<compile_context>
chip_gen: v7x
topology: tpu7x:2x2x1
jax: 0.10.0
libtpu: 0.0.40
codegen_flags: <defaults>
</compile_context>

<pallas_src>
import math
import numpy as np
import jax
import jax.numpy as jnp
from jax.experimental import pallas as pl
from jax.experimental.pallas import tpu as pltpu

NEG_SLOPE = 0.2            # nn.LeakyReLU(0.2)
EPS = 1e-5                 # nn.InstanceNorm3d default eps
MXU_DTYPE = jnp.bfloat16   # bf16 MXU on all generations; accumulation stays f32


def _round_up(v, m):
    return ((v + m - 1) // m) * m


def _leaky(v):
    return jnp.where(v > 0, v, NEG_SLOPE * v)


def _make_resblk_kernel(D, H, W, cin, cout, cpad, rows, normalize, downsample,
                        learned_sc, pad):
    S = D * H * W
    HW = H * W
    inv_sqrt2 = 1.0 / math.sqrt(2.0)
    taps = [(kd - 1, kh - 1, kw - 1)
            for kd in range(3) for kh in range(3) for kw in range(3)]

    def kernel(*refs):
        it = iter(refs)
        x_ref = next(it)                           # (cin, S)  f32
        meta_ref = next(it)                        # (3, S)    int32: h, w, is_corner
        w1_ref = next(it); b1_ref = next(it)       # (cin, 27*cpad) bf16, (cin, 1) f32
        w2_ref = next(it); b2_ref = next(it)       # (cout, 27*cpad) bf16, (cout, 1) f32
        if normalize:
            g1_ref = next(it); be1_ref = next(it)
            g2_ref = next(it); be2_ref = next(it)
        if learned_sc:
            wsc_ref = next(it)                     # (cout, cin) bf16
        o_ref = next(it)                           # (cout, S) f32
        halo_ref = next(it)                        # (rows, pad + S + pad) f32
        im_ref = next(it)                          # (27*cpad, S) bf16

        width = pad + S + pad
        # Only the halo columns and the zero-padded channel rows ever need to be
        # zero; the interior [pad:pad+S] of the live rows is fully rewritten before
        # every use (robust under megacore splitting / uninitialized scratch).
        halo_ref[:, 0:pad] = jnp.zeros((rows, pad), jnp.float32)
        halo_ref[:, pad + S:width] = jnp.zeros((rows, pad), jnp.float32)
        if cpad > cin:
            halo_ref[cin:cpad, :] = jnp.zeros((cpad - cin, width), jnp.float32)

        h_idx = meta_ref[0:1, :]
        w_idx = meta_ref[1:2, :]

        def conv3x3x3(v, w_ref_, b_ref_, step):
            """3x3x3 'same' conv as ONE MXU matmul (K = 27*cpad).
            The d-axis boundary is absorbed by the zero halo (pad >= H*W*step),
            so only h/w boundaries need masks; those are hoisted out of the
            27-tap loop (4 compares + 4 ands per conv)."""
            halo_ref[0:cin, pad:pad + S] = v
            h_ok = {-1: h_idx >= step, 0: None, 1: h_idx < (H - step)}
            w_ok = {-1: w_idx >= step, 0: None, 1: w_idx < (W - step)}
            masks = {}
            for dh in (-1, 0, 1):
                for dw in (-1, 0, 1):
                    conds = [c for c in (h_ok[dh], w_ok[dw]) if c is not None]
                    if not conds:
                        masks[(dh, dw)] = None
                    elif len(conds) == 1:
                        masks[(dh, dw)] = conds[0]
                    else:
                        masks[(dh, dw)] = conds[0] & conds[1]
            for t, (dd, dh, dw) in enumerate(taps):
                delta = (dd * HW + dh * W + dw) * step
                win = halo_ref[0:cpad, pad + delta:pad + delta + S]
                m = masks[(dh, dw)]
                if m is not None:
                    win = jnp.where(m, win, 0.0)
                # cpad is a full sublane tile of the MXU dtype -> unmasked store
                im_ref[t * cpad:(t + 1) * cpad, :] = win.astype(im_ref.dtype)
            out = jnp.dot(w_ref_[...], im_ref[...],
                          preferred_element_type=jnp.float32)
            return out + b_ref_[...]

        def pool222(v, c):
            """avg_pool3d(kernel=2, stride=2): one halo store + 7 shifted reads
            (2x2x2 box sum); values are valid at the corner lanes (even d,h,w)."""
            halo_ref[0:c, pad:pad + S] = v
            acc = v
            for off in (1, W, W + 1, HW, HW + 1, HW + W, HW + W + 1):
                acc = acc + halo_ref[0:c, pad + off:pad + off + S]
            return acc * 0.125

        # ----------------- residual branch -----------------
        h = x_ref[...].astype(jnp.float32)
        if normalize:
            mu = jnp.mean(h, axis=1, keepdims=True)
            var = jnp.mean((h - mu) ** 2, axis=1, keepdims=True)
            h = (h - mu) * jax.lax.rsqrt(var + EPS) * g1_ref[...] + be1_ref[...]
        h = _leaky(h)
        h = conv3x3x3(h, w1_ref, b1_ref, 1)                     # (cin, S)

        step2 = 1
        if downsample:
            h = pool222(h, cin)                                 # corner-valid
            step2 = 2
        if normalize:
            if downsample:
                cmask = (meta_ref[2:3, :] == 1).astype(jnp.float32)   # (1, S)
                cnt = float(S // 8)
                mu = jnp.sum(h * cmask, axis=1, keepdims=True) / cnt
                var = jnp.sum(((h - mu) ** 2) * cmask, axis=1, keepdims=True) / cnt
            else:
                mu = jnp.mean(h, axis=1, keepdims=True)
                var = jnp.mean((h - mu) ** 2, axis=1, keepdims=True)
            h = (h - mu) * jax.lax.rsqrt(var + EPS) * g2_ref[...] + be2_ref[...]
        h = _leaky(h)
        r = conv3x3x3(h, w2_ref, b2_ref, step2)                 # (cout, S)

        # ------------- shortcut branch (re-read x: keeps vreg pressure low) -------------
        if learned_sc:
            s = jnp.dot(wsc_ref[...], x_ref[...].astype(MXU_DTYPE),
                        preferred_element_type=jnp.float32)     # (cout, S)
        else:
            s = x_ref[...].astype(jnp.float32)
        if downsample:
            s = pool222(s, cout)

        o_ref[...] = ((s + r) * inv_sqrt2).astype(o_ref.dtype)

    return kernel


def resblk_forward(x_ncdhw, params, *, normalize, downsample):
    N, cin, D, H, W = x_ncdhw.shape
    cout = params["w2"].shape[-1]
    learned_sc = cin != cout
    if downsample:
        assert D % 2 == 0 and H % 2 == 0 and W % 2 == 0, "avg_pool3d(2) needs even dims"
    S = D * H * W

    # lane-shift halo: largest tap / pool offset is (H*W + W + 1) * step; rounded to a
    # multiple of 128 so interior stores stay lane-aligned.  pad >= H*W*step is also
    # what lets the kernel drop the d-axis boundary masks.
    step_max = 2 if downsample else 1
    pad = _round_up((H * W + W + 1) * step_max, 128)

    # Channel blocks padded to a full sublane tile of the MXU dtype so every im2col
    # row-block store is a full, unmasked tile store (weights zero-padded in K).
    sub = 8 * (4 // jnp.dtype(MXU_DTYPE).itemsize)          # 8 for f32, 16 for bf16
    cpad = _round_up(cin, sub)
    rows = max(cpad, _round_up(cout, 8))                    # halo sublane rows

    # NCDHW flattens directly into the kernel's lane-dense (C, D*H*W) layout.
    x = x_ncdhw.reshape(N, cin, S).astype(jnp.float32)

    # Per-lane h/w coordinates (conv boundary masks) + 2x2x2-corner flag (post-pool
    # instance-norm statistics), precomputed host-side.
    d_np, h_np, w_np = np.meshgrid(np.arange(D), np.arange(H), np.arange(W),
                                   indexing="ij")
    corner = ((d_np % 2 == 0) & (h_np % 2 == 0) & (w_np % 2 == 0))
    meta = np.stack([h_np.reshape(-1), w_np.reshape(-1),
                     corner.reshape(-1).astype(np.int64)]).astype(np.int32)   # (3, S)
    meta = jnp.asarray(meta)

    # Conv weights pre-reshaped + zero-padded on the input-channel axis (one K=27*cpad
    # contraction per conv) and pre-cast to the MXU dtype.
    def conv_weight(w):                                    # (3,3,3,cin,co) DHWIO
        co = w.shape[-1]
        wt = w.reshape(27, cin, co)
        wt = jnp.pad(wt, ((0, 0), (0, cpad - cin), (0, 0)))
        return wt.reshape(27 * cpad, co).T.astype(MXU_DTYPE)   # (co, 27*cpad)

    w1_mat = conv_weight(params["w1"])
    w2_mat = conv_weight(params["w2"])

    inputs = [x, meta,
              w1_mat, params["b1"].reshape(cin, 1).astype(jnp.float32),
              w2_mat, params["b2"].reshape(cout, 1).astype(jnp.float32)]
    in_specs = [
        pl.BlockSpec((None, cin, S), lambda n: (n, 0, 0)),
        pl.BlockSpec((3, S), lambda n: (0, 0)),
        pl.BlockSpec((cin, 27 * cpad), lambda n: (0, 0)),
        pl.BlockSpec((cin, 1), lambda n: (0, 0)),
        pl.BlockSpec((cout, 27 * cpad), lambda n: (0, 0)),
        pl.BlockSpec((cout, 1), lambda n: (0, 0)),
    ]
    if normalize:
        for name in ("g1", "be1", "g2", "be2"):
            inputs.append(params[name].reshape(cin, 1).astype(jnp.float32))
            in_specs.append(pl.BlockSpec((cin, 1), lambda n: (0, 0)))
    if learned_sc:
        inputs.append(params["wsc"].T.astype(MXU_DTYPE))       # (cout, cin)
        in_specs.append(pl.BlockSpec((cout, cin), lambda n: (0, 0)))

    kernel = _make_resblk_kernel(D, H, W, cin, cout, cpad, rows,
                                 normalize, downsample, learned_sc, pad)

    # VMEM budget: actual working set (scratch + double-buffered I/O + params),
    # clamped to the chip's physical capacity (64 MiB/TC on v7x, 128 MiB on v5e/v6e).
    itemsz = jnp.dtype(MXU_DTYPE).itemsize
    scratch_bytes = rows * (pad + S + pad) * 4 + 27 * cpad * S * itemsz
    io_bytes = 2 * (cin + cout) * S * 4
    param_bytes = 27 * cpad * (cin + cout) * itemsz + (3 * S * 4) + 64 * 1024
    need = scratch_bytes + io_bytes + param_bytes + (8 << 20)
    try:
        vmem_cap = int(getattr(pltpu.get_tpu_info(), "vmem_capacity_bytes",
                               64 * 1024 * 1024))
    except Exception:
        vmem_cap = 64 * 1024 * 1024
    vmem_limit = int(min(max(need, 32 << 20), int(0.9 * vmem_cap)))

    out_flat = pl.pallas_call(
        kernel,
        out_shape=jax.ShapeDtypeStruct((N, cout, S), jnp.float32),
        grid_spec=pltpu.PrefetchScalarGridSpec(
            num_scalar_prefetch=0,
            grid=(N,),                                    # one batch element per step
            in_specs=in_specs,
            out_specs=pl.BlockSpec((None, cout, S), lambda n: (n, 0, 0)),
            scratch_shapes=[
                pltpu.VMEM((rows, pad + S + pad), jnp.float32),  # zero-haloed activations
                pltpu.VMEM((27 * cpad, S), MXU_DTYPE),           # bf16 im2col (both convs)
            ]),
        compiler_params=pltpu.CompilerParams(
            dimension_semantics=("parallel",),
            vmem_limit_bytes=vmem_limit),
    )(*inputs)

    out = out_flat.reshape(N, cout, D, H, W)
    if downsample:
        # Downsampled results live at the even (d, h, w) voxels; compact with a tiny
        # strided slice in XLA instead of a lane gather inside the kernel.
        out = out[:, :, ::2, ::2, ::2]
    return out


# ------------------------- pure-JAX reference (for verification) -------------------------
def resblk_reference(x_ncdhw, params, *, normalize, downsample):
    x = jnp.transpose(x_ncdhw, (0, 2, 3, 4, 1)).astype(jnp.float32)
    cin = x.shape[-1]
    cout = params["w2"].shape[-1]
    learned_sc = cin != cout

    def inorm(v, g, b):
        mu = jnp.mean(v, axis=(1, 2, 3), keepdims=True)
        var = jnp.mean((v - mu) ** 2, axis=(1, 2, 3), keepdims=True)
        return (v - mu) / jnp.sqrt(var + EPS) * g + b

    def conv3(v, w, b):
        y = jax.lax.conv_general_dilated(
            v, w, window_strides=(1, 1, 1), padding="SAME",
            dimension_numbers=("NDHWC", "DHWIO", "NDHWC"))
        return y + b

    def pool(v):
        n, d, h, w, c = v.shape
        return v.reshape(n, d // 2, 2, h // 2, 2, w // 2, 2, c).mean(axis=(2, 4, 6))

    h = x
    if normalize:
        h = inorm(h, params["g1"], params["be1"])
    h = _leaky(h)
    h = conv3(h, params["w1"], params["b1"])
    if downsample:
        h = pool(h)
    if normalize:
        h = inorm(h, params["g2"], params["be2"])
    h = _leaky(h)
    h = conv3(h, params["w2"], params["b2"])

    s = x
    if learned_sc:
        s = jnp.einsum("ndhwi,io->ndhwo", s, params["wsc"])
    if downsample:
        s = pool(s)

    out = (s + h) / math.sqrt(2.0)
    return jnp.transpose(out, (0, 4, 1, 2, 3))


def _make_params(key, cin, cout, normalize):
    k = jax.random.split(key, 10)
    fan = 1.0 / math.sqrt(cin * 27)
    params = {
        "w1": jax.random.normal(k[0], (3, 3, 3, cin, cin), jnp.float32) * fan,   # DHWIO
        "b1": jax.random.normal(k[1], (cin,), jnp.float32) * 0.1,
        "w2": jax.random.normal(k[2], (3, 3, 3, cin, cout), jnp.float32) * fan,  # DHWIO
        "b2": jax.random.normal(k[3], (cout,), jnp.float32) * 0.1,
    }
    if normalize:
        params.update({
            "g1": 1.0 + 0.1 * jax.random.normal(k[4], (cin,), jnp.float32),
            "be1": 0.1 * jax.random.normal(k[5], (cin,), jnp.float32),
            "g2": 1.0 + 0.1 * jax.random.normal(k[6], (cin,), jnp.float32),
            "be2": 0.1 * jax.random.normal(k[7], (cin,), jnp.float32),
        })
    if cin != cout:
        params["wsc"] = (jax.random.normal(k[8], (cin, cout), jnp.float32)
                         / math.sqrt(cin))
    return params, k[9]


def _run_case(key, *, N, cin, cout, D, H, W, normalize, downsample,
              atol=3e-2, rtol=3e-2):
    params, kx = _make_params(key, cin, cout, normalize)
    x = jax.random.normal(kx, (N, cin, D, H, W), jnp.float32)     # NCDHW, like PyTorch
    out = resblk_forward(x, params, normalize=normalize, downsample=downsample)
    out = jax.block_until_ready(out)
    D2, H2, W2 = (D // 2, H // 2, W // 2) if downsample else (D, H, W)
    assert out.shape == (N, cout, D2, H2, W2), out.shape
    ref = resblk_reference(x, params, normalize=normalize, downsample=downsample)
    err = float(jnp.max(jnp.abs(out - ref)))
    if not bool(jnp.allclose(out, ref, atol=atol, rtol=rtol)):
        raise AssertionError(
            f"mismatch vs f32 JAX reference (max abs err {err}, bf16 MXU path) for "
            f"normalize={normalize} downsample={downsample} cin={cin} cout={cout}")
    return err


if __name__ == "__main__":
    key = jax.random.PRNGKey(0)
    k1, k2 = jax.random.split(key)
    # ResBlk(4, 8, normalize=True, downsample=True): exercises every branch.
    _run_case(k1, N=2, cin=4, cout=8, D=8, H=8, W=8,
              normalize=True, downsample=True)
    # ResBlk(8, 8, normalize=False, downsample=False): plain residual path.
    _run_case(k2, N=1, cin=8, cout=8, D=8, H=8, W=8,
              normalize=False, downsample=False)
    print("KERNEL_OK")
</pallas_src>

<mosaic_0001>
module attributes {stable_mosaic.version = 11 : i64} {
  func.func @kernel(%arg0: i32, %arg1: memref<1x4x512xf32, #tpu.memory_space<vmem>>, %arg2: memref<3x512xi32, #tpu.memory_space<vmem>>, %arg3: memref<4x432xbf16, #tpu.memory_space<vmem>>, %arg4: memref<4x1xf32, #tpu.memory_space<vmem>>, %arg5: memref<8x432xbf16, #tpu.memory_space<vmem>>, %arg6: memref<8x1xf32, #tpu.memory_space<vmem>>, %arg7: memref<4x1xf32, #tpu.memory_space<vmem>>, %arg8: memref<4x1xf32, #tpu.memory_space<vmem>>, %arg9: memref<4x1xf32, #tpu.memory_space<vmem>>, %arg10: memref<4x1xf32, #tpu.memory_space<vmem>>, %arg11: memref<8x4xbf16, #tpu.memory_space<vmem>>, %arg12: memref<1x8x512xf32, #tpu.memory_space<vmem>>, %arg13: memref<16x1024xf32, #tpu.memory_space<vmem>>, %arg14: memref<432x512xbf16, #tpu.memory_space<vmem>>) attributes {dimension_semantics = [#tpu.dimension_semantics<parallel>], iteration_bounds = array<i64: 2>, scalar_prefetch = 0 : i64, scratch_operands = 2 : i64, tpu.core_type = #tpu.core_type<tc>, window_params = [{transform_indices = @transform_0, window_bounds = array<i64: 1, 4, 512>}, {pipeline_mode = #tpu.pipeline_mode<synchronous>, transform_indices = @transform_1, window_bounds = array<i64: 3, 512>}, {pipeline_mode = #tpu.pipeline_mode<synchronous>, transform_indices = @transform_2, window_bounds = array<i64: 4, 432>}, {pipeline_mode = #tpu.pipeline_mode<synchronous>, transform_indices = @transform_3, window_bounds = array<i64: 4, 1>}, {pipeline_mode = #tpu.pipeline_mode<synchronous>, transform_indices = @transform_4, window_bounds = array<i64: 8, 432>}, {pipeline_mode = #tpu.pipeline_mode<synchronous>, transform_indices = @transform_5, window_bounds = array<i64: 8, 1>}, {pipeline_mode = #tpu.pipeline_mode<synchronous>, transform_indices = @transform_6, window_bounds = array<i64: 4, 1>}, {pipeline_mode = #tpu.pipeline_mode<synchronous>, transform_indices = @transform_7, window_bounds = array<i64: 4, 1>}, {pipeline_mode = #tpu.pipeline_mode<synchronous>, transform_indices = @transform_8, window_bounds = array<i64: 4, 1>}, {pipeline_mode = #tpu.pipeline_mode<synchronous>, transform_indices = @transform_9, window_bounds = array<i64: 4, 1>}, {pipeline_mode = #tpu.pipeline_mode<synchronous>, transform_indices = @transform_10, window_bounds = array<i64: 8, 4>}, {transform_indices = @transform_11, window_bounds = array<i64: 1, 8, 512>}]} {
    %cst = arith.constant 0.000000e+00 : f32
    %0 = vector.broadcast %cst : f32 to vector<16x256xf32>
    %c0 = arith.constant 0 : index
    %c0_0 = arith.constant 0 : index
    %1 = vector.load %arg13[%c0, %c0_0] : memref<16x1024xf32, #tpu.memory_space<vmem>>, vector<16x256xf32>
    tpu.vector_store %arg13[%c0, %c0_0], %0 {strides = array<i32>} : memref<16x1024xf32, #tpu.memory_space<vmem>>, vector<16x256xf32>,
    %cst_1 = arith.constant 0.000000e+00 : f32
    %2 = vector.broadcast %cst_1 : f32 to vector<16x256xf32>
    %c0_2 = arith.constant 0 : index
    %c768 = arith.constant 768 : index
    %3 = vector.load %arg13[%c0_2, %c768] : memref<16x1024xf32, #tpu.memory_space<vmem>>, vector<16x256xf32>
    tpu.vector_store %arg13[%c0_2, %c768], %2 {strides = array<i32>} : memref<16x1024xf32, #tpu.memory_space<vmem>>, vector<16x256xf32>,
    %cst_3 = arith.constant 0.000000e+00 : f32
    %4 = vector.broadcast %cst_3 : f32 to vector<12x1024xf32>
    %c4 = arith.constant 4 : index
    %c0_4 = arith.constant 0 : index
    %5 = vector.load %arg13[%c4, %c0_4] : memref<16x1024xf32, #tpu.memory_space<vmem>>, vector<12x1024xf32>
    tpu.vector_store %arg13[%c4, %c0_4], %4 {strides = array<i32>} : memref<16x1024xf32, #tpu.memory_space<vmem>>, vector<12x1024xf32>,
    %c0_5 = arith.constant 0 : index
    %c0_6 = arith.constant 0 : index
    %6 = vector.load %arg2[%c0_5, %c0_6] : memref<3x512xi32, #tpu.memory_space<vmem>>, vector<1x512xi32>
    %c1 = arith.constant 1 : index
    %c0_7 = arith.constant 0 : index
    %7 = vector.load %arg2[%c1, %c0_7] : memref<3x512xi32, #tpu.memory_space<vmem>>, vector<1x512xi32>
    %c0_8 = arith.constant 0 : index
    %c0_9 = arith.constant 0 : index
    %c0_10 = arith.constant 0 : index
    %8 = vector.load %arg1[%c0_8, %c0_9, %c0_10] : memref<1x4x512xf32, #tpu.memory_space<vmem>>, vector<1x4x512xf32>
    %9 = vector.shape_cast %8 : vector<1x4x512xf32> to vector<4x512xf32>
    %cst_11 = arith.constant dense<0.000000e+00> : vector<4xf32>
    %10 = vector.multi_reduction <add>, %9, %cst_11 [1] : vector<4x512xf32> to vector<4xf32>
    %11 = vector.shape_cast %10 : vector<4xf32> to vector<4x1xf32>
    %cst_12 = arith.constant 5.120000e+02 : f32
    %12 = vector.broadcast %cst_12 : f32 to vector<4x1xf32>
    %13 = arith.divf %11, %12 : vector<4x1xf32>
    %14 = vector.broadcast %13 : vector<4x1xf32> to vector<4x512xf32>
    %15 = arith.subf %9, %14 : vector<4x512xf32>
    %16 = arith.mulf %15, %15 : vector<4x512xf32>
    %cst_13 = arith.constant dense<0.000000e+00> : vector<4xf32>
    %17 = vector.multi_reduction <add>, %16, %cst_13 [1] : vector<4x512xf32> to vector<4xf32>
    %18 = vector.shape_cast %17 : vector<4xf32> to vector<4x1xf32>
    %cst_14 = arith.constant 5.120000e+02 : f32
    %19 = vector.broadcast %cst_14 : f32 to vector<4x1xf32>
    %20 = arith.divf %18, %19 : vector<4x1xf32>
    %21 = vector.broadcast %13 : vector<4x1xf32> to vector<4x512xf32>
    %22 = arith.subf %9, %21 : vector<4x512xf32>
    %cst_15 = arith.constant 9.99999974E-6 : f32
    %23 = vector.broadcast %cst_15 : f32 to vector<4x1xf32>
    %24 = arith.addf %20, %23 : vector<4x1xf32>
    %25 = math.rsqrt %24 : vector<4x1xf32>
    %26 = vector.broadcast %25 : vector<4x1xf32> to vector<4x512xf32>
    %27 = arith.mulf %22, %26 : vector<4x512xf32>
    %c0_16 = arith.constant 0 : index
    %c0_17 = arith.constant 0 : index
    %28 = vector.load %arg7[%c0_16, %c0_17] : memref<4x1xf32, #tpu.memory_space<vmem>>, vector<4x1xf32>
    %29 = vector.broadcast %28 : vector<4x1xf32> to vector<4x512xf32>
    %30 = arith.mulf %27, %29 : vector<4x512xf32>
    %c0_18 = arith.constant 0 : index
    %c0_19 = arith.constant 0 : index
    %31 = vector.load %arg8[%c0_18, %c0_19] : memref<4x1xf32, #tpu.memory_space<vmem>>, vector<4x1xf32>
    %32 = vector.broadcast %31 : vector<4x1xf32> to vector<4x512xf32>
    %33 = arith.addf %30, %32 : vector<4x512xf32>
    %cst_20 = arith.constant 0.000000e+00 : f32
    %34 = vector.broadcast %cst_20 : f32 to vector<4x512xf32>
    %35 = arith.cmpf ogt, %33, %34 : vector<4x512xf32>
    %cst_21 = arith.constant 2.000000e-01 : f32
    %36 = vector.broadcast %cst_21 : f32 to vector<4x512xf32>
    %37 = arith.mulf %36, %33 : vector<4x512xf32>
    %38 = arith.select %35, %33, %37 : vector<4x512xi1>, vector<4x512xf32>
    %c0_22 = arith.constant 0 : index
    %c256 = arith.constant 256 : index
    %39 = vector.load %arg13[%c0_22, %c256] : memref<16x1024xf32, #tpu.memory_space<vmem>>, vector<4x512xf32>
    tpu.vector_store %arg13[%c0_22, %c256], %38 {strides = array<i32>} : memref<16x1024xf32, #tpu.memory_space<vmem>>, vector<4x512xf32>,
    %c1_i32 = arith.constant 1 : i32
    %40 = vector.broadcast %c1_i32 : i32 to vector<1x512xi32>
    %41 = arith.cmpi sge, %6, %40 : vector<1x512xi32>
    %c7_i32 = arith.constant 7 : i32
    %42 = vector.broadcast %c7_i32 : i32 to vector<1x512xi32>
    %43 = arith.cmpi slt, %6, %42 : vector<1x512xi32>
    %c1_i32_23 = arith.constant 1 : i32
    %44 = vector.broadcast %c1_i32_23 : i32 to vector<1x512xi32>
    %45 = arith.cmpi sge, %7, %44 : vector<1x512xi32>
    %c7_i32_24 = arith.constant 7 : i32
    %46 = vector.broadcast %c7_i32_24 : i32 to vector<1x512xi32>
    %47 = arith.cmpi slt, %7, %46 : vector<1x512xi32>
    %48 = arith.andi %41, %45 : vector<1x512xi1>
    %49 = arith.andi %41, %47 : vector<1x512xi1>
    %50 = arith.andi %43, %45 : vector<1x512xi1>
    %51 = arith.andi %43, %47 : vector<1x512xi1>
    %c0_25 = arith.constant 0 : index
    %c183 = arith.constant 183 : index
    %52 = vector.load %arg13[%c0_25, %c183] : memref<16x1024xf32, #tpu.memory_space<vmem>>, vector<16x512xf32>
    %cst_26 = arith.constant 0.000000e+00 : f32
    %53 = vector.shape_cast %48 : vector<1x512xi1> to vector<1x512xi1>
    %54 = vector.broadcast %53 : vector<1x512xi1> to vector<16x512xi1>
    %55 = vector.broadcast %cst_26 : f32 to vector<16x512xf32>
    %56 = arith.select %54, %52, %55 : vector<16x512xi1>, vector<16x512xf32>
    %57 = arith.truncf %56 : vector<16x512xf32> to vector<16x512xbf16>
    %c0_27 = arith.constant 0 : index
    %c0_28 = arith.constant 0 : index
    %58 = vector.load %arg14[%c0_27, %c0_28] : memref<432x512xbf16, #tpu.memory_space<vmem>>, vector<16x512xbf16>
    tpu.vector_store %arg14[%c0_27, %c0_28], %57 {strides = array<i32>} : memref<432x512xbf16, #tpu.memory_space<vmem>>, vector<16x512xbf16>,
    %c0_29 = arith.constant 0 : index
    %c184 = arith.constant 184 : index
    %59 = vector.load %arg13[%c0_29, %c184] : memref<16x1024xf32, #tpu.memory_space<vmem>>, vector<16x512xf32>
    %cst_30 = arith.constant 0.000000e+00 : f32
    %60 = vector.shape_cast %41 : vector<1x512xi1> to vector<1x512xi1>
    %61 = vector.broadcast %60 : vector<1x512xi1> to vector<16x512xi1>
    %62 = vector.broadcast %cst_30 : f32 to vector<16x512xf32>
    %63 = arith.select %61, %59, %62 : vector<16x512xi1>, vector<16x512xf32>
    %64 = arith.truncf %63 : vector<16x512xf32> to vector<16x512xbf16>
    %c16 = arith.constant 16 : index
    %c0_31 = arith.constant 0 : index
    %65 = vector.load %arg14[%c16, %c0_31] : memref<432x512xbf16, #tpu.memory_space<vmem>>, vector<16x512xbf16>
    tpu.vector_store %arg14[%c16, %c0_31], %64 {strides = array<i32>} : memref<432x512xbf16, #tpu.memory_space<vmem>>, vector<16x512xbf16>,
    %c0_32 = arith.constant 0 : index
    %c185 = arith.constant 185 : index
    %66 = vector.load %arg13[%c0_32, %c185] : memref<16x1024xf32, #tpu.memory_space<vmem>>, vector<16x512xf32>
    %cst_33 = arith.constant 0.000000e+00 : f32
    %67 = vector.shape_cast %49 : vector<1x512xi1> to vector<1x512xi1>
    %68 = vector.broadcast %67 : vector<1x512xi1> to vector<16x512xi1>
    %69 = vector.broadcast %cst_33 : f32 to vector<16x512xf32>
    %70 = arith.select %68, %66, %69 : vector<16x512xi1>, vector<16x512xf32>
    %71 = arith.truncf %70 : vector<16x512xf32> to vector<16x512xbf16>
    %c32 = arith.constant 32 : index
    %c0_34 = arith.constant 0 : index
    %72 = vector.load %arg14[%c32, %c0_34] : memref<432x512xbf16, #tpu.memory_space<vmem>>, vector<16x512xbf16>
    tpu.vector_store %arg14[%c32, %c0_34], %71 {strides = array<i32>} : memref<432x512xbf16, #tpu.memory_space<vmem>>, vector<16x512xbf16>,
    %c0_35 = arith.constant 0 : index
    %c191 = arith.constant 191 : index
    %73 = vector.load %arg13[%c0_35, %c191] : memref<16x1024xf32, #tpu.memory_space<vmem>>, vector<16x512xf32>
    %cst_36 = arith.constant 0.000000e+00 : f32
    %74 = vector.shape_cast %45 : vector<1x512xi1> to vector<1x512xi1>
    %75 = vector.broadcast %74 : vector<1x512xi1> to vector<16x512xi1>
    %76 = vector.broadcast %cst_36 : f32 to vector<16x512xf32>
    %77 = arith.select %75, %73, %76 : vector<16x512xi1>, vector<16x512xf32>
    %78 = arith.truncf %77 : vector<16x512xf32> to vector<16x512xbf16>
    %c48 = arith.constant 48 : index
    %c0_37 = arith.constant 0 : index
    %79 = vector.load %arg14[%c48, %c0_37] : memref<432x512xbf16, #tpu.memory_space<vmem>>, vector<16x512xbf16>
    tpu.vector_store %arg14[%c48, %c0_37], %78 {strides = array<i32>} : memref<432x512xbf16, #tpu.memory_space<vmem>>, vector<16x512xbf16>,
    %c0_38 = arith.constant 0 : index
    %c192 = arith.constant 192 : index
    %80 = vector.load %arg13[%c0_38, %c192] : memref<16x1024xf32, #tpu.memory_space<vmem>>, vector<16x512xf32>
    %81 = arith.truncf %80 : vector<16x512xf32> to vector<16x512xbf16>
    %c64 = arith.constant 64 : index
    %c0_39 = arith.constant 0 : index
    %82 = vector.load %arg14[%c64, %c0_39] : memref<432x512xbf16, #tpu.memory_space<vmem>>, vector<16x512xbf16>
    tpu.vector_store %arg14[%c64, %c0_39], %81 {strides = array<i32>} : memref<432x512xbf16, #tpu.memory_space<vmem>>, vector<16x512xbf16>,
    %c0_40 = arith.constant 0 : index
    %c193 = arith.constant 193 : index
    %83 = vector.load %arg13[%c0_40, %c193] : memref<16x1024xf32, #tpu.memory_space<vmem>>, vector<16x512xf32>
    %cst_41 = arith.constant 0.000000e+00 : f32
    %84 = vector.shape_cast %47 : vector<1x512xi1> to vector<1x512xi1>
    %85 = vector.broadcast %84 : vector<1x512xi1> to vector<16x512xi1>
    %86 = vector.broadcast %cst_41 : f32 to vector<16x512xf32>
    %87 = arith.select %85, %83, %86 : vector<16x512xi1>, vector<16x512xf32>
    %88 = arith.truncf %87 : vector<16x512xf32> to vector<16x512xbf16>
    %c80 = arith.constant 80 : index
    %c0_42 = arith.constant 0 : index
    %89 = vector.load %arg14[%c80, %c0_42] : memref<432x512xbf16, #tpu.memory_space<vmem>>, vector<16x512xbf16>
    tpu.vector_store %arg14[%c80, %c0_42], %88 {strides = array<i32>} : memref<432x512xbf16, #tpu.memory_space<vmem>>, vector<16x512xbf16>,
    %c0_43 = arith.constant 0 : index
    %c199 = arith.constant 199 : index
    %90 = vector.load %arg13[%c0_43, %c199] : memref<16x1024xf32, #tpu.memory_space<vmem>>, vector<16x512xf32>
    %cst_44 = arith.constant 0.000000e+00 : f32
    %91 = vector.shape_cast %50 : vector<1x512xi1> to vector<1x512xi1>
    %92 = vector.broadcast %91 : vector<1x512xi1> to vector<16x512xi1>
    %93 = vector.broadcast %cst_44 : f32 to vector<16x512xf32>
    %94 = arith.select %92, %90, %93 : vector<16x512xi1>, vector<16x512xf32>
    %95 = arith.truncf %94 : vector<16x512xf32> to vector<16x512xbf16>
    %c96 = arith.constant 96 : index
    %c0_45 = arith.constant 0 : index
    %96 = vector.load %arg14[%c96, %c0_45] : memref<432x512xbf16, #tpu.memory_space<vmem>>, vector<16x512xbf16>
    tpu.vector_store %arg14[%c96, %c0_45], %95 {strides = array<i32>} : memref<432x512xbf16, #tpu.memory_space<vmem>>, vector<16x512xbf16>,
    %c0_46 = arith.constant 0 : index
    %c200 = arith.constant 200 : index
    %97 = vector.load %arg13[%c0_46, %c200] : memref<16x1024xf32, #tpu.memory_space<vmem>>, vector<16x512xf32>
    %cst_47 = arith.constant 0.000000e+00 : f32
    %98 = vector.shape_cast %43 : vector<1x512xi1> to vector<1x512xi1>
    %99 = vector.broadcast %98 : vector<1x512xi1> to vector<16x512xi1>
    %100 = vector.broadcast %cst_47 : f32 to vector<16x512xf32>
    %101 = arith.select %99, %97, %100 : vector<16x512xi1>, vector<16x512xf32>
    %102 = arith.truncf %101 : vector<16x512xf32> to vector<16x512xbf16>
    %c112 = arith.constant 112 : index
    %c0_48 = arith.constant 0 : index
    %103 = vector.load %arg14[%c112, %c0_48] : memref<432x512xbf16, #tpu.memory_space<vmem>>, vector<16x512xbf16>
    tpu.vector_store %arg14[%c112, %c0_48], %102 {strides = array<i32>} : memref<432x512xbf16, #tpu.memory_space<vmem>>, vector<16x512xbf16>,
    %c0_49 = arith.constant 0 : index
    %c201 = arith.constant 201 : index
    %104 = vector.load %arg13[%c0_49, %c201] : memref<16x1024xf32, #tpu.memory_space<vmem>>, vector<16x512xf32>
    %cst_50 = arith.constant 0.000000e+00 : f32
    %105 = vector.shape_cast %51 : vector<1x512xi1> to vector<1x512xi1>
    %106 = vector.broadcast %105 : vector<1x512xi1> to vector<16x512xi1>
    %107 = vector.broadcast %cst_50 : f32 to vector<16x512xf32>
    %108 = arith.select %106, %104, %107 : vector<16x512xi1>, vector<16x512xf32>
    %109 = arith.truncf %108 : vector<16x512xf32> to vector<16x512xbf16>
    %c128 = arith.constant 128 : index
    %c0_51 = arith.constant 0 : index
    %110 = vector.load %arg14[%c128, %c0_51] : memref<432x512xbf16, #tpu.memory_space<vmem>>, vector<16x512xbf16>
    tpu.vector_store %arg14[%c128, %c0_51], %109 {strides = array<i32>} : memref<432x512xbf16, #tpu.memory_space<vmem>>, vector<16x512xbf16>,
    %c0_52 = arith.constant 0 : index
    %c247 = arith.constant 247 : index
    %111 = vector.load %arg13[%c0_52, %c247] : memref<16x1024xf32, #tpu.memory_space<vmem>>, vector<16x512xf32>
    %cst_53 = arith.constant 0.000000e+00 : f32
    %112 = vector.shape_cast %48 : vector<1x512xi1> to vector<1x512xi1>
    %113 = vector.broadcast %112 : vector<1x512xi1> to vector<16x512xi1>
    %114 = vector.broadcast %cst_53 : f32 to vector<16x512xf32>
    %115 = arith.select %113, %111, %114 : vector<16x512xi1>, vector<16x512xf32>
    %116 = arith.truncf %115 : vector<16x512xf32> to vector<16x512xbf16>
    %c144 = arith.constant 144 : index
    %c0_54 = arith.constant 0 : index
    %117 = vector.load %arg14[%c144, %c0_54] : memref<432x512xbf16, #tpu.memory_space<vmem>>, vector<16x512xbf16>
    tpu.vector_store %arg14[%c144, %c0_54], %116 {strides = array<i32>} : memref<432x512xbf16, #tpu.memory_space<vmem>>, vector<16x512xbf16>,
    %c0_55 = arith.constant 0 : index
    %c248 = arith.constant 248 : index
    %118 = vector.load %arg13[%c0_55, %c248] : memref<16x1024xf32, #tpu.memory_space<vmem>>, vector<16x512xf32>
    %cst_56 = arith.constant 0.000000e+00 : f32
    %119 = vector.shape_cast %41 : vector<1x512xi1> to vector<1x512xi1>
    %120 = vector.broadcast %119 : vector<1x512xi1> to vector<16x512xi1>
    %121 = vector.broadcast %cst_56 : f32 to vector<16x512xf32>
    %122 = arith.select %120, %118, %121 : vector<16x512xi1>, vector<16x512xf32>
    %123 = arith.truncf %122 : vector<16x512xf32> to vector<16x512xbf16>
    %c160 = arith.constant 160 : index
    %c0_57 = arith.constant 0 : index
    %124 = vector.load %arg14[%c160, %c0_57] : memref<432x512xbf16, #tpu.memory_space<vmem>>, vector<16x512xbf16>
    tpu.vector_store %arg14[%c160, %c0_57], %123 {strides = array<i32>} : memref<432x512xbf16, #tpu.memory_space<vmem>>, vector<16x512xbf16>,
    %c0_58 = arith.constant 0 : index
    %c249 = arith.constant 249 : index
    %125 = vector.load %arg13[%c0_58, %c249] : memref<16x1024xf32, #tpu.memory_space<vmem>>, vector<16x512xf32>
    %cst_59 = arith.constant 0.000000e+00 : f32
    %126 = vector.shape_cast %49 : vector<1x512xi1> to vector<1x512xi1>
    %127 = vector.broadcast %126 : vector<1x512xi1> to vector<16x512xi1>
    %128 = vector.broadcast %cst_59 : f32 to vector<16x512xf32>
    %129 = arith.select %127, %125, %128 : vector<16x512xi1>, vector<16x512xf32>
    %130 = arith.truncf %129 : vector<16x512xf32> to vector<16x512xbf16>
    %c176 = arith.constant 176 : index
    %c0_60 = arith.constant 0 : index
    %131 = vector.load %arg14[%c176, %c0_60] : memref<432x512xbf16, #tpu.memory_space<vmem>>, vector<16x512xbf16>
    tpu.vector_store %arg14[%c176, %c0_60], %130 {strides = array<i32>} : memref<432x512xbf16, #tpu.memory_space<vmem>>, vector<16x512xbf16>,
    %c0_61 = arith.constant 0 : index
    %c255 = arith.constant 255 : index
    %132 = vector.load %arg13[%c0_61, %c255] : memref<16x1024xf32, #tpu.memory_space<vmem>>, vector<16x512xf32>
    %cst_62 = arith.constant 0.000000e+00 : f32
    %133 = vector.shape_cast %45 : vector<1x512xi1> to vector<1x512xi1>
    %134 = vector.broadcast %133 : vector<1x512xi1> to vector<16x512xi1>
    %135 = vector.broadcast %cst_62 : f32 to vector<16x512xf32>
    %136 = arith.select %134, %132, %135 : vector<16x512xi1>, vector<16x512xf32>
    %137 = arith.truncf %136 : vector<16x512xf32> to vector<16x512xbf16>
    %c192_63 = arith.constant 192 : index
    %c0_64 = arith.constant 0 : index
    %138 = vector.load %arg14[%c192_63, %c0_64] : memref<432x512xbf16, #tpu.memory_space<vmem>>, vector<16x512xbf16>
    tpu.vector_store %arg14[%c192_63, %c0_64], %137 {strides = array<i32>} : memref<432x512xbf16, #tpu.memory_space<vmem>>, vector<16x512xbf16>,
    %c0_65 = arith.constant 0 : index
    %c256_66 = arith.constant 256 : index
    %139 = vector.load %arg13[%c0_65, %c256_66] : memref<16x1024xf32, #tpu.memory_space<vmem>>, vector<16x512xf32>
    %140 = arith.truncf %139 : vector<16x512xf32> to vector<16x512xbf16>
    %c208 = arith.constant 208 : index
    %c0_67 = arith.constant 0 : index
    %141 = vector.load %arg14[%c208, %c0_67] : memref<432x512xbf16, #tpu.memory_space<vmem>>, vector<16x512xbf16>
    tpu.vector_store %arg14[%c208, %c0_67], %140 {strides = array<i32>} : memref<432x512xbf16, #tpu.memory_space<vmem>>, vector<16x512xbf16>,
    %c0_68 = arith.constant 0 : index
    %c257 = arith.constant 257 : index
    %142 = vector.load %arg13[%c0_68, %c257] : memref<16x1024xf32, #tpu.memory_space<vmem>>, vector<16x512xf32>
    %cst_69 = arith.constant 0.000000e+00 : f32
    %143 = vector.shape_cast %47 : vector<1x512xi1> to vector<1x512xi1>
    %144 = vector.broadcast %143 : vector<1x512xi1> to vector<16x512xi1>
    %145 = vector.broadcast %cst_69 : f32 to vector<16x512xf32>
    %146 = arith.select %144, %142, %145 : vector<16x512xi1>, vector<16x512xf32>
    %147 = arith.truncf %146 : vector<16x512xf32> to vector<16x512xbf16>
    %c224 = arith.constant 224 : index
    %c0_70 = arith.constant 0 : index
    %148 = vector.load %arg14[%c224, %c0_70] : memref<432x512xbf16, #tpu.memory_space<vmem>>, vector<16x512xbf16>
    tpu.vector_store %arg14[%c224, %c0_70], %147 {strides = array<i32>} : memref<432x512xbf16, #tpu.memory_space<vmem>>, vector<16x512xbf16>,
    %c0_71 = arith.constant 0 : index
    %c263 = arith.constant 263 : index
    %149 = vector.load %arg13[%c0_71, %c263] : memref<16x1024xf32, #tpu.memory_space<vmem>>, vector<16x512xf32>
    %cst_72 = arith.constant 0.000000e+00 : f32
    %150 = vector.shape_cast %50 : vector<1x512xi1> to vector<1x512xi1>
    %151 = vector.broadcast %150 : vector<1x512xi1> to vector<16x512xi1>
    %152 = vector.broadcast %cst_72 : f32 to vector<16x512xf32>
    %153 = arith.select %151, %149, %152 : vector<16x512xi1>, vector<16x512xf32>
    %154 = arith.truncf %153 : vector<16x512xf32> to vector<16x512xbf16>
    %c240 = arith.constant 240 : index
    %c0_73 = arith.constant 0 : index
    %155 = vector.load %arg14[%c240, %c0_73] : memref<432x512xbf16, #tpu.memory_space<vmem>>, vector<16x512xbf16>
    tpu.vector_store %arg14[%c240, %c0_73], %154 {strides = array<i32>} : memref<432x512xbf16, #tpu.memory_space<vmem>>, vector<16x512xbf16>,
    %c0_74 = arith.constant 0 : index
    %c264 = arith.constant 264 : index
    %156 = vector.load %arg13[%c0_74, %c264] : memref<16x1024xf32, #tpu.memory_space<vmem>>, vector<16x512xf32>
    %cst_75 = arith.constant 0.000000e+00 : f32
    %157 = vector.shape_cast %43 : vector<1x512xi1> to vector<1x512xi1>
    %158 = vector.broadcast %157 : vector<1x512xi1> to vector<16x512xi1>
    %159 = vector.broadcast %cst_75 : f32 to vector<16x512xf32>
    %160 = arith.select %158, %156, %159 : vector<16x512xi1>, vector<16x512xf32>
    %161 = arith.truncf %160 : vector<16x512xf32> to vector<16x512xbf16>
    %c256_76 = arith.constant 256 : index
    %c0_77 = arith.constant 0 : index
    %162 = vector.load %arg14[%c256_76, %c0_77] : memref<432x512xbf16, #tpu.memory_space<vmem>>, vector<16x512xbf16>
    tpu.vector_store %arg14[%c256_76, %c0_77], %161 {strides = array<i32>} : memref<432x512xbf16, #tpu.memory_space<vmem>>, vector<16x512xbf16>,
    %c0_78 = arith.constant 0 : index
    %c265 = arith.constant 265 : index
    %163 = vector.load %arg13[%c0_78, %c265] : memref<16x1024xf32, #tpu.memory_space<vmem>>, vector<16x512xf32>
    %cst_79 = arith.constant 0.000000e+00 : f32
    %164 = vector.shape_cast %51 : vector<1x512xi1> to vector<1x512xi1>
    %165 = vector.broadcast %164 : vector<1x512xi1> to vector<16x512xi1>
    %166 = vector.broadcast %cst_79 : f32 to vector<16x512xf32>
    %167 = arith.select %165, %163, %166 : vector<16x512xi1>, vector<16x512xf32>
    %168 = arith.truncf %167 : vector<16x512xf32> to vector<16x512xbf16>
    %c272 = arith.constant 272 : index
    %c0_80 = arith.constant 0 : index
    %169 = vector.load %arg14[%c272, %c0_80] : memref<432x512xbf16, #tpu.memory_space<vmem>>, vector<16x512xbf16>
    tpu.vector_store %arg14[%c272, %c0_80], %168 {strides = array<i32>} : memref<432x512xbf16, #tpu.memory_space<vmem>>, vector<16x512xbf16>,
    %c0_81 = arith.constant 0 : index
    %c311 = arith.constant 311 : index
    %170 = vector.load %arg13[%c0_81, %c311] : memref<16x1024xf32, #tpu.memory_space<vmem>>, vector<16x512xf32>
    %cst_82 = arith.constant 0.000000e+00 : f32
    %171 = vector.shape_cast %48 : vector<1x512xi1> to vector<1x512xi1>
    %172 = vector.broadcast %171 : vector<1x512xi1> to vector<16x512xi1>
    %173 = vector.broadcast %cst_82 : f32 to vector<16x512xf32>
    %174 = arith.select %172, %170, %173 : vector<16x512xi1>, vector<16x512xf32>
    %175 = arith.truncf %174 : vector<16x512xf32> to vector<16x512xbf16>
    %c288 = arith.constant 288 : index
    %c0_83 = arith.constant 0 : index
    %176 = vector.load %arg14[%c288, %c0_83] : memref<432x512xbf16, #tpu.memory_space<vmem>>, vector<16x512xbf16>
    tpu.vector_store %arg14[%c288, %c0_83], %175 {strides = array<i32>} : memref<432x512xbf16, #tpu.memory_space<vmem>>, vector<16x512xbf16>,
    %c0_84 = arith.constant 0 : index
    %c312 = arith.constant 312 : index
    %177 = vector.load %arg13[%c0_84, %c312] : memref<16x1024xf32, #tpu.memory_space<vmem>>, vector<16x512xf32>
    %cst_85 = arith.constant 0.000000e+00 : f32
    %178 = vector.shape_cast %41 : vector<1x512xi1> to vector<1x512xi1>
    %179 = vector.broadcast %178 : vector<1x512xi1> to vector<16x512xi1>
    %180 = vector.broadcast %cst_85 : f32 to vector<16x512xf32>
    %181 = arith.select %179, %177, %180 : vector<16x512xi1>, vector<16x512xf32>
    %182 = arith.truncf %181 : vector<16x512xf32> to vector<16x512xbf16>
    %c304 = arith.constant 304 : index
    %c0_86 = arith.constant 0 : index
    %183 = vector.load %arg14[%c304, %c0_86] : memref<432x512xbf16, #tpu.memory_space<vmem>>, vector<16x512xbf16>
    tpu.vector_store %arg14[%c304, %c0_86], %182 {strides = array<i32>} : memref<432x512xbf16, #tpu.memory_space<vmem>>, vector<16x512xbf16>,
    %c0_87 = arith.constant 0 : index
    %c313 = arith.constant 313 : index
    %184 = vector.load %arg13[%c0_87, %c313] : memref<16x1024xf32, #tpu.memory_space<vmem>>, vector<16x512xf32>
    %cst_88 = arith.constant 0.000000e+00 : f32
    %185 = vector.shape_cast %49 : vector<1x512xi1> to vector<1x512xi1>
    %186 = vector.broadcast %185 : vector<1x512xi1> to vector<16x512xi1>
    %187 = vector.broadcast %cst_88 : f32 to vector<16x512xf32>
    %188 = arith.select %186, %184, %187 : vector<16x512xi1>, vector<16x512xf32>
    %189 = arith.truncf %188 : vector<16x512xf32> to vector<16x512xbf16>
    %c320 = arith.constant 320 : index
    %c0_89 = arith.constant 0 : index
    %190 = vector.load %arg14[%c320, %c0_89] : memref<432x512xbf16, #tpu.memory_space<vmem>>, vector<16x512xbf16>
    tpu.vector_store %arg14[%c320, %c0_89], %189 {strides = array<i32>} : memref<432x512xbf16, #tpu.memory_space<vmem>>, vector<16x512xbf16>,
    %c0_90 = arith.constant 0 : index
    %c319 = arith.constant 319 : index
    %191 = vector.load %arg13[%c0_90, %c319] : memref<16x1024xf32, #tpu.memory_space<vmem>>, vector<16x512xf32>
    %cst_91 = arith.constant 0.000000e+00 : f32
    %192 = vector.shape_cast %45 : vector<1x512xi1> to vector<1x512xi1>
    %193 = vector.broadcast %192 : vector<1x512xi1> to vector<16x512xi1>
    %194 = vector.broadcast %cst_91 : f32 to vector<16x512xf32>
    %195 = arith.select %193, %191, %194 : vector<16x512xi1>, vector<16x512xf32>
    %196 = arith.truncf %195 : vector<16x512xf32> to vector<16x512xbf16>
    %c336 = arith.constant 336 : index
    %c0_92 = arith.constant 0 : index
    %197 = vector.load %arg14[%c336, %c0_92] : memref<432x512xbf16, #tpu.memory_space<vmem>>, vector<16x512xbf16>
    tpu.vector_store %arg14[%c336, %c0_92], %196 {strides = array<i32>} : memref<432x512xbf16, #tpu.memory_space<vmem>>, vector<16x512xbf16>,
    %c0_93 = arith.constant 0 : index
    %c320_94 = arith.constant 320 : index
    %198 = vector.load %arg13[%c0_93, %c320_94] : memref<16x1024xf32, #tpu.memory_space<vmem>>, vector<16x512xf32>
    %199 = arith.truncf %198 : vector<16x512xf32> to vector<16x512xbf16>
    %c352 = arith.constant 352 : index
    %c0_95 = arith.constant 0 : index
    %200 = vector.load %arg14[%c352, %c0_95] : memref<432x512xbf16, #tpu.memory_space<vmem>>, vector<16x512xbf16>
    tpu.vector_store %arg14[%c352, %c0_95], %199 {strides = array<i32>} : memref<432x512xbf16, #tpu.memory_space<vmem>>, vector<16x512xbf16>,
    %c0_96 = arith.constant 0 : index
    %c321 = arith.constant 321 : index
    %201 = vector.load %arg13[%c0_96, %c321] : memref<16x1024xf32, #tpu.memory_space<vmem>>, vector<16x512xf32>
    %cst_97 = arith.constant 0.000000e+00 : f32
    %202 = vector.shape_cast %47 : vector<1x512xi1> to vector<1x512xi1>
    %203 = vector.broadcast %202 : vector<1x512xi1> to vector<16x512xi1>
    %204 = vector.broadcast %cst_97 : f32 to vector<16x512xf32>
    %205 = arith.select %203, %201, %204 : vector<16x512xi1>, vector<16x512xf32>
    %206 = arith.truncf %205 : vector<16x512xf32> to vector<16x512xbf16>
    %c368 = arith.constant 368 : index
    %c0_98 = arith.constant 0 : index
    %207 = vector.load %arg14[%c368, %c0_98] : memref<432x512xbf16, #tpu.memory_space<vmem>>, vector<16x512xbf16>
    tpu.vector_store %arg14[%c368, %c0_98], %206 {strides = array<i32>} : memref<432x512xbf16, #tpu.memory_space<vmem>>, vector<16x512xbf16>,
    %c0_99 = arith.constant 0 : index
    %c327 = arith.constant 327 : index
    %208 = vector.load %arg13[%c0_99, %c327] : memref<16x1024xf32, #tpu.memory_space<vmem>>, vector<16x512xf32>
    %cst_100 = arith.constant 0.000000e+00 : f32
    %209 = vector.shape_cast %50 : vector<1x512xi1> to vector<1x512xi1>
    %210 = vector.broadcast %209 : vector<1x512xi1> to vector<16x512xi1>
    %211 = vector.broadcast %cst_100 : f32 to vector<16x512xf32>
    %212 = arith.select %210, %208, %211 : vector<16x512xi1>, vector<16x512xf32>
    %213 = arith.truncf %212 : vector<16x512xf32> to vector<16x512xbf16>
    %c384 = arith.constant 384 : index
    %c0_101 = arith.constant 0 : index
    %214 = vector.load %arg14[%c384, %c0_101] : memref<432x512xbf16, #tpu.memory_space<vmem>>, vector<16x512xbf16>
    tpu.vector_store %arg14[%c384, %c0_101], %213 {strides = array<i32>} : memref<432x512xbf16, #tpu.memory_space<vmem>>, vector<16x512xbf16>,
    %c0_102 = arith.constant 0 : index
    %c328 = arith.constant 328 : index
    %215 = vector.load %arg13[%c0_102, %c328] : memref<16x1024xf32, #tpu.memory_space<vmem>>, vector<16x512xf32>
    %cst_103 = arith.constant 0.000000e+00 : f32
    %216 = vector.shape_cast %43 : vector<1x512xi1> to vector<1x512xi1>
    %217 = vector.broadcast %216 : vector<1x512xi1> to vector<16x512xi1>
    %218 = vector.broadcast %cst_103 : f32 to vector<16x512xf32>
    %219 = arith.select %217, %215, %218 : vector<16x512xi1>, vector<16x512xf32>
    %220 = arith.truncf %219 : vector<16x512xf32> to vector<16x512xbf16>
    %c400 = arith.constant 400 : index
    %c0_104 = arith.constant 0 : index
    %221 = vector.load %arg14[%c400, %c0_104] : memref<432x512xbf16, #tpu.memory_space<vmem>>, vector<16x512xbf16>
    tpu.vector_store %arg14[%c400, %c0_104], %220 {strides = array<i32>} : memref<432x512xbf16, #tpu.memory_space<vmem>>, vector<16x512xbf16>,
    %c0_105 = arith.constant 0 : index
    %c329 = arith.constant 329 : index
    %222 = vector.load %arg13[%c0_105, %c329] : memref<16x1024xf32, #tpu.memory_space<vmem>>, vector<16x512xf32>
    %cst_106 = arith.constant 0.000000e+00 : f32
    %223 = vector.shape_cast %51 : vector<1x512xi1> to vector<1x512xi1>
    %224 = vector.broadcast %223 : vector<1x512xi1> to vector<16x512xi1>
    %225 = vector.broadcast %cst_106 : f32 to vector<16x512xf32>
    %226 = arith.select %224, %222, %225 : vector<16x512xi1>, vector<16x512xf32>
    %227 = arith.truncf %226 : vector<16x512xf32> to vector<16x512xbf16>
    %c416 = arith.constant 416 : index
    %c0_107 = arith.constant 0 : index
    %228 = vector.load %arg14[%c416, %c0_107] : memref<432x512xbf16, #tpu.memory_space<vmem>>, vector<16x512xbf16>
    tpu.vector_store %arg14[%c416, %c0_107], %227 {strides = array<i32>} : memref<432x512xbf16, #tpu.memory_space<vmem>>, vector<16x512xbf16>,
    %c0_108 = arith.constant 0 : index
    %c0_109 = arith.constant 0 : index
    %229 = vector.load %arg3[%c0_108, %c0_109] : memref<4x432xbf16, #tpu.memory_space<vmem>>, vector<4x432xbf16>
    %c0_110 = arith.constant 0 : index
    %c0_111 = arith.constant 0 : index
    %230 = vector.load %arg14[%c0_110, %c0_111] : memref<432x512xbf16, #tpu.memory_space<vmem>>, vector<432x512xbf16>
    %cst_112 = arith.constant dense<0.000000e+00> : vector<4x512xf32>
    %231 = tpu.matmul %229, %230, %cst_112 {dimension_numbers = #tpu.dot_dimension_numbers<[1], [0], [0], [1], [0, 0, 1, 1], [], []>} : vector<4x432xbf16>, vector<432x512xbf16>, vector<4x512xf32> -> vector<4x512xf32>
    %c0_113 = arith.constant 0 : index
    %c0_114 = arith.constant 0 : index
    %232 = vector.load %arg4[%c0_113, %c0_114] : memref<4x1xf32, #tpu.memory_space<vmem>>, vector<4x1xf32>
    %233 = vector.broadcast %232 : vector<4x1xf32> to vector<4x512xf32>
    %234 = arith.addf %231, %233 : vector<4x512xf32>
    %c0_115 = arith.constant 0 : index
    %c256_116 = arith.constant 256 : index
    %235 = vector.load %arg13[%c0_115, %c256_116] : memref<16x1024xf32, #tpu.memory_space<vmem>>, vector<4x512xf32>
    tpu.vector_store %arg13[%c0_115, %c256_116], %234 {strides = array<i32>} : memref<16x1024xf32, #tpu.memory_space<vmem>>, vector<4x512xf32>,
    %c0_117 = arith.constant 0 : index
    %c257_118 = arith.constant 257 : index
    %236 = vector.load %arg13[%c0_117, %c257_118] : memref<16x1024xf32, #tpu.memory_space<vmem>>, vector<4x512xf32>
    %237 = arith.addf %234, %236 : vector<4x512xf32>
    %c0_119 = arith.constant 0 : index
    %c264_120 = arith.constant 264 : index
    %238 = vector.load %arg13[%c0_119, %c264_120] : memref<16x1024xf32, #tpu.memory_space<vmem>>, vector<4x512xf32>
    %239 = arith.addf %237, %238 : vector<4x512xf32>
    %c0_121 = arith.constant 0 : index
    %c265_122 = arith.constant 265 : index
    %240 = vector.load %arg13[%c0_121, %c265_122] : memref<16x1024xf32, #tpu.memory_space<vmem>>, vector<4x512xf32>
    %241 = arith.addf %239, %240 : vector<4x512xf32>
    %c0_123 = arith.constant 0 : index
    %c320_124 = arith.constant 320 : index
    %242 = vector.load %arg13[%c0_123, %c320_124] : memref<16x1024xf32, #tpu.memory_space<vmem>>, vector<4x512xf32>
    %243 = arith.addf %241, %242 : vector<4x512xf32>
    %c0_125 = arith.constant 0 : index
    %c321_126 = arith.constant 321 : index
    %244 = vector.load %arg13[%c0_125, %c321_126] : memref<16x1024xf32, #tpu.memory_space<vmem>>, vector<4x512xf32>
    %245 = arith.addf %243, %244 : vector<4x512xf32>
    %c0_127 = arith.constant 0 : index
    %c328_128 = arith.constant 328 : index
    %246 = vector.load %arg13[%c0_127, %c328_128] : memref<16x1024xf32, #tpu.memory_space<vmem>>, vector<4x512xf32>
    %247 = arith.addf %245, %246 : vector<4x512xf32>
    %c0_129 = arith.constant 0 : index
    %c329_130 = arith.constant 329 : index
    %248 = vector.load %arg13[%c0_129, %c329_130] : memref<16x1024xf32, #tpu.memory_space<vmem>>, vector<4x512xf32>
    %249 = arith.addf %247, %248 : vector<4x512xf32>
    %cst_131 = arith.constant 1.250000e-01 : f32
    %250 = vector.broadcast %cst_131 : f32 to vector<4x512xf32>
    %251 = arith.mulf %249, %250 : vector<4x512xf32>
    %c2 = arith.constant 2 : index
    %c0_132 = arith.constant 0 : index
    %252 = vector.load %arg2[%c2, %c0_132] : memref<3x512xi32, #tpu.memory_space<vmem>>, vector<1x512xi32>
    %c1_i32_133 = arith.constant 1 : i32
    %253 = vector.broadcast %c1_i32_133 : i32 to vector<1x512xi32>
    %254 = arith.cmpi eq, %252, %253 : vector<1x512xi32>
    %255 = arith.extui %254 : vector<1x512xi1> to vector<1x512xi32>
    %256 = arith.sitofp %255 : vector<1x512xi32> to vector<1x512xf32>
    %257 = vector.broadcast %256 : vector<1x512xf32> to vector<4x512xf32>
    %258 = arith.mulf %251, %257 : vector<4x512xf32>
    %cst_134 = arith.constant dense<0.000000e+00> : vector<4xf32>
    %259 = vector.multi_reduction <add>, %258, %cst_134 [1] : vector<4x512xf32> to vector<4xf32>
    %260 = vector.shape_cast %259 : vector<4xf32> to vector<4x1xf32>
    %cst_135 = arith.constant 6.400000e+01 : f32
    %261 = vector.broadcast %cst_135 : f32 to vector<4x1xf32>
    %262 = arith.divf %260, %261 : vector<4x1xf32>
    %263 = vector.broadcast %262 : vector<4x1xf32> to vector<4x512xf32>
    %264 = arith.subf %251, %263 : vector<4x512xf32>
    %265 = arith.mulf %264, %264 : vector<4x512xf32>
    %266 = vector.broadcast %256 : vector<1x512xf32> to vector<4x512xf32>
    %267 = arith.mulf %265, %266 : vector<4x512xf32>
    %cst_136 = arith.constant dense<0.000000e+00> : vector<4xf32>
    %268 = vector.multi_reduction <add>, %267, %cst_136 [1] : vector<4x512xf32> to vector<4xf32>
    %269 = vector.shape_cast %268 : vector<4xf32> to vector<4x1xf32>
    %cst_137 = arith.constant 6.400000e+01 : f32
    %270 = vector.broadcast %cst_137 : f32 to vector<4x1xf32>
    %271 = arith.divf %269, %270 : vector<4x1xf32>
    %272 = vector.broadcast %262 : vector<4x1xf32> to vector<4x512xf32>
    %273 = arith.subf %251, %272 : vector<4x512xf32>
    %cst_138 = arith.constant 9.99999974E-6 : f32
    %274 = vector.broadcast %cst_138 : f32 to vector<4x1xf32>
    %275 = arith.addf %271, %274 : vector<4x1xf32>
    %276 = math.rsqrt %275 : vector<4x1xf32>
    %277 = vector.broadcast %276 : vector<4x1xf32> to vector<4x512xf32>
    %278 = arith.mulf %273, %277 : vector<4x512xf32>
    %c0_139 = arith.constant 0 : index
    %c0_140 = arith.constant 0 : index
    %279 = vector.load %arg9[%c0_139, %c0_140] : memref<4x1xf32, #tpu.memory_space<vmem>>, vector<4x1xf32>
    %280 = vector.broadcast %279 : vector<4x1xf32> to vector<4x512xf32>
    %281 = arith.mulf %278, %280 : vector<4x512xf32>
    %c0_141 = arith.constant 0 : index
    %c0_142 = arith.constant 0 : index
    %282 = vector.load %arg10[%c0_141, %c0_142] : memref<4x1xf32, #tpu.memory_space<vmem>>, vector<4x1xf32>
    %283 = vector.broadcast %282 : vector<4x1xf32> to vector<4x512xf32>
    %284 = arith.addf %281, %283 : vector<4x512xf32>
    %cst_143 = arith.constant 0.000000e+00 : f32
    %285 = vector.broadcast %cst_143 : f32 to vector<4x512xf32>
    %286 = arith.cmpf ogt, %284, %285 : vector<4x512xf32>
    %cst_144 = arith.constant 2.000000e-01 : f32
    %287 = vector.broadcast %cst_144 : f32 to vector<4x512xf32>
    %288 = arith.mulf %287, %284 : vector<4x512xf32>
    %289 = arith.select %286, %284, %288 : vector<4x512xi1>, vector<4x512xf32>
    %c0_145 = arith.constant 0 : index
    %c256_146 = arith.constant 256 : index
    %290 = vector.load %arg13[%c0_145, %c256_146] : memref<16x1024xf32, #tpu.memory_space<vmem>>, vector<4x512xf32>
    tpu.vector_store %arg13[%c0_145, %c256_146], %289 {strides = array<i32>} : memref<16x1024xf32, #tpu.memory_space<vmem>>, vector<4x512xf32>,
    %c2_i32 = arith.constant 2 : i32
    %291 = vector.broadcast %c2_i32 : i32 to vector<1x512xi32>
    %292 = arith.cmpi sge, %6, %291 : vector<1x512xi32>
    %c6_i32 = arith.constant 6 : i32
    %293 = vector.broadcast %c6_i32 : i32 to vector<1x512xi32>
    %294 = arith.cmpi slt, %6, %293 : vector<1x512xi32>
    %c2_i32_147 = arith.constant 2 : i32
    %295 = vector.broadcast %c2_i32_147 : i32 to vector<1x512xi32>
    %296 = arith.cmpi sge, %7, %295 : vector<1x512xi32>
    %c6_i32_148 = arith.constant 6 : i32
    %297 = vector.broadcast %c6_i32_148 : i32 to vector<1x512xi32>
    %298 = arith.cmpi slt, %7, %297 : vector<1x512xi32>
    %299 = arith.andi %292, %296 : vector<1x512xi1>
    %300 = arith.andi %292, %298 : vector<1x512xi1>
    %301 = arith.andi %294, %296 : vector<1x512xi1>
    %302 = arith.andi %294, %298 : vector<1x512xi1>
    %c0_149 = arith.constant 0 : index
    %c110 = arith.constant 110 : index
    %303 = vector.load %arg13[%c0_149, %c110] : memref<16x1024xf32, #tpu.memory_space<vmem>>, vector<16x512xf32>
    %cst_150 = arith.constant 0.000000e+00 : f32
    %304 = vector.shape_cast %299 : vector<1x512xi1> to vector<1x512xi1>
    %305 = vector.broadcast %304 : vector<1x512xi1> to vector<16x512xi1>
    %306 = vector.broadcast %cst_150 : f32 to vector<16x512xf32>
    %307 = arith.select %305, %303, %306 : vector<16x512xi1>, vector<16x512xf32>
    %308 = arith.truncf %307 : vector<16x512xf32> to vector<16x512xbf16>
    %c0_151 = arith.constant 0 : index
    %c0_152 = arith.constant 0 : index
    %309 = vector.load %arg14[%c0_151, %c0_152] : memref<432x512xbf16, #tpu.memory_space<vmem>>, vector<16x512xbf16>
    tpu.vector_store %arg14[%c0_151, %c0_152], %308 {strides = array<i32>} : memref<432x512xbf16, #tpu.memory_space<vmem>>, vector<16x512xbf16>,
    %c0_153 = arith.constant 0 : index
    %c112_154 = arith.constant 112 : index
    %310 = vector.load %arg13[%c0_153, %c112_154] : memref<16x1024xf32, #tpu.memory_space<vmem>>, vector<16x512xf32>
    %cst_155 = arith.constant 0.000000e+00 : f32
    %311 = vector.shape_cast %292 : vector<1x512xi1> to vector<1x512xi1>
    %312 = vector.broadcast %311 : vector<1x512xi1> to vector<16x512xi1>
    %313 = vector.broadcast %cst_155 : f32 to vector<16x512xf32>
    %314 = arith.select %312, %310, %313 : vector<16x512xi1>, vector<16x512xf32>
    %315 = arith.truncf %314 : vector<16x512xf32> to vector<16x512xbf16>
    %c16_156 = arith.constant 16 : index
    %c0_157 = arith.constant 0 : index
    %316 = vector.load %arg14[%c16_156, %c0_157] : memref<432x512xbf16, #tpu.memory_space<vmem>>, vector<16x512xbf16>
    tpu.vector_store %arg14[%c16_156, %c0_157], %315 {strides = array<i32>} : memref<432x512xbf16, #tpu.memory_space<vmem>>, vector<16x512xbf16>,
    %c0_158 = arith.constant 0 : index
    %c114 = arith.constant 114 : index
    %317 = vector.load %arg13[%c0_158, %c114] : memref<16x1024xf32, #tpu.memory_space<vmem>>, vector<16x512xf32>
    %cst_159 = arith.constant 0.000000e+00 : f32
    %318 = vector.shape_cast %300 : vector<1x512xi1> to vector<1x512xi1>
    %319 = vector.broadcast %318 : vector<1x512xi1> to vector<16x512xi1>
    %320 = vector.broadcast %cst_159 : f32 to vector<16x512xf32>
    %321 = arith.select %319, %317, %320 : vector<16x512xi1>, vector<16x512xf32>
    %322 = arith.truncf %321 : vector<16x512xf32> to vector<16x512xbf16>
    %c32_160 = arith.constant 32 : index
    %c0_161 = arith.constant 0 : index
    %323 = vector.load %arg14[%c32_160, %c0_161] : memref<432x512xbf16, #tpu.memory_space<vmem>>, vector<16x512xbf16>
    tpu.vector_store %arg14[%c32_160, %c0_161], %322 {strides = array<i32>} : memref<432x512xbf16, #tpu.memory_space<vmem>>, vector<16x512xbf16>,
    %c0_162 = arith.constant 0 : index
    %c126 = arith.constant 126 : index
    %324 = vector.load %arg13[%c0_162, %c126] : memref<16x1024xf32, #tpu.memory_space<vmem>>, vector<16x512xf32>
    %cst_163 = arith.constant 0.000000e+00 : f32
    %325 = vector.shape_cast %296 : vector<1x512xi1> to vector<1x512xi1>
    %326 = vector.broadcast %325 : vector<1x512xi1> to vector<16x512xi1>
    %327 = vector.broadcast %cst_163 : f32 to vector<16x512xf32>
    %328 = arith.select %326, %324, %327 : vector<16x512xi1>, vector<16x512xf32>
    %329 = arith.truncf %328 : vector<16x512xf32> to vector<16x512xbf16>
    %c48_164 = arith.constant 48 : index
    %c0_165 = arith.constant 0 : index
    %330 = vector.load %arg14[%c48_164, %c0_165] : memref<432x512xbf16, #tpu.memory_space<vmem>>, vector<16x512xbf16>
    tpu.vector_store %arg14[%c48_164, %c0_165], %329 {strides = array<i32>} : memref<432x512xbf16, #tpu.memory_space<vmem>>, vector<16x512xbf16>,
    %c0_166 = arith.constant 0 : index
    %c128_167 = arith.constant 128 : index
    %331 = vector.load %arg13[%c0_166, %c128_167] : memref<16x1024xf32, #tpu.memory_space<vmem>>, vector<16x512xf32>
    %332 = arith.truncf %331 : vector<16x512xf32> to vector<16x512xbf16>
    %c64_168 = arith.constant 64 : index
    %c0_169 = arith.constant 0 : index
    %333 = vector.load %arg14[%c64_168, %c0_169] : memref<432x512xbf16, #tpu.memory_space<vmem>>, vector<16x512xbf16>
    tpu.vector_store %arg14[%c64_168, %c0_169], %332 {strides = array<i32>} : memref<432x512xbf16, #tpu.memory_space<vmem>>, vector<16x512xbf16>,
    %c0_170 = arith.constant 0 : index
    %c130 = arith.constant 130 : index
    %334 = vector.load %arg13[%c0_170, %c130] : memref<16x1024xf32, #tpu.memory_space<vmem>>, vector<16x512xf32>
    %cst_171 = arith.constant 0.000000e+00 : f32
    %335 = vector.shape_cast %298 : vector<1x512xi1> to vector<1x512xi1>
    %336 = vector.broadcast %335 : vector<1x512xi1> to vector<16x512xi1>
    %337 = vector.broadcast %cst_171 : f32 to vector<16x512xf32>
    %338 = arith.select %336, %334, %337 : vector<16x512xi1>, vector<16x512xf32>
    %339 = arith.truncf %338 : vector<16x512xf32> to vector<16x512xbf16>
    %c80_172 = arith.constant 80 : index
    %c0_173 = arith.constant 0 : index
    %340 = vector.load %arg14[%c80_172, %c0_173] : memref<432x512xbf16, #tpu.memory_space<vmem>>, vector<16x512xbf16>
    tpu.vector_store %arg14[%c80_172, %c0_173], %339 {strides = array<i32>} : memref<432x512xbf16, #tpu.memory_space<vmem>>, vector<16x512xbf16>,
    %c0_174 = arith.constant 0 : index
    %c142 = arith.constant 142 : index
    %341 = vector.load %arg13[%c0_174, %c142] : memref<16x1024xf32, #tpu.memory_space<vmem>>, vector<16x512xf32>
    %cst_175 = arith.constant 0.000000e+00 : f32
    %342 = vector.shape_cast %301 : vector<1x512xi1> to vector<1x512xi1>
    %343 = vector.broadcast %342 : vector<1x512xi1> to vector<16x512xi1>
    %344 = vector.broadcast %cst_175 : f32 to vector<16x512xf32>
    %345 = arith.select %343, %341, %344 : vector<16x512xi1>, vector<16x512xf32>
    %346 = arith.truncf %345 : vector<16x512xf32> to vector<16x512xbf16>
    %c96_176 = arith.constant 96 : index
    %c0_177 = arith.constant 0 : index
    %347 = vector.load %arg14[%c96_176, %c0_177] : memref<432x512xbf16, #tpu.memory_space<vmem>>, vector<16x512xbf16>
    tpu.vector_store %arg14[%c96_176, %c0_177], %346 {strides = array<i32>} : memref<432x512xbf16, #tpu.memory_space<vmem>>, vector<16x512xbf16>,
    %c0_178 = arith.constant 0 : index
    %c144_179 = arith.constant 144 : index
    %348 = vector.load %arg13[%c0_178, %c144_179] : memref<16x1024xf32, #tpu.memory_space<vmem>>, vector<16x512xf32>
    %cst_180 = arith.constant 0.000000e+00 : f32
    %349 = vector.shape_cast %294 : vector<1x512xi1> to vector<1x512xi1>
    %350 = vector.broadcast %349 : vector<1x512xi1> to vector<16x512xi1>
    %351 = vector.broadcast %cst_180 : f32 to vector<16x512xf32>
    %352 = arith.select %350, %348, %351 : vector<16x512xi1>, vector<16x512xf32>
    %353 = arith.truncf %352 : vector<16x512xf32> to vector<16x512xbf16>
    %c112_181 = arith.constant 112 : index
    %c0_182 = arith.constant 0 : index
    %354 = vector.load %arg14[%c112_181, %c0_182] : memref<432x512xbf16, #tpu.memory_space<vmem>>, vector<16x512xbf16>
    tpu.vector_store %arg14[%c112_181, %c0_182], %353 {strides = array<i32>} : memref<432x512xbf16, #tpu.memory_space<vmem>>, vector<16x512xbf16>,
    %c0_183 = arith.constant 0 : index
    %c146 = arith.constant 146 : index
    %355 = vector.load %arg13[%c0_183, %c146] : memref<16x1024xf32, #tpu.memory_space<vmem>>, vector<16x512xf32>
    %cst_184 = arith.constant 0.000000e+00 : f32
    %356 = vector.shape_cast %302 : vector<1x512xi1> to vector<1x512xi1>
    %357 = vector.broadcast %356 : vector<1x512xi1> to vector<16x512xi1>
    %358 = vector.broadcast %cst_184 : f32 to vector<16x512xf32>
    %359 = arith.select %357, %355, %358 : vector<16x512xi1>, vector<16x512xf32>
    %360 = arith.truncf %359 : vector<16x512xf32> to vector<16x512xbf16>
    %c128_185 = arith.constant 128 : index
    %c0_186 = arith.constant 0 : index
    %361 = vector.load %arg14[%c128_185, %c0_186] : memref<432x512xbf16, #tpu.memory_space<vmem>>, vector<16x512xbf16>
    tpu.vector_store %arg14[%c128_185, %c0_186], %360 {strides = array<i32>} : memref<432x512xbf16, #tpu.memory_space<vmem>>, vector<16x512xbf16>,
    %c0_187 = arith.constant 0 : index
    %c238 = arith.constant 238 : index
    %362 = vector.load %arg13[%c0_187, %c238] : memref<16x1024xf32, #tpu.memory_space<vmem>>, vector<16x512xf32>
    %cst_188 = arith.constant 0.000000e+00 : f32
    %363 = vector.shape_cast %299 : vector<1x512xi1> to vector<1x512xi1>
    %364 = vector.broadcast %363 : vector<1x512xi1> to vector<16x512xi1>
    %365 = vector.broadcast %cst_188 : f32 to vector<16x512xf32>
    %366 = arith.select %364, %362, %365 : vector<16x512xi1>, vector<16x512xf32>
    %367 = arith.truncf %366 : vector<16x512xf32> to vector<16x512xbf16>
    %c144_189 = arith.constant 144 : index
    %c0_190 = arith.constant 0 : index
    %368 = vector.load %arg14[%c144_189, %c0_190] : memref<432x512xbf16, #tpu.memory_space<vmem>>, vector<16x512xbf16>
    tpu.vector_store %arg14[%c144_189, %c0_190], %367 {strides = array<i32>} : memref<432x512xbf16, #tpu.memory_space<vmem>>, vector<16x512xbf16>,
    %c0_191 = arith.constant 0 : index
    %c240_192 = arith.constant 240 : index
    %369 = vector.load %arg13[%c0_191, %c240_192] : memref<16x1024xf32, #tpu.memory_space<vmem>>, vector<16x512xf32>
    %cst_193 = arith.constant 0.000000e+00 : f32
    %370 = vector.shape_cast %292 : vector<1x512xi1> to vector<1x512xi1>
    %371 = vector.broadcast %370 : vector<1x512xi1> to vector<16x512xi1>
    %372 = vector.broadcast %cst_193 : f32 to vector<16x512xf32>
    %373 = arith.select %371, %369, %372 : vector<16x512xi1>, vector<16x512xf32>
    %374 = arith.truncf %373 : vector<16x512xf32> to vector<16x512xbf16>
    %c160_194 = arith.constant 160 : index
    %c0_195 = arith.constant 0 : index
    %375 = vector.load %arg14[%c160_194, %c0_195] : memref<432x512xbf16, #tpu.memory_space<vmem>>, vector<16x512xbf16>
    tpu.vector_store %arg14[%c160_194, %c0_195], %374 {strides = array<i32>} : memref<432x512xbf16, #tpu.memory_space<vmem>>, vector<16x512xbf16>,
    %c0_196 = arith.constant 0 : index
    %c242 = arith.constant 242 : index
    %376 = vector.load %arg13[%c0_196, %c242] : memref<16x1024xf32, #tpu.memory_space<vmem>>, vector<16x512xf32>
    %cst_197 = arith.constant 0.000000e+00 : f32
    %377 = vector.shape_cast %300 : vector<1x512xi1> to vector<1x512xi1>
    %378 = vector.broadcast %377 : vector<1x512xi1> to vector<16x512xi1>
    %379 = vector.broadcast %cst_197 : f32 to vector<16x512xf32>
    %380 = arith.select %378, %376, %379 : vector<16x512xi1>, vector<16x512xf32>
    %381 = arith.truncf %380 : vector<16x512xf32> to vector<16x512xbf16>
    %c176_198 = arith.constant 176 : index
    %c0_199 = arith.constant 0 : index
    %382 = vector.load %arg14[%c176_198, %c0_199] : memref<432x512xbf16, #tpu.memory_space<vmem>>, vector<16x512xbf16>
    tpu.vector_store %arg14[%c176_198, %c0_199], %381 {strides = array<i32>} : memref<432x512xbf16, #tpu.memory_space<vmem>>, vector<16x512xbf16>,
    %c0_200 = arith.constant 0 : index
    %c254 = arith.constant 254 : index
    %383 = vector.load %arg13[%c0_200, %c254] : memref<16x1024xf32, #tpu.memory_space<vmem>>, vector<16x512xf32>
    %cst_201 = arith.constant 0.000000e+00 : f32
    %384 = vector.shape_cast %296 : vector<1x512xi1> to vector<1x512xi1>
    %385 = vector.broadcast %384 : vector<1x512xi1> to vector<16x512xi1>
    %386 = vector.broadcast %cst_201 : f32 to vector<16x512xf32>
    %387 = arith.select %385, %383, %386 : vector<16x512xi1>, vector<16x512xf32>
    %388 = arith.truncf %387 : vector<16x512xf32> to vector<16x512xbf16>
    %c192_202 = arith.constant 192 : index
    %c0_203 = arith.constant 0 : index
    %389 = vector.load %arg14[%c192_202, %c0_203] : memref<432x512xbf16, #tpu.memory_space<vmem>>, vector<16x512xbf16>
    tpu.vector_store %arg14[%c192_202, %c0_203], %388 {strides = array<i32>} : memref<432x512xbf16, #tpu.memory_space<vmem>>, vector<16x512xbf16>,
    %c0_204 = arith.constant 0 : index
    %c256_205 = arith.constant 256 : index
    %390 = vector.load %arg13[%c0_204, %c256_205] : memref<16x1024xf32, #tpu.memory_space<vmem>>, vector<16x512xf32>
    %391 = arith.truncf %390 : vector<16x512xf32> to vector<16x512xbf16>
    %c208_206 = arith.constant 208 : index
    %c0_207 = arith.constant 0 : index
    %392 = vector.load %arg14[%c208_206, %c0_207] : memref<432x512xbf16, #tpu.memory_space<vmem>>, vector<16x512xbf16>
    tpu.vector_store %arg14[%c208_206, %c0_207], %391 {strides = array<i32>} : memref<432x512xbf16, #tpu.memory_space<vmem>>, vector<16x512xbf16>,
    %c0_208 = arith.constant 0 : index
    %c258 = arith.constant 258 : index
    %393 = vector.load %arg13[%c0_208, %c258] : memref<16x1024xf32, #tpu.memory_space<vmem>>, vector<16x512xf32>
    %cst_209 = arith.constant 0.000000e+00 : f32
    %394 = vector.shape_cast %298 : vector<1x512xi1> to vector<1x512xi1>
    %395 = vector.broadcast %394 : vector<1x512xi1> to vector<16x512xi1>
    %396 = vector.broadcast %cst_209 : f32 to vector<16x512xf32>
    %397 = arith.select %395, %393, %396 : vector<16x512xi1>, vector<16x512xf32>
    %398 = arith.truncf %397 : vector<16x512xf32> to vector<16x512xbf16>
    %c224_210 = arith.constant 224 : index
    %c0_211 = arith.constant 0 : index
    %399 = vector.load %arg14[%c224_210, %c0_211] : memref<432x512xbf16, #tpu.memory_space<vmem>>, vector<16x512xbf16>
    tpu.vector_store %arg14[%c224_210, %c0_211], %398 {strides = array<i32>} : memref<432x512xbf16, #tpu.memory_space<vmem>>, vector<16x512xbf16>,
    %c0_212 = arith.constant 0 : index
    %c270 = arith.constant 270 : index
    %400 = vector.load %arg13[%c0_212, %c270] : memref<16x1024xf32, #tpu.memory_space<vmem>>, vector<16x512xf32>
    %cst_213 = arith.constant 0.000000e+00 : f32
    %401 = vector.shape_cast %301 : vector<1x512xi1> to vector<1x512xi1>
    %402 = vector.broadcast %401 : vector<1x512xi1> to vector<16x512xi1>
    %403 = vector.broadcast %cst_213 : f32 to vector<16x512xf32>
    %404 = arith.select %402, %400, %403 : vector<16x512xi1>, vector<16x512xf32>
    %405 = arith.truncf %404 : vector<16x512xf32> to vector<16x512xbf16>
    %c240_214 = arith.constant 240 : index
    %c0_215 = arith.constant 0 : index
    %406 = vector.load %arg14[%c240_214, %c0_215] : memref<432x512xbf16, #tpu.memory_space<vmem>>, vector<16x512xbf16>
    tpu.vector_store %arg14[%c240_214, %c0_215], %405 {strides = array<i32>} : memref<432x512xbf16, #tpu.memory_space<vmem>>, vector<16x512xbf16>,
    %c0_216 = arith.constant 0 : index
    %c272_217 = arith.constant 272 : index
    %407 = vector.load %arg13[%c0_216, %c272_217] : memref<16x1024xf32, #tpu.memory_space<vmem>>, vector<16x512xf32>
    %cst_218 = arith.constant 0.000000e+00 : f32
    %408 = vector.shape_cast %294 : vector<1x512xi1> to vector<1x512xi1>
    %409 = vector.broadcast %408 : vector<1x512xi1> to vector<16x512xi1>
    %410 = vector.broadcast %cst_218 : f32 to vector<16x512xf32>
    %411 = arith.select %409, %407, %410 : vector<16x512xi1>, vector<16x512xf32>
    %412 = arith.truncf %411 : vector<16x512xf32> to vector<16x512xbf16>
    %c256_219 = arith.constant 256 : index
    %c0_220 = arith.constant 0 : index
    %413 = vector.load %arg14[%c256_219, %c0_220] : memref<432x512xbf16, #tpu.memory_space<vmem>>, vector<16x512xbf16>
    tpu.vector_store %arg14[%c256_219, %c0_220], %412 {strides = array<i32>} : memref<432x512xbf16, #tpu.memory_space<vmem>>, vector<16x512xbf16>,
    %c0_221 = arith.constant 0 : index
    %c274 = arith.constant 274 : index
    %414 = vector.load %arg13[%c0_221, %c274] : memref<16x1024xf32, #tpu.memory_space<vmem>>, vector<16x512xf32>
    %cst_222 = arith.constant 0.000000e+00 : f32
    %415 = vector.shape_cast %302 : vector<1x512xi1> to vector<1x512xi1>
    %416 = vector.broadcast %415 : vector<1x512xi1> to vector<16x512xi1>
    %417 = vector.broadcast %cst_222 : f32 to vector<16x512xf32>
    %418 = arith.select %416, %414, %417 : vector<16x512xi1>, vector<16x512xf32>
    %419 = arith.truncf %418 : vector<16x512xf32> to vector<16x512xbf16>
    %c272_223 = arith.constant 272 : index
    %c0_224 = arith.constant 0 : index
    %420 = vector.load %arg14[%c272_223, %c0_224] : memref<432x512xbf16, #tpu.memory_space<vmem>>, vector<16x512xbf16>
    tpu.vector_store %arg14[%c272_223, %c0_224], %419 {strides = array<i32>} : memref<432x512xbf16, #tpu.memory_space<vmem>>, vector<16x512xbf16>,
    %c0_225 = arith.constant 0 : index
    %c366 = arith.constant 366 : index
    %421 = vector.load %arg13[%c0_225, %c366] : memref<16x1024xf32, #tpu.memory_space<vmem>>, vector<16x512xf32>
    %cst_226 = arith.constant 0.000000e+00 : f32
    %422 = vector.shape_cast %299 : vector<1x512xi1> to vector<1x512xi1>
    %423 = vector.broadcast %422 : vector<1x512xi1> to vector<16x512xi1>
    %424 = vector.broadcast %cst_226 : f32 to vector<16x512xf32>
    %425 = arith.select %423, %421, %424 : vector<16x512xi1>, vector<16x512xf32>
    %426 = arith.truncf %425 : vector<16x512xf32> to vector<16x512xbf16>
    %c288_227 = arith.constant 288 : index
    %c0_228 = arith.constant 0 : index
    %427 = vector.load %arg14[%c288_227, %c0_228] : memref<432x512xbf16, #tpu.memory_space<vmem>>, vector<16x512xbf16>
    tpu.vector_store %arg14[%c288_227, %c0_228], %426 {strides = array<i32>} : memref<432x512xbf16, #tpu.memory_space<vmem>>, vector<16x512xbf16>,
    %c0_229 = arith.constant 0 : index
    %c368_230 = arith.constant 368 : index
    %428 = vector.load %arg13[%c0_229, %c368_230] : memref<16x1024xf32, #tpu.memory_space<vmem>>, vector<16x512xf32>
    %cst_231 = arith.constant 0.000000e+00 : f32
    %429 = vector.shape_cast %292 : vector<1x512xi1> to vector<1x512xi1>
    %430 = vector.broadcast %429 : vector<1x512xi1> to vector<16x512xi1>
    %431 = vector.broadcast %cst_231 : f32 to vector<16x512xf32>
    %432 = arith.select %430, %428, %431 : vector<16x512xi1>, vector<16x512xf32>
    %433 = arith.truncf %432 : vector<16x512xf32> to vector<16x512xbf16>
    %c304_232 = arith.constant 304 : index
    %c0_233 = arith.constant 0 : index
    %434 = vector.load %arg14[%c304_232, %c0_233] : memref<432x512xbf16, #tpu.memory_space<vmem>>, vector<16x512xbf16>
    tpu.vector_store %arg14[%c304_232, %c0_233], %433 {strides = array<i32>} : memref<432x512xbf16, #tpu.memory_space<vmem>>, vector<16x512xbf16>,
    %c0_234 = arith.constant 0 : index
    %c370 = arith.constant 370 : index
    %435 = vector.load %arg13[%c0_234, %c370] : memref<16x1024xf32, #tpu.memory_space<vmem>>, vector<16x512xf32>
    %cst_235 = arith.constant 0.000000e+00 : f32
    %436 = vector.shape_cast %300 : vector<1x512xi1> to vector<1x512xi1>
    %437 = vector.broadcast %436 : vector<1x512xi1> to vector<16x512xi1>
    %438 = vector.broadcast %cst_235 : f32 to vector<16x512xf32>
    %439 = arith.select %437, %435, %438 : vector<16x512xi1>, vector<16x512xf32>
    %440 = arith.truncf %439 : vector<16x512xf32> to vector<16x512xbf16>
    %c320_236 = arith.constant 320 : index
    %c0_237 = arith.constant 0 : index
    %441 = vector.load %arg14[%c320_236, %c0_237] : memref<432x512xbf16, #tpu.memory_space<vmem>>, vector<16x512xbf16>
    tpu.vector_store %arg14[%c320_236, %c0_237], %440 {strides = array<i32>} : memref<432x512xbf16, #tpu.memory_space<vmem>>, vector<16x512xbf16>,
    %c0_238 = arith.constant 0 : index
    %c382 = arith.constant 382 : index
    %442 = vector.load %arg13[%c0_238, %c382] : memref<16x1024xf32, #tpu.memory_space<vmem>>, vector<16x512xf32>
    %cst_239 = arith.constant 0.000000e+00 : f32
    %443 = vector.shape_cast %296 : vector<1x512xi1> to vector<1x512xi1>
    %444 = vector.broadcast %443 : vector<1x512xi1> to vector<16x512xi1>
    %445 = vector.broadcast %cst_239 : f32 to vector<16x512xf32>
    %446 = arith.select %444, %442, %445 : vector<16x512xi1>, vector<16x512xf32>
    %447 = arith.truncf %446 : vector<16x512xf32> to vector<16x512xbf16>
    %c336_240 = arith.constant 336 : index
    %c0_241 = arith.constant 0 : index
    %448 = vector.load %arg14[%c336_240, %c0_241] : memref<432x512xbf16, #tpu.memory_space<vmem>>, vector<16x512xbf16>
    tpu.vector_store %arg14[%c336_240, %c0_241], %447 {strides = array<i32>} : memref<432x512xbf16, #tpu.memory_space<vmem>>, vector<16x512xbf16>,
    %c0_242 = arith.constant 0 : index
    %c384_243 = arith.constant 384 : index
    %449 = vector.load %arg13[%c0_242, %c384_243] : memref<16x1024xf32, #tpu.memory_space<vmem>>, vector<16x512xf32>
    %450 = arith.truncf %449 : vector<16x512xf32> to vector<16x512xbf16>
    %c352_244 = arith.constant 352 : index
    %c0_245 = arith.constant 0 : index
    %451 = vector.load %arg14[%c352_244, %c0_245] : memref<432x512xbf16, #tpu.memory_space<vmem>>, vector<16x512xbf16>
    tpu.vector_store %arg14[%c352_244, %c0_245], %450 {strides = array<i32>} : memref<432x512xbf16, #tpu.memory_space<vmem>>, vector<16x512xbf16>,
    %c0_246 = arith.constant 0 : index
    %c386 = arith.constant 386 : index
    %452 = vector.load %arg13[%c0_246, %c386] : memref<16x1024xf32, #tpu.memory_space<vmem>>, vector<16x512xf32>
    %cst_247 = arith.constant 0.000000e+00 : f32
    %453 = vector.shape_cast %298 : vector<1x512xi1> to vector<1x512xi1>
    %454 = vector.broadcast %453 : vector<1x512xi1> to vector<16x512xi1>
    %455 = vector.broadcast %cst_247 : f32 to vector<16x512xf32>
    %456 = arith.select %454, %452, %455 : vector<16x512xi1>, vector<16x512xf32>
    %457 = arith.truncf %456 : vector<16x512xf32> to vector<16x512xbf16>
    %c368_248 = arith.constant 368 : index
    %c0_249 = arith.constant 0 : index
    %458 = vector.load %arg14[%c368_248, %c0_249] : memref<432x512xbf16, #tpu.memory_space<vmem>>, vector<16x512xbf16>
    tpu.vector_store %arg14[%c368_248, %c0_249], %457 {strides = array<i32>} : memref<432x512xbf16, #tpu.memory_space<vmem>>, vector<16x512xbf16>,
    %c0_250 = arith.constant 0 : index
    %c398 = arith.constant 398 : index
    %459 = vector.load %arg13[%c0_250, %c398] : memref<16x1024xf32, #tpu.memory_space<vmem>>, vector<16x512xf32>
    %cst_251 = arith.constant 0.000000e+00 : f32
    %460 = vector.shape_cast %301 : vector<1x512xi1> to vector<1x512xi1>
    %461 = vector.broadcast %460 : vector<1x512xi1> to vector<16x512xi1>
    %462 = vector.broadcast %cst_251 : f32 to vector<16x512xf32>
    %463 = arith.select %461, %459, %462 : vector<16x512xi1>, vector<16x512xf32>
    %464 = arith.truncf %463 : vector<16x512xf32> to vector<16x512xbf16>
    %c384_252 = arith.constant 384 : index
    %c0_253 = arith.constant 0 : index
    %465 = vector.load %arg14[%c384_252, %c0_253] : memref<432x512xbf16, #tpu.memory_space<vmem>>, vector<16x512xbf16>
    tpu.vector_store %arg14[%c384_252, %c0_253], %464 {strides = array<i32>} : memref<432x512xbf16, #tpu.memory_space<vmem>>, vector<16x512xbf16>,
    %c0_254 = arith.constant 0 : index
    %c400_255 = arith.constant 400 : index
    %466 = vector.load %arg13[%c0_254, %c400_255] : memref<16x1024xf32, #tpu.memory_space<vmem>>, vector<16x512xf32>
    %cst_256 = arith.constant 0.000000e+00 : f32
    %467 = vector.shape_cast %294 : vector<1x512xi1> to vector<1x512xi1>
    %468 = vector.broadcast %467 : vector<1x512xi1> to vector<16x512xi1>
    %469 = vector.broadcast %cst_256 : f32 to vector<16x512xf32>
    %470 = arith.select %468, %466, %469 : vector<16x512xi1>, vector<16x512xf32>
    %471 = arith.truncf %470 : vector<16x512xf32> to vector<16x512xbf16>
    %c400_257 = arith.constant 400 : index
    %c0_258 = arith.constant 0 : index
    %472 = vector.load %arg14[%c400_257, %c0_258] : memref<432x512xbf16, #tpu.memory_space<vmem>>, vector<16x512xbf16>
    tpu.vector_store %arg14[%c400_257, %c0_258], %471 {strides = array<i32>} : memref<432x512xbf16, #tpu.memory_space<vmem>>, vector<16x512xbf16>,
    %c0_259 = arith.constant 0 : index
    %c402 = arith.constant 402 : index
    %473 = vector.load %arg13[%c0_259, %c402] : memref<16x1024xf32, #tpu.memory_space<vmem>>, vector<16x512xf32>
    %cst_260 = arith.constant 0.000000e+00 : f32
    %474 = vector.shape_cast %302 : vector<1x512xi1> to vector<1x512xi1>
    %475 = vector.broadcast %474 : vector<1x512xi1> to vector<16x512xi1>
    %476 = vector.broadcast %cst_260 : f32 to vector<16x512xf32>
    %477 = arith.select %475, %473, %476 : vector<16x512xi1>, vector<16x512xf32>
    %478 = arith.truncf %477 : vector<16x512xf32> to vector<16x512xbf16>
    %c416_261 = arith.constant 416 : index
    %c0_262 = arith.constant 0 : index
    %479 = vector.load %arg14[%c416_261, %c0_262] : memref<432x512xbf16, #tpu.memory_space<vmem>>, vector<16x512xbf16>
    tpu.vector_store %arg14[%c416_261, %c0_262], %478 {strides = array<i32>} : memref<432x512xbf16, #tpu.memory_space<vmem>>, vector<16x512xbf16>,
    %c0_263 = arith.constant 0 : index
    %c0_264 = arith.constant 0 : index
    %480 = vector.load %arg5[%c0_263, %c0_264] : memref<8x432xbf16, #tpu.memory_space<vmem>>, vector<8x432xbf16>
    %c0_265 = arith.constant 0 : index
    %c0_266 = arith.constant 0 : index
    %481 = vector.load %arg14[%c0_265, %c0_266] : memref<432x512xbf16, #tpu.memory_space<vmem>>, vector<432x512xbf16>
    %cst_267 = arith.constant dense<0.000000e+00> : vector<8x512xf32>
    %482 = tpu.matmul %480, %481, %cst_267 {dimension_numbers = #tpu.dot_dimension_numbers<[1], [0], [0], [1], [0, 0, 1, 1], [], []>} : vector<8x432xbf16>, vector<432x512xbf16>, vector<8x512xf32> -> vector<8x512xf32>
    %c0_268 = arith.constant 0 : index
    %c0_269 = arith.constant 0 : index
    %483 = vector.load %arg6[%c0_268, %c0_269] : memref<8x1xf32, #tpu.memory_space<vmem>>, vector<8x1xf32>
    %484 = vector.broadcast %483 : vector<8x1xf32> to vector<8x512xf32>
    %485 = arith.addf %482, %484 : vector<8x512xf32>
    %c0_270 = arith.constant 0 : index
    %c0_271 = arith.constant 0 : index
    %486 = vector.load %arg11[%c0_270, %c0_271] : memref<8x4xbf16, #tpu.memory_space<vmem>>, vector<8x4xbf16>
    %c0_272 = arith.constant 0 : index
    %c0_273 = arith.constant 0 : index
    %c0_274 = arith.constant 0 : index
    %487 = vector.load %arg1[%c0_272, %c0_273, %c0_274] : memref<1x4x512xf32, #tpu.memory_space<vmem>>, vector<1x4x512xf32>
    %488 = vector.shape_cast %487 : vector<1x4x512xf32> to vector<4x512xf32>
    %489 = arith.truncf %488 : vector<4x512xf32> to vector<4x512xbf16>
    %cst_275 = arith.constant dense<0.000000e+00> : vector<8x512xf32>
    %490 = tpu.matmul %486, %489, %cst_275 {dimension_numbers = #tpu.dot_dimension_numbers<[1], [0], [0], [1], [0, 0, 1, 1], [], []>} : vector<8x4xbf16>, vector<4x512xbf16>, vector<8x512xf32> -> vector<8x512xf32>
    %c0_276 = arith.constant 0 : index
    %c256_277 = arith.constant 256 : index
    %491 = vector.load %arg13[%c0_276, %c256_277] : memref<16x1024xf32, #tpu.memory_space<vmem>>, vector<8x512xf32>
    tpu.vector_store %arg13[%c0_276, %c256_277], %490 {strides = array<i32>} : memref<16x1024xf32, #tpu.memory_space<vmem>>, vector<8x512xf32>,
    %c0_278 = arith.constant 0 : index
    %c257_279 = arith.constant 257 : index
    %492 = vector.load %arg13[%c0_278, %c257_279] : memref<16x1024xf32, #tpu.memory_space<vmem>>, vector<8x512xf32>
    %493 = arith.addf %490, %492 : vector<8x512xf32>
    %c0_280 = arith.constant 0 : index
    %c264_281 = arith.constant 264 : index
    %494 = vector.load %arg13[%c0_280, %c264_281] : memref<16x1024xf32, #tpu.memory_space<vmem>>, vector<8x512xf32>
    %495 = arith.addf %493, %494 : vector<8x512xf32>
    %c0_282 = arith.constant 0 : index
    %c265_283 = arith.constant 265 : index
    %496 = vector.load %arg13[%c0_282, %c265_283] : memref<16x1024xf32, #tpu.memory_space<vmem>>, vector<8x512xf32>
    %497 = arith.addf %495, %496 : vector<8x512xf32>
    %c0_284 = arith.constant 0 : index
    %c320_285 = arith.constant 320 : index
    %498 = vector.load %arg13[%c0_284, %c320_285] : memref<16x1024xf32, #tpu.memory_space<vmem>>, vector<8x512xf32>
    %499 = arith.addf %497, %498 : vector<8x512xf32>
    %c0_286 = arith.constant 0 : index
    %c321_287 = arith.constant 321 : index
    %500 = vector.load %arg13[%c0_286, %c321_287] : memref<16x1024xf32, #tpu.memory_space<vmem>>, vector<8x512xf32>
    %501 = arith.addf %499, %500 : vector<8x512xf32>
    %c0_288 = arith.constant 0 : index
    %c328_289 = arith.constant 328 : index
    %502 = vector.load %arg13[%c0_288, %c328_289] : memref<16x1024xf32, #tpu.memory_space<vmem>>, vector<8x512xf32>
    %503 = arith.addf %501, %502 : vector<8x512xf32>
    %c0_290 = arith.constant 0 : index
    %c329_291 = arith.constant 329 : index
    %504 = vector.load %arg13[%c0_290, %c329_291] : memref<16x1024xf32, #tpu.memory_space<vmem>>, vector<8x512xf32>
    %505 = arith.addf %503, %504 : vector<8x512xf32>
    %cst_292 = arith.constant 1.250000e-01 : f32
    %506 = vector.broadcast %cst_292 : f32 to vector<8x512xf32>
    %507 = arith.mulf %505, %506 : vector<8x512xf32>
    %508 = arith.addf %507, %485 : vector<8x512xf32>
    %cst_293 = arith.constant 0.707106769 : f32
    %509 = vector.broadcast %cst_293 : f32 to vector<8x512xf32>
    %510 = arith.mulf %508, %509 : vector<8x512xf32>
    %c0_294 = arith.constant 0 : index
    %c0_295 = arith.constant 0 : index
    %c0_296 = arith.constant 0 : index
    %511 = vector.load %arg12[%c0_294, %c0_295, %c0_296] : memref<1x8x512xf32, #tpu.memory_space<vmem>>, vector<1x8x512xf32>
    %512 = vector.shape_cast %511 : vector<1x8x512xf32> to vector<8x512xf32>
    %513 = vector.shape_cast %510 : vector<8x512xf32> to vector<1x8x512xf32>
    tpu.vector_store %arg12[%c0_294, %c0_295, %c0_296], %513 {strides = array<i32>} : memref<1x8x512xf32, #tpu.memory_space<vmem>>, vector<1x8x512xf32>,
    return
  }
  func.func @transform_0(%arg0: i32) -> (i32, i32, i32) {
    %c0_i32 = arith.constant 0 : i32
    %c0_i32_0 = arith.constant 0 : i32
    %c0_i32_1 = arith.constant 0 : i32
    return %arg0, %c0_i32, %c0_i32_0 : i32, i32, i32
  }
  func.func @transform_1(%arg0: i32) -> (i32, i32) {
    %c0_i32 = arith.constant 0 : i32
    %c0_i32_0 = arith.constant 0 : i32
    %c0_i32_1 = arith.constant 0 : i32
    return %c0_i32, %c0_i32_0 : i32, i32
  }
  func.func @transform_2(%arg0: i32) -> (i32, i32) {
    %c0_i32 = arith.constant 0 : i32
    %c0_i32_0 = arith.constant 0 : i32
    %c0_i32_1 = arith.constant 0 : i32
    return %c0_i32, %c0_i32_0 : i32, i32
  }
  func.func @transform_3(%arg0: i32) -> (i32, i32) {
    %c0_i32 = arith.constant 0 : i32
    %c0_i32_0 = arith.constant 0 : i32
    %c0_i32_1 = arith.constant 0 : i32
    return %c0_i32, %c0_i32_0 : i32, i32
  }
  func.func @transform_4(%arg0: i32) -> (i32, i32) {
    %c0_i32 = arith.constant 0 : i32
    %c0_i32_0 = arith.constant 0 : i32
    %c0_i32_1 = arith.constant 0 : i32
    return %c0_i32, %c0_i32_0 : i32, i32
  }
  func.func @transform_5(%arg0: i32) -> (i32, i32) {
    %c0_i32 = arith.constant 0 : i32
    %c0_i32_0 = arith.constant 0 : i32
    %c0_i32_1 = arith.constant 0 : i32
    return %c0_i32, %c0_i32_0 : i32, i32
  }
  func.func @transform_6(%arg0: i32) -> (i32, i32) {
    %c0_i32 = arith.constant 0 : i32
    %c0_i32_0 = arith.constant 0 : i32
    %c0_i32_1 = arith.constant 0 : i32
    return %c0_i32, %c0_i32_0 : i32, i32
  }
  func.func @transform_7(%arg0: i32) -> (i32, i32) {
    %c0_i32 = arith.constant 0 : i32
    %c0_i32_0 = arith.constant 0 : i32
    %c0_i32_1 = arith.constant 0 : i32
    return %c0_i32, %c0_i32_0 : i32, i32
  }
  func.func @transform_8(%arg0: i32) -> (i32, i32) {
    %c0_i32 = arith.constant 0 : i32
    %c0_i32_0 = arith.constant 0 : i32
    %c0_i32_1 = arith.constant 0 : i32
    return %c0_i32, %c0_i32_0 : i32, i32
  }
  func.func @transform_9(%arg0: i32) -> (i32, i32) {
    %c0_i32 = arith.constant 0 : i32
    %c0_i32_0 = arith.constant 0 : i32
    %c0_i32_1 = arith.constant 0 : i32
    return %c0_i32, %c0_i32_0 : i32, i32
  }
  func.func @transform_10(%arg0: i32) -> (i32, i32) {
    %c0_i32 = arith.constant 0 : i32
    %c0_i32_0 = arith.constant 0 : i32
    %c0_i32_1 = arith.constant 0 : i32
    return %c0_i32, %c0_i32_0 : i32, i32
  }
  func.func @transform_11(%arg0: i32) -> (i32, i32, i32) {
    %c0_i32 = arith.constant 0 : i32
    %c0_i32_0 = arith.constant 0 : i32
    %c0_i32_1 = arith.constant 0 : i32
    return %arg0, %c0_i32, %c0_i32_0 : i32, i32, i32
  }
}

</mosaic_0001>

<llo_original>
// kernel: tpu_custom_call.1
$region0: #{tpu_custom_call.1}
  #allocation0 [shape = 'u32[]', space=smem, size = 0x4, offset = 0x4, fixed_abs, tag = 'smem constant byte address 0x4 - core index']
  #allocation1 [shape = 'u32[144,128]{1,0:T(1,128)}', space=vmem, size = 0x12000, scoped, tag = 'internal scratch']
  #allocation2 [shape = 'f32[16,1024]{1,0:T(8,128)}', space=vmem, size = 0x10000, scoped, tag = 'scratch operand']
  #allocation3 [shape = 'bf16[432,512]{1,0:T(16,128)(2,1)}', space=vmem, size = 0x6c000, scoped, tag = 'scratch operand']
  %s0 = inlined_call_operand.vmem [shape: f32[2,4,512], index: 0, kind: input, shape index: {}]
  %s1 = inlined_call_operand.hbm [shape: s32[3,512], index: 1, kind: input, shape index: {}]
  %s2 = inlined_call_operand.hbm [shape: bf16[4,432], index: 2, kind: input, shape index: {}]
  %s3 = inlined_call_operand.vmem [shape: f32[4,1], index: 3, kind: input, shape index: {}]
  %s4 = inlined_call_operand.vmem [shape: bf16[8,432], index: 4, kind: input, shape index: {}]
  %s5 = inlined_call_operand.vmem [shape: f32[8,1], index: 5, kind: input, shape index: {}]
  %s6 = inlined_call_operand.vmem [shape: f32[4,1], index: 6, kind: input, shape index: {}]
  %s7 = inlined_call_operand.vmem [shape: f32[4,1], index: 7, kind: input, shape index: {}]
  %s8 = inlined_call_operand.vmem [shape: f32[4,1], index: 8, kind: input, shape index: {}]
  %s9 = inlined_call_operand.vmem [shape: f32[4,1], index: 9, kind: input, shape index: {}]
  %s10 = inlined_call_operand.vmem [shape: bf16[8,4], index: 10, kind: input, shape index: {}]
  %s11 = inlined_call_operand.hbm [shape: f32[2,8,512], index: 11, kind: output, shape index: {}]
  %s12 = sld [smem:[#allocation0]]
  $region85: #{tpu_custom_call.1} parent=0
    _
  %s14 = ssub.s32 1, %s12
  %s15 = scalar_select 0, %s14, %s12
  $region1: #{tpu_custom_call.1} parent=0
    #allocation4 [shape = 'u8[8192]{0}', space=vmem, size = 0x2000, scoped, tag = 'input window, operand 1, single buffered']
    #allocation5 [shape = 's32[2]{0}', space=sflag, size = 0x8, scoped, tag = 'scoped memory for tpu_custom_call.1']
    #allocation6 [shape = 's32[2]{0}', space=sflag, size = 0x8, scoped, tag = 'scoped memory for tpu_custom_call.1']
    #allocation7 [shape = 'u8[4096]{0}', space=vmem, size = 0x1000, scoped, tag = 'input window, operand 2, single buffered']
    #allocation8 [shape = 's32[1]{0}', space=sflag, size = 0x4, scoped, tag = 'scoped memory for tpu_custom_call.1']
    #allocation9 [shape = 'u8[32768]{0}', space=vmem, size = 0x8000, scoped, tag = 'output window, operand 0']
    %16 = vsyncpa [#allocation5], 0
    %17 = vsyncpa [#allocation8], 0
    %18 = vsyncpa [#allocation6], 0
    %s19 = scalar_lea.sflag [#allocation6], 1
    %20 = vsyncpa %s19, 0
    loop: start=0, step=1, limit=4
    $region2: #{tpu_custom_call.1} parent=1 // loop_pre_header
      _
    $region3: #{tpu_custom_call.1} parent=1 // loop_header
      %s22 = sphi 0, %s26
      %p23 = scmp.ge.s32.totalorder %s22, 4
      %s32 = sphi 0, %s34
      %s35 = sphi 0, %s32
      %s36 = sphi 0, %s35
      %s52 = sphi 0, %s36
      %s56 = sphi 0, %s56
      %s58 = sphi 0, %s56
      %s59 = sphi 0, %s58
      %s73 = sphi 0, %s59
      %s77 = sphi 0, %s77
      %s79 = sphi 0, %s77
      %s80 = sphi 0, %s79
      %s94 = sphi 0, %s80
      %s98 = sphi 0, %s98
      %s100 = sphi 0, %s98
      %s101 = sphi 0, %s100
      %s115 = sphi 0, %s101
      %s119 = sphi 0, %s119
      %s121 = sphi 0, %s119
      %s122 = sphi 0, %s121
      %s136 = sphi 0, %s122
      %s140 = sphi 0, %s140
      %s142 = sphi 0, %s140
      %s143 = sphi 0, %s142
      %s157 = sphi 0, %s143
      %s161 = sphi 0, %s161
      %s163 = sphi 0, %s161
      %s164 = sphi 0, %s163
      %s178 = sphi 0, %s164
      %s182 = sphi 0, %s182
      %s184 = sphi 0, %s182
      %s185 = sphi 0, %s184
      %s199 = sphi 0, %s185
      %s203 = sphi 0, %s203
      %s205 = sphi 0, %s203
      %s206 = sphi 0, %s205
      %s220 = sphi 0, %s206
      %s224 = sphi 0, %s224
      %s226 = sphi 0, %s224
      %s227 = sphi 0, %s226
      %s241 = sphi 0, %s227
      %s245 = sphi 0, %s245
      %s247 = sphi 0, %s245
      %s248 = sphi 0, %s247
      %s262 = sphi 0, %s248
      %s268 = sphi 0, %s270
      %s271 = sphi 0, %s268
      %s272 = sphi 0, %s271
      %s288 = sphi 0, %s272
    $region4: #{tpu_custom_call.1} parent=1 // loop_header_branch
      %25 = sbr.rel (%p23) target = $region8
    $region5: #{tpu_custom_call.1} parent=1 // loop_body
      %s27 = ssub.s32 %s22, 1
      %s28 = ssub.s32 %s22, 2
      %s29 = sadd.s32 %s22, 1
      %s30 = ssub.s32 %s22, %s29
      %p31 = scmp.eq.s32.totalorder %s30, 0
      %s33 = sadd.s32 %s32, 1
      %s34 = scalar_select %p31, %s32, %s33
      %p37 = pneg %p31
      %p38 = scmp.eq.s32.totalorder %s22, 1
      %p39 = por %p37, %p38
      %p40 = scmp.ne.s32.totalorder %s32, %s35
      %p41 = scmp.eq.s32.totalorder %s22, 0
      %p42 = por %p40, %p41
      %p43 = scmp.ne.s32.totalorder %s32, %s35
      %p44 = scmp.eq.s32.totalorder %s27, 1
      %p45 = por %p43, %p44
      %p46 = scmp.ne.s32.totalorder %s35, %s36
      %p47 = scmp.eq.s32.totalorder %s27, 0
      %p48 = por %p46, %p47
      %p49 = scmp.ne.s32.totalorder %s35, %s36
      %p50 = scmp.eq.s32.totalorder %s28, 1
      %p51 = por %p49, %p50
      %p53 = scmp.ne.s32.totalorder %s36, %s52
      %p54 = scmp.eq.s32.totalorder %s28, 0
      %p55 = por %p53, %p54
      %s57 = sadd.s32 %s56, 1
      %p60 = scmp.eq.s32.totalorder %s22, 1
      %p61 = scmp.ne.s32.totalorder %s56, %s58
      %p62 = scmp.eq.s32.totalorder %s22, 0
      %p63 = por %p61, %p62
      %p64 = scmp.ne.s32.totalorder %s56, %s58
      %p65 = scmp.eq.s32.totalorder %s27, 1
      %p66 = por %p64, %p65
      %p67 = scmp.ne.s32.totalorder %s58, %s59
      %p68 = scmp.eq.s32.totalorder %s27, 0
      %p69 = por %p67, %p68
      %p70 = scmp.ne.s32.totalorder %s58, %s59
      %p71 = scmp.eq.s32.totalorder %s28, 1
      %p72 = por %p70, %p71
      %p74 = scmp.ne.s32.totalorder %s59, %s73
      %p75 = scmp.eq.s32.totalorder %s28, 0
      %p76 = por %p74, %p75
      %s78 = sadd.s32 %s77, 1
      %p81 = scmp.eq.s32.totalorder %s22, 1
      %p82 = scmp.ne.s32.totalorder %s77, %s79
      %p83 = scmp.eq.s32.totalorder %s22, 0
      %p84 = por %p82, %p83
      %p85 = scmp.ne.s32.totalorder %s77, %s79
      %p86 = scmp.eq.s32.totalorder %s27, 1
      %p87 = por %p85, %p86
      %p88 = scmp.ne.s32.totalorder %s79, %s80
      %p89 = scmp.eq.s32.totalorder %s27, 0
      %p90 = por %p88, %p89
      %p91 = scmp.ne.s32.totalorder %s79, %s80
      %p92 = scmp.eq.s32.totalorder %s28, 1
      %p93 = por %p91, %p92
      %p95 = scmp.ne.s32.totalorder %s80, %s94
      %p96 = scmp.eq.s32.totalorder %s28, 0
      %p97 = por %p95, %p96
      %s99 = sadd.s32 %s98, 1
      %p102 = scmp.eq.s32.totalorder %s22, 1
      %p103 = scmp.ne.s32.totalorder %s98, %s100
      %p104 = scmp.eq.s32.totalorder %s22, 0
      %p105 = por %p103, %p104
      %p106 = scmp.ne.s32.totalorder %s98, %s100
      %p107 = scmp.eq.s32.totalorder %s27, 1
      %p108 = por %p106, %p107
      %p109 = scmp.ne.s32.totalorder %s100, %s101
      %p110 = scmp.eq.s32.totalorder %s27, 0
      %p111 = por %p109, %p110
      %p112 = scmp.ne.s32.totalorder %s100, %s101
      %p113 = scmp.eq.s32.totalorder %s28, 1
      %p114 = por %p112, %p113
      %p116 = scmp.ne.s32.totalorder %s101, %s115
      %p117 = scmp.eq.s32.totalorder %s28, 0
      %p118 = por %p116, %p117
      %s120 = sadd.s32 %s119, 1
      %p123 = scmp.eq.s32.totalorder %s22, 1
      %p124 = scmp.ne.s32.totalorder %s119, %s121
      %p125 = scmp.eq.s32.totalorder %s22, 0
      %p126 = por %p124, %p125
      %p127 = scmp.ne.s32.totalorder %s119, %s121
      %p128 = scmp.eq.s32.totalorder %s27, 1
      %p129 = por %p127, %p128
      %p130 = scmp.ne.s32.totalorder %s121, %s122
      %p131 = scmp.eq.s32.totalorder %s27, 0
      %p132 = por %p130, %p131
      %p133 = scmp.ne.s32.totalorder %s121, %s122
      %p134 = scmp.eq.s32.totalorder %s28, 1
      %p135 = por %p133, %p134
      %p137 = scmp.ne.s32.totalorder %s122, %s136
      %p138 = scmp.eq.s32.totalorder %s28, 0
      %p139 = por %p137, %p138
      %s141 = sadd.s32 %s140, 1
      %p144 = scmp.eq.s32.totalorder %s22, 1
      %p145 = scmp.ne.s32.totalorder %s140, %s142
      %p146 = scmp.eq.s32.totalorder %s22, 0
      %p147 = por %p145, %p146
      %p148 = scmp.ne.s32.totalorder %s140, %s142
      %p149 = scmp.eq.s32.totalorder %s27, 1
      %p150 = por %p148, %p149
      %p151 = scmp.ne.s32.totalorder %s142, %s143
      %p152 = scmp.eq.s32.totalorder %s27, 0
      %p153 = por %p151, %p152
      %p154 = scmp.ne.s32.totalorder %s142, %s143
      %p155 = scmp.eq.s32.totalorder %s28, 1
      %p156 = por %p154, %p155
      %p158 = scmp.ne.s32.totalorder %s143, %s157
      %p159 = scmp.eq.s32.totalorder %s28, 0
      %p160 = por %p158, %p159
      %s162 = sadd.s32 %s161, 1
      %p165 = scmp.eq.s32.totalorder %s22, 1
      %p166 = scmp.ne.s32.totalorder %s161, %s163
      %p167 = scmp.eq.s32.totalorder %s22, 0
      %p168 = por %p166, %p167
      %p169 = scmp.ne.s32.totalorder %s161, %s163
      %p170 = scmp.eq.s32.totalorder %s27, 1
      %p171 = por %p169, %p170
      %p172 = scmp.ne.s32.totalorder %s163, %s164
      %p173 = scmp.eq.s32.totalorder %s27, 0
      %p174 = por %p172, %p173
      %p175 = scmp.ne.s32.totalorder %s163, %s164
      %p176 = scmp.eq.s32.totalorder %s28, 1
      %p177 = por %p175, %p176
      %p179 = scmp.ne.s32.totalorder %s164, %s178
      %p180 = scmp.eq.s32.totalorder %s28, 0
      %p181 = por %p179, %p180
      %s183 = sadd.s32 %s182, 1
      %p186 = scmp.eq.s32.totalorder %s22, 1
      %p187 = scmp.ne.s32.totalorder %s182, %s184
      %p188 = scmp.eq.s32.totalorder %s22, 0
      %p189 = por %p187, %p188
      %p190 = scmp.ne.s32.totalorder %s182, %s184
      %p191 = scmp.eq.s32.totalorder %s27, 1
      %p192 = por %p190, %p191
      %p193 = scmp.ne.s32.totalorder %s184, %s185
      %p194 = scmp.eq.s32.totalorder %s27, 0
      %p195 = por %p193, %p194
      %p196 = scmp.ne.s32.totalorder %s184, %s185
      %p197 = scmp.eq.s32.totalorder %s28, 1
      %p198 = por %p196, %p197
      %p200 = scmp.ne.s32.totalorder %s185, %s199
      %p201 = scmp.eq.s32.totalorder %s28, 0
      %p202 = por %p200, %p201
      %s204 = sadd.s32 %s203, 1
      %p207 = scmp.eq.s32.totalorder %s22, 1
      %p208 = scmp.ne.s32.totalorder %s203, %s205
      %p209 = scmp.eq.s32.totalorder %s22, 0
      %p210 = por %p208, %p209
      %p211 = scmp.ne.s32.totalorder %s203, %s205
      %p212 = scmp.eq.s32.totalorder %s27, 1
      %p213 = por %p211, %p212
      %p214 = scmp.ne.s32.totalorder %s205, %s206
      %p215 = scmp.eq.s32.totalorder %s27, 0
      %p216 = por %p214, %p215
      %p217 = scmp.ne.s32.totalorder %s205, %s206
      %p218 = scmp.eq.s32.totalorder %s28, 1
      %p219 = por %p217, %p218
      %p221 = scmp.ne.s32.totalorder %s206, %s220
      %p222 = scmp.eq.s32.totalorder %s28, 0
      %p223 = por %p221, %p222
      %s225 = sadd.s32 %s224, 1
      %p228 = scmp.eq.s32.totalorder %s22, 1
      %p229 = scmp.ne.s32.totalorder %s224, %s226
      %p230 = scmp.eq.s32.totalorder %s22, 0
      %p231 = por %p229, %p230
      %p232 = scmp.ne.s32.totalorder %s224, %s226
      %p233 = scmp.eq.s32.totalorder %s27, 1
      %p234 = por %p232, %p233
      %p235 = scmp.ne.s32.totalorder %s226, %s227
      %p236 = scmp.eq.s32.totalorder %s27, 0
      %p237 = por %p235, %p236
      %p238 = scmp.ne.s32.totalorder %s226, %s227
      %p239 = scmp.eq.s32.totalorder %s28, 1
      %p240 = por %p238, %p239
      %p242 = scmp.ne.s32.totalorder %s227, %s241
      %p243 = scmp.eq.s32.totalorder %s28, 0
      %p244 = por %p242, %p243
      %s246 = sadd.s32 %s245, 1
      %p249 = scmp.eq.s32.totalorder %s22, 1
      %p250 = scmp.ne.s32.totalorder %s245, %s247
      %p251 = scmp.eq.s32.totalorder %s22, 0
      %p252 = por %p250, %p251
      %p253 = scmp.ne.s32.totalorder %s245, %s247
      %p254 = scmp.eq.s32.totalorder %s27, 1
      %p255 = por %p253, %p254
      %p256 = scmp.ne.s32.totalorder %s247, %s248
      %p257 = scmp.eq.s32.totalorder %s27, 0
      %p258 = por %p256, %p257
      %p259 = scmp.ne.s32.totalorder %s247, %s248
      %p260 = scmp.eq.s32.totalorder %s28, 1
      %p261 = por %p259, %p260
      %p263 = scmp.ne.s32.totalorder %s248, %s262
      %p264 = scmp.eq.s32.totalorder %s28, 0
      %p265 = por %p263, %p264
      %s266 = ssub.s32 %s22, %s29
      %p267 = scmp.eq.s32.totalorder %s266, 0
      %s269 = sadd.s32 %s268, 1
      %s270 = scalar_select %p267, %s268, %s269
      %p273 = pneg %p267
      %p274 = scmp.eq.s32.totalorder %s22, 1
      %p275 = por %p273, %p274
      %p276 = scmp.ne.s32.totalorder %s268, %s271
      %p277 = scmp.eq.s32.totalorder %s22, 0
      %p278 = por %p276, %p277
      %p279 = scmp.ne.s32.totalorder %s268, %s271
      %p280 = scmp.eq.s32.totalorder %s27, 1
      %p281 = por %p279, %p280
      %p282 = scmp.ne.s32.totalorder %s271, %s272
      %p283 = scmp.eq.s32.totalorder %s27, 0
      %p284 = por %p282, %p283
      %p285 = scmp.ne.s32.totalorder %s271, %s272
      %p286 = scmp.eq.s32.totalorder %s28, 1
      %p287 = por %p285, %p286
      %p289 = scmp.ne.s32.totalorder %s272, %s288
      %p290 = scmp.eq.s32.totalorder %s28, 0
      %p291 = por %p289, %p290
      %p292 = scmp.le.s32.totalorder 1, %s22
      %p293 = scmp.lt.s32.totalorder %s22, 3
      %p294 = pnand %p292, %p293
      %p295 = pneg %p294
      // Predicated region
      $region9: #{tpu_custom_call.1} parent=5 // pred_check
        _
      $region10: #{tpu_custom_call.1} parent=5 // pred_check_branch
        %297 = sbr.rel (%p294) target = $region12
      $region11: #{tpu_custom_call.1} parent=5 // pred_region
        %s298 = ssub.s32 %s22, 1
        // Predicated region
        $region13: #{tpu_custom_call.1} parent=11 // pred_check
          %p299 = pneg %p69
        $region14: #{tpu_custom_call.1} parent=11 // pred_check_branch
          %301 = sbr.rel (%p299) target = $region16
        $region15: #{tpu_custom_call.1} parent=11 // pred_region
          %s303 = ssub.s32 256, 256
          %304 = vsyncadd [#allocation5], %s303
          %s306 = sshll.u32 [#allocation4], 4
          %s307 = int_to_ptr.vmem [resolvable:$true] %s306
          %309 = dma.hbm_to_vmem [thread:$0]  %s1, 256, %s307, [#allocation5]
        $region16: #{tpu_custom_call.1} parent=11 // pred_fallthru
          _
        // Predicated region
        $region17: #{tpu_custom_call.1} parent=11 // pred_check
          %p310 = pneg %p90
        $region18: #{tpu_custom_call.1} parent=11 // pred_check_branch
          %312 = sbr.rel (%p310) target = $region20
        $region19: #{tpu_custom_call.1} parent=11 // pred_region
          %s314 = ssub.s32 128, 128
          %315 = vsyncadd [#allocation8], %s314
          %s317 = sshll.u32 [#allocation7], 4
          %s318 = int_to_ptr.vmem [resolvable:$true] %s317
          %320 = dma.hbm_to_vmem [thread:$0]  %s2, 128, %s318, [#allocation8]
        $region20: #{tpu_custom_call.1} parent=11 // pred_fallthru
          _
        // Predicated region
        $region21: #{tpu_custom_call.1} parent=11 // pred_check
          %p321 = pneg %p111
        $region22: #{tpu_custom_call.1} parent=11 // pred_check_branch
          %323 = sbr.rel (%p321) target = $region24
        $region23: #{tpu_custom_call.1} parent=11 // pred_region
          _
        $region24: #{tpu_custom_call.1} parent=11 // pred_fallthru
          _
        // Predicated region
        $region25: #{tpu_custom_call.1} parent=11 // pred_check
          %p324 = pneg %p132
        $region26: #{tpu_custom_call.1} parent=11 // pred_check_branch
          %326 = sbr.rel (%p324) target = $region28
        $region27: #{tpu_custom_call.1} parent=11 // pred_region
          _
        $region28: #{tpu_custom_call.1} parent=11 // pred_fallthru
          _
        // Predicated region
        $region29: #{tpu_custom_call.1} parent=11 // pred_check
          %p327 = pneg %p153
        $region30: #{tpu_custom_call.1} parent=11 // pred_check_branch
          %329 = sbr.rel (%p327) target = $region32
        $region31: #{tpu_custom_call.1} parent=11 // pred_region
          _
        $region32: #{tpu_custom_call.1} parent=11 // pred_fallthru
          _
        // Predicated region
        $region33: #{tpu_custom_call.1} parent=11 // pred_check
          %p330 = pneg %p174
        $region34: #{tpu_custom_call.1} parent=11 // pred_check_branch
          %332 = sbr.rel (%p330) target = $region36
        $region35: #{tpu_custom_call.1} parent=11 // pred_region
          _
        $region36: #{tpu_custom_call.1} parent=11 // pred_fallthru
          _
        // Predicated region
        $region37: #{tpu_custom_call.1} parent=11 // pred_check
          %p333 = pneg %p195
        $region38: #{tpu_custom_call.1} parent=11 // pred_check_branch
          %335 = sbr.rel (%p333) target = $region40
        $region39: #{tpu_custom_call.1} parent=11 // pred_region
          _
        $region40: #{tpu_custom_call.1} parent=11 // pred_fallthru
          _
        // Predicated region
        $region41: #{tpu_custom_call.1} parent=11 // pred_check
          %p336 = pneg %p216
        $region42: #{tpu_custom_call.1} parent=11 // pred_check_branch
          %338 = sbr.rel (%p336) target = $region44
        $region43: #{tpu_custom_call.1} parent=11 // pred_region
          _
        $region44: #{tpu_custom_call.1} parent=11 // pred_fallthru
          _
        // Predicated region
        $region45: #{tpu_custom_call.1} parent=11 // pred_check
          %p339 = pneg %p237
        $region46: #{tpu_custom_call.1} parent=11 // pred_check_branch
          %341 = sbr.rel (%p339) target = $region48
        $region47: #{tpu_custom_call.1} parent=11 // pred_region
          _
        $region48: #{tpu_custom_call.1} parent=11 // pred_fallthru
          _
        // Predicated region
        $region49: #{tpu_custom_call.1} parent=11 // pred_check
          %p342 = pneg %p258
        $region50: #{tpu_custom_call.1} parent=11 // pred_check_branch
          %344 = sbr.rel (%p342) target = $region52
        $region51: #{tpu_custom_call.1} parent=11 // pred_region
          _
        $region52: #{tpu_custom_call.1} parent=11 // pred_fallthru
          _
      $region12: #{tpu_custom_call.1} parent=5 // pred_fallthru
        _
      %p345 = scmp.lt.s32.totalorder %s22, 2
      // Predicated region
      $region53: #{tpu_custom_call.1} parent=5 // pred_check
        %p346 = pneg %p345
      $region54: #{tpu_custom_call.1} parent=5 // pred_check_branch
        %348 = sbr.rel (%p346) target = $region56
      $region55: #{tpu_custom_call.1} parent=5 // pred_region
        // Predicated region
        $region57: #{tpu_custom_call.1} parent=55 // pred_check
          %p349 = pneg %p42
        $region58: #{tpu_custom_call.1} parent=55 // pred_check_branch
          %351 = sbr.rel (%p349) target = $region60
        $region59: #{tpu_custom_call.1} parent=55 // pred_region
          %p352 = scmp.lt.s32.totalorder %s22, 1
          %s353 = scalar_select %p352, %s22, 1
          %s354 = smul.addr %s353, 4
          %s355 = smul.addr %s354, 4
          %s356 = scalar_lea.vmem %s0, %s355
        $region60: #{tpu_custom_call.1} parent=55 // pred_fallthru
          _
      $region56: #{tpu_custom_call.1} parent=5 // pred_fallthru
        _
      %p357 = scmp.le.s32.totalorder 1, %s22
      %p358 = scmp.lt.s32.totalorder %s22, 3
      %p359 = pnand %p357, %p358
      %p360 = pneg %p359
      // Predicated region
      $region61: #{tpu_custom_call.1} parent=5 // pred_check
        _
      $region62: #{tpu_custom_call.1} parent=5 // pred_check_branch
        %362 = sbr.rel (%p359) target = $region64
      $region63: #{tpu_custom_call.1} parent=5 // pred_region
        %s363 = ssub.s32 %s22, 1
        // Predicated region
        $region65: #{tpu_custom_call.1} parent=63 // pred_check
          %p364 = pneg %p69
        $region66: #{tpu_custom_call.1} parent=63 // pred_check_branch
          %366 = sbr.rel (%p364) target = $region68
        $region67: #{tpu_custom_call.1} parent=63 // pred_region
          %367 = dma.done [#allocation5], 256
        $region68: #{tpu_custom_call.1} parent=63 // pred_fallthru
          _
        // Predicated region
        $region69: #{tpu_custom_call.1} parent=63 // pred_check
          %p368 = pneg %p90
        $region70: #{tpu_custom_call.1} parent=63 // pred_check_branch
          %370 = sbr.rel (%p368) target = $region72
        $region71: #{tpu_custom_call.1} parent=63 // pred_region
          %371 = dma.done [#allocation8], 128
        $region72: #{tpu_custom_call.1} parent=63 // pred_fallthru
          _
        %p372 = scmp.lt.s32.totalorder %s27, 1
        %s373 = scalar_select %p372, %s27, 1
        %s374 = smul.addr %s373, 4
        %s375 = smul.addr %s374, 4
        %s376 = scalar_lea.vmem %s0, %s375
        %p377 = pneg %p48
        %p378 = pneg %p45
        %p379 = pneg %p69
        %p380 = pneg %p66
        %p381 = pneg %p90
        %p382 = pneg %p87
        %p383 = pneg %p111
        %p384 = pneg %p108
        %p385 = pneg %p132
        %p386 = pneg %p129
        %p387 = pneg %p153
        %p388 = pneg %p150
        %p389 = pneg %p174
        %p390 = pneg %p171
        %p391 = pneg %p195
        %p392 = pneg %p192
        %p393 = pneg %p216
        %p394 = pneg %p213
        %p395 = pneg %p237
        %p396 = pneg %p234
        %p397 = pneg %p258
        %p398 = pneg %p255
        %p399 = pneg %p284
        %p400 = pneg %p281
        %s401 = sand.u32 %s271, 1
        %s402 = scalar_lea.sflag [#allocation6], %s401
        %s403 = sand.u32 %s271, 1
        %s404 = smul.addr %s403, 32
        %s405 = scalar_lea.vmem [#allocation9], %s404
        %p406 = scmp.lt.s32.totalorder %s27, 1
        %s407 = scalar_select %p406, %s27, 1
        %s408 = smul.addr %s407, 4
        %s409 = smul.addr %s408, 4
        %s410 = scalar_lea.vmem %s0, %s409
        %412 = vst [vmem:[#allocation2] sm:$0xff] 0.0
        %413 = vst [vmem:[#allocation2 + $0x8] sm:$0xff] 0.0
        %414 = vst [vmem:[#allocation2 + $0x40] sm:$0xff] 0.0
        %415 = vst [vmem:[#allocation2 + $0x48] sm:$0xff] 0.0
        %416 = vst [vmem:[#allocation2 + $0x30] sm:$0xff] 0.0
        %417 = vst [vmem:[#allocation2 + $0x38] sm:$0xff] 0.0
        %418 = vst [vmem:[#allocation2 + $0x70] sm:$0xff] 0.0
        %419 = vst [vmem:[#allocation2 + $0x78] sm:$0xff] 0.0
        %420 = vst [vmem:[#allocation2] sm:$0xf0] 0.0
        %421 = vst [vmem:[#allocation2 + $0x8] sm:$0xf0] 0.0
        %422 = vst [vmem:[#allocation2 + $0x10] sm:$0xf0] 0.0
        %423 = vst [vmem:[#allocation2 + $0x18] sm:$0xf0] 0.0
        %424 = vst [vmem:[#allocation2 + $0x20] sm:$0xf0] 0.0
        %425 = vst [vmem:[#allocation2 + $0x28] sm:$0xf0] 0.0
        %426 = vst [vmem:[#allocation2 + $0x30] sm:$0xf0] 0.0
        %427 = vst [vmem:[#allocation2 + $0x38] sm:$0xf0] 0.0
        %428 = vst [vmem:[#allocation2 + $0x40] sm:$0xff] 0.0
        %429 = vst [vmem:[#allocation2 + $0x48] sm:$0xff] 0.0
        %430 = vst [vmem:[#allocation2 + $0x50] sm:$0xff] 0.0
        %431 = vst [vmem:[#allocation2 + $0x58] sm:$0xff] 0.0
        %432 = vst [vmem:[#allocation2 + $0x60] sm:$0xff] 0.0
        %433 = vst [vmem:[#allocation2 + $0x68] sm:$0xff] 0.0
        %434 = vst [vmem:[#allocation2 + $0x70] sm:$0xff] 0.0
        %435 = vst [vmem:[#allocation2 + $0x78] sm:$0xff] 0.0
        %v436 = vld [vmem:[#allocation4] ss:$4 sm:$0xf]
        %s437 = scalar_lea.vmem [#allocation4], 1
        %v438 = vld [vmem:[%s437] ss:$4 sm:$0xf]
        %v439 = vld [vmem:[%s410] sm:$0xff]
        %v440 = vld [vmem:[%s410 + $0x8] sm:$0xff]
        %v443 = vcombine.high %v439, %v439
        %v444 = vcombine.high %v440, %v440
        %vm447 = vcmask 1043456
        %v448 = vsel %vm447, %v439, 0.0
        %v449 = vsel %vm447, %v443, 0.0
        %v450 = vadd.f32 %v448, %v449
        %v451 = vsel %vm447, %v440, 0.0
        %v452 = vadd.f32 %v450, %v451
        %v453 = vsel %vm447, %v444, 0.0
        %v454 = vadd.f32 %v452, %v453
        %455 = vadd.xlane.f32.xlu0 %v454
        %v456 = vpop.xlane.xlu0 %455
        %v457 = vrcp.pop 512.0
        %v458 = vmul.f32 %v456, %v457
        %v461 = vunpack.c.l.s4 839922192
        %v462 = vunpack.c.0.s8 %v461
        %v463 = vlaneseq
        %v464 = vshrl.u32 %v463, 7
        %v465 = vsub.s32 %v462, %v464
        %v466 = vrot.slane %v458, %v465
        %v468 = vsub.f32 %v439, %v466
        %v469 = vsub.f32 %v440, %v466
        %v470 = vmul.f32 %v468, %v468
        %v471 = vmul.f32 %v469, %v469
        %v474 = vcombine.high %v470, %v470
        %v475 = vcombine.high %v471, %v471
        %v478 = vsel %vm447, %v470, 0.0
        %v479 = vsel %vm447, %v474, 0.0
        %v480 = vadd.f32 %v478, %v479
        %v481 = vsel %vm447, %v471, 0.0
        %v482 = vadd.f32 %v480, %v481
        %v483 = vsel %vm447, %v475, 0.0
        %v484 = vadd.f32 %v482, %v483
        %485 = vadd.xlane.f32.xlu0 %v484
        %v486 = vpop.xlane.xlu0 %485
        %v487 = vmul.f32 %v486, %v457
        %v488 = vadd.f32 %v487, 1e-05
        %v489 = vrsqrt.pop %v488
        %v492 = vunpack.c.l.s4 839922192
        %v493 = vunpack.c.0.s8 %v492
        %v494 = vlaneseq
        %v495 = vshrl.u32 %v494, 7
        %v496 = vsub.s32 %v493, %v495
        %v497 = vrot.slane %v489, %v496
        %v499 = vmul.f32 %v468, %v497
        %v500 = vmul.f32 %v469, %v497
        %v501 = vld [vmem:[%s6] sm:$0xf]
        %503 = vset.pattern.permute.xlu0 0
        %504 = vperm.xlu0 %503, %v501
        %v505 = vpop.permute.xlu0 %504
        %v507 = vunpack.c.l.s4 839922192
        %v508 = vunpack.c.0.s8 %v507
        %v509 = vlaneseq
        %v510 = vshrl.u32 %v509, 7
        %v511 = vsub.s32 %v508, %v510
        %v512 = vrot.slane %v505, %v511
        %v514 = vmul.f32 %v499, %v512
        %v515 = vmul.f32 %v500, %v512
        %v516 = vld [vmem:[%s7] sm:$0xf]
        %518 = vset.pattern.permute.xlu0 0
        %519 = vperm.xlu0 %518, %v516
        %v520 = vpop.permute.xlu0 %519
        %v522 = vunpack.c.l.s4 839922192
        %v523 = vunpack.c.0.s8 %v522
        %v524 = vlaneseq
        %v525 = vshrl.u32 %v524, 7
        %v526 = vsub.s32 %v523, %v525
        %v527 = vrot.slane %v520, %v526
        %v529 = vadd.f32 %v514, %v527
        %v530 = vadd.f32 %v515, %v527
        %vm531 = vcmp.gt.f32.partialorder %v529, 0.0
        %vm532 = vcmp.gt.f32.partialorder %v530, 0.0
        %v533 = vmul.f32 %v529, 0.2
        %v534 = vmul.f32 %v530, 0.2
        %v535 = vsel %vm531, %v529, %v533
        %v536 = vsel %vm532, %v530, %v534
        %v539 = vcombine.high %v535, %v535
        %v540 = vcombine.high %v536, %v536
        %543 = vst [vmem:[#allocation2 + $0x10] sm:$0xf] %v535
        %544 = vst [vmem:[#allocation2 + $0x18] sm:$0xf] %v539
        %545 = vst [vmem:[#allocation2 + $0x20] sm:$0xf] %v536
        %546 = vst [vmem:[#allocation2 + $0x28] sm:$0xf] %v540
        %vm547 = vcmp.ge.s32.totalorder %v436, 1
        %vm548 = vcmp.lt.s32.totalorder %v436, 7
        %vm549 = vcmp.ge.s32.totalorder %v438, 1
        %vm550 = vcmp.lt.s32.totalorder %v438, 7
        %vm551 = vmand %vm547, %vm549
        %vm552 = vmand %vm547, %vm550
        %vm553 = vmand %vm548, %vm549
        %vm554 = vmand %vm548, %vm550
        %v555 = vld [vmem:[#allocation2 + $0x8] sm:$0xff]
        %v556 = vld [vmem:[#allocation2 + $0x10] sm:$0xff]
        %v557 = vld [vmem:[#allocation2 + $0x18] sm:$0xff]
        %v558 = vld [vmem:[#allocation2 + $0x20] sm:$0xff]
        %v559 = vld [vmem:[#allocation2 + $0x28] sm:$0xff]
        %v560 = vld [vmem:[#allocation2 + $0x48] sm:$0xff]
        %v561 = vld [vmem:[#allocation2 + $0x50] sm:$0xff]
        %v562 = vld [vmem:[#allocation2 + $0x58] sm:$0xff]
        %v563 = vld [vmem:[#allocation2 + $0x60] sm:$0xff]
        %v564 = vld [vmem:[#allocation2 + $0x68] sm:$0xff]
        %v565 = vsel %vm551, 1, 0
        %v566 = vlaneseq
        %v567 = vshrl.u32 %v566, 7
        %v568 = vsub.s32 0, %v567
        %v569 = vrot.slane %v565, %v568
        %v570 = vlaneseq
        %v571 = vshrl.u32 %v570, 7
        %v572 = vsub.s32 1, %v571
        %v573 = vrot.slane %v565, %v572
        %v574 = vlaneseq
        %v575 = vshrl.u32 %v574, 7
        %v576 = vsub.s32 2, %v575
        %v577 = vrot.slane %v565, %v576
        %v578 = vlaneseq
        %v579 = vshrl.u32 %v578, 7
        %v580 = vsub.s32 3, %v579
        %v581 = vrot.slane %v565, %v580
        %vm582 = vcmp.eq.s32.totalorder %v569, 1
        %vm583 = vcmp.eq.s32.totalorder %v573, 1
        %vm584 = vcmp.eq.s32.totalorder %v577, 1
        %vm585 = vcmp.eq.s32.totalorder %v581, 1
        %596 = vrot.lane.b32.xlu0 %v555, 73
        %v597 = vpop.permute.xlu0 %596
        %598 = vrot.lane.b32.xlu0 %v556, 73
        %v599 = vpop.permute.xlu0 %598
        %600 = vrot.lane.b32.xlu0 %v557, 73
        %v601 = vpop.permute.xlu0 %600
        %602 = vrot.lane.b32.xlu0 %v558, 73
        %v603 = vpop.permute.xlu0 %602
        %604 = vrot.lane.b32.xlu0 %v559, 73
        %v605 = vpop.permute.xlu0 %604
        %606 = vrot.lane.b32.xlu0 %v560, 73
        %v607 = vpop.permute.xlu0 %606
        %608 = vrot.lane.b32.xlu0 %v561, 73
        %v609 = vpop.permute.xlu0 %608
        %610 = vrot.lane.b32.xlu0 %v562, 73
        %v611 = vpop.permute.xlu0 %610
        %612 = vrot.lane.b32.xlu0 %v563, 73
        %v613 = vpop.permute.xlu0 %612
        %614 = vrot.lane.b32.xlu0 %v564, 73
        %v615 = vpop.permute.xlu0 %614
        %vm616 = vcmask 596992
        %v617 = vsel %vm616, %v597, %v599
        %v618 = vsel %vm616, %v599, %v601
        %v619 = vsel %vm616, %v601, %v603
        %v620 = vsel %vm616, %v603, %v605
        %v621 = vsel %vm616, %v607, %v609
        %v622 = vsel %vm616, %v609, %v611
        %v623 = vsel %vm616, %v611, %v613
        %v624 = vsel %vm616, %v613, %v615
        %v633 = vsel %vm582, %v617, 0.0
        %v634 = vsel %vm583, %v618, 0.0
        %v635 = vsel %vm584, %v619, 0.0
        %v636 = vsel %vm585, %v620, 0.0
        %v637 = vsel %vm582, %v621, 0.0
        %v638 = vsel %vm583, %v622, 0.0
        %v639 = vsel %vm584, %v623, 0.0
        %v640 = vsel %vm585, %v624, 0.0
        %v641 = vpack.c.bf16 %v637, %v633
        %v642 = vpack.c.bf16 %v638, %v634
        %v643 = vpack.c.bf16 %v639, %v635
        %v644 = vpack.c.bf16 %v640, %v636
        %645 = vst [vmem:[#allocation3] sm:$0xff] %v641
        %646 = vst [vmem:[#allocation3 + $0x8] sm:$0xff] %v642
        %647 = vst [vmem:[#allocation3 + $0x10] sm:$0xff] %v643
        %648 = vst [vmem:[#allocation3 + $0x18] sm:$0xff] %v644
        %v649 = vld [vmem:[#allocation2 + $0x8] sm:$0xff]
        %v650 = vld [vmem:[#allocation2 + $0x10] sm:$0xff]
        %v651 = vld [vmem:[#allocation2 + $0x18] sm:$0xff]
        %v652 = vld [vmem:[#allocation2 + $0x20] sm:$0xff]
        %v653 = vld [vmem:[#allocation2 + $0x28] sm:$0xff]
        %v654 = vld [vmem:[#allocation2 + $0x48] sm:$0xff]
        %v655 = vld [vmem:[#allocation2 + $0x50] sm:$0xff]
        %v656 = vld [vmem:[#allocation2 + $0x58] sm:$0xff]
        %v657 = vld [vmem:[#allocation2 + $0x60] sm:$0xff]
        %v658 = vld [vmem:[#allocation2 + $0x68] sm:$0xff]
        %v659 = vsel %vm547, 1, 0
        %v660 = vlaneseq
        %v661 = vshrl.u32 %v660, 7
        %v662 = vsub.s32 0, %v661
        %v663 = vrot.slane %v659, %v662
        %v664 = vlaneseq
        %v665 = vshrl.u32 %v664, 7
        %v666 = vsub.s32 1, %v665
        %v667 = vrot.slane %v659, %v666
        %v668 = vlaneseq
        %v669 = vshrl.u32 %v668, 7
        %v670 = vsub.s32 2, %v669
        %v671 = vrot.slane %v659, %v670
        %v672 = vlaneseq
        %v673 = vshrl.u32 %v672, 7
        %v674 = vsub.s32 3, %v673
        %v675 = vrot.slane %v659, %v674
        %vm676 = vcmp.eq.s32.totalorder %v663, 1
        %vm677 = vcmp.eq.s32.totalorder %v667, 1
        %vm678 = vcmp.eq.s32.totalorder %v671, 1
        %vm679 = vcmp.eq.s32.totalorder %v675, 1
        %690 = vrot.lane.b32.xlu0 %v649, 72
        %v691 = vpop.permute.xlu0 %690
        %692 = vrot.lane.b32.xlu0 %v650, 72
        %v693 = vpop.permute.xlu0 %692
        %694 = vrot.lane.b32.xlu0 %v651, 72
        %v695 = vpop.permute.xlu0 %694
        %696 = vrot.lane.b32.xlu0 %v652, 72
        %v697 = vpop.permute.xlu0 %696
        %698 = vrot.lane.b32.xlu0 %v653, 72
        %v699 = vpop.permute.xlu0 %698
        %700 = vrot.lane.b32.xlu0 %v654, 72
        %v701 = vpop.permute.xlu0 %700
        %702 = vrot.lane.b32.xlu0 %v655, 72
        %v703 = vpop.permute.xlu0 %702
        %704 = vrot.lane.b32.xlu0 %v656, 72
        %v705 = vpop.permute.xlu0 %704
        %706 = vrot.lane.b32.xlu0 %v657, 72
        %v707 = vpop.permute.xlu0 %706
        %708 = vrot.lane.b32.xlu0 %v658, 72
        %v709 = vpop.permute.xlu0 %708
        %vm710 = vcmask 588800
        %v711 = vsel %vm710, %v691, %v693
        %v712 = vsel %vm710, %v693, %v695
        %v713 = vsel %vm710, %v695, %v697
        %v714 = vsel %vm710, %v697, %v699
        %v715 = vsel %vm710, %v701, %v703
        %v716 = vsel %vm710, %v703, %v705
        %v717 = vsel %vm710, %v705, %v707
        %v718 = vsel %vm710, %v707, %v709
        %v727 = vsel %vm676, %v711, 0.0
        %v728 = vsel %vm677, %v712, 0.0
        %v729 = vsel %vm678, %v713, 0.0
        %v730 = vsel %vm679, %v714, 0.0
        %v731 = vsel %vm676, %v715, 0.0
        %v732 = vsel %vm677, %v716, 0.0
        %v733 = vsel %vm678, %v717, 0.0
        %v734 = vsel %vm679, %v718, 0.0
        %v735 = vpack.c.bf16 %v731, %v727
        %v736 = vpack.c.bf16 %v732, %v728
        %v737 = vpack.c.bf16 %v733, %v729
        %v738 = vpack.c.bf16 %v734, %v730
        %739 = vst [vmem:[#allocation3 + $0x20] sm:$0xff] %v735
        %740 = vst [vmem:[#allocation3 + $0x28] sm:$0xff] %v736
        %741 = vst [vmem:[#allocation3 + $0x30] sm:$0xff] %v737
        %742 = vst [vmem:[#allocation3 + $0x38] sm:$0xff] %v738
        %v743 = vld [vmem:[#allocation2 + $0x8] sm:$0xff]
        %v744 = vld [vmem:[#allocation2 + $0x10] sm:$0xff]
        %v745 = vld [vmem:[#allocation2 + $0x18] sm:$0xff]
        %v746 = vld [vmem:[#allocation2 + $0x20] sm:$0xff]
        %v747 = vld [vmem:[#allocation2 + $0x28] sm:$0xff]
        %v748 = vld [vmem:[#allocation2 + $0x48] sm:$0xff]
        %v749 = vld [vmem:[#allocation2 + $0x50] sm:$0xff]
        %v750 = vld [vmem:[#allocation2 + $0x58] sm:$0xff]
        %v751 = vld [vmem:[#allocation2 + $0x60] sm:$0xff]
        %v752 = vld [vmem:[#allocation2 + $0x68] sm:$0xff]
        %v753 = vsel %vm552, 1, 0
        %v754 = vlaneseq
        %v755 = vshrl.u32 %v754, 7
        %v756 = vsub.s32 0, %v755
        %v757 = vrot.slane %v753, %v756
        %v758 = vlaneseq
        %v759 = vshrl.u32 %v758, 7
        %v760 = vsub.s32 1, %v759
        %v761 = vrot.slane %v753, %v760
        %v762 = vlaneseq
        %v763 = vshrl.u32 %v762, 7
        %v764 = vsub.s32 2, %v763
        %v765 = vrot.slane %v753, %v764
        %v766 = vlaneseq
        %v767 = vshrl.u32 %v766, 7
        %v768 = vsub.s32 3, %v767
        %v769 = vrot.slane %v753, %v768
        %vm770 = vcmp.eq.s32.totalorder %v757, 1
        %vm771 = vcmp.eq.s32.totalorder %v761, 1
        %vm772 = vcmp.eq.s32.totalorder %v765, 1
        %vm773 = vcmp.eq.s32.totalorder %v769, 1
        %784 = vrot.lane.b32.xlu0 %v743, 71
        %v785 = vpop.permute.xlu0 %784
        %786 = vrot.lane.b32.xlu0 %v744, 71
        %v787 = vpop.permute.xlu0 %786
        %788 = vrot.lane.b32.xlu0 %v745, 71
        %v789 = vpop.permute.xlu0 %788
        %790 = vrot.lane.b32.xlu0 %v746, 71
        %v791 = vpop.permute.xlu0 %790
        %792 = vrot.lane.b32.xlu0 %v747, 71
        %v793 = vpop.permute.xlu0 %792
        %794 = vrot.lane.b32.xlu0 %v748, 71
        %v795 = vpop.permute.xlu0 %794
        %796 = vrot.lane.b32.xlu0 %v749, 71
        %v797 = vpop.permute.xlu0 %796
        %798 = vrot.lane.b32.xlu0 %v750, 71
        %v799 = vpop.permute.xlu0 %798
        %800 = vrot.lane.b32.xlu0 %v751, 71
        %v801 = vpop.permute.xlu0 %800
        %802 = vrot.lane.b32.xlu0 %v752, 71
        %v803 = vpop.permute.xlu0 %802
        %vm804 = vcmask 580608
        %v805 = vsel %vm804, %v785, %v787
        %v806 = vsel %vm804, %v787, %v789
        %v807 = vsel %vm804, %v789, %v791
        %v808 = vsel %vm804, %v791, %v793
        %v809 = vsel %vm804, %v795, %v797
        %v810 = vsel %vm804, %v797, %v799
        %v811 = vsel %vm804, %v799, %v801
        %v812 = vsel %vm804, %v801, %v803
        %v821 = vsel %vm770, %v805, 0.0
        %v822 = vsel %vm771, %v806, 0.0
        %v823 = vsel %vm772, %v807, 0.0
        %v824 = vsel %vm773, %v808, 0.0
        %v825 = vsel %vm770, %v809, 0.0
        %v826 = vsel %vm771, %v810, 0.0
        %v827 = vsel %vm772, %v811, 0.0
        %v828 = vsel %vm773, %v812, 0.0
        %v829 = vpack.c.bf16 %v825, %v821
        %v830 = vpack.c.bf16 %v826, %v822
        %v831 = vpack.c.bf16 %v827, %v823
        %v832 = vpack.c.bf16 %v828, %v824
        %833 = vst [vmem:[#allocation3 + $0x40] sm:$0xff] %v829
        %834 = vst [vmem:[#allocation3 + $0x48] sm:$0xff] %v830
        %835 = vst [vmem:[#allocation3 + $0x50] sm:$0xff] %v831
        %836 = vst [vmem:[#allocation3 + $0x58] sm:$0xff] %v832
        %v837 = vld [vmem:[#allocation2 + $0x8] sm:$0xff]
        %v838 = vld [vmem:[#allocation2 + $0x10] sm:$0xff]
        %v839 = vld [vmem:[#allocation2 + $0x18] sm:$0xff]
        %v840 = vld [vmem:[#allocation2 + $0x20] sm:$0xff]
        %v841 = vld [vmem:[#allocation2 + $0x28] sm:$0xff]
        %v842 = vld [vmem:[#allocation2 + $0x48] sm:$0xff]
        %v843 = vld [vmem:[#allocation2 + $0x50] sm:$0xff]
        %v844 = vld [vmem:[#allocation2 + $0x58] sm:$0xff]
        %v845 = vld [vmem:[#allocation2 + $0x60] sm:$0xff]
        %v846 = vld [vmem:[#allocation2 + $0x68] sm:$0xff]
        %v847 = vsel %vm549, 1, 0
        %v848 = vlaneseq
        %v849 = vshrl.u32 %v848, 7
        %v850 = vsub.s32 0, %v849
        %v851 = vrot.slane %v847, %v850
        %v852 = vlaneseq
        %v853 = vshrl.u32 %v852, 7
        %v854 = vsub.s32 1, %v853
        %v855 = vrot.slane %v847, %v854
        %v856 = vlaneseq
        %v857 = vshrl.u32 %v856, 7
        %v858 = vsub.s32 2, %v857
        %v859 = vrot.slane %v847, %v858
        %v860 = vlaneseq
        %v861 = vshrl.u32 %v860, 7
        %v862 = vsub.s32 3, %v861
        %v863 = vrot.slane %v847, %v862
        %vm864 = vcmp.eq.s32.totalorder %v851, 1
        %vm865 = vcmp.eq.s32.totalorder %v855, 1
        %vm866 = vcmp.eq.s32.totalorder %v859, 1
        %vm867 = vcmp.eq.s32.totalorder %v863, 1
        %878 = vrot.lane.b32.xlu0 %v837, 65
        %v879 = vpop.permute.xlu0 %878
        %880 = vrot.lane.b32.xlu0 %v838, 65
        %v881 = vpop.permute.xlu0 %880
        %882 = vrot.lane.b32.xlu0 %v839, 65
        %v883 = vpop.permute.xlu0 %882
        %884 = vrot.lane.b32.xlu0 %v840, 65
        %v885 = vpop.permute.xlu0 %884
        %886 = vrot.lane.b32.xlu0 %v841, 65
        %v887 = vpop.permute.xlu0 %886
        %888 = vrot.lane.b32.xlu0 %v842, 65
        %v889 = vpop.permute.xlu0 %888
        %890 = vrot.lane.b32.xlu0 %v843, 65
        %v891 = vpop.permute.xlu0 %890
        %892 = vrot.lane.b32.xlu0 %v844, 65
        %v893 = vpop.permute.xlu0 %892
        %894 = vrot.lane.b32.xlu0 %v845, 65
        %v895 = vpop.permute.xlu0 %894
        %896 = vrot.lane.b32.xlu0 %v846, 65
        %v897 = vpop.permute.xlu0 %896
        %vm898 = vcmask 531456
        %v899 = vsel %vm898, %v879, %v881
        %v900 = vsel %vm898, %v881, %v883
        %v901 = vsel %vm898, %v883, %v885
        %v902 = vsel %vm898, %v885, %v887
        %v903 = vsel %vm898, %v889, %v891
        %v904 = vsel %vm898, %v891, %v893
        %v905 = vsel %vm898, %v893, %v895
        %v906 = vsel %vm898, %v895, %v897
        %v915 = vsel %vm864, %v899, 0.0
        %v916 = vsel %vm865, %v900, 0.0
        %v917 = vsel %vm866, %v901, 0.0
        %v918 = vsel %vm867, %v902, 0.0
        %v919 = vsel %vm864, %v903, 0.0
        %v920 = vsel %vm865, %v904, 0.0
        %v921 = vsel %vm866, %v905, 0.0
        %v922 = vsel %vm867, %v906, 0.0
        %v923 = vpack.c.bf16 %v919, %v915
        %v924 = vpack.c.bf16 %v920, %v916
        %v925 = vpack.c.bf16 %v921, %v917
        %v926 = vpack.c.bf16 %v922, %v918
        %927 = vst [vmem:[#allocation3 + $0x60] sm:$0xff] %v923
        %928 = vst [vmem:[#allocation3 + $0x68] sm:$0xff] %v924
        %929 = vst [vmem:[#allocation3 + $0x70] sm:$0xff] %v925
        %930 = vst [vmem:[#allocation3 + $0x78] sm:$0xff] %v926
        %v931 = vld [vmem:[#allocation2 + $0x8] sm:$0xff]
        %v932 = vld [vmem:[#allocation2 + $0x10] sm:$0xff]
        %v933 = vld [vmem:[#allocation2 + $0x18] sm:$0xff]
        %v934 = vld [vmem:[#allocation2 + $0x20] sm:$0xff]
        %v935 = vld [vmem:[#allocation2 + $0x28] sm:$0xff]
        %v936 = vld [vmem:[#allocation2 + $0x48] sm:$0xff]
        %v937 = vld [vmem:[#allocation2 + $0x50] sm:$0xff]
        %v938 = vld [vmem:[#allocation2 + $0x58] sm:$0xff]
        %v939 = vld [vmem:[#allocation2 + $0x60] sm:$0xff]
        %v940 = vld [vmem:[#allocation2 + $0x68] sm:$0xff]
        %v941 = vpack.c.bf16 %v936, %v931
        %v942 = vpack.c.bf16 %v937, %v932
        %v943 = vpack.c.bf16 %v938, %v933
        %v944 = vpack.c.bf16 %v939, %v934
        %v945 = vpack.c.bf16 %v940, %v935
        %951 = vrot.lane.b32.xlu0 %v941, 64
        %v952 = vpop.permute.xlu0 %951
        %953 = vrot.lane.b32.xlu0 %v942, 64
        %v954 = vpop.permute.xlu0 %953
        %955 = vrot.lane.b32.xlu0 %v943, 64
        %v956 = vpop.permute.xlu0 %955
        %957 = vrot.lane.b32.xlu0 %v944, 64
        %v958 = vpop.permute.xlu0 %957
        %959 = vrot.lane.b32.xlu0 %v945, 64
        %v960 = vpop.permute.xlu0 %959
        %vm961 = vcmask 523264
        %v962 = vsel %vm961, %v952, %v954
        %v963 = vsel %vm961, %v954, %v956
        %v964 = vsel %vm961, %v956, %v958
        %v965 = vsel %vm961, %v958, %v960
        %970 = vst [vmem:[#allocation3 + $0x80] sm:$0xff] %v962
        %971 = vst [vmem:[#allocation3 + $0x88] sm:$0xff] %v963
        %972 = vst [vmem:[#allocation3 + $0x90] sm:$0xff] %v964
        %973 = vst [vmem:[#allocation3 + $0x98] sm:$0xff] %v965
        %v974 = vld [vmem:[#allocation2 + $0x8] sm:$0xff]
        %v975 = vld [vmem:[#allocation2 + $0x10] sm:$0xff]
        %v976 = vld [vmem:[#allocation2 + $0x18] sm:$0xff]
        %v977 = vld [vmem:[#allocation2 + $0x20] sm:$0xff]
        %v978 = vld [vmem:[#allocation2 + $0x28] sm:$0xff]
        %v979 = vld [vmem:[#allocation2 + $0x48] sm:$0xff]
        %v980 = vld [vmem:[#allocation2 + $0x50] sm:$0xff]
        %v981 = vld [vmem:[#allocation2 + $0x58] sm:$0xff]
        %v982 = vld [vmem:[#allocation2 + $0x60] sm:$0xff]
        %v983 = vld [vmem:[#allocation2 + $0x68] sm:$0xff]
        %v984 = vsel %vm550, 1, 0
        %v985 = vlaneseq
        %v986 = vshrl.u32 %v985, 7
        %v987 = vsub.s32 0, %v986
        %v988 = vrot.slane %v984, %v987
        %v989 = vlaneseq
        %v990 = vshrl.u32 %v989, 7
        %v991 = vsub.s32 1, %v990
        %v992 = vrot.slane %v984, %v991
        %v993 = vlaneseq
        %v994 = vshrl.u32 %v993, 7
        %v995 = vsub.s32 2, %v994
        %v996 = vrot.slane %v984, %v995
        %v997 = vlaneseq
        %v998 = vshrl.u32 %v997, 7
        %v999 = vsub.s32 3, %v998
        %v1000 = vrot.slane %v984, %v999
        %vm1001 = vcmp.eq.s32.totalorder %v988, 1
        %vm1002 = vcmp.eq.s32.totalorder %v992, 1
        %vm1003 = vcmp.eq.s32.totalorder %v996, 1
        %vm1004 = vcmp.eq.s32.totalorder %v1000, 1
        %1015 = vrot.lane.b32.xlu0 %v974, 63
        %v1016 = vpop.permute.xlu0 %1015
        %1017 = vrot.lane.b32.xlu0 %v975, 63
        %v1018 = vpop.permute.xlu0 %1017
        %1019 = vrot.lane.b32.xlu0 %v976, 63
        %v1020 = vpop.permute.xlu0 %1019
        %1021 = vrot.lane.b32.xlu0 %v977, 63
        %v1022 = vpop.permute.xlu0 %1021
        %1023 = vrot.lane.b32.xlu0 %v978, 63
        %v1024 = vpop.permute.xlu0 %1023
        %1025 = vrot.lane.b32.xlu0 %v979, 63
        %v1026 = vpop.permute.xlu0 %1025
        %1027 = vrot.lane.b32.xlu0 %v980, 63
        %v1028 = vpop.permute.xlu0 %1027
        %1029 = vrot.lane.b32.xlu0 %v981, 63
        %v1030 = vpop.permute.xlu0 %1029
        %1031 = vrot.lane.b32.xlu0 %v982, 63
        %v1032 = vpop.permute.xlu0 %1031
        %1033 = vrot.lane.b32.xlu0 %v983, 63
        %v1034 = vpop.permute.xlu0 %1033
        %vm1035 = vcmask 515072
        %v1036 = vsel %vm1035, %v1016, %v1018
        %v1037 = vsel %vm1035, %v1018, %v1020
        %v1038 = vsel %vm1035, %v1020, %v1022
        %v1039 = vsel %vm1035, %v1022, %v1024
        %v1040 = vsel %vm1035, %v1026, %v1028
        %v1041 = vsel %vm1035, %v1028, %v1030
        %v1042 = vsel %vm1035, %v1030, %v1032
        %v1043 = vsel %vm1035, %v1032, %v1034
        %v1052 = vsel %vm1001, %v1036, 0.0
        %v1053 = vsel %vm1002, %v1037, 0.0
        %v1054 = vsel %vm1003, %v1038, 0.0
        %v1055 = vsel %vm1004, %v1039, 0.0
        %v1056 = vsel %vm1001, %v1040, 0.0
        %v1057 = vsel %vm1002, %v1041, 0.0
        %v1058 = vsel %vm1003, %v1042, 0.0
        %v1059 = vsel %vm1004, %v1043, 0.0
        %v1060 = vpack.c.bf16 %v1056, %v1052
        %v1061 = vpack.c.bf16 %v1057, %v1053
        %v1062 = vpack.c.bf16 %v1058, %v1054
        %v1063 = vpack.c.bf16 %v1059, %v1055
        %1064 = vst [vmem:[#allocation3 + $0xa0] sm:$0xff] %v1060
        %1065 = vst [vmem:[#allocation3 + $0xa8] sm:$0xff] %v1061
        %1066 = vst [vmem:[#allocation3 + $0xb0] sm:$0xff] %v1062
        %1067 = vst [vmem:[#allocation3 + $0xb8] sm:$0xff] %v1063
        %v1068 = vld [vmem:[#allocation2 + $0x8] sm:$0xff]
        %v1069 = vld [vmem:[#allocation2 + $0x10] sm:$0xff]
        %v1070 = vld [vmem:[#allocation2 + $0x18] sm:$0xff]
        %v1071 = vld [vmem:[#allocation2 + $0x20] sm:$0xff]
        %v1072 = vld [vmem:[#allocation2 + $0x28] sm:$0xff]
        %v1073 = vld [vmem:[#allocation2 + $0x48] sm:$0xff]
        %v1074 = vld [vmem:[#allocation2 + $0x50] sm:$0xff]
        %v1075 = vld [vmem:[#allocation2 + $0x58] sm:$0xff]
        %v1076 = vld [vmem:[#allocation2 + $0x60] sm:$0xff]
        %v1077 = vld [vmem:[#allocation2 + $0x68] sm:$0xff]
        %v1078 = vsel %vm553, 1, 0
        %v1079 = vlaneseq
        %v1080 = vshrl.u32 %v1079, 7
        %v1081 = vsub.s32 0, %v1080
        %v1082 = vrot.slane %v1078, %v1081
        %v1083 = vlaneseq
        %v1084 = vshrl.u32 %v1083, 7
        %v1085 = vsub.s32 1, %v1084
        %v1086 = vrot.slane %v1078, %v1085
        %v1087 = vlaneseq
        %v1088 = vshrl.u32 %v1087, 7
        %v1089 = vsub.s32 2, %v1088
        %v1090 = vrot.slane %v1078, %v1089
        %v1091 = vlaneseq
        %v1092 = vshrl.u32 %v1091, 7
        %v1093 = vsub.s32 3, %v1092
        %v1094 = vrot.slane %v1078, %v1093
        %vm1095 = vcmp.eq.s32.totalorder %v1082, 1
        %vm1096 = vcmp.eq.s32.totalorder %v1086, 1
        %vm1097 = vcmp.eq.s32.totalorder %v1090, 1
        %vm1098 = vcmp.eq.s32.totalorder %v1094, 1
        %1109 = vrot.lane.b32.xlu0 %v1068, 57
        %v1110 = vpop.permute.xlu0 %1109
        %1111 = vrot.lane.b32.xlu0 %v1069, 57
        %v1112 = vpop.permute.xlu0 %1111
        %1113 = vrot.lane.b32.xlu0 %v1070, 57
        %v1114 = vpop.permute.xlu0 %1113
        %1115 = vrot.lane.b32.xlu0 %v1071, 57
        %v1116 = vpop.permute.xlu0 %1115
        %1117 = vrot.lane.b32.xlu0 %v1072, 57
        %v1118 = vpop.permute.xlu0 %1117
        %1119 = vrot.lane.b32.xlu0 %v1073, 57
        %v1120 = vpop.permute.xlu0 %1119
        %1121 = vrot.lane.b32.xlu0 %v1074, 57
        %v1122 = vpop.permute.xlu0 %1121
        %1123 = vrot.lane.b32.xlu0 %v1075, 57
        %v1124 = vpop.permute.xlu0 %1123
        %1125 = vrot.lane.b32.xlu0 %v1076, 57
        %v1126 = vpop.permute.xlu0 %1125
        %1127 = vrot.lane.b32.xlu0 %v1077, 57
        %v1128 = vpop.permute.xlu0 %1127
        %vm1129 = vcmask 465920
        %v1130 = vsel %vm1129, %v1110, %v1112
        %v1131 = vsel %vm1129, %v1112, %v1114
        %v1132 = vsel %vm1129, %v1114, %v1116
        %v1133 = vsel %vm1129, %v1116, %v1118
        %v1134 = vsel %vm1129, %v1120, %v1122
        %v1135 = vsel %vm1129, %v1122, %v1124
        %v1136 = vsel %vm1129, %v1124, %v1126
        %v1137 = vsel %vm1129, %v1126, %v1128
        %v1146 = vsel %vm1095, %v1130, 0.0
        %v1147 = vsel %vm1096, %v1131, 0.0
        %v1148 = vsel %vm1097, %v1132, 0.0
        %v1149 = vsel %vm1098, %v1133, 0.0
        %v1150 = vsel %vm1095, %v1134, 0.0
        %v1151 = vsel %vm1096, %v1135, 0.0
        %v1152 = vsel %vm1097, %v1136, 0.0
        %v1153 = vsel %vm1098, %v1137, 0.0
        %v1154 = vpack.c.bf16 %v1150, %v1146
        %v1155 = vpack.c.bf16 %v1151, %v1147
        %v1156 = vpack.c.bf16 %v1152, %v1148
        %v1157 = vpack.c.bf16 %v1153, %v1149
        %1158 = vst [vmem:[#allocation3 + $0xc0] sm:$0xff] %v1154
        %1159 = vst [vmem:[#allocation3 + $0xc8] sm:$0xff] %v1155
        %1160 = vst [vmem:[#allocation3 + $0xd0] sm:$0xff] %v1156
        %1161 = vst [vmem:[#allocation3 + $0xd8] sm:$0xff] %v1157
        %v1162 = vld [vmem:[#allocation2 + $0x8] sm:$0xff]
        %v1163 = vld [vmem:[#allocation2 + $0x10] sm:$0xff]
        %v1164 = vld [vmem:[#allocation2 + $0x18] sm:$0xff]
        %v1165 = vld [vmem:[#allocation2 + $0x20] sm:$0xff]
        %v1166 = vld [vmem:[#allocation2 + $0x28] sm:$0xff]
        %v1167 = vld [vmem:[#allocation2 + $0x48] sm:$0xff]
        %v1168 = vld [vmem:[#allocation2 + $0x50] sm:$0xff]
        %v1169 = vld [vmem:[#allocation2 + $0x58] sm:$0xff]
        %v1170 = vld [vmem:[#allocation2 + $0x60] sm:$0xff]
        %v1171 = vld [vmem:[#allocation2 + $0x68] sm:$0xff]
        %v1172 = vsel %vm548, 1, 0
        %v1173 = vlaneseq
        %v1174 = vshrl.u32 %v1173, 7
        %v1175 = vsub.s32 0, %v1174
        %v1176 = vrot.slane %v1172, %v1175
        %v1177 = vlaneseq
        %v1178 = vshrl.u32 %v1177, 7
        %v1179 = vsub.s32 1, %v1178
        %v1180 = vrot.slane %v1172, %v1179
        %v1181 = vlaneseq
        %v1182 = vshrl.u32 %v1181, 7
        %v1183 = vsub.s32 2, %v1182
        %v1184 = vrot.slane %v1172, %v1183
        %v1185 = vlaneseq
        %v1186 = vshrl.u32 %v1185, 7
        %v1187 = vsub.s32 3, %v1186
        %v1188 = vrot.slane %v1172, %v1187
        %vm1189 = vcmp.eq.s32.totalorder %v1176, 1
        %vm1190 = vcmp.eq.s32.totalorder %v1180, 1
        %vm1191 = vcmp.eq.s32.totalorder %v1184, 1
        %vm1192 = vcmp.eq.s32.totalorder %v1188, 1
        %1203 = vrot.lane.b32.xlu0 %v1162, 56
        %v1204 = vpop.permute.xlu0 %1203
        %1205 = vrot.lane.b32.xlu0 %v1163, 56
        %v1206 = vpop.permute.xlu0 %1205
        %1207 = vrot.lane.b32.xlu0 %v1164, 56
        %v1208 = vpop.permute.xlu0 %1207
        %1209 = vrot.lane.b32.xlu0 %v1165, 56
        %v1210 = vpop.permute.xlu0 %1209
        %1211 = vrot.lane.b32.xlu0 %v1166, 56
        %v1212 = vpop.permute.xlu0 %1211
        %1213 = vrot.lane.b32.xlu0 %v1167, 56
        %v1214 = vpop.permute.xlu0 %1213
        %1215 = vrot.lane.b32.xlu0 %v1168, 56
        %v1216 = vpop.permute.xlu0 %1215
        %1217 = vrot.lane.b32.xlu0 %v1169, 56
        %v1218 = vpop.permute.xlu0 %1217
        %1219 = vrot.lane.b32.xlu0 %v1170, 56
        %v1220 = vpop.permute.xlu0 %1219
        %1221 = vrot.lane.b32.xlu0 %v1171, 56
        %v1222 = vpop.permute.xlu0 %1221
        %vm1223 = vcmask 457728
        %v1224 = vsel %vm1223, %v1204, %v1206
        %v1225 = vsel %vm1223, %v1206, %v1208
        %v1226 = vsel %vm1223, %v1208, %v1210
        %v1227 = vsel %vm1223, %v1210, %v1212
        %v1228 = vsel %vm1223, %v1214, %v1216
        %v1229 = vsel %vm1223, %v1216, %v1218
        %v1230 = vsel %vm1223, %v1218, %v1220
        %v1231 = vsel %vm1223, %v1220, %v1222
        %v1240 = vsel %vm1189, %v1224, 0.0
        %v1241 = vsel %vm1190, %v1225, 0.0
        %v1242 = vsel %vm1191, %v1226, 0.0
        %v1243 = vsel %vm1192, %v1227, 0.0
        %v1244 = vsel %vm1189, %v1228, 0.0
        %v1245 = vsel %vm1190, %v1229, 0.0
        %v1246 = vsel %vm1191, %v1230, 0.0
        %v1247 = vsel %vm1192, %v1231, 0.0
        %v1248 = vpack.c.bf16 %v1244, %v1240
        %v1249 = vpack.c.bf16 %v1245, %v1241
        %v1250 = vpack.c.bf16 %v1246, %v1242
        %v1251 = vpack.c.bf16 %v1247, %v1243
        %1252 = vst [vmem:[#allocation3 + $0xe0] sm:$0xff] %v1248
        %1253 = vst [vmem:[#allocation3 + $0xe8] sm:$0xff] %v1249
        %1254 = vst [vmem:[#allocation3 + $0xf0] sm:$0xff] %v1250
        %1255 = vst [vmem:[#allocation3 + $0xf8] sm:$0xff] %v1251
        %v1256 = vld [vmem:[#allocation2 + $0x8] sm:$0xff]
        %v1257 = vld [vmem:[#allocation2 + $0x10] sm:$0xff]
        %v1258 = vld [vmem:[#allocation2 + $0x18] sm:$0xff]
        %v1259 = vld [vmem:[#allocation2 + $0x20] sm:$0xff]
        %v1260 = vld [vmem:[#allocation2 + $0x28] sm:$0xff]
        %v1261 = vld [vmem:[#allocation2 + $0x48] sm:$0xff]
        %v1262 = vld [vmem:[#allocation2 + $0x50] sm:$0xff]
        %v1263 = vld [vmem:[#allocation2 + $0x58] sm:$0xff]
        %v1264 = vld [vmem:[#allocation2 + $0x60] sm:$0xff]
        %v1265 = vld [vmem:[#allocation2 + $0x68] sm:$0xff]
        %v1266 = vsel %vm554, 1, 0
        %v1267 = vlaneseq
        %v1268 = vshrl.u32 %v1267, 7
        %v1269 = vsub.s32 0, %v1268
        %v1270 = vrot.slane %v1266, %v1269
        %v1271 = vlaneseq
        %v1272 = vshrl.u32 %v1271, 7
        %v1273 = vsub.s32 1, %v1272
        %v1274 = vrot.slane %v1266, %v1273
        %v1275 = vlaneseq
        %v1276 = vshrl.u32 %v1275, 7
        %v1277 = vsub.s32 2, %v1276
        %v1278 = vrot.slane %v1266, %v1277
        %v1279 = vlaneseq
        %v1280 = vshrl.u32 %v1279, 7
        %v1281 = vsub.s32 3, %v1280
        %v1282 = vrot.slane %v1266, %v1281
        %vm1283 = vcmp.eq.s32.totalorder %v1270, 1
        %vm1284 = vcmp.eq.s32.totalorder %v1274, 1
        %vm1285 = vcmp.eq.s32.totalorder %v1278, 1
        %vm1286 = vcmp.eq.s32.totalorder %v1282, 1
        %1297 = vrot.lane.b32.xlu0 %v1256, 55
        %v1298 = vpop.permute.xlu0 %1297
        %1299 = vrot.lane.b32.xlu0 %v1257, 55
        %v1300 = vpop.permute.xlu0 %1299
        %1301 = vrot.lane.b32.xlu0 %v1258, 55
        %v1302 = vpop.permute.xlu0 %1301
        %1303 = vrot.lane.b32.xlu0 %v1259, 55
        %v1304 = vpop.permute.xlu0 %1303
        %1305 = vrot.lane.b32.xlu0 %v1260, 55
        %v1306 = vpop.permute.xlu0 %1305
        %1307 = vrot.lane.b32.xlu0 %v1261, 55
        %v1308 = vpop.permute.xlu0 %1307
        %1309 = vrot.lane.b32.xlu0 %v1262, 55
        %v1310 = vpop.permute.xlu0 %1309
        %1311 = vrot.lane.b32.xlu0 %v1263, 55
        %v1312 = vpop.permute.xlu0 %1311
        %1313 = vrot.lane.b32.xlu0 %v1264, 55
        %v1314 = vpop.permute.xlu0 %1313
        %1315 = vrot.lane.b32.xlu0 %v1265, 55
        %v1316 = vpop.permute.xlu0 %1315
        %vm1317 = vcmask 449536
        %v1318 = vsel %vm1317, %v1298, %v1300
        %v1319 = vsel %vm1317, %v1300, %v1302
        %v1320 = vsel %vm1317, %v1302, %v1304
        %v1321 = vsel %vm1317, %v1304, %v1306
        %v1322 = vsel %vm1317, %v1308, %v1310
        %v1323 = vsel %vm1317, %v1310, %v1312
        %v1324 = vsel %vm1317, %v1312, %v1314
        %v1325 = vsel %vm1317, %v1314, %v1316
        %v1334 = vsel %vm1283, %v1318, 0.0
        %v1335 = vsel %vm1284, %v1319, 0.0
        %v1336 = vsel %vm1285, %v1320, 0.0
        %v1337 = vsel %vm1286, %v1321, 0.0
        %v1338 = vsel %vm1283, %v1322, 0.0
        %v1339 = vsel %vm1284, %v1323, 0.0
        %v1340 = vsel %vm1285, %v1324, 0.0
        %v1341 = vsel %vm1286, %v1325, 0.0
        %v1342 = vpack.c.bf16 %v1338, %v1334
        %v1343 = vpack.c.bf16 %v1339, %v1335
        %v1344 = vpack.c.bf16 %v1340, %v1336
        %v1345 = vpack.c.bf16 %v1341, %v1337
        %1346 = vst [vmem:[#allocation3 + $0x100] sm:$0xff] %v1342
        %1347 = vst [vmem:[#allocation3 + $0x108] sm:$0xff] %v1343
        %1348 = vst [vmem:[#allocation3 + $0x110] sm:$0xff] %v1344
        %1349 = vst [vmem:[#allocation3 + $0x118] sm:$0xff] %v1345
        %v1350 = vld [vmem:[#allocation2 + $0x8] sm:$0xff]
        %v1351 = vld [vmem:[#allocation2 + $0x10] sm:$0xff]
        %v1352 = vld [vmem:[#allocation2 + $0x18] sm:$0xff]
        %v1353 = vld [vmem:[#allocation2 + $0x20] sm:$0xff]
        %v1354 = vld [vmem:[#allocation2 + $0x28] sm:$0xff]
        %v1355 = vld [vmem:[#allocation2 + $0x48] sm:$0xff]
        %v1356 = vld [vmem:[#allocation2 + $0x50] sm:$0xff]
        %v1357 = vld [vmem:[#allocation2 + $0x58] sm:$0xff]
        %v1358 = vld [vmem:[#allocation2 + $0x60] sm:$0xff]
        %v1359 = vld [vmem:[#allocation2 + $0x68] sm:$0xff]
        %1370 = vrot.lane.b32.xlu0 %v1350, 9
        %v1371 = vpop.permute.xlu0 %1370
        %1372 = vrot.lane.b32.xlu0 %v1351, 9
        %v1373 = vpop.permute.xlu0 %1372
        %1374 = vrot.lane.b32.xlu0 %v1352, 9
        %v1375 = vpop.permute.xlu0 %1374
        %1376 = vrot.lane.b32.xlu0 %v1353, 9
        %v1377 = vpop.permute.xlu0 %1376
        %1378 = vrot.lane.b32.xlu0 %v1354, 9
        %v1379 = vpop.permute.xlu0 %1378
        %1380 = vrot.lane.b32.xlu0 %v1355, 9
        %v1381 = vpop.permute.xlu0 %1380
        %1382 = vrot.lane.b32.xlu0 %v1356, 9
        %v1383 = vpop.permute.xlu0 %1382
        %1384 = vrot.lane.b32.xlu0 %v1357, 9
        %v1385 = vpop.permute.xlu0 %1384
        %1386 = vrot.lane.b32.xlu0 %v1358, 9
        %v1387 = vpop.permute.xlu0 %1386
        %1388 = vrot.lane.b32.xlu0 %v1359, 9
        %v1389 = vpop.permute.xlu0 %1388
        %vm1390 = vcmask 72704
        %v1391 = vsel %vm1390, %v1371, %v1373
        %v1392 = vsel %vm1390, %v1373, %v1375
        %v1393 = vsel %vm1390, %v1375, %v1377
        %v1394 = vsel %vm1390, %v1377, %v1379
        %v1395 = vsel %vm1390, %v1381, %v1383
        %v1396 = vsel %vm1390, %v1383, %v1385
        %v1397 = vsel %vm1390, %v1385, %v1387
        %v1398 = vsel %vm1390, %v1387, %v1389
        %v1407 = vsel %vm582, %v1391, 0.0
        %v1408 = vsel %vm583, %v1392, 0.0
        %v1409 = vsel %vm584, %v1393, 0.0
        %v1410 = vsel %vm585, %v1394, 0.0
        %v1411 = vsel %vm582, %v1395, 0.0
        %v1412 = vsel %vm583, %v1396, 0.0
        %v1413 = vsel %vm584, %v1397, 0.0
        %v1414 = vsel %vm585, %v1398, 0.0
        %v1415 = vpack.c.bf16 %v1411, %v1407
        %v1416 = vpack.c.bf16 %v1412, %v1408
        %v1417 = vpack.c.bf16 %v1413, %v1409
        %v1418 = vpack.c.bf16 %v1414, %v1410
        %1419 = vst [vmem:[#allocation3 + $0x120] sm:$0xff] %v1415
        %1420 = vst [vmem:[#allocation3 + $0x128] sm:$0xff] %v1416
        %1421 = vst [vmem:[#allocation3 + $0x130] sm:$0xff] %v1417
        %1422 = vst [vmem:[#allocation3 + $0x138] sm:$0xff] %v1418
        %v1423 = vld [vmem:[#allocation2 + $0x8] sm:$0xff]
        %v1424 = vld [vmem:[#allocation2 + $0x10] sm:$0xff]
        %v1425 = vld [vmem:[#allocation2 + $0x18] sm:$0xff]
        %v1426 = vld [vmem:[#allocation2 + $0x20] sm:$0xff]
        %v1427 = vld [vmem:[#allocation2 + $0x28] sm:$0xff]
        %v1428 = vld [vmem:[#allocation2 + $0x48] sm:$0xff]
        %v1429 = vld [vmem:[#allocation2 + $0x50] sm:$0xff]
        %v1430 = vld [vmem:[#allocation2 + $0x58] sm:$0xff]
        %v1431 = vld [vmem:[#allocation2 + $0x60] sm:$0xff]
        %v1432 = vld [vmem:[#allocation2 + $0x68] sm:$0xff]
        %1443 = vrot.lane.b32.xlu0 %v1423, 8
        %v1444 = vpop.permute.xlu0 %1443
        %1445 = vrot.lane.b32.xlu0 %v1424, 8
        %v1446 = vpop.permute.xlu0 %1445
        %1447 = vrot.lane.b32.xlu0 %v1425, 8
        %v1448 = vpop.permute.xlu0 %1447
        %1449 = vrot.lane.b32.xlu0 %v1426, 8
        %v1450 = vpop.permute.xlu0 %1449
        %1451 = vrot.lane.b32.xlu0 %v1427, 8
        %v1452 = vpop.permute.xlu0 %1451
        %1453 = vrot.lane.b32.xlu0 %v1428, 8
        %v1454 = vpop.permute.xlu0 %1453
        %1455 = vrot.lane.b32.xlu0 %v1429, 8
        %v1456 = vpop.permute.xlu0 %1455
        %1457 = vrot.lane.b32.xlu0 %v1430, 8
        %v1458 = vpop.permute.xlu0 %1457
        %1459 = vrot.lane.b32.xlu0 %v1431, 8
        %v1460 = vpop.permute.xlu0 %1459
        %1461 = vrot.lane.b32.xlu0 %v1432, 8
        %v1462 = vpop.permute.xlu0 %1461
        %vm1463 = vcmask 64512
        %v1464 = vsel %vm1463, %v1444, %v1446
        %v1465 = vsel %vm1463, %v1446, %v1448
        %v1466 = vsel %vm1463, %v1448, %v1450
        %v1467 = vsel %vm1463, %v1450, %v1452
        %v1468 = vsel %vm1463, %v1454, %v1456
        %v1469 = vsel %vm1463, %v1456, %v1458
        %v1470 = vsel %vm1463, %v1458, %v1460
        %v1471 = vsel %vm1463, %v1460, %v1462
        %v1480 = vsel %vm676, %v1464, 0.0
        %v1481 = vsel %vm677, %v1465, 0.0
        %v1482 = vsel %vm678, %v1466, 0.0
        %v1483 = vsel %vm679, %v1467, 0.0
        %v1484 = vsel %vm676, %v1468, 0.0
        %v1485 = vsel %vm677, %v1469, 0.0
        %v1486 = vsel %vm678, %v1470, 0.0
        %v1487 = vsel %vm679, %v1471, 0.0
        %v1488 = vpack.c.bf16 %v1484, %v1480
        %v1489 = vpack.c.bf16 %v1485, %v1481
        %v1490 = vpack.c.bf16 %v1486, %v1482
        %v1491 = vpack.c.bf16 %v1487, %v1483
        %1492 = vst [vmem:[#allocation3 + $0x140] sm:$0xff] %v1488
        %1493 = vst [vmem:[#allocation3 + $0x148] sm:$0xff] %v1489
        %1494 = vst [vmem:[#allocation3 + $0x150] sm:$0xff] %v1490
        %1495 = vst [vmem:[#allocation3 + $0x158] sm:$0xff] %v1491
        %v1496 = vld [vmem:[#allocation2 + $0x8] sm:$0xff]
        %v1497 = vld [vmem:[#allocation2 + $0x10] sm:$0xff]
        %v1498 = vld [vmem:[#allocation2 + $0x18] sm:$0xff]
        %v1499 = vld [vmem:[#allocation2 + $0x20] sm:$0xff]
        %v1500 = vld [vmem:[#allocation2 + $0x28] sm:$0xff]
        %v1501 = vld [vmem:[#allocation2 + $0x48] sm:$0xff]
        %v1502 = vld [vmem:[#allocation2 + $0x50] sm:$0xff]
        %v1503 = vld [vmem:[#allocation2 + $0x58] sm:$0xff]
        %v1504 = vld [vmem:[#allocation2 + $0x60] sm:$0xff]
        %v1505 = vld [vmem:[#allocation2 + $0x68] sm:$0xff]
        %1516 = vrot.lane.b32.xlu0 %v1496, 7
        %v1517 = vpop.permute.xlu0 %1516
        %1518 = vrot.lane.b32.xlu0 %v1497, 7
        %v1519 = vpop.permute.xlu0 %1518
        %1520 = vrot.lane.b32.xlu0 %v1498, 7
        %v1521 = vpop.permute.xlu0 %1520
        %1522 = vrot.lane.b32.xlu0 %v1499, 7
        %v1523 = vpop.permute.xlu0 %1522
        %1524 = vrot.lane.b32.xlu0 %v1500, 7
        %v1525 = vpop.permute.xlu0 %1524
        %1526 = vrot.lane.b32.xlu0 %v1501, 7
        %v1527 = vpop.permute.xlu0 %1526
        %1528 = vrot.lane.b32.xlu0 %v1502, 7
        %v1529 = vpop.permute.xlu0 %1528
        %1530 = vrot.lane.b32.xlu0 %v1503, 7
        %v1531 = vpop.permute.xlu0 %1530
        %1532 = vrot.lane.b32.xlu0 %v1504, 7
        %v1533 = vpop.permute.xlu0 %1532
        %1534 = vrot.lane.b32.xlu0 %v1505, 7
        %v1535 = vpop.permute.xlu0 %1534
        %vm1536 = vcmask 56320
        %v1537 = vsel %vm1536, %v1517, %v1519
        %v1538 = vsel %vm1536, %v1519, %v1521
        %v1539 = vsel %vm1536, %v1521, %v1523
        %v1540 = vsel %vm1536, %v1523, %v1525
        %v1541 = vsel %vm1536, %v1527, %v1529
        %v1542 = vsel %vm1536, %v1529, %v1531
        %v1543 = vsel %vm1536, %v1531, %v1533
        %v1544 = vsel %vm1536, %v1533, %v1535
        %v1553 = vsel %vm770, %v1537, 0.0
        %v1554 = vsel %vm771, %v1538, 0.0
        %v1555 = vsel %vm772, %v1539, 0.0
        %v1556 = vsel %vm773, %v1540, 0.0
        %v1557 = vsel %vm770, %v1541, 0.0
        %v1558 = vsel %vm771, %v1542, 0.0
        %v1559 = vsel %vm772, %v1543, 0.0
        %v1560 = vsel %vm773, %v1544, 0.0
        %v1561 = vpack.c.bf16 %v1557, %v1553
        %v1562 = vpack.c.bf16 %v1558, %v1554
        %v1563 = vpack.c.bf16 %v1559, %v1555
        %v1564 = vpack.c.bf16 %v1560, %v1556
        %1565 = vst [vmem:[#allocation3 + $0x160] sm:$0xff] %v1561
        %1566 = vst [vmem:[#allocation3 + $0x168] sm:$0xff] %v1562
        %1567 = vst [vmem:[#allocation3 + $0x170] sm:$0xff] %v1563
        %1568 = vst [vmem:[#allocation3 + $0x178] sm:$0xff] %v1564
        %v1569 = vld [vmem:[#allocation2 + $0x8] sm:$0xff]
        %v1570 = vld [vmem:[#allocation2 + $0x10] sm:$0xff]
        %v1571 = vld [vmem:[#allocation2 + $0x18] sm:$0xff]
        %v1572 = vld [vmem:[#allocation2 + $0x20] sm:$0xff]
        %v1573 = vld [vmem:[#allocation2 + $0x28] sm:$0xff]
        %v1574 = vld [vmem:[#allocation2 + $0x48] sm:$0xff]
        %v1575 = vld [vmem:[#allocation2 + $0x50] sm:$0xff]
        %v1576 = vld [vmem:[#allocation2 + $0x58] sm:$0xff]
        %v1577 = vld [vmem:[#allocation2 + $0x60] sm:$0xff]
        %v1578 = vld [vmem:[#allocation2 + $0x68] sm:$0xff]
        %1589 = vrot.lane.b32.xlu0 %v1569, 1
        %v1590 = vpop.permute.xlu0 %1589
        %1591 = vrot.lane.b32.xlu0 %v1570, 1
        %v1592 = vpop.permute.xlu0 %1591
        %1593 = vrot.lane.b32.xlu0 %v1571, 1
        %v1594 = vpop.permute.xlu0 %1593
        %1595 = vrot.lane.b32.xlu0 %v1572, 1
        %v1596 = vpop.permute.xlu0 %1595
        %1597 = vrot.lane.b32.xlu0 %v1573, 1
        %v1598 = vpop.permute.xlu0 %1597
        %1599 = vrot.lane.b32.xlu0 %v1574, 1
        %v1600 = vpop.permute.xlu0 %1599
        %1601 = vrot.lane.b32.xlu0 %v1575, 1
        %v1602 = vpop.permute.xlu0 %1601
        %1603 = vrot.lane.b32.xlu0 %v1576, 1
        %v1604 = vpop.permute.xlu0 %1603
        %1605 = vrot.lane.b32.xlu0 %v1577, 1
        %v1606 = vpop.permute.xlu0 %1605
        %1607 = vrot.lane.b32.xlu0 %v1578, 1
        %v1608 = vpop.permute.xlu0 %1607
        %vm1609 = vcmask 7168
        %v1610 = vsel %vm1609, %v1590, %v1592
        %v1611 = vsel %vm1609, %v1592, %v1594
        %v1612 = vsel %vm1609, %v1594, %v1596
        %v1613 = vsel %vm1609, %v1596, %v1598
        %v1614 = vsel %vm1609, %v1600, %v1602
        %v1615 = vsel %vm1609, %v1602, %v1604
        %v1616 = vsel %vm1609, %v1604, %v1606
        %v1617 = vsel %vm1609, %v1606, %v1608
        %v1626 = vsel %vm864, %v1610, 0.0
        %v1627 = vsel %vm865, %v1611, 0.0
        %v1628 = vsel %vm866, %v1612, 0.0
        %v1629 = vsel %vm867, %v1613, 0.0
        %v1630 = vsel %vm864, %v1614, 0.0
        %v1631 = vsel %vm865, %v1615, 0.0
        %v1632 = vsel %vm866, %v1616, 0.0
        %v1633 = vsel %vm867, %v1617, 0.0
        %v1634 = vpack.c.bf16 %v1630, %v1626
        %v1635 = vpack.c.bf16 %v1631, %v1627
        %v1636 = vpack.c.bf16 %v1632, %v1628
        %v1637 = vpack.c.bf16 %v1633, %v1629
        %1638 = vst [vmem:[#allocation3 + $0x180] sm:$0xff] %v1634
        %1639 = vst [vmem:[#allocation3 + $0x188] sm:$0xff] %v1635
        %1640 = vst [vmem:[#allocation3 + $0x190] sm:$0xff] %v1636
        %1641 = vst [vmem:[#allocation3 + $0x198] sm:$0xff] %v1637
        %v1642 = vld [vmem:[#allocation2 + $0x10] sm:$0xff]
        %v1643 = vld [vmem:[#allocation2 + $0x18] sm:$0xff]
        %v1644 = vld [vmem:[#allocation2 + $0x20] sm:$0xff]
        %v1645 = vld [vmem:[#allocation2 + $0x28] sm:$0xff]
        %v1646 = vld [vmem:[#allocation2 + $0x50] sm:$0xff]
        %v1647 = vld [vmem:[#allocation2 + $0x58] sm:$0xff]
        %v1648 = vld [vmem:[#allocation2 + $0x60] sm:$0xff]
        %v1649 = vld [vmem:[#allocation2 + $0x68] sm:$0xff]
        %v1650 = vpack.c.bf16 %v1646, %v1642
        %v1651 = vpack.c.bf16 %v1647, %v1643
        %v1652 = vpack.c.bf16 %v1648, %v1644
        %v1653 = vpack.c.bf16 %v1649, %v1645
        %1654 = vst [vmem:[#allocation3 + $0x1a0] sm:$0xff] %v1650
        %1655 = vst [vmem:[#allocation3 + $0x1a8] sm:$0xff] %v1651
        %1656 = vst [vmem:[#allocation3 + $0x1b0] sm:$0xff] %v1652
        %1657 = vst [vmem:[#allocation3 + $0x1b8] sm:$0xff] %v1653
        %v1658 = vld [vmem:[#allocation2 + $0x10] sm:$0xff]
        %v1659 = vld [vmem:[#allocation2 + $0x18] sm:$0xff]
        %v1660 = vld [vmem:[#allocation2 + $0x20] sm:$0xff]
        %v1661 = vld [vmem:[#allocation2 + $0x28] sm:$0xff]
        %v1662 = vld [vmem:[#allocation2 + $0x30] sm:$0xff]
        %v1663 = vld [vmem:[#allocation2 + $0x50] sm:$0xff]
        %v1664 = vld [vmem:[#allocation2 + $0x58] sm:$0xff]
        %v1665 = vld [vmem:[#allocation2 + $0x60] sm:$0xff]
        %v1666 = vld [vmem:[#allocation2 + $0x68] sm:$0xff]
        %v1667 = vld [vmem:[#allocation2 + $0x70] sm:$0xff]
        %1678 = vrot.lane.b32.xlu0 %v1658, 127
        %v1679 = vpop.permute.xlu0 %1678
        %1680 = vrot.lane.b32.xlu0 %v1659, 127
        %v1681 = vpop.permute.xlu0 %1680
        %1682 = vrot.lane.b32.xlu0 %v1660, 127
        %v1683 = vpop.permute.xlu0 %1682
        %1684 = vrot.lane.b32.xlu0 %v1661, 127
        %v1685 = vpop.permute.xlu0 %1684
        %1686 = vrot.lane.b32.xlu0 %v1662, 127
        %v1687 = vpop.permute.xlu0 %1686
        %1688 = vrot.lane.b32.xlu0 %v1663, 127
        %v1689 = vpop.permute.xlu0 %1688
        %1690 = vrot.lane.b32.xlu0 %v1664, 127
        %v1691 = vpop.permute.xlu0 %1690
        %1692 = vrot.lane.b32.xlu0 %v1665, 127
        %v1693 = vpop.permute.xlu0 %1692
        %1694 = vrot.lane.b32.xlu0 %v1666, 127
        %v1695 = vpop.permute.xlu0 %1694
        %1696 = vrot.lane.b32.xlu0 %v1667, 127
        %v1697 = vpop.permute.xlu0 %1696
        %vm1698 = vcmask 1039360
        %v1699 = vsel %vm1698, %v1679, %v1681
        %v1700 = vsel %vm1698, %v1681, %v1683
        %v1701 = vsel %vm1698, %v1683, %v1685
        %v1702 = vsel %vm1698, %v1685, %v1687
        %v1703 = vsel %vm1698, %v1689, %v1691
        %v1704 = vsel %vm1698, %v1691, %v1693
        %v1705 = vsel %vm1698, %v1693, %v1695
        %v1706 = vsel %vm1698, %v1695, %v1697
        %v1715 = vsel %vm1001, %v1699, 0.0
        %v1716 = vsel %vm1002, %v1700, 0.0
        %v1717 = vsel %vm1003, %v1701, 0.0
        %v1718 = vsel %vm1004, %v1702, 0.0
        %v1719 = vsel %vm1001, %v1703, 0.0
        %v1720 = vsel %vm1002, %v1704, 0.0
        %v1721 = vsel %vm1003, %v1705, 0.0
        %v1722 = vsel %vm1004, %v1706, 0.0
        %v1723 = vpack.c.bf16 %v1719, %v1715
        %v1724 = vpack.c.bf16 %v1720, %v1716
        %v1725 = vpack.c.bf16 %v1721, %v1717
        %v1726 = vpack.c.bf16 %v1722, %v1718
        %1727 = vst [vmem:[#allocation3 + $0x1c0] sm:$0xff] %v1723
        %1728 = vst [vmem:[#allocation3 + $0x1c8] sm:$0xff] %v1724
        %1729 = vst [vmem:[#allocation3 + $0x1d0] sm:$0xff] %v1725
        %1730 = vst [vmem:[#allocation3 + $0x1d8] sm:$0xff] %v1726
        %v1731 = vld [vmem:[#allocation2 + $0x10] sm:$0xff]
        %v1732 = vld [vmem:[#allocation2 + $0x18] sm:$0xff]
        %v1733 = vld [vmem:[#allocation2 + $0x20] sm:$0xff]
        %v1734 = vld [vmem:[#allocation2 + $0x28] sm:$0xff]
        %v1735 = vld [vmem:[#allocation2 + $0x30] sm:$0xff]
        %v1736 = vld [vmem:[#allocation2 + $0x50] sm:$0xff]
        %v1737 = vld [vmem:[#allocation2 + $0x58] sm:$0xff]
        %v1738 = vld [vmem:[#allocation2 + $0x60] sm:$0xff]
        %v1739 = vld [vmem:[#allocation2 + $0x68] sm:$0xff]
        %v1740 = vld [vmem:[#allocation2 + $0x70] sm:$0xff]
        %1751 = vrot.lane.b32.xlu0 %v1731, 121
        %v1752 = vpop.permute.xlu0 %1751
        %1753 = vrot.lane.b32.xlu0 %v1732, 121
        %v1754 = vpop.permute.xlu0 %1753
        %1755 = vrot.lane.b32.xlu0 %v1733, 121
        %v1756 = vpop.permute.xlu0 %1755
        %1757 = vrot.lane.b32.xlu0 %v1734, 121
        %v1758 = vpop.permute.xlu0 %1757
        %1759 = vrot.lane.b32.xlu0 %v1735, 121
        %v1760 = vpop.permute.xlu0 %1759
        %1761 = vrot.lane.b32.xlu0 %v1736, 121
        %v1762 = vpop.permute.xlu0 %1761
        %1763 = vrot.lane.b32.xlu0 %v1737, 121
        %v1764 = vpop.permute.xlu0 %1763
        %1765 = vrot.lane.b32.xlu0 %v1738, 121
        %v1766 = vpop.permute.xlu0 %1765
        %1767 = vrot.lane.b32.xlu0 %v1739, 121
        %v1768 = vpop.permute.xlu0 %1767
        %1769 = vrot.lane.b32.xlu0 %v1740, 121
        %v1770 = vpop.permute.xlu0 %1769
        %vm1771 = vcmask 990208
        %v1772 = vsel %vm1771, %v1752, %v1754
        %v1773 = vsel %vm1771, %v1754, %v1756
        %v1774 = vsel %vm1771, %v1756, %v1758
        %v1775 = vsel %vm1771, %v1758, %v1760
        %v1776 = vsel %vm1771, %v1762, %v1764
        %v1777 = vsel %vm1771, %v1764, %v1766
        %v1778 = vsel %vm1771, %v1766, %v1768
        %v1779 = vsel %vm1771, %v1768, %v1770
        %v1788 = vsel %vm1095, %v1772, 0.0
        %v1789 = vsel %vm1096, %v1773, 0.0
        %v1790 = vsel %vm1097, %v1774, 0.0
        %v1791 = vsel %vm1098, %v1775, 0.0
        %v1792 = vsel %vm1095, %v1776, 0.0
        %v1793 = vsel %vm1096, %v1777, 0.0
        %v1794 = vsel %vm1097, %v1778, 0.0
        %v1795 = vsel %vm1098, %v1779, 0.0
        %v1796 = vpack.c.bf16 %v1792, %v1788
        %v1797 = vpack.c.bf16 %v1793, %v1789
        %v1798 = vpack.c.bf16 %v1794, %v1790
        %v1799 = vpack.c.bf16 %v1795, %v1791
        %1800 = vst [vmem:[#allocation3 + $0x1e0] sm:$0xff] %v1796
        %1801 = vst [vmem:[#allocation3 + $0x1e8] sm:$0xff] %v1797
        %1802 = vst [vmem:[#allocation3 + $0x1f0] sm:$0xff] %v1798
        %1803 = vst [vmem:[#allocation3 + $0x1f8] sm:$0xff] %v1799
        %v1804 = vld [vmem:[#allocation2 + $0x10] sm:$0xff]
        %v1805 = vld [vmem:[#allocation2 + $0x18] sm:$0xff]
        %v1806 = vld [vmem:[#allocation2 + $0x20] sm:$0xff]
        %v1807 = vld [vmem:[#allocation2 + $0x28] sm:$0xff]
        %v1808 = vld [vmem:[#allocation2 + $0x30] sm:$0xff]
        %v1809 = vld [vmem:[#allocation2 + $0x50] sm:$0xff]
        %v1810 = vld [vmem:[#allocation2 + $0x58] sm:$0xff]
        %v1811 = vld [vmem:[#allocation2 + $0x60] sm:$0xff]
        %v1812 = vld [vmem:[#allocation2 + $0x68] sm:$0xff]
        %v1813 = vld [vmem:[#allocation2 + $0x70] sm:$0xff]
        %1824 = vrot.lane.b32.xlu0 %v1804, 120
        %v1825 = vpop.permute.xlu0 %1824
        %1826 = vrot.lane.b32.xlu0 %v1805, 120
        %v1827 = vpop.permute.xlu0 %1826
        %1828 = vrot.lane.b32.xlu0 %v1806, 120
        %v1829 = vpop.permute.xlu0 %1828
        %1830 = vrot.lane.b32.xlu0 %v1807, 120
        %v1831 = vpop.permute.xlu0 %1830
        %1832 = vrot.lane.b32.xlu0 %v1808, 120
        %v1833 = vpop.permute.xlu0 %1832
        %1834 = vrot.lane.b32.xlu0 %v1809, 120
        %v1835 = vpop.permute.xlu0 %1834
        %1836 = vrot.lane.b32.xlu0 %v1810, 120
        %v1837 = vpop.permute.xlu0 %1836
        %1838 = vrot.lane.b32.xlu0 %v1811, 120
        %v1839 = vpop.permute.xlu0 %1838
        %1840 = vrot.lane.b32.xlu0 %v1812, 120
        %v1841 = vpop.permute.xlu0 %1840
        %1842 = vrot.lane.b32.xlu0 %v1813, 120
        %v1843 = vpop.permute.xlu0 %1842
        %vm1844 = vcmask 982016
        %v1845 = vsel %vm1844, %v1825, %v1827
        %v1846 = vsel %vm1844, %v1827, %v1829
        %v1847 = vsel %vm1844, %v1829, %v1831
        %v1848 = vsel %vm1844, %v1831, %v1833
        %v1849 = vsel %vm1844, %v1835, %v1837
        %v1850 = vsel %vm1844, %v1837, %v1839
        %v1851 = vsel %vm1844, %v1839, %v1841
        %v1852 = vsel %vm1844, %v1841, %v1843
        %v1861 = vsel %vm1189, %v1845, 0.0
        %v1862 = vsel %vm1190, %v1846, 0.0
        %v1863 = vsel %vm1191, %v1847, 0.0
        %v1864 = vsel %vm1192, %v1848, 0.0
        %v1865 = vsel %vm1189, %v1849, 0.0
        %v1866 = vsel %vm1190, %v1850, 0.0
        %v1867 = vsel %vm1191, %v1851, 0.0
        %v1868 = vsel %vm1192, %v1852, 0.0
        %v1869 = vpack.c.bf16 %v1865, %v1861
        %v1870 = vpack.c.bf16 %v1866, %v1862
        %v1871 = vpack.c.bf16 %v1867, %v1863
        %v1872 = vpack.c.bf16 %v1868, %v1864
        %1873 = vst [vmem:[#allocation3 + $0x200] sm:$0xff] %v1869
        %1874 = vst [vmem:[#allocation3 + $0x208] sm:$0xff] %v1870
        %1875 = vst [vmem:[#allocation3 + $0x210] sm:$0xff] %v1871
        %1876 = vst [vmem:[#allocation3 + $0x218] sm:$0xff] %v1872
        %v1877 = vld [vmem:[#allocation2 + $0x10] sm:$0xff]
        %v1878 = vld [vmem:[#allocation2 + $0x18] sm:$0xff]
        %v1879 = vld [vmem:[#allocation2 + $0x20] sm:$0xff]
        %v1880 = vld [vmem:[#allocation2 + $0x28] sm:$0xff]
        %v1881 = vld [vmem:[#allocation2 + $0x30] sm:$0xff]
        %v1882 = vld [vmem:[#allocation2 + $0x50] sm:$0xff]
        %v1883 = vld [vmem:[#allocation2 + $0x58] sm:$0xff]
        %v1884 = vld [vmem:[#allocation2 + $0x60] sm:$0xff]
        %v1885 = vld [vmem:[#allocation2 + $0x68] sm:$0xff]
        %v1886 = vld [vmem:[#allocation2 + $0x70] sm:$0xff]
        %1897 = vrot.lane.b32.xlu0 %v1877, 119
        %v1898 = vpop.permute.xlu0 %1897
        %1899 = vrot.lane.b32.xlu0 %v1878, 119
        %v1900 = vpop.permute.xlu0 %1899
        %1901 = vrot.lane.b32.xlu0 %v1879, 119
        %v1902 = vpop.permute.xlu0 %1901
        %1903 = vrot.lane.b32.xlu0 %v1880, 119
        %v1904 = vpop.permute.xlu0 %1903
        %1905 = vrot.lane.b32.xlu0 %v1881, 119
        %v1906 = vpop.permute.xlu0 %1905
        %1907 = vrot.lane.b32.xlu0 %v1882, 119
        %v1908 = vpop.permute.xlu0 %1907
        %1909 = vrot.lane.b32.xlu0 %v1883, 119
        %v1910 = vpop.permute.xlu0 %1909
        %1911 = vrot.lane.b32.xlu0 %v1884, 119
        %v1912 = vpop.permute.xlu0 %1911
        %1913 = vrot.lane.b32.xlu0 %v1885, 119
        %v1914 = vpop.permute.xlu0 %1913
        %1915 = vrot.lane.b32.xlu0 %v1886, 119
        %v1916 = vpop.permute.xlu0 %1915
        %vm1917 = vcmask 973824
        %v1918 = vsel %vm1917, %v1898, %v1900
        %v1919 = vsel %vm1917, %v1900, %v1902
        %v1920 = vsel %vm1917, %v1902, %v1904
        %v1921 = vsel %vm1917, %v1904, %v1906
        %v1922 = vsel %vm1917, %v1908, %v1910
        %v1923 = vsel %vm1917, %v1910, %v1912
        %v1924 = vsel %vm1917, %v1912, %v1914
        %v1925 = vsel %vm1917, %v1914, %v1916
        %v1934 = vsel %vm1283, %v1918, 0.0
        %v1935 = vsel %vm1284, %v1919, 0.0
        %v1936 = vsel %vm1285, %v1920, 0.0
        %v1937 = vsel %vm1286, %v1921, 0.0
        %v1938 = vsel %vm1283, %v1922, 0.0
        %v1939 = vsel %vm1284, %v1923, 0.0
        %v1940 = vsel %vm1285, %v1924, 0.0
        %v1941 = vsel %vm1286, %v1925, 0.0
        %v1942 = vpack.c.bf16 %v1938, %v1934
        %v1943 = vpack.c.bf16 %v1939, %v1935
        %v1944 = vpack.c.bf16 %v1940, %v1936
        %v1945 = vpack.c.bf16 %v1941, %v1937
        %1946 = vst [vmem:[#allocation3 + $0x220] sm:$0xff] %v1942
        %1947 = vst [vmem:[#allocation3 + $0x228] sm:$0xff] %v1943
        %1948 = vst [vmem:[#allocation3 + $0x230] sm:$0xff] %v1944
        %1949 = vst [vmem:[#allocation3 + $0x238] sm:$0xff] %v1945
        %v1950 = vld [vmem:[#allocation2 + $0x10] sm:$0xff]
        %v1951 = vld [vmem:[#allocation2 + $0x18] sm:$0xff]
        %v1952 = vld [vmem:[#allocation2 + $0x20] sm:$0xff]
        %v1953 = vld [vmem:[#allocation2 + $0x28] sm:$0xff]
        %v1954 = vld [vmem:[#allocation2 + $0x30] sm:$0xff]
        %v1955 = vld [vmem:[#allocation2 + $0x50] sm:$0xff]
        %v1956 = vld [vmem:[#allocation2 + $0x58] sm:$0xff]
        %v1957 = vld [vmem:[#allocation2 + $0x60] sm:$0xff]
        %v1958 = vld [vmem:[#allocation2 + $0x68] sm:$0xff]
        %v1959 = vld [vmem:[#allocation2 + $0x70] sm:$0xff]
        %1970 = vrot.lane.b32.xlu0 %v1950, 73
        %v1971 = vpop.permute.xlu0 %1970
        %1972 = vrot.lane.b32.xlu0 %v1951, 73
        %v1973 = vpop.permute.xlu0 %1972
        %1974 = vrot.lane.b32.xlu0 %v1952, 73
        %v1975 = vpop.permute.xlu0 %1974
        %1976 = vrot.lane.b32.xlu0 %v1953, 73
        %v1977 = vpop.permute.xlu0 %1976
        %1978 = vrot.lane.b32.xlu0 %v1954, 73
        %v1979 = vpop.permute.xlu0 %1978
        %1980 = vrot.lane.b32.xlu0 %v1955, 73
        %v1981 = vpop.permute.xlu0 %1980
        %1982 = vrot.lane.b32.xlu0 %v1956, 73
        %v1983 = vpop.permute.xlu0 %1982
        %1984 = vrot.lane.b32.xlu0 %v1957, 73
        %v1985 = vpop.permute.xlu0 %1984
        %1986 = vrot.lane.b32.xlu0 %v1958, 73
        %v1987 = vpop.permute.xlu0 %1986
        %1988 = vrot.lane.b32.xlu0 %v1959, 73
        %v1989 = vpop.permute.xlu0 %1988
        %v1990 = vsel %vm616, %v1971, %v1973
        %v1991 = vsel %vm616, %v1973, %v1975
        %v1992 = vsel %vm616, %v1975, %v1977
        %v1993 = vsel %vm616, %v1977, %v1979
        %v1994 = vsel %vm616, %v1981, %v1983
        %v1995 = vsel %vm616, %v1983, %v1985
        %v1996 = vsel %vm616, %v1985, %v1987
        %v1997 = vsel %vm616, %v1987, %v1989
        %v2006 = vsel %vm582, %v1990, 0.0
        %v2007 = vsel %vm583, %v1991, 0.0
        %v2008 = vsel %vm584, %v1992, 0.0
        %v2009 = vsel %vm585, %v1993, 0.0
        %v2010 = vsel %vm582, %v1994, 0.0
        %v2011 = vsel %vm583, %v1995, 0.0
        %v2012 = vsel %vm584, %v1996, 0.0
        %v2013 = vsel %vm585, %v1997, 0.0
        %v2014 = vpack.c.bf16 %v2010, %v2006
        %v2015 = vpack.c.bf16 %v2011, %v2007
        %v2016 = vpack.c.bf16 %v2012, %v2008
        %v2017 = vpack.c.bf16 %v2013, %v2009
        %2018 = vst [vmem:[#allocation3 + $0x240] sm:$0xff] %v2014
        %2019 = vst [vmem:[#allocation3 + $0x248] sm:$0xff] %v2015
        %2020 = vst [vmem:[#allocation3 + $0x250] sm:$0xff] %v2016
        %2021 = vst [vmem:[#allocation3 + $0x258] sm:$0xff] %v2017
        %v2022 = vld [vmem:[#allocation2 + $0x10] sm:$0xff]
        %v2023 = vld [vmem:[#allocation2 + $0x18] sm:$0xff]
        %v2024 = vld [vmem:[#allocation2 + $0x20] sm:$0xff]
        %v2025 = vld [vmem:[#allocation2 + $0x28] sm:$0xff]
        %v2026 = vld [vmem:[#allocation2 + $0x30] sm:$0xff]
        %v2027 = vld [vmem:[#allocation2 + $0x50] sm:$0xff]
        %v2028 = vld [vmem:[#allocation2 + $0x58] sm:$0xff]
        %v2029 = vld [vmem:[#allocation2 + $0x60] sm:$0xff]
        %v2030 = vld [vmem:[#allocation2 + $0x68] sm:$0xff]
        %v2031 = vld [vmem:[#allocation2 + $0x70] sm:$0xff]
        %2042 = vrot.lane.b32.xlu0 %v2022, 72
        %v2043 = vpop.permute.xlu0 %2042
        %2044 = vrot.lane.b32.xlu0 %v2023, 72
        %v2045 = vpop.permute.xlu0 %2044
        %2046 = vrot.lane.b32.xlu0 %v2024, 72
        %v2047 = vpop.permute.xlu0 %2046
        %2048 = vrot.lane.b32.xlu0 %v2025, 72
        %v2049 = vpop.permute.xlu0 %2048
        %2050 = vrot.lane.b32.xlu0 %v2026, 72
        %v2051 = vpop.permute.xlu0 %2050
        %2052 = vrot.lane.b32.xlu0 %v2027, 72
        %v2053 = vpop.permute.xlu0 %2052
        %2054 = vrot.lane.b32.xlu0 %v2028, 72
        %v2055 = vpop.permute.xlu0 %2054
        %2056 = vrot.lane.b32.xlu0 %v2029, 72
        %v2057 = vpop.permute.xlu0 %2056
        %2058 = vrot.lane.b32.xlu0 %v2030, 72
        %v2059 = vpop.permute.xlu0 %2058
        %2060 = vrot.lane.b32.xlu0 %v2031, 72
        %v2061 = vpop.permute.xlu0 %2060
        %v2062 = vsel %vm710, %v2043, %v2045
        %v2063 = vsel %vm710, %v2045, %v2047
        %v2064 = vsel %vm710, %v2047, %v2049
        %v2065 = vsel %vm710, %v2049, %v2051
        %v2066 = vsel %vm710, %v2053, %v2055
        %v2067 = vsel %vm710, %v2055, %v2057
        %v2068 = vsel %vm710, %v2057, %v2059
        %v2069 = vsel %vm710, %v2059, %v2061
        %v2078 = vsel %vm676, %v2062, 0.0
        %v2079 = vsel %vm677, %v2063, 0.0
        %v2080 = vsel %vm678, %v2064, 0.0
        %v2081 = vsel %vm679, %v2065, 0.0
        %v2082 = vsel %vm676, %v2066, 0.0
        %v2083 = vsel %vm677, %v2067, 0.0
        %v2084 = vsel %vm678, %v2068, 0.0
        %v2085 = vsel %vm679, %v2069, 0.0
        %v2086 = vpack.c.bf16 %v2082, %v2078
        %v2087 = vpack.c.bf16 %v2083, %v2079
        %v2088 = vpack.c.bf16 %v2084, %v2080
        %v2089 = vpack.c.bf16 %v2085, %v2081
        %2090 = vst [vmem:[#allocation3 + $0x260] sm:$0xff] %v2086
        %2091 = vst [vmem:[#allocation3 + $0x268] sm:$0xff] %v2087
        %2092 = vst [vmem:[#allocation3 + $0x270] sm:$0xff] %v2088
        %2093 = vst [vmem:[#allocation3 + $0x278] sm:$0xff] %v2089
        %v2094 = vld [vmem:[#allocation2 + $0x10] sm:$0xff]
        %v2095 = vld [vmem:[#allocation2 + $0x18] sm:$0xff]
        %v2096 = vld [vmem:[#allocation2 + $0x20] sm:$0xff]
        %v2097 = vld [vmem:[#allocation2 + $0x28] sm:$0xff]
        %v2098 = vld [vmem:[#allocation2 + $0x30] sm:$0xff]
        %v2099 = vld [vmem:[#allocation2 + $0x50] sm:$0xff]
        %v2100 = vld [vmem:[#allocation2 + $0x58] sm:$0xff]
        %v2101 = vld [vmem:[#allocation2 + $0x60] sm:$0xff]
        %v2102 = vld [vmem:[#allocation2 + $0x68] sm:$0xff]
        %v2103 = vld [vmem:[#allocation2 + $0x70] sm:$0xff]
        %2114 = vrot.lane.b32.xlu0 %v2094, 71
        %v2115 = vpop.permute.xlu0 %2114
        %2116 = vrot.lane.b32.xlu0 %v2095, 71
        %v2117 = vpop.permute.xlu0 %2116
        %2118 = vrot.lane.b32.xlu0 %v2096, 71
        %v2119 = vpop.permute.xlu0 %2118
        %2120 = vrot.lane.b32.xlu0 %v2097, 71
        %v2121 = vpop.permute.xlu0 %2120
        %2122 = vrot.lane.b32.xlu0 %v2098, 71
        %v2123 = vpop.permute.xlu0 %2122
        %2124 = vrot.lane.b32.xlu0 %v2099, 71
        %v2125 = vpop.permute.xlu0 %2124
        %2126 = vrot.lane.b32.xlu0 %v2100, 71
        %v2127 = vpop.permute.xlu0 %2126
        %2128 = vrot.lane.b32.xlu0 %v2101, 71
        %v2129 = vpop.permute.xlu0 %2128
        %2130 = vrot.lane.b32.xlu0 %v2102, 71
        %v2131 = vpop.permute.xlu0 %2130
        %2132 = vrot.lane.b32.xlu0 %v2103, 71
        %v2133 = vpop.permute.xlu0 %2132
        %v2134 = vsel %vm804, %v2115, %v2117
        %v2135 = vsel %vm804, %v2117, %v2119
        %v2136 = vsel %vm804, %v2119, %v2121
        %v2137 = vsel %vm804, %v2121, %v2123
        %v2138 = vsel %vm804, %v2125, %v2127
        %v2139 = vsel %vm804, %v2127, %v2129
        %v2140 = vsel %vm804, %v2129, %v2131
        %v2141 = vsel %vm804, %v2131, %v2133
        %v2150 = vsel %vm770, %v2134, 0.0
        %v2151 = vsel %vm771, %v2135, 0.0
        %v2152 = vsel %vm772, %v2136, 0.0
        %v2153 = vsel %vm773, %v2137, 0.0
        %v2154 = vsel %vm770, %v2138, 0.0
        %v2155 = vsel %vm771, %v2139, 0.0
        %v2156 = vsel %vm772, %v2140, 0.0
        %v2157 = vsel %vm773, %v2141, 0.0
        %v2158 = vpack.c.bf16 %v2154, %v2150
        %v2159 = vpack.c.bf16 %v2155, %v2151
        %v2160 = vpack.c.bf16 %v2156, %v2152
        %v2161 = vpack.c.bf16 %v2157, %v2153
        %2162 = vst [vmem:[#allocation3 + $0x280] sm:$0xff] %v2158
        %2163 = vst [vmem:[#allocation3 + $0x288] sm:$0xff] %v2159
        %2164 = vst [vmem:[#allocation3 + $0x290] sm:$0xff] %v2160
        %2165 = vst [vmem:[#allocation3 + $0x298] sm:$0xff] %v2161
        %v2166 = vld [vmem:[#allocation2 + $0x10] sm:$0xff]
        %v2167 = vld [vmem:[#allocation2 + $0x18] sm:$0xff]
        %v2168 = vld [vmem:[#allocation2 + $0x20] sm:$0xff]
        %v2169 = vld [vmem:[#allocation2 + $0x28] sm:$0xff]
        %v2170 = vld [vmem:[#allocation2 + $0x30] sm:$0xff]
        %v2171 = vld [vmem:[#allocation2 + $0x50] sm:$0xff]
        %v2172 = vld [vmem:[#allocation2 + $0x58] sm:$0xff]
        %v2173 = vld [vmem:[#allocation2 + $0x60] sm:$0xff]
        %v2174 = vld [vmem:[#allocation2 + $0x68] sm:$0xff]
        %v2175 = vld [vmem:[#allocation2 + $0x70] sm:$0xff]
        %2186 = vrot.lane.b32.xlu0 %v2166, 65
        %v2187 = vpop.permute.xlu0 %2186
        %2188 = vrot.lane.b32.xlu0 %v2167, 65
        %v2189 = vpop.permute.xlu0 %2188
        %2190 = vrot.lane.b32.xlu0 %v2168, 65
        %v2191 = vpop.permute.xlu0 %2190
        %2192 = vrot.lane.b32.xlu0 %v2169, 65
        %v2193 = vpop.permute.xlu0 %2192
        %2194 = vrot.lane.b32.xlu0 %v2170, 65
        %v2195 = vpop.permute.xlu0 %2194
        %2196 = vrot.lane.b32.xlu0 %v2171, 65
        %v2197 = vpop.permute.xlu0 %2196
        %2198 = vrot.lane.b32.xlu0 %v2172, 65
        %v2199 = vpop.permute.xlu0 %2198
        %2200 = vrot.lane.b32.xlu0 %v2173, 65
        %v2201 = vpop.permute.xlu0 %2200
        %2202 = vrot.lane.b32.xlu0 %v2174, 65
        %v2203 = vpop.permute.xlu0 %2202
        %2204 = vrot.lane.b32.xlu0 %v2175, 65
        %v2205 = vpop.permute.xlu0 %2204
        %v2206 = vsel %vm898, %v2187, %v2189
        %v2207 = vsel %vm898, %v2189, %v2191
        %v2208 = vsel %vm898, %v2191, %v2193
        %v2209 = vsel %vm898, %v2193, %v2195
        %v2210 = vsel %vm898, %v2197, %v2199
        %v2211 = vsel %vm898, %v2199, %v2201
        %v2212 = vsel %vm898, %v2201, %v2203
        %v2213 = vsel %vm898, %v2203, %v2205
        %v2222 = vsel %vm864, %v2206, 0.0
        %v2223 = vsel %vm865, %v2207, 0.0
        %v2224 = vsel %vm866, %v2208, 0.0
        %v2225 = vsel %vm867, %v2209, 0.0
        %v2226 = vsel %vm864, %v2210, 0.0
        %v2227 = vsel %vm865, %v2211, 0.0
        %v2228 = vsel %vm866, %v2212, 0.0
        %v2229 = vsel %vm867, %v2213, 0.0
        %v2230 = vpack.c.bf16 %v2226, %v2222
        %v2231 = vpack.c.bf16 %v2227, %v2223
        %v2232 = vpack.c.bf16 %v2228, %v2224
        %v2233 = vpack.c.bf16 %v2229, %v2225
        %2234 = vst [vmem:[#allocation3 + $0x2a0] sm:$0xff] %v2230
        %2235 = vst [vmem:[#allocation3 + $0x2a8] sm:$0xff] %v2231
        %2236 = vst [vmem:[#allocation3 + $0x2b0] sm:$0xff] %v2232
        %2237 = vst [vmem:[#allocation3 + $0x2b8] sm:$0xff] %v2233
        %v2238 = vld [vmem:[#allocation2 + $0x10] sm:$0xff]
        %v2239 = vld [vmem:[#allocation2 + $0x18] sm:$0xff]
        %v2240 = vld [vmem:[#allocation2 + $0x20] sm:$0xff]
        %v2241 = vld [vmem:[#allocation2 + $0x28] sm:$0xff]
        %v2242 = vld [vmem:[#allocation2 + $0x30] sm:$0xff]
        %v2243 = vld [vmem:[#allocation2 + $0x50] sm:$0xff]
        %v2244 = vld [vmem:[#allocation2 + $0x58] sm:$0xff]
        %v2245 = vld [vmem:[#allocation2 + $0x60] sm:$0xff]
        %v2246 = vld [vmem:[#allocation2 + $0x68] sm:$0xff]
        %v2247 = vld [vmem:[#allocation2 + $0x70] sm:$0xff]
        %v2248 = vpack.c.bf16 %v2243, %v2238
        %v2249 = vpack.c.bf16 %v2244, %v2239
        %v2250 = vpack.c.bf16 %v2245, %v2240
        %v2251 = vpack.c.bf16 %v2246, %v2241
        %v2252 = vpack.c.bf16 %v2247, %v2242
        %2258 = vrot.lane.b32.xlu0 %v2248, 64
        %v2259 = vpop.permute.xlu0 %2258
        %2260 = vrot.lane.b32.xlu0 %v2249, 64
        %v2261 = vpop.permute.xlu0 %2260
        %2262 = vrot.lane.b32.xlu0 %v2250, 64
        %v2263 = vpop.permute.xlu0 %2262
        %2264 = vrot.lane.b32.xlu0 %v2251, 64
        %v2265 = vpop.permute.xlu0 %2264
        %2266 = vrot.lane.b32.xlu0 %v2252, 64
        %v2267 = vpop.permute.xlu0 %2266
        %v2268 = vsel %vm961, %v2259, %v2261
        %v2269 = vsel %vm961, %v2261, %v2263
        %v2270 = vsel %vm961, %v2263, %v2265
        %v2271 = vsel %vm961, %v2265, %v2267
        %2276 = vst [vmem:[#allocation3 + $0x2c0] sm:$0xff] %v2268
        %2277 = vst [vmem:[#allocation3 + $0x2c8] sm:$0xff] %v2269
        %2278 = vst [vmem:[#allocation3 + $0x2d0] sm:$0xff] %v2270
        %2279 = vst [vmem:[#allocation3 + $0x2d8] sm:$0xff] %v2271
        %v2280 = vld [vmem:[#allocation2 + $0x10] sm:$0xff]
        %v2281 = vld [vmem:[#allocation2 + $0x18] sm:$0xff]
        %v2282 = vld [vmem:[#allocation2 + $0x20] sm:$0xff]
        %v2283 = vld [vmem:[#allocation2 + $0x28] sm:$0xff]
        %v2284 = vld [vmem:[#allocation2 + $0x30] sm:$0xff]
        %v2285 = vld [vmem:[#allocation2 + $0x50] sm:$0xff]
        %v2286 = vld [vmem:[#allocation2 + $0x58] sm:$0xff]
        %v2287 = vld [vmem:[#allocation2 + $0x60] sm:$0xff]
        %v2288 = vld [vmem:[#allocation2 + $0x68] sm:$0xff]
        %v2289 = vld [vmem:[#allocation2 + $0x70] sm:$0xff]
        %2300 = vrot.lane.b32.xlu0 %v2280, 63
        %v2301 = vpop.permute.xlu0 %2300
        %2302 = vrot.lane.b32.xlu0 %v2281, 63
        %v2303 = vpop.permute.xlu0 %2302
        %2304 = vrot.lane.b32.xlu0 %v2282, 63
        %v2305 = vpop.permute.xlu0 %2304
        %2306 = vrot.lane.b32.xlu0 %v2283, 63
        %v2307 = vpop.permute.xlu0 %2306
        %2308 = vrot.lane.b32.xlu0 %v2284, 63
        %v2309 = vpop.permute.xlu0 %2308
        %2310 = vrot.lane.b32.xlu0 %v2285, 63
        %v2311 = vpop.permute.xlu0 %2310
        %2312 = vrot.lane.b32.xlu0 %v2286, 63
        %v2313 = vpop.permute.xlu0 %2312
        %2314 = vrot.lane.b32.xlu0 %v2287, 63
        %v2315 = vpop.permute.xlu0 %2314
        %2316 = vrot.lane.b32.xlu0 %v2288, 63
        %v2317 = vpop.permute.xlu0 %2316
        %2318 = vrot.lane.b32.xlu0 %v2289, 63
        %v2319 = vpop.permute.xlu0 %2318
        %v2320 = vsel %vm1035, %v2301, %v2303
        %v2321 = vsel %vm1035, %v2303, %v2305
        %v2322 = vsel %vm1035, %v2305, %v2307
        %v2323 = vsel %vm1035, %v2307, %v2309
        %v2324 = vsel %vm1035, %v2311, %v2313
        %v2325 = vsel %vm1035, %v2313, %v2315
        %v2326 = vsel %vm1035, %v2315, %v2317
        %v2327 = vsel %vm1035, %v2317, %v2319
        %v2336 = vsel %vm1001, %v2320, 0.0
        %v2337 = vsel %vm1002, %v2321, 0.0
        %v2338 = vsel %vm1003, %v2322, 0.0
        %v2339 = vsel %vm1004, %v2323, 0.0
        %v2340 = vsel %vm1001, %v2324, 0.0
        %v2341 = vsel %vm1002, %v2325, 0.0
        %v2342 = vsel %vm1003, %v2326, 0.0
        %v2343 = vsel %vm1004, %v2327, 0.0
        %v2344 = vpack.c.bf16 %v2340, %v2336
        %v2345 = vpack.c.bf16 %v2341, %v2337
        %v2346 = vpack.c.bf16 %v2342, %v2338
        %v2347 = vpack.c.bf16 %v2343, %v2339
        %2348 = vst [vmem:[#allocation3 + $0x2e0] sm:$0xff] %v2344
        %2349 = vst [vmem:[#allocation3 + $0x2e8] sm:$0xff] %v2345
        %2350 = vst [vmem:[#allocation3 + $0x2f0] sm:$0xff] %v2346
        %2351 = vst [vmem:[#allocation3 + $0x2f8] sm:$0xff] %v2347
        %v2352 = vld [vmem:[#allocation2 + $0x10] sm:$0xff]
        %v2353 = vld [vmem:[#allocation2 + $0x18] sm:$0xff]
        %v2354 = vld [vmem:[#allocation2 + $0x20] sm:$0xff]
        %v2355 = vld [vmem:[#allocation2 + $0x28] sm:$0xff]
        %v2356 = vld [vmem:[#allocation2 + $0x30] sm:$0xff]
        %v2357 = vld [vmem:[#allocation2 + $0x50] sm:$0xff]
        %v2358 = vld [vmem:[#allocation2 + $0x58] sm:$0xff]
        %v2359 = vld [vmem:[#allocation2 + $0x60] sm:$0xff]
        %v2360 = vld [vmem:[#allocation2 + $0x68] sm:$0xff]
        %v2361 = vld [vmem:[#allocation2 + $0x70] sm:$0xff]
        %2372 = vrot.lane.b32.xlu0 %v2352, 57
        %v2373 = vpop.permute.xlu0 %2372
        %2374 = vrot.lane.b32.xlu0 %v2353, 57
        %v2375 = vpop.permute.xlu0 %2374
        %2376 = vrot.lane.b32.xlu0 %v2354, 57
        %v2377 = vpop.permute.xlu0 %2376
        %2378 = vrot.lane.b32.xlu0 %v2355, 57
        %v2379 = vpop.permute.xlu0 %2378
        %2380 = vrot.lane.b32.xlu0 %v2356, 57
        %v2381 = vpop.permute.xlu0 %2380
        %2382 = vrot.lane.b32.xlu0 %v2357, 57
        %v2383 = vpop.permute.xlu0 %2382
        %2384 = vrot.lane.b32.xlu0 %v2358, 57
        %v2385 = vpop.permute.xlu0 %2384
        %2386 = vrot.lane.b32.xlu0 %v2359, 57
        %v2387 = vpop.permute.xlu0 %2386
        %2388 = vrot.lane.b32.xlu0 %v2360, 57
        %v2389 = vpop.permute.xlu0 %2388
        %2390 = vrot.lane.b32.xlu0 %v2361, 57
        %v2391 = vpop.permute.xlu0 %2390
        %v2392 = vsel %vm1129, %v2373, %v2375
        %v2393 = vsel %vm1129, %v2375, %v2377
        %v2394 = vsel %vm1129, %v2377, %v2379
        %v2395 = vsel %vm1129, %v2379, %v2381
        %v2396 = vsel %vm1129, %v2383, %v2385
        %v2397 = vsel %vm1129, %v2385, %v2387
        %v2398 = vsel %vm1129, %v2387, %v2389
        %v2399 = vsel %vm1129, %v2389, %v2391
        %v2408 = vsel %vm1095, %v2392, 0.0
        %v2409 = vsel %vm1096, %v2393, 0.0
        %v2410 = vsel %vm1097, %v2394, 0.0
        %v2411 = vsel %vm1098, %v2395, 0.0
        %v2412 = vsel %vm1095, %v2396, 0.0
        %v2413 = vsel %vm1096, %v2397, 0.0
        %v2414 = vsel %vm1097, %v2398, 0.0
        %v2415 = vsel %vm1098, %v2399, 0.0
        %v2416 = vpack.c.bf16 %v2412, %v2408
        %v2417 = vpack.c.bf16 %v2413, %v2409
        %v2418 = vpack.c.bf16 %v2414, %v2410
        %v2419 = vpack.c.bf16 %v2415, %v2411
        %2420 = vst [vmem:[#allocation3 + $0x300] sm:$0xff] %v2416
        %2421 = vst [vmem:[#allocation3 + $0x308] sm:$0xff] %v2417
        %2422 = vst [vmem:[#allocation3 + $0x310] sm:$0xff] %v2418
        %2423 = vst [vmem:[#allocation3 + $0x318] sm:$0xff] %v2419
        %v2424 = vld [vmem:[#allocation2 + $0x10] sm:$0xff]
        %v2425 = vld [vmem:[#allocation2 + $0x18] sm:$0xff]
        %v2426 = vld [vmem:[#allocation2 + $0x20] sm:$0xff]
        %v2427 = vld [vmem:[#allocation2 + $0x28] sm:$0xff]
        %v2428 = vld [vmem:[#allocation2 + $0x30] sm:$0xff]
        %v2429 = vld [vmem:[#allocation2 + $0x50] sm:$0xff]
        %v2430 = vld [vmem:[#allocation2 + $0x58] sm:$0xff]
        %v2431 = vld [vmem:[#allocation2 + $0x60] sm:$0xff]
        %v2432 = vld [vmem:[#allocation2 + $0x68] sm:$0xff]
        %v2433 = vld [vmem:[#allocation2 + $0x70] sm:$0xff]
        %2444 = vrot.lane.b32.xlu0 %v2424, 56
        %v2445 = vpop.permute.xlu0 %2444
        %2446 = vrot.lane.b32.xlu0 %v2425, 56
        %v2447 = vpop.permute.xlu0 %2446
        %2448 = vrot.lane.b32.xlu0 %v2426, 56
        %v2449 = vpop.permute.xlu0 %2448
        %2450 = vrot.lane.b32.xlu0 %v2427, 56
        %v2451 = vpop.permute.xlu0 %2450
        %2452 = vrot.lane.b32.xlu0 %v2428, 56
        %v2453 = vpop.permute.xlu0 %2452
        %2454 = vrot.lane.b32.xlu0 %v2429, 56
        %v2455 = vpop.permute.xlu0 %2454
        %2456 = vrot.lane.b32.xlu0 %v2430, 56
        %v2457 = vpop.permute.xlu0 %2456
        %2458 = vrot.lane.b32.xlu0 %v2431, 56
        %v2459 = vpop.permute.xlu0 %2458
        %2460 = vrot.lane.b32.xlu0 %v2432, 56
        %v2461 = vpop.permute.xlu0 %2460
        %2462 = vrot.lane.b32.xlu0 %v2433, 56
        %v2463 = vpop.permute.xlu0 %2462
        %v2464 = vsel %vm1223, %v2445, %v2447
        %v2465 = vsel %vm1223, %v2447, %v2449
        %v2466 = vsel %vm1223, %v2449, %v2451
        %v2467 = vsel %vm1223, %v2451, %v2453
        %v2468 = vsel %vm1223, %v2455, %v2457
        %v2469 = vsel %vm1223, %v2457, %v2459
        %v2470 = vsel %vm1223, %v2459, %v2461
        %v2471 = vsel %vm1223, %v2461, %v2463
        %v2480 = vsel %vm1189, %v2464, 0.0
        %v2481 = vsel %vm1190, %v2465, 0.0
        %v2482 = vsel %vm1191, %v2466, 0.0
        %v2483 = vsel %vm1192, %v2467, 0.0
        %v2484 = vsel %vm1189, %v2468, 0.0
        %v2485 = vsel %vm1190, %v2469, 0.0
        %v2486 = vsel %vm1191, %v2470, 0.0
        %v2487 = vsel %vm1192, %v2471, 0.0
        %v2488 = vpack.c.bf16 %v2484, %v2480
        %v2489 = vpack.c.bf16 %v2485, %v2481
        %v2490 = vpack.c.bf16 %v2486, %v2482
        %v2491 = vpack.c.bf16 %v2487, %v2483
        %2492 = vst [vmem:[#allocation3 + $0x320] sm:$0xff] %v2488
        %2493 = vst [vmem:[#allocation3 + $0x328] sm:$0xff] %v2489
        %2494 = vst [vmem:[#allocation3 + $0x330] sm:$0xff] %v2490
        %2495 = vst [vmem:[#allocation3 + $0x338] sm:$0xff] %v2491
        %v2496 = vld [vmem:[#allocation2 + $0x10] sm:$0xff]
        %v2497 = vld [vmem:[#allocation2 + $0x18] sm:$0xff]
        %v2498 = vld [vmem:[#allocation2 + $0x20] sm:$0xff]
        %v2499 = vld [vmem:[#allocation2 + $0x28] sm:$0xff]
        %v2500 = vld [vmem:[#allocation2 + $0x30] sm:$0xff]
        %v2501 = vld [vmem:[#allocation2 + $0x50] sm:$0xff]
        %v2502 = vld [vmem:[#allocation2 + $0x58] sm:$0xff]
        %v2503 = vld [vmem:[#allocation2 + $0x60] sm:$0xff]
        %v2504 = vld [vmem:[#allocation2 + $0x68] sm:$0xff]
        %v2505 = vld [vmem:[#allocation2 + $0x70] sm:$0xff]
        %2516 = vrot.lane.b32.xlu0 %v2496, 55
        %v2517 = vpop.permute.xlu0 %2516
        %2518 = vrot.lane.b32.xlu0 %v2497, 55
        %v2519 = vpop.permute.xlu0 %2518
        %2520 = vrot.lane.b32.xlu0 %v2498, 55
        %v2521 = vpop.permute.xlu0 %2520
        %2522 = vrot.lane.b32.xlu0 %v2499, 55
        %v2523 = vpop.permute.xlu0 %2522
        %2524 = vrot.lane.b32.xlu0 %v2500, 55
        %v2525 = vpop.permute.xlu0 %2524
        %2526 = vrot.lane.b32.xlu0 %v2501, 55
        %v2527 = vpop.permute.xlu0 %2526
        %2528 = vrot.lane.b32.xlu0 %v2502, 55
        %v2529 = vpop.permute.xlu0 %2528
        %2530 = vrot.lane.b32.xlu0 %v2503, 55
        %v2531 = vpop.permute.xlu0 %2530
        %2532 = vrot.lane.b32.xlu0 %v2504, 55
        %v2533 = vpop.permute.xlu0 %2532
        %2534 = vrot.lane.b32.xlu0 %v2505, 55
        %v2535 = vpop.permute.xlu0 %2534
        %v2536 = vsel %vm1317, %v2517, %v2519
        %v2537 = vsel %vm1317, %v2519, %v2521
        %v2538 = vsel %vm1317, %v2521, %v2523
        %v2539 = vsel %vm1317, %v2523, %v2525
        %v2540 = vsel %vm1317, %v2527, %v2529
        %v2541 = vsel %vm1317, %v2529, %v2531
        %v2542 = vsel %vm1317, %v2531, %v2533
        %v2543 = vsel %vm1317, %v2533, %v2535
        %v2552 = vsel %vm1283, %v2536, 0.0
        %v2553 = vsel %vm1284, %v2537, 0.0
        %v2554 = vsel %vm1285, %v2538, 0.0
        %v2555 = vsel %vm1286, %v2539, 0.0
        %v2556 = vsel %vm1283, %v2540, 0.0
        %v2557 = vsel %vm1284, %v2541, 0.0
        %v2558 = vsel %vm1285, %v2542, 0.0
        %v2559 = vsel %vm1286, %v2543, 0.0
        %v2560 = vpack.c.bf16 %v2556, %v2552
        %v2561 = vpack.c.bf16 %v2557, %v2553
        %v2562 = vpack.c.bf16 %v2558, %v2554
        %v2563 = vpack.c.bf16 %v2559, %v2555
        %2564 = vst [vmem:[#allocation3 + $0x340] sm:$0xff] %v2560
        %2565 = vst [vmem:[#allocation3 + $0x348] sm:$0xff] %v2561
        %2566 = vst [vmem:[#allocation3 + $0x350] sm:$0xff] %v2562
        %2567 = vst [vmem:[#allocation3 + $0x358] sm:$0xff] %v2563
        %v2568 = vld [vmem:[#allocation7] sm:$0xff]
        %v2569 = vld [vmem:[#allocation3] sm:$0xff]
        %v2570 = vld [vmem:[#allocation3 + $0x8] sm:$0xff]
        %v2571 = vld [vmem:[#allocation3 + $0x10] sm:$0xff]
        %v2572 = vld [vmem:[#allocation3 + $0x18] sm:$0xff]
        %v2573 = vld [vmem:[#allocation3 + $0x20] sm:$0xff]
        %v2574 = vld [vmem:[#allocation3 + $0x28] sm:$0xff]
        %v2575 = vld [vmem:[#allocation3 + $0x30] sm:$0xff]
        %v2576 = vld [vmem:[#allocation3 + $0x38] sm:$0xff]
        %v2577 = vld [vmem:[#allocation3 + $0x40] sm:$0xff]
        %v2578 = vld [vmem:[#allocation3 + $0x48] sm:$0xff]
        %v2579 = vld [vmem:[#allocation3 + $0x50] sm:$0xff]
        %v2580 = vld [vmem:[#allocation3 + $0x58] sm:$0xff]
        %v2581 = vld [vmem:[#allocation3 + $0x60] sm:$0xff]
        %v2582 = vld [vmem:[#allocation3 + $0x68] sm:$0xff]
        %v2583 = vld [vmem:[#allocation3 + $0x70] sm:$0xff]
        %v2584 = vld [vmem:[#allocation3 + $0x78] sm:$0xff]
        %v2585 = vld [vmem:[#allocation3 + $0x80] sm:$0xff]
        %v2586 = vld [vmem:[#allocation3 + $0x88] sm:$0xff]
        %v2587 = vld [vmem:[#allocation3 + $0x90] sm:$0xff]
        %v2588 = vld [vmem:[#allocation3 + $0x98] sm:$0xff]
        %v2589 = vld [vmem:[#allocation3 + $0xa0] sm:$0xff]
        %v2590 = vld [vmem:[#allocation3 + $0xa8] sm:$0xff]
        %v2591 = vld [vmem:[#allocation3 + $0xb0] sm:$0xff]
        %v2592 = vld [vmem:[#allocation3 + $0xb8] sm:$0xff]
        %v2593 = vld [vmem:[#allocation3 + $0xc0] sm:$0xff]
        %v2594 = vld [vmem:[#allocation3 + $0xc8] sm:$0xff]
        %v2595 = vld [vmem:[#allocation3 + $0xd0] sm:$0xff]
        %v2596 = vld [vmem:[#allocation3 + $0xd8] sm:$0xff]
        %v2597 = vld [vmem:[#allocation3 + $0xe0] sm:$0xff]
        %v2598 = vld [vmem:[#allocation3 + $0xe8] sm:$0xff]
        %v2599 = vld [vmem:[#allocation3 + $0xf0] sm:$0xff]
        %v2600 = vld [vmem:[#allocation3 + $0xf8] sm:$0xff]
        %v2601 = vld [vmem:[#allocation3 + $0x100] sm:$0xff]
        %v2602 = vld [vmem:[#allocation3 + $0x108] sm:$0xff]
        %v2603 = vld [vmem:[#allocation3 + $0x110] sm:$0xff]
        %v2604 = vld [vmem:[#allocation3 + $0x118] sm:$0xff]
        %v2605 = vld [vmem:[#allocation3 + $0x120] sm:$0xff]
        %v2606 = vld [vmem:[#allocation3 + $0x128] sm:$0xff]
        %v2607 = vld [vmem:[#allocation3 + $0x130] sm:$0xff]
        %v2608 = vld [vmem:[#allocation3 + $0x138] sm:$0xff]
        %v2609 = vld [vmem:[#allocation3 + $0x140] sm:$0xff]
        %v2610 = vld [vmem:[#allocation3 + $0x148] sm:$0xff]
        %v2611 = vld [vmem:[#allocation3 + $0x150] sm:$0xff]
        %v2612 = vld [vmem:[#allocation3 + $0x158] sm:$0xff]
        %v2613 = vld [vmem:[#allocation3 + $0x160] sm:$0xff]
        %v2614 = vld [vmem:[#allocation3 + $0x168] sm:$0xff]
        %v2615 = vld [vmem:[#allocation3 + $0x170] sm:$0xff]
        %v2616 = vld [vmem:[#allocation3 + $0x178] sm:$0xff]
        %v2617 = vld [vmem:[#allocation3 + $0x180] sm:$0xff]
        %v2618 = vld [vmem:[#allocation3 + $0x188] sm:$0xff]
        %v2619 = vld [vmem:[#allocation3 + $0x190] sm:$0xff]
        %v2620 = vld [vmem:[#allocation3 + $0x198] sm:$0xff]
        %v2621 = vld [vmem:[#allocation3 + $0x1a0] sm:$0xff]
        %v2622 = vld [vmem:[#allocation3 + $0x1a8] sm:$0xff]
        %v2623 = vld [vmem:[#allocation3 + $0x1b0] sm:$0xff]
        %v2624 = vld [vmem:[#allocation3 + $0x1b8] sm:$0xff]
        %v2625 = vld [vmem:[#allocation3 + $0x1c0] sm:$0xff]
        %v2626 = vld [vmem:[#allocation3 + $0x1c8] sm:$0xff]
        %v2627 = vld [vmem:[#allocation3 + $0x1d0] sm:$0xff]
        %v2628 = vld [vmem:[#allocation3 + $0x1d8] sm:$0xff]
        %v2629 = vld [vmem:[#allocation3 + $0x1e0] sm:$0xff]
        %v2630 = vld [vmem:[#allocation3 + $0x1e8] sm:$0xff]
        %v2631 = vld [vmem:[#allocation3 + $0x1f0] sm:$0xff]
        %v2632 = vld [vmem:[#allocation3 + $0x1f8] sm:$0xff]
        %v2633 = vld [vmem:[#allocation3 + $0x200] sm:$0xff]
        %v2634 = vld [vmem:[#allocation3 + $0x208] sm:$0xff]
        %v2635 = vld [vmem:[#allocation3 + $0x210] sm:$0xff]
        %v2636 = vld [vmem:[#allocation3 + $0x218] sm:$0xff]
        %v2637 = vld [vmem:[#allocation3 + $0x220] sm:$0xff]
        %v2638 = vld [vmem:[#allocation3 + $0x228] sm:$0xff]
        %v2639 = vld [vmem:[#allocation3 + $0x230] sm:$0xff]
        %v2640 = vld [vmem:[#allocation3 + $0x238] sm:$0xff]
        %v2641 = vld [vmem:[#allocation3 + $0x240] sm:$0xff]
        %v2642 = vld [vmem:[#allocation3 + $0x248] sm:$0xff]
        %v2643 = vld [vmem:[#allocation3 + $0x250] sm:$0xff]
        %v2644 = vld [vmem:[#allocation3 + $0x258] sm:$0xff]
        %v2645 = vld [vmem:[#allocation3 + $0x260] sm:$0xff]
        %v2646 = vld [vmem:[#allocation3 + $0x268] sm:$0xff]
        %v2647 = vld [vmem:[#allocation3 + $0x270] sm:$0xff]
        %v2648 = vld [vmem:[#allocation3 + $0x278] sm:$0xff]
        %v2649 = vld [vmem:[#allocation3 + $0x280] sm:$0xff]
        %v2650 = vld [vmem:[#allocation3 + $0x288] sm:$0xff]
        %v2651 = vld [vmem:[#allocation3 + $0x290] sm:$0xff]
        %v2652 = vld [vmem:[#allocation3 + $0x298] sm:$0xff]
        %v2653 = vld [vmem:[#allocation3 + $0x2a0] sm:$0xff]
        %v2654 = vld [vmem:[#allocation3 + $0x2a8] sm:$0xff]
        %v2655 = vld [vmem:[#allocation3 + $0x2b0] sm:$0xff]
        %v2656 = vld [vmem:[#allocation3 + $0x2b8] sm:$0xff]
        %v2657 = vld [vmem:[#allocation3 + $0x2c0] sm:$0xff]
        %v2658 = vld [vmem:[#allocation3 + $0x2c8] sm:$0xff]
        %v2659 = vld [vmem:[#allocation3 + $0x2d0] sm:$0xff]
        %v2660 = vld [vmem:[#allocation3 + $0x2d8] sm:$0xff]
        %v2661 = vld [vmem:[#allocation3 + $0x2e0] sm:$0xff]
        %v2662 = vld [vmem:[#allocation3 + $0x2e8] sm:$0xff]
        %v2663 = vld [vmem:[#allocation3 + $0x2f0] sm:$0xff]
        %v2664 = vld [vmem:[#allocation3 + $0x2f8] sm:$0xff]
        %v2665 = vld [vmem:[#allocation3 + $0x300] sm:$0xff]
        %v2666 = vld [vmem:[#allocation3 + $0x308] sm:$0xff]
        %v2667 = vld [vmem:[#allocation3 + $0x310] sm:$0xff]
        %v2668 = vld [vmem:[#allocation3 + $0x318] sm:$0xff]
        %v2669 = vld [vmem:[#allocation3 + $0x320] sm:$0xff]
        %v2670 = vld [vmem:[#allocation3 + $0x328] sm:$0xff]
        %v2671 = vld [vmem:[#allocation3 + $0x330] sm:$0xff]
        %v2672 = vld [vmem:[#allocation3 + $0x338] sm:$0xff]
        %v2673 = vld [vmem:[#allocation3 + $0x340] sm:$0xff]
        %v2674 = vld [vmem:[#allocation3 + $0x348] sm:$0xff]
        %v2675 = vld [vmem:[#allocation3 + $0x350] sm:$0xff]
        %v2676 = vld [vmem:[#allocation3 + $0x358] sm:$0xff]
        %v2677 = vld [vmem:[%s3] sm:$0xf]
        %2679 = vset.pattern.permute.xlu0 0
        %2680 = vperm.xlu0 %2679, %v2677
        %v2681 = vpop.permute.xlu0 %2680
        %v2684 = vcombine.high %v2568, %v2568
        %v2686 = vunpack.c.l.s4 1983009808
        %v2687 = vunpack.c.0.s8 %v2686
        %v2688 = vlaneseq
        %v2689 = vshrl.u32 %v2688, 7
        %v2690 = vsub.s32 %v2687, %v2689
        %v2691 = vrot.slane %v2568, %v2690
        %v2693 = vunpack.c.l.s4 1983009808
        %v2694 = vunpack.c.0.s8 %v2693
        %v2695 = vlaneseq
        %v2696 = vshrl.u32 %v2695, 7
        %v2697 = vsub.s32 %v2694, %v2696
        %v2698 = vrot.slane %v2684, %v2697
        %v2699 = vcombine.high %v2691, %v2691
        %v2700 = vcombine.high %v2698, %v2698
        %vm2704 = vcmask 392192
        %v2706 = vsel %vm2704, %v2700, 0
        %2708 = vmatprep.subr.bf16.mxu0 %v2570
        %2709 = vmatpush1.bf16.msra.mxu0 %v2569
        %2710 = vmatprep.subr.bf16.mxu0 %v2574
        %2711 = vmatpush1.bf16.msra.mxu0 %v2573
        %2712 = vmatprep.subr.bf16.mxu0 %v2578
        %2713 = vmatpush1.bf16.msra.mxu0 %v2577
        %2714 = vmatprep.subr.bf16.mxu0 %v2582
        %2715 = vmatpush1.bf16.msra.mxu0 %v2581
        %2716 = vmatprep.subr.bf16.mxu0 %v2586
        %2717 = vmatpush1.bf16.msra.mxu0 %v2585
        %2718 = vmatprep.subr.bf16.mxu0 %v2590
        %2719 = vmatpush1.bf16.msra.mxu0 %v2589
        %2720 = vmatprep.subr.bf16.mxu0 %v2594
        %2721 = vmatpush1.bf16.msra.mxu0 %v2593
        %2722 = vmatprep.subr.bf16.mxu0 %v2598
        %2723 = vmatpush1.bf16.msra.mxu0 %v2597
        %2724 = vmatprep.subr.bf16.mxu0 %v2602
        %2725 = vmatpush1.bf16.msra.mxu0 %v2601
        %2726 = vmatprep.subr.bf16.mxu0 %v2606
        %2727 = vmatpush1.bf16.msra.mxu0 %v2605
        %2728 = vmatprep.subr.bf16.mxu0 %v2610
        %2729 = vmatpush1.bf16.msra.mxu0 %v2609
        %2730 = vmatprep.subr.bf16.mxu0 %v2614
        %2731 = vmatpush1.bf16.msra.mxu0 %v2613
        %2732 = vmatprep.subr.bf16.mxu0 %v2618
        %2733 = vmatpush1.bf16.msra.mxu0 %v2617
        %2734 = vmatprep.subr.bf16.mxu0 %v2622
        %2735 = vmatpush1.bf16.msra.mxu0 %v2621
        %2736 = vmatprep.subr.bf16.mxu0 %v2626
        %2737 = vmatpush1.bf16.msra.mxu0 %v2625
        %2738 = vmatprep.subr.bf16.mxu0 %v2630
        %2739 = vmatpush1.bf16.msra.mxu0 %v2629
        %2740 = vmatprep.mubr.bf16.mxu0 %v2699
        %2741 = vmatmul.mubr.bf16.gmra.mrb[0].mxu0 %v2691
        %v2742 = vpop.f32.mrb[0].mxu0
        %v2743 = vadd.f32 %v2681, %v2742
        %v2744 = vpop.f32.mrb[0].mxu0
        %v2745 = vadd.f32 %v2681, %v2744
        %v2746 = vpop.f32.mrb[0].mxu0
        %v2747 = vpop.f32.mrb[0].mxu0
        %2748 = vdwg.mxu0
        %2749 = vmatprep.subr.bf16.mxu0 %v2634
        %2750 = vmatpush1.bf16.msra.mxu0 %v2633
        %2751 = vmatprep.subr.bf16.mxu0 %v2638
        %2752 = vmatpush1.bf16.msra.mxu0 %v2637
        %2753 = vmatprep.subr.bf16.mxu0 %v2642
        %2754 = vmatpush1.bf16.msra.mxu0 %v2641
        %2755 = vmatprep.subr.bf16.mxu0 %v2646
        %2756 = vmatpush1.bf16.msra.mxu0 %v2645
        %2757 = vmatprep.subr.bf16.mxu0 %v2650
        %2758 = vmatpush1.bf16.msra.mxu0 %v2649
        %2759 = vmatprep.subr.bf16.mxu0 %v2654
        %2760 = vmatpush1.bf16.msra.mxu0 %v2653
        %2761 = vmatprep.subr.bf16.mxu0 %v2658
        %2762 = vmatpush1.bf16.msra.mxu0 %v2657
        %2763 = vmatprep.subr.bf16.mxu0 %v2662
        %2764 = vmatpush1.bf16.msra.mxu0 %v2661
        %2765 = vmatprep.subr.bf16.mxu0 %v2666
        %2766 = vmatpush1.bf16.msra.mxu0 %v2665
        %2767 = vmatprep.subr.bf16.mxu0 %v2670
        %2768 = vmatpush1.bf16.msra.mxu0 %v2669
        %2769 = vmatprep.subr.bf16.mxu0 %v2674
        %2770 = vmatpush1.bf16.msra.mxu0 %v2673
        %2771 = vmatprep.subr.bf16.mxu0 0
        %2772 = vmatpush1.bf16.msra.mxu0 0
        %2773 = vmatprep.subr.bf16.mxu0 0
        %2774 = vmatpush1.bf16.msra.mxu0 0
        %2775 = vmatprep.subr.bf16.mxu0 0
        %2776 = vmatpush1.bf16.msra.mxu0 0
        %2777 = vmatprep.subr.bf16.mxu0 0
        %2778 = vmatpush1.bf16.msra.mxu0 0
        %2779 = vmatprep.subr.bf16.mxu0 0
        %2780 = vmatpush1.bf16.msra.mxu0 0
        %2781 = vmatprep.mubr.bf16.mxu0 %v2706
        %2782 = vmatmul.mubr.bf16.gmra.mrb[0].mxu0 %v2698
        %v2783 = vpop.f32.mrb[0].mxu0
        %v2784 = vadd.f32 %v2743, %v2783
        %v2785 = vpop.f32.mrb[0].mxu0
        %v2786 = vadd.f32 %v2745, %v2785
        %v2787 = vpop.f32.mrb[0].mxu0
        %v2788 = vpop.f32.mrb[0].mxu0
        %2789 = vdwg.mxu0
        %2790 = vmatprep.subr.bf16.mxu0 %v2572
        %2791 = vmatpush1.bf16.msra.mxu0 %v2571
        %2792 = vmatprep.subr.bf16.mxu0 %v2576
        %2793 = vmatpush1.bf16.msra.mxu0 %v2575
        %2794 = vmatprep.subr.bf16.mxu0 %v2580
        %2795 = vmatpush1.bf16.msra.mxu0 %v2579
        %2796 = vmatprep.subr.bf16.mxu0 %v2584
        %2797 = vmatpush1.bf16.msra.mxu0 %v2583
        %2798 = vmatprep.subr.bf16.mxu0 %v2588
        %2799 = vmatpush1.bf16.msra.mxu0 %v2587
        %2800 = vmatprep.subr.bf16.mxu0 %v2592
        %2801 = vmatpush1.bf16.msra.mxu0 %v2591
        %2802 = vmatprep.subr.bf16.mxu0 %v2596
        %2803 = vmatpush1.bf16.msra.mxu0 %v2595
        %2804 = vmatprep.subr.bf16.mxu0 %v2600
        %2805 = vmatpush1.bf16.msra.mxu0 %v2599
        %2806 = vmatprep.subr.bf16.mxu0 %v2604
        %2807 = vmatpush1.bf16.msra.mxu0 %v2603
        %2808 = vmatprep.subr.bf16.mxu0 %v2608
        %2809 = vmatpush1.bf16.msra.mxu0 %v2607
        %2810 = vmatprep.subr.bf16.mxu0 %v2612
        %2811 = vmatpush1.bf16.msra.mxu0 %v2611
        %2812 = vmatprep.subr.bf16.mxu0 %v2616
        %2813 = vmatpush1.bf16.msra.mxu0 %v2615
        %2814 = vmatprep.subr.bf16.mxu0 %v2620
        %2815 = vmatpush1.bf16.msra.mxu0 %v2619
        %2816 = vmatprep.subr.bf16.mxu0 %v2624
        %2817 = vmatpush1.bf16.msra.mxu0 %v2623
        %2818 = vmatprep.subr.bf16.mxu0 %v2628
        %2819 = vmatpush1.bf16.msra.mxu0 %v2627
        %2820 = vmatprep.subr.bf16.mxu0 %v2632
        %2821 = vmatpush1.bf16.msra.mxu0 %v2631
        %2822 = vmatprep.mubr.bf16.mxu0 %v2699
        %2823 = vmatmul.mubr.bf16.gmra.mrb[0].mxu0 %v2691
        %v2824 = vpop.f32.mrb[0].mxu0
        %v2825 = vadd.f32 %v2681, %v2824
        %v2826 = vpop.f32.mrb[0].mxu0
        %v2827 = vadd.f32 %v2681, %v2826
        %v2828 = vpop.f32.mrb[0].mxu0
        %v2829 = vpop.f32.mrb[0].mxu0
        %2830 = vdwg.mxu0
        %2831 = vmatprep.subr.bf16.mxu0 %v2636
        %2832 = vmatpush1.bf16.msra.mxu0 %v2635
        %2833 = vmatprep.subr.bf16.mxu0 %v2640
        %2834 = vmatpush1.bf16.msra.mxu0 %v2639
        %2835 = vmatprep.subr.bf16.mxu0 %v2644
        %2836 = vmatpush1.bf16.msra.mxu0 %v2643
        %2837 = vmatprep.subr.bf16.mxu0 %v2648
        %2838 = vmatpush1.bf16.msra.mxu0 %v2647
        %2839 = vmatprep.subr.bf16.mxu0 %v2652
        %2840 = vmatpush1.bf16.msra.mxu0 %v2651
        %2841 = vmatprep.subr.bf16.mxu0 %v2656
        %2842 = vmatpush1.bf16.msra.mxu0 %v2655
        %2843 = vmatprep.subr.bf16.mxu0 %v2660
        %2844 = vmatpush1.bf16.msra.mxu0 %v2659
        %2845 = vmatprep.subr.bf16.mxu0 %v2664
        %2846 = vmatpush1.bf16.msra.mxu0 %v2663
        %2847 = vmatprep.subr.bf16.mxu0 %v2668
        %2848 = vmatpush1.bf16.msra.mxu0 %v2667
        %2849 = vmatprep.subr.bf16.mxu0 %v2672
        %2850 = vmatpush1.bf16.msra.mxu0 %v2671
        %2851 = vmatprep.subr.bf16.mxu0 %v2676
        %2852 = vmatpush1.bf16.msra.mxu0 %v2675
        %2853 = vmatprep.subr.bf16.mxu0 0
        %2854 = vmatpush1.bf16.msra.mxu0 0
        %2855 = vmatprep.subr.bf16.mxu0 0
        %2856 = vmatpush1.bf16.msra.mxu0 0
        %2857 = vmatprep.subr.bf16.mxu0 0
        %2858 = vmatpush1.bf16.msra.mxu0 0
        %2859 = vmatprep.subr.bf16.mxu0 0
        %2860 = vmatpush1.bf16.msra.mxu0 0
        %2861 = vmatprep.subr.bf16.mxu0 0
        %2862 = vmatpush1.bf16.msra.mxu0 0
        %2863 = vmatprep.mubr.bf16.mxu0 %v2706
        %2864 = vmatmul.mubr.bf16.gmra.mrb[0].mxu0 %v2698
        %v2865 = vpop.f32.mrb[0].mxu0
        %v2866 = vadd.f32 %v2825, %v2865
        %v2867 = vpop.f32.mrb[0].mxu0
        %v2868 = vadd.f32 %v2827, %v2867
        %v2869 = vpop.f32.mrb[0].mxu0
        %v2870 = vpop.f32.mrb[0].mxu0
        %2871 = vdwg.mxu0
        %2872 = vst [vmem:[#allocation2 + $0x10] sm:$0xf] %v2784
        %2873 = vst [vmem:[#allocation2 + $0x18] sm:$0xf] %v2786
        %2874 = vst [vmem:[#allocation2 + $0x20] sm:$0xf] %v2866
        %2875 = vst [vmem:[#allocation2 + $0x28] sm:$0xf] %v2868
        %v2876 = vld [vmem:[#allocation2 + $0x10] sm:$0xf]
        %v2877 = vld [vmem:[#allocation2 + $0x18] sm:$0xf]
        %v2878 = vld [vmem:[#allocation2 + $0x20] sm:$0xf]
        %v2879 = vld [vmem:[#allocation2 + $0x28] sm:$0xf]
        %v2880 = vld [vmem:[#allocation2 + $0x30] sm:$0xf]
        %2886 = vrot.lane.b32.xlu0 %v2876, 127
        %v2887 = vpop.permute.xlu0 %2886
        %2888 = vrot.lane.b32.xlu0 %v2877, 127
        %v2889 = vpop.permute.xlu0 %2888
        %2890 = vrot.lane.b32.xlu0 %v2878, 127
        %v2891 = vpop.permute.xlu0 %2890
        %2892 = vrot.lane.b32.xlu0 %v2879, 127
        %v2893 = vpop.permute.xlu0 %2892
        %2894 = vrot.lane.b32.xlu0 %v2880, 127
        %v2895 = vpop.permute.xlu0 %2894
        %v2896 = vsel %vm1698, %v2887, %v2889
        %v2897 = vsel %vm1698, %v2889, %v2891
        %v2898 = vsel %vm1698, %v2891, %v2893
        %v2899 = vsel %vm1698, %v2893, %v2895
        %v2904 = vadd.f32 %v2784, %v2896
        %v2905 = vadd.f32 %v2786, %v2897
        %v2906 = vadd.f32 %v2866, %v2898
        %v2907 = vadd.f32 %v2868, %v2899
        %2908 = vrot.lane.b32.xlu0 %v2876, 120
        %v2909 = vpop.permute.xlu0 %2908
        %2910 = vrot.lane.b32.xlu0 %v2877, 120
        %v2911 = vpop.permute.xlu0 %2910
        %2912 = vrot.lane.b32.xlu0 %v2878, 120
        %v2913 = vpop.permute.xlu0 %2912
        %2914 = vrot.lane.b32.xlu0 %v2879, 120
        %v2915 = vpop.permute.xlu0 %2914
        %2916 = vrot.lane.b32.xlu0 %v2880, 120
        %v2917 = vpop.permute.xlu0 %2916
        %v2918 = vsel %vm1844, %v2909, %v2911
        %v2919 = vsel %vm1844, %v2911, %v2913
        %v2920 = vsel %vm1844, %v2913, %v2915
        %v2921 = vsel %vm1844, %v2915, %v2917
        %v2926 = vadd.f32 %v2904, %v2918
        %v2927 = vadd.f32 %v2905, %v2919
        %v2928 = vadd.f32 %v2906, %v2920
        %v2929 = vadd.f32 %v2907, %v2921
        %2930 = vrot.lane.b32.xlu0 %v2876, 119
        %v2931 = vpop.permute.xlu0 %2930
        %2932 = vrot.lane.b32.xlu0 %v2877, 119
        %v2933 = vpop.permute.xlu0 %2932
        %2934 = vrot.lane.b32.xlu0 %v2878, 119
        %v2935 = vpop.permute.xlu0 %2934
        %2936 = vrot.lane.b32.xlu0 %v2879, 119
        %v2937 = vpop.permute.xlu0 %2936
        %2938 = vrot.lane.b32.xlu0 %v2880, 119
        %v2939 = vpop.permute.xlu0 %2938
        %v2940 = vsel %vm1917, %v2931, %v2933
        %v2941 = vsel %vm1917, %v2933, %v2935
        %v2942 = vsel %vm1917, %v2935, %v2937
        %v2943 = vsel %vm1917, %v2937, %v2939
        %v2948 = vadd.f32 %v2926, %v2940
        %v2949 = vadd.f32 %v2927, %v2941
        %v2950 = vadd.f32 %v2928, %v2942
        %v2951 = vadd.f32 %v2929, %v2943
        %2952 = vrot.lane.b32.xlu0 %v2876, 64
        %v2953 = vpop.permute.xlu0 %2952
        %2954 = vrot.lane.b32.xlu0 %v2877, 64
        %v2955 = vpop.permute.xlu0 %2954
        %2956 = vrot.lane.b32.xlu0 %v2878, 64
        %v2957 = vpop.permute.xlu0 %2956
        %2958 = vrot.lane.b32.xlu0 %v2879, 64
        %v2959 = vpop.permute.xlu0 %2958
        %2960 = vrot.lane.b32.xlu0 %v2880, 64
        %v2961 = vpop.permute.xlu0 %2960
        %vm2962 = vcmask 523264
        %v2963 = vsel %vm2962, %v2953, %v2955
        %v2964 = vsel %vm2962, %v2955, %v2957
        %v2965 = vsel %vm2962, %v2957, %v2959
        %v2966 = vsel %vm2962, %v2959, %v2961
        %v2971 = vadd.f32 %v2948, %v2963
        %v2972 = vadd.f32 %v2949, %v2964
        %v2973 = vadd.f32 %v2950, %v2965
        %v2974 = vadd.f32 %v2951, %v2966
        %2975 = vrot.lane.b32.xlu0 %v2876, 63
        %v2976 = vpop.permute.xlu0 %2975
        %2977 = vrot.lane.b32.xlu0 %v2877, 63
        %v2978 = vpop.permute.xlu0 %2977
        %2979 = vrot.lane.b32.xlu0 %v2878, 63
        %v2980 = vpop.permute.xlu0 %2979
        %2981 = vrot.lane.b32.xlu0 %v2879, 63
        %v2982 = vpop.permute.xlu0 %2981
        %2983 = vrot.lane.b32.xlu0 %v2880, 63
        %v2984 = vpop.permute.xlu0 %2983
        %v2985 = vsel %vm1035, %v2976, %v2978
        %v2986 = vsel %vm1035, %v2978, %v2980
        %v2987 = vsel %vm1035, %v2980, %v2982
        %v2988 = vsel %vm1035, %v2982, %v2984
        %v2993 = vadd.f32 %v2971, %v2985
        %v2994 = vadd.f32 %v2972, %v2986
        %v2995 = vadd.f32 %v2973, %v2987
        %v2996 = vadd.f32 %v2974, %v2988
        %2997 = vrot.lane.b32.xlu0 %v2876, 56
        %v2998 = vpop.permute.xlu0 %2997
        %2999 = vrot.lane.b32.xlu0 %v2877, 56
        %v3000 = vpop.permute.xlu0 %2999
        %3001 = vrot.lane.b32.xlu0 %v2878, 56
        %v3002 = vpop.permute.xlu0 %3001
        %3003 = vrot.lane.b32.xlu0 %v2879, 56
        %v3004 = vpop.permute.xlu0 %3003
        %3005 = vrot.lane.b32.xlu0 %v2880, 56
        %v3006 = vpop.permute.xlu0 %3005
        %v3007 = vsel %vm1223, %v2998, %v3000
        %v3008 = vsel %vm1223, %v3000, %v3002
        %v3009 = vsel %vm1223, %v3002, %v3004
        %v3010 = vsel %vm1223, %v3004, %v3006
        %v3015 = vadd.f32 %v2993, %v3007
        %v3016 = vadd.f32 %v2994, %v3008
        %v3017 = vadd.f32 %v2995, %v3009
        %v3018 = vadd.f32 %v2996, %v3010
        %3019 = vrot.lane.b32.xlu0 %v2876, 55
        %v3020 = vpop.permute.xlu0 %3019
        %3021 = vrot.lane.b32.xlu0 %v2877, 55
        %v3022 = vpop.permute.xlu0 %3021
        %3023 = vrot.lane.b32.xlu0 %v2878, 55
        %v3024 = vpop.permute.xlu0 %3023
        %3025 = vrot.lane.b32.xlu0 %v2879, 55
        %v3026 = vpop.permute.xlu0 %3025
        %3027 = vrot.lane.b32.xlu0 %v2880, 55
        %v3028 = vpop.permute.xlu0 %3027
        %v3029 = vsel %vm1317, %v3020, %v3022
        %v3030 = vsel %vm1317, %v3022, %v3024
        %v3031 = vsel %vm1317, %v3024, %v3026
        %v3032 = vsel %vm1317, %v3026, %v3028
        %v3037 = vadd.f32 %v3015, %v3029
        %v3038 = vadd.f32 %v3016, %v3030
        %v3039 = vadd.f32 %v3017, %v3031
        %v3040 = vadd.f32 %v3018, %v3032
        %v3041 = vmul.f32 %v3037, 0.125
        %v3042 = vmul.f32 %v3038, 0.125
        %v3043 = vmul.f32 %v3039, 0.125
        %v3044 = vmul.f32 %v3040, 0.125
        %s3045 = scalar_lea.vmem [#allocation4], 2
        %v3046 = vld [vmem:[%s3045] ss:$4 sm:$0xf]
        %vm3047 = vcmp.eq.s32.totalorder %v3046, 1
        %v3048 = vsel %vm3047, 1, 0
        %v3049 = vcvt.s32.f32 %v3048
        %v3051 = vlaneseq
        %v3052 = vshrl.u32 %v3051, 7
        %v3053 = vsub.s32 0, %v3052
        %v3054 = vrot.slane %v3049, %v3053
        %v3055 = vlaneseq
        %v3056 = vshrl.u32 %v3055, 7
        %v3057 = vsub.s32 1, %v3056
        %v3058 = vrot.slane %v3049, %v3057
        %v3059 = vlaneseq
        %v3060 = vshrl.u32 %v3059, 7
        %v3061 = vsub.s32 2, %v3060
        %v3062 = vrot.slane %v3049, %v3061
        %v3063 = vlaneseq
        %v3064 = vshrl.u32 %v3063, 7
        %v3065 = vsub.s32 3, %v3064
        %v3066 = vrot.slane %v3049, %v3065
        %v3071 = vmul.f32 %v3041, %v3054
        %v3072 = vmul.f32 %v3042, %v3058
        %v3073 = vmul.f32 %v3043, %v3062
        %v3074 = vmul.f32 %v3044, %v3066
        %v3075 = vsel %vm447, %v3071, 0.0
        %v3076 = vsel %vm447, %v3072, 0.0
        %v3077 = vadd.f32 %v3075, %v3076
        %v3078 = vsel %vm447, %v3073, 0.0
        %v3079 = vadd.f32 %v3077, %v3078
        %v3080 = vsel %vm447, %v3074, 0.0
        %v3081 = vadd.f32 %v3079, %v3080
        %3082 = vadd.xlane.f32.xlu0 %v3081
        %v3083 = vpop.xlane.xlu0 %3082
        %v3084 = vrcp.pop 64.0
        %v3085 = vmul.f32 %v3083, %v3084
        %v3086 = vsub.f32 %v3041, %v3085
        %v3087 = vsub.f32 %v3042, %v3085
        %v3088 = vsub.f32 %v3043, %v3085
        %v3089 = vsub.f32 %v3044, %v3085
        %v3090 = vmul.f32 %v3086, %v3086
        %v3091 = vmul.f32 %v3087, %v3087
        %v3092 = vmul.f32 %v3088, %v3088
        %v3093 = vmul.f32 %v3089, %v3089
        %v3094 = vmul.f32 %v3090, %v3054
        %v3095 = vmul.f32 %v3091, %v3058
        %v3096 = vmul.f32 %v3092, %v3062
        %v3097 = vmul.f32 %v3093, %v3066
        %v3098 = vsel %vm447, %v3094, 0.0
        %v3099 = vsel %vm447, %v3095, 0.0
        %v3100 = vadd.f32 %v3098, %v3099
        %v3101 = vsel %vm447, %v3096, 0.0
        %v3102 = vadd.f32 %v3100, %v3101
        %v3103 = vsel %vm447, %v3097, 0.0
        %v3104 = vadd.f32 %v3102, %v3103
        %3105 = vadd.xlane.f32.xlu0 %v3104
        %v3106 = vpop.xlane.xlu0 %3105
        %v3107 = vmul.f32 %v3106, %v3084
        %v3108 = vadd.f32 %v3107, 1e-05
        %v3109 = vrsqrt.pop %v3108
        %v3110 = vmul.f32 %v3086, %v3109
        %v3111 = vmul.f32 %v3087, %v3109
        %v3112 = vmul.f32 %v3088, %v3109
        %v3113 = vmul.f32 %v3089, %v3109
        %v3114 = vld [vmem:[%s8] sm:$0xf]
        %3116 = vset.pattern.permute.xlu0 0
        %3117 = vperm.xlu0 %3116, %v3114
        %v3118 = vpop.permute.xlu0 %3117
        %v3120 = vmul.f32 %v3110, %v3118
        %v3121 = vmul.f32 %v3111, %v3118
        %v3122 = vmul.f32 %v3112, %v3118
        %v3123 = vmul.f32 %v3113, %v3118
        %v3124 = vld [vmem:[%s9] sm:$0xf]
        %3126 = vset.pattern.permute.xlu0 0
        %3127 = vperm.xlu0 %3126, %v3124
        %v3128 = vpop.permute.xlu0 %3127
        %v3130 = vadd.f32 %v3120, %v3128
        %v3131 = vadd.f32 %v3121, %v3128
        %v3132 = vadd.f32 %v3122, %v3128
        %v3133 = vadd.f32 %v3123, %v3128
        %vm3134 = vcmp.gt.f32.partialorder %v3130, 0.0
        %vm3135 = vcmp.gt.f32.partialorder %v3131, 0.0
        %vm3136 = vcmp.gt.f32.partialorder %v3132, 0.0
        %vm3137 = vcmp.gt.f32.partialorder %v3133, 0.0
        %v3138 = vmul.f32 %v3130, 0.2
        %v3139 = vmul.f32 %v3131, 0.2
        %v3140 = vmul.f32 %v3132, 0.2
        %v3141 = vmul.f32 %v3133, 0.2
        %v3142 = vsel %vm3134, %v3130, %v3138
        %v3143 = vsel %vm3135, %v3131, %v3139
        %v3144 = vsel %vm3136, %v3132, %v3140
        %v3145 = vsel %vm3137, %v3133, %v3141
        %3146 = vst [vmem:[#allocation2 + $0x10] sm:$0xf] %v3142
        %3147 = vst [vmem:[#allocation2 + $0x18] sm:$0xf] %v3143
        %3148 = vst [vmem:[#allocation2 + $0x20] sm:$0xf] %v3144
        %3149 = vst [vmem:[#allocation2 + $0x28] sm:$0xf] %v3145
        %vm3150 = vcmp.ge.s32.totalorder %v436, 2
        %vm3151 = vcmp.lt.s32.totalorder %v436, 6
        %vm3152 = vcmp.ge.s32.totalorder %v438, 2
        %vm3153 = vcmp.lt.s32.totalorder %v438, 6
        %vm3154 = vmand %vm3150, %vm3152
        %vm3155 = vmand %vm3150, %vm3153
        %vm3156 = vmand %vm3151, %vm3152
        %vm3157 = vmand %vm3151, %vm3153
        %v3158 = vld [vmem:[#allocation2] sm:$0xff]
        %v3159 = vld [vmem:[#allocation2 + $0x8] sm:$0xff]
        %v3160 = vld [vmem:[#allocation2 + $0x10] sm:$0xff]
        %v3161 = vld [vmem:[#allocation2 + $0x18] sm:$0xff]
        %v3162 = vld [vmem:[#allocation2 + $0x20] sm:$0xff]
        %v3163 = vld [vmem:[#allocation2 + $0x40] sm:$0xff]
        %v3164 = vld [vmem:[#allocation2 + $0x48] sm:$0xff]
        %v3165 = vld [vmem:[#allocation2 + $0x50] sm:$0xff]
        %v3166 = vld [vmem:[#allocation2 + $0x58] sm:$0xff]
        %v3167 = vld [vmem:[#allocation2 + $0x60] sm:$0xff]
        %v3168 = vsel %vm3154, 1, 0
        %v3169 = vlaneseq
        %v3170 = vshrl.u32 %v3169, 7
        %v3171 = vsub.s32 0, %v3170
        %v3172 = vrot.slane %v3168, %v3171
        %v3173 = vlaneseq
        %v3174 = vshrl.u32 %v3173, 7
        %v3175 = vsub.s32 1, %v3174
        %v3176 = vrot.slane %v3168, %v3175
        %v3177 = vlaneseq
        %v3178 = vshrl.u32 %v3177, 7
        %v3179 = vsub.s32 2, %v3178
        %v3180 = vrot.slane %v3168, %v3179
        %v3181 = vlaneseq
        %v3182 = vshrl.u32 %v3181, 7
        %v3183 = vsub.s32 3, %v3182
        %v3184 = vrot.slane %v3168, %v3183
        %vm3185 = vcmp.eq.s32.totalorder %v3172, 1
        %vm3186 = vcmp.eq.s32.totalorder %v3176, 1
        %vm3187 = vcmp.eq.s32.totalorder %v3180, 1
        %vm3188 = vcmp.eq.s32.totalorder %v3184, 1
        %3199 = vrot.lane.b32.xlu0 %v3158, 18
        %v3200 = vpop.permute.xlu0 %3199
        %3201 = vrot.lane.b32.xlu0 %v3159, 18
        %v3202 = vpop.permute.xlu0 %3201
        %3203 = vrot.lane.b32.xlu0 %v3160, 18
        %v3204 = vpop.permute.xlu0 %3203
        %3205 = vrot.lane.b32.xlu0 %v3161, 18
        %v3206 = vpop.permute.xlu0 %3205
        %3207 = vrot.lane.b32.xlu0 %v3162, 18
        %v3208 = vpop.permute.xlu0 %3207
        %3209 = vrot.lane.b32.xlu0 %v3163, 18
        %v3210 = vpop.permute.xlu0 %3209
        %3211 = vrot.lane.b32.xlu0 %v3164, 18
        %v3212 = vpop.permute.xlu0 %3211
        %3213 = vrot.lane.b32.xlu0 %v3165, 18
        %v3214 = vpop.permute.xlu0 %3213
        %3215 = vrot.lane.b32.xlu0 %v3166, 18
        %v3216 = vpop.permute.xlu0 %3215
        %3217 = vrot.lane.b32.xlu0 %v3167, 18
        %v3218 = vpop.permute.xlu0 %3217
        %vm3219 = vcmask 146432
        %v3220 = vsel %vm3219, %v3200, %v3202
        %v3221 = vsel %vm3219, %v3202, %v3204
        %v3222 = vsel %vm3219, %v3204, %v3206
        %v3223 = vsel %vm3219, %v3206, %v3208
        %v3224 = vsel %vm3219, %v3210, %v3212
        %v3225 = vsel %vm3219, %v3212, %v3214
        %v3226 = vsel %vm3219, %v3214, %v3216
        %v3227 = vsel %vm3219, %v3216, %v3218
        %v3236 = vsel %vm3185, %v3220, 0.0
        %v3237 = vsel %vm3186, %v3221, 0.0
        %v3238 = vsel %vm3187, %v3222, 0.0
        %v3239 = vsel %vm3188, %v3223, 0.0
        %v3240 = vsel %vm3185, %v3224, 0.0
        %v3241 = vsel %vm3186, %v3225, 0.0
        %v3242 = vsel %vm3187, %v3226, 0.0
        %v3243 = vsel %vm3188, %v3227, 0.0
        %v3244 = vpack.c.bf16 %v3240, %v3236
        %v3245 = vpack.c.bf16 %v3241, %v3237
        %v3246 = vpack.c.bf16 %v3242, %v3238
        %v3247 = vpack.c.bf16 %v3243, %v3239
        %3248 = vst [vmem:[#allocation3] sm:$0xff] %v3244
        %3249 = vst [vmem:[#allocation3 + $0x8] sm:$0xff] %v3245
        %3250 = vst [vmem:[#allocation3 + $0x10] sm:$0xff] %v3246
        %3251 = vst [vmem:[#allocation3 + $0x18] sm:$0xff] %v3247
        %v3252 = vld [vmem:[#allocation2] sm:$0xff]
        %v3253 = vld [vmem:[#allocation2 + $0x8] sm:$0xff]
        %v3254 = vld [vmem:[#allocation2 + $0x10] sm:$0xff]
        %v3255 = vld [vmem:[#allocation2 + $0x18] sm:$0xff]
        %v3256 = vld [vmem:[#allocation2 + $0x20] sm:$0xff]
        %v3257 = vld [vmem:[#allocation2 + $0x40] sm:$0xff]
        %v3258 = vld [vmem:[#allocation2 + $0x48] sm:$0xff]
        %v3259 = vld [vmem:[#allocation2 + $0x50] sm:$0xff]
        %v3260 = vld [vmem:[#allocation2 + $0x58] sm:$0xff]
        %v3261 = vld [vmem:[#allocation2 + $0x60] sm:$0xff]
        %v3262 = vsel %vm3150, 1, 0
        %v3263 = vlaneseq
        %v3264 = vshrl.u32 %v3263, 7
        %v3265 = vsub.s32 0, %v3264
        %v3266 = vrot.slane %v3262, %v3265
        %v3267 = vlaneseq
        %v3268 = vshrl.u32 %v3267, 7
        %v3269 = vsub.s32 1, %v3268
        %v3270 = vrot.slane %v3262, %v3269
        %v3271 = vlaneseq
        %v3272 = vshrl.u32 %v3271, 7
        %v3273 = vsub.s32 2, %v3272
        %v3274 = vrot.slane %v3262, %v3273
        %v3275 = vlaneseq
        %v3276 = vshrl.u32 %v3275, 7
        %v3277 = vsub.s32 3, %v3276
        %v3278 = vrot.slane %v3262, %v3277
        %vm3279 = vcmp.eq.s32.totalorder %v3266, 1
        %vm3280 = vcmp.eq.s32.totalorder %v3270, 1
        %vm3281 = vcmp.eq.s32.totalorder %v3274, 1
        %vm3282 = vcmp.eq.s32.totalorder %v3278, 1
        %3293 = vrot.lane.b32.xlu0 %v3252, 16
        %v3294 = vpop.permute.xlu0 %3293
        %3295 = vrot.lane.b32.xlu0 %v3253, 16
        %v3296 = vpop.permute.xlu0 %3295
        %3297 = vrot.lane.b32.xlu0 %v3254, 16
        %v3298 = vpop.permute.xlu0 %3297
        %3299 = vrot.lane.b32.xlu0 %v3255, 16
        %v3300 = vpop.permute.xlu0 %3299
        %3301 = vrot.lane.b32.xlu0 %v3256, 16
        %v3302 = vpop.permute.xlu0 %3301
        %3303 = vrot.lane.b32.xlu0 %v3257, 16
        %v3304 = vpop.permute.xlu0 %3303
        %3305 = vrot.lane.b32.xlu0 %v3258, 16
        %v3306 = vpop.permute.xlu0 %3305
        %3307 = vrot.lane.b32.xlu0 %v3259, 16
        %v3308 = vpop.permute.xlu0 %3307
        %3309 = vrot.lane.b32.xlu0 %v3260, 16
        %v3310 = vpop.permute.xlu0 %3309
        %3311 = vrot.lane.b32.xlu0 %v3261, 16
        %v3312 = vpop.permute.xlu0 %3311
        %vm3313 = vcmask 130048
        %v3314 = vsel %vm3313, %v3294, %v3296
        %v3315 = vsel %vm3313, %v3296, %v3298
        %v3316 = vsel %vm3313, %v3298, %v3300
        %v3317 = vsel %vm3313, %v3300, %v3302
        %v3318 = vsel %vm3313, %v3304, %v3306
        %v3319 = vsel %vm3313, %v3306, %v3308
        %v3320 = vsel %vm3313, %v3308, %v3310
        %v3321 = vsel %vm3313, %v3310, %v3312
        %v3330 = vsel %vm3279, %v3314, 0.0
        %v3331 = vsel %vm3280, %v3315, 0.0
        %v3332 = vsel %vm3281, %v3316, 0.0
        %v3333 = vsel %vm3282, %v3317, 0.0
        %v3334 = vsel %vm3279, %v3318, 0.0
        %v3335 = vsel %vm3280, %v3319, 0.0
        %v3336 = vsel %vm3281, %v3320, 0.0
        %v3337 = vsel %vm3282, %v3321, 0.0
        %v3338 = vpack.c.bf16 %v3334, %v3330
        %v3339 = vpack.c.bf16 %v3335, %v3331
        %v3340 = vpack.c.bf16 %v3336, %v3332
        %v3341 = vpack.c.bf16 %v3337, %v3333
        %3342 = vst [vmem:[#allocation3 + $0x20] sm:$0xff] %v3338
        %3343 = vst [vmem:[#allocation3 + $0x28] sm:$0xff] %v3339
        %3344 = vst [vmem:[#allocation3 + $0x30] sm:$0xff] %v3340
        %3345 = vst [vmem:[#allocation3 + $0x38] sm:$0xff] %v3341
        %v3346 = vld [vmem:[#allocation2] sm:$0xff]
        %v3347 = vld [vmem:[#allocation2 + $0x8] sm:$0xff]
        %v3348 = vld [vmem:[#allocation2 + $0x10] sm:$0xff]
        %v3349 = vld [vmem:[#allocation2 + $0x18] sm:$0xff]
        %v3350 = vld [vmem:[#allocation2 + $0x20] sm:$0xff]
        %v3351 = vld [vmem:[#allocation2 + $0x40] sm:$0xff]
        %v3352 = vld [vmem:[#allocation2 + $0x48] sm:$0xff]
        %v3353 = vld [vmem:[#allocation2 + $0x50] sm:$0xff]
        %v3354 = vld [vmem:[#allocation2 + $0x58] sm:$0xff]
        %v3355 = vld [vmem:[#allocation2 + $0x60] sm:$0xff]
        %v3356 = vsel %vm3155, 1, 0
        %v3357 = vlaneseq
        %v3358 = vshrl.u32 %v3357, 7
        %v3359 = vsub.s32 0, %v3358
        %v3360 = vrot.slane %v3356, %v3359
        %v3361 = vlaneseq
        %v3362 = vshrl.u32 %v3361, 7
        %v3363 = vsub.s32 1, %v3362
        %v3364 = vrot.slane %v3356, %v3363
        %v3365 = vlaneseq
        %v3366 = vshrl.u32 %v3365, 7
        %v3367 = vsub.s32 2, %v3366
        %v3368 = vrot.slane %v3356, %v3367
        %v3369 = vlaneseq
        %v3370 = vshrl.u32 %v3369, 7
        %v3371 = vsub.s32 3, %v3370
        %v3372 = vrot.slane %v3356, %v3371
        %vm3373 = vcmp.eq.s32.totalorder %v3360, 1
        %vm3374 = vcmp.eq.s32.totalorder %v3364, 1
        %vm3375 = vcmp.eq.s32.totalorder %v3368, 1
        %vm3376 = vcmp.eq.s32.totalorder %v3372, 1
        %3387 = vrot.lane.b32.xlu0 %v3346, 14
        %v3388 = vpop.permute.xlu0 %3387
        %3389 = vrot.lane.b32.xlu0 %v3347, 14
        %v3390 = vpop.permute.xlu0 %3389
        %3391 = vrot.lane.b32.xlu0 %v3348, 14
        %v3392 = vpop.permute.xlu0 %3391
        %3393 = vrot.lane.b32.xlu0 %v3349, 14
        %v3394 = vpop.permute.xlu0 %3393
        %3395 = vrot.lane.b32.xlu0 %v3350, 14
        %v3396 = vpop.permute.xlu0 %3395
        %3397 = vrot.lane.b32.xlu0 %v3351, 14
        %v3398 = vpop.permute.xlu0 %3397
        %3399 = vrot.lane.b32.xlu0 %v3352, 14
        %v3400 = vpop.permute.xlu0 %3399
        %3401 = vrot.lane.b32.xlu0 %v3353, 14
        %v3402 = vpop.permute.xlu0 %3401
        %3403 = vrot.lane.b32.xlu0 %v3354, 14
        %v3404 = vpop.permute.xlu0 %3403
        %3405 = vrot.lane.b32.xlu0 %v3355, 14
        %v3406 = vpop.permute.xlu0 %3405
        %vm3407 = vcmask 113664
        %v3408 = vsel %vm3407, %v3388, %v3390
        %v3409 = vsel %vm3407, %v3390, %v3392
        %v3410 = vsel %vm3407, %v3392, %v3394
        %v3411 = vsel %vm3407, %v3394, %v3396
        %v3412 = vsel %vm3407, %v3398, %v3400
        %v3413 = vsel %vm3407, %v3400, %v3402
        %v3414 = vsel %vm3407, %v3402, %v3404
        %v3415 = vsel %vm3407, %v3404, %v3406
        %v3424 = vsel %vm3373, %v3408, 0.0
        %v3425 = vsel %vm3374, %v3409, 0.0
        %v3426 = vsel %vm3375, %v3410, 0.0
        %v3427 = vsel %vm3376, %v3411, 0.0
        %v3428 = vsel %vm3373, %v3412, 0.0
        %v3429 = vsel %vm3374, %v3413, 0.0
        %v3430 = vsel %vm3375, %v3414, 0.0
        %v3431 = vsel %vm3376, %v3415, 0.0
        %v3432 = vpack.c.bf16 %v3428, %v3424
        %v3433 = vpack.c.bf16 %v3429, %v3425
        %v3434 = vpack.c.bf16 %v3430, %v3426
        %v3435 = vpack.c.bf16 %v3431, %v3427
        %3436 = vst [vmem:[#allocation3 + $0x40] sm:$0xff] %v3432
        %3437 = vst [vmem:[#allocation3 + $0x48] sm:$0xff] %v3433
        %3438 = vst [vmem:[#allocation3 + $0x50] sm:$0xff] %v3434
        %3439 = vst [vmem:[#allocation3 + $0x58] sm:$0xff] %v3435
        %v3440 = vld [vmem:[#allocation2] sm:$0xff]
        %v3441 = vld [vmem:[#allocation2 + $0x8] sm:$0xff]
        %v3442 = vld [vmem:[#allocation2 + $0x10] sm:$0xff]
        %v3443 = vld [vmem:[#allocation2 + $0x18] sm:$0xff]
        %v3444 = vld [vmem:[#allocation2 + $0x20] sm:$0xff]
        %v3445 = vld [vmem:[#allocation2 + $0x40] sm:$0xff]
        %v3446 = vld [vmem:[#allocation2 + $0x48] sm:$0xff]
        %v3447 = vld [vmem:[#allocation2 + $0x50] sm:$0xff]
        %v3448 = vld [vmem:[#allocation2 + $0x58] sm:$0xff]
        %v3449 = vld [vmem:[#allocation2 + $0x60] sm:$0xff]
        %v3450 = vsel %vm3152, 1, 0
        %v3451 = vlaneseq
        %v3452 = vshrl.u32 %v3451, 7
        %v3453 = vsub.s32 0, %v3452
        %v3454 = vrot.slane %v3450, %v3453
        %v3455 = vlaneseq
        %v3456 = vshrl.u32 %v3455, 7
        %v3457 = vsub.s32 1, %v3456
        %v3458 = vrot.slane %v3450, %v3457
        %v3459 = vlaneseq
        %v3460 = vshrl.u32 %v3459, 7
        %v3461 = vsub.s32 2, %v3460
        %v3462 = vrot.slane %v3450, %v3461
        %v3463 = vlaneseq
        %v3464 = vshrl.u32 %v3463, 7
        %v3465 = vsub.s32 3, %v3464
        %v3466 = vrot.slane %v3450, %v3465
        %vm3467 = vcmp.eq.s32.totalorder %v3454, 1
        %vm3468 = vcmp.eq.s32.totalorder %v3458, 1
        %vm3469 = vcmp.eq.s32.totalorder %v3462, 1
        %vm3470 = vcmp.eq.s32.totalorder %v3466, 1
        %3481 = vrot.lane.b32.xlu0 %v3440, 2
        %v3482 = vpop.permute.xlu0 %3481
        %3483 = vrot.lane.b32.xlu0 %v3441, 2
        %v3484 = vpop.permute.xlu0 %3483
        %3485 = vrot.lane.b32.xlu0 %v3442, 2
        %v3486 = vpop.permute.xlu0 %3485
        %3487 = vrot.lane.b32.xlu0 %v3443, 2
        %v3488 = vpop.permute.xlu0 %3487
        %3489 = vrot.lane.b32.xlu0 %v3444, 2
        %v3490 = vpop.permute.xlu0 %3489
        %3491 = vrot.lane.b32.xlu0 %v3445, 2
        %v3492 = vpop.permute.xlu0 %3491
        %3493 = vrot.lane.b32.xlu0 %v3446, 2
        %v3494 = vpop.permute.xlu0 %3493
        %3495 = vrot.lane.b32.xlu0 %v3447, 2
        %v3496 = vpop.permute.xlu0 %3495
        %3497 = vrot.lane.b32.xlu0 %v3448, 2
        %v3498 = vpop.permute.xlu0 %3497
        %3499 = vrot.lane.b32.xlu0 %v3449, 2
        %v3500 = vpop.permute.xlu0 %3499
        %vm3501 = vcmask 15360
        %v3502 = vsel %vm3501, %v3482, %v3484
        %v3503 = vsel %vm3501, %v3484, %v3486
        %v3504 = vsel %vm3501, %v3486, %v3488
        %v3505 = vsel %vm3501, %v3488, %v3490
        %v3506 = vsel %vm3501, %v3492, %v3494
        %v3507 = vsel %vm3501, %v3494, %v3496
        %v3508 = vsel %vm3501, %v3496, %v3498
        %v3509 = vsel %vm3501, %v3498, %v3500
        %v3518 = vsel %vm3467, %v3502, 0.0
        %v3519 = vsel %vm3468, %v3503, 0.0
        %v3520 = vsel %vm3469, %v3504, 0.0
        %v3521 = vsel %vm3470, %v3505, 0.0
        %v3522 = vsel %vm3467, %v3506, 0.0
        %v3523 = vsel %vm3468, %v3507, 0.0
        %v3524 = vsel %vm3469, %v3508, 0.0
        %v3525 = vsel %vm3470, %v3509, 0.0
        %v3526 = vpack.c.bf16 %v3522, %v3518
        %v3527 = vpack.c.bf16 %v3523, %v3519
        %v3528 = vpack.c.bf16 %v3524, %v3520
        %v3529 = vpack.c.bf16 %v3525, %v3521
        %3530 = vst [vmem:[#allocation3 + $0x60] sm:$0xff] %v3526
        %3531 = vst [vmem:[#allocation3 + $0x68] sm:$0xff] %v3527
        %3532 = vst [vmem:[#allocation3 + $0x70] sm:$0xff] %v3528
        %3533 = vst [vmem:[#allocation3 + $0x78] sm:$0xff] %v3529
        %v3534 = vld [vmem:[#allocation2 + $0x8] sm:$0xff]
        %v3535 = vld [vmem:[#allocation2 + $0x10] sm:$0xff]
        %v3536 = vld [vmem:[#allocation2 + $0x18] sm:$0xff]
        %v3537 = vld [vmem:[#allocation2 + $0x20] sm:$0xff]
        %v3538 = vld [vmem:[#allocation2 + $0x48] sm:$0xff]
        %v3539 = vld [vmem:[#allocation2 + $0x50] sm:$0xff]
        %v3540 = vld [vmem:[#allocation2 + $0x58] sm:$0xff]
        %v3541 = vld [vmem:[#allocation2 + $0x60] sm:$0xff]
        %v3542 = vpack.c.bf16 %v3538, %v3534
        %v3543 = vpack.c.bf16 %v3539, %v3535
        %v3544 = vpack.c.bf16 %v3540, %v3536
        %v3545 = vpack.c.bf16 %v3541, %v3537
        %3546 = vst [vmem:[#allocation3 + $0x80] sm:$0xff] %v3542
        %3547 = vst [vmem:[#allocation3 + $0x88] sm:$0xff] %v3543
        %3548 = vst [vmem:[#allocation3 + $0x90] sm:$0xff] %v3544
        %3549 = vst [vmem:[#allocation3 + $0x98] sm:$0xff] %v3545
        %v3550 = vld [vmem:[#allocation2 + $0x8] sm:$0xff]
        %v3551 = vld [vmem:[#allocation2 + $0x10] sm:$0xff]
        %v3552 = vld [vmem:[#allocation2 + $0x18] sm:$0xff]
        %v3553 = vld [vmem:[#allocation2 + $0x20] sm:$0xff]
        %v3554 = vld [vmem:[#allocation2 + $0x28] sm:$0xff]
        %v3555 = vld [vmem:[#allocation2 + $0x48] sm:$0xff]
        %v3556 = vld [vmem:[#allocation2 + $0x50] sm:$0xff]
        %v3557 = vld [vmem:[#allocation2 + $0x58] sm:$0xff]
        %v3558 = vld [vmem:[#allocation2 + $0x60] sm:$0xff]
        %v3559 = vld [vmem:[#allocation2 + $0x68] sm:$0xff]
        %v3560 = vsel %vm3153, 1, 0
        %v3561 = vlaneseq
        %v3562 = vshrl.u32 %v3561, 7
        %v3563 = vsub.s32 0, %v3562
        %v3564 = vrot.slane %v3560, %v3563
        %v3565 = vlaneseq
        %v3566 = vshrl.u32 %v3565, 7
        %v3567 = vsub.s32 1, %v3566
        %v3568 = vrot.slane %v3560, %v3567
        %v3569 = vlaneseq
        %v3570 = vshrl.u32 %v3569, 7
        %v3571 = vsub.s32 2, %v3570
        %v3572 = vrot.slane %v3560, %v3571
        %v3573 = vlaneseq
        %v3574 = vshrl.u32 %v3573, 7
        %v3575 = vsub.s32 3, %v3574
        %v3576 = vrot.slane %v3560, %v3575
        %vm3577 = vcmp.eq.s32.totalorder %v3564, 1
        %vm3578 = vcmp.eq.s32.totalorder %v3568, 1
        %vm3579 = vcmp.eq.s32.totalorder %v3572, 1
        %vm3580 = vcmp.eq.s32.totalorder %v3576, 1
        %3591 = vrot.lane.b32.xlu0 %v3550, 126
        %v3592 = vpop.permute.xlu0 %3591
        %3593 = vrot.lane.b32.xlu0 %v3551, 126
        %v3594 = vpop.permute.xlu0 %3593
        %3595 = vrot.lane.b32.xlu0 %v3552, 126
        %v3596 = vpop.permute.xlu0 %3595
        %3597 = vrot.lane.b32.xlu0 %v3553, 126
        %v3598 = vpop.permute.xlu0 %3597
        %3599 = vrot.lane.b32.xlu0 %v3554, 126
        %v3600 = vpop.permute.xlu0 %3599
        %3601 = vrot.lane.b32.xlu0 %v3555, 126
        %v3602 = vpop.permute.xlu0 %3601
        %3603 = vrot.lane.b32.xlu0 %v3556, 126
        %v3604 = vpop.permute.xlu0 %3603
        %3605 = vrot.lane.b32.xlu0 %v3557, 126
        %v3606 = vpop.permute.xlu0 %3605
        %3607 = vrot.lane.b32.xlu0 %v3558, 126
        %v3608 = vpop.permute.xlu0 %3607
        %3609 = vrot.lane.b32.xlu0 %v3559, 126
        %v3610 = vpop.permute.xlu0 %3609
        %vm3611 = vcmask 1031168
        %v3612 = vsel %vm3611, %v3592, %v3594
        %v3613 = vsel %vm3611, %v3594, %v3596
        %v3614 = vsel %vm3611, %v3596, %v3598
        %v3615 = vsel %vm3611, %v3598, %v3600
        %v3616 = vsel %vm3611, %v3602, %v3604
        %v3617 = vsel %vm3611, %v3604, %v3606
        %v3618 = vsel %vm3611, %v3606, %v3608
        %v3619 = vsel %vm3611, %v3608, %v3610
        %v3628 = vsel %vm3577, %v3612, 0.0
        %v3629 = vsel %vm3578, %v3613, 0.0
        %v3630 = vsel %vm3579, %v3614, 0.0
        %v3631 = vsel %vm3580, %v3615, 0.0
        %v3632 = vsel %vm3577, %v3616, 0.0
        %v3633 = vsel %vm3578, %v3617, 0.0
        %v3634 = vsel %vm3579, %v3618, 0.0
        %v3635 = vsel %vm3580, %v3619, 0.0
        %v3636 = vpack.c.bf16 %v3632, %v3628
        %v3637 = vpack.c.bf16 %v3633, %v3629
        %v3638 = vpack.c.bf16 %v3634, %v3630
        %v3639 = vpack.c.bf16 %v3635, %v3631
        %3640 = vst [vmem:[#allocation3 + $0xa0] sm:$0xff] %v3636
        %3641 = vst [vmem:[#allocation3 + $0xa8] sm:$0xff] %v3637
        %3642 = vst [vmem:[#allocation3 + $0xb0] sm:$0xff] %v3638
        %3643 = vst [vmem:[#allocation3 + $0xb8] sm:$0xff] %v3639
        %v3644 = vld [vmem:[#allocation2 + $0x8] sm:$0xff]
        %v3645 = vld [vmem:[#allocation2 + $0x10] sm:$0xff]
        %v3646 = vld [vmem:[#allocation2 + $0x18] sm:$0xff]
        %v3647 = vld [vmem:[#allocation2 + $0x20] sm:$0xff]
        %v3648 = vld [vmem:[#allocation2 + $0x28] sm:$0xff]
        %v3649 = vld [vmem:[#allocation2 + $0x48] sm:$0xff]
        %v3650 = vld [vmem:[#allocation2 + $0x50] sm:$0xff]
        %v3651 = vld [vmem:[#allocation2 + $0x58] sm:$0xff]
        %v3652 = vld [vmem:[#allocation2 + $0x60] sm:$0xff]
        %v3653 = vld [vmem:[#allocation2 + $0x68] sm:$0xff]
        %v3654 = vsel %vm3156, 1, 0
        %v3655 = vlaneseq
        %v3656 = vshrl.u32 %v3655, 7
        %v3657 = vsub.s32 0, %v3656
        %v3658 = vrot.slane %v3654, %v3657
        %v3659 = vlaneseq
        %v3660 = vshrl.u32 %v3659, 7
        %v3661 = vsub.s32 1, %v3660
        %v3662 = vrot.slane %v3654, %v3661
        %v3663 = vlaneseq
        %v3664 = vshrl.u32 %v3663, 7
        %v3665 = vsub.s32 2, %v3664
        %v3666 = vrot.slane %v3654, %v3665
        %v3667 = vlaneseq
        %v3668 = vshrl.u32 %v3667, 7
        %v3669 = vsub.s32 3, %v3668
        %v3670 = vrot.slane %v3654, %v3669
        %vm3671 = vcmp.eq.s32.totalorder %v3658, 1
        %vm3672 = vcmp.eq.s32.totalorder %v3662, 1
        %vm3673 = vcmp.eq.s32.totalorder %v3666, 1
        %vm3674 = vcmp.eq.s32.totalorder %v3670, 1
        %3685 = vrot.lane.b32.xlu0 %v3644, 114
        %v3686 = vpop.permute.xlu0 %3685
        %3687 = vrot.lane.b32.xlu0 %v3645, 114
        %v3688 = vpop.permute.xlu0 %3687
        %3689 = vrot.lane.b32.xlu0 %v3646, 114
        %v3690 = vpop.permute.xlu0 %3689
        %3691 = vrot.lane.b32.xlu0 %v3647, 114
        %v3692 = vpop.permute.xlu0 %3691
        %3693 = vrot.lane.b32.xlu0 %v3648, 114
        %v3694 = vpop.permute.xlu0 %3693
        %3695 = vrot.lane.b32.xlu0 %v3649, 114
        %v3696 = vpop.permute.xlu0 %3695
        %3697 = vrot.lane.b32.xlu0 %v3650, 114
        %v3698 = vpop.permute.xlu0 %3697
        %3699 = vrot.lane.b32.xlu0 %v3651, 114
        %v3700 = vpop.permute.xlu0 %3699
        %3701 = vrot.lane.b32.xlu0 %v3652, 114
        %v3702 = vpop.permute.xlu0 %3701
        %3703 = vrot.lane.b32.xlu0 %v3653, 114
        %v3704 = vpop.permute.xlu0 %3703
        %vm3705 = vcmask 932864
        %v3706 = vsel %vm3705, %v3686, %v3688
        %v3707 = vsel %vm3705, %v3688, %v3690
        %v3708 = vsel %vm3705, %v3690, %v3692
        %v3709 = vsel %vm3705, %v3692, %v3694
        %v3710 = vsel %vm3705, %v3696, %v3698
        %v3711 = vsel %vm3705, %v3698, %v3700
        %v3712 = vsel %vm3705, %v3700, %v3702
        %v3713 = vsel %vm3705, %v3702, %v3704
        %v3722 = vsel %vm3671, %v3706, 0.0
        %v3723 = vsel %vm3672, %v3707, 0.0
        %v3724 = vsel %vm3673, %v3708, 0.0
        %v3725 = vsel %vm3674, %v3709, 0.0
        %v3726 = vsel %vm3671, %v3710, 0.0
        %v3727 = vsel %vm3672, %v3711, 0.0
        %v3728 = vsel %vm3673, %v3712, 0.0
        %v3729 = vsel %vm3674, %v3713, 0.0
        %v3730 = vpack.c.bf16 %v3726, %v3722
        %v3731 = vpack.c.bf16 %v3727, %v3723
        %v3732 = vpack.c.bf16 %v3728, %v3724
        %v3733 = vpack.c.bf16 %v3729, %v3725
        %3734 = vst [vmem:[#allocation3 + $0xc0] sm:$0xff] %v3730
        %3735 = vst [vmem:[#allocation3 + $0xc8] sm:$0xff] %v3731
        %3736 = vst [vmem:[#allocation3 + $0xd0] sm:$0xff] %v3732
        %3737 = vst [vmem:[#allocation3 + $0xd8] sm:$0xff] %v3733
        %v3738 = vld [vmem:[#allocation2 + $0x8] sm:$0xff]
        %v3739 = vld [vmem:[#allocation2 + $0x10] sm:$0xff]
        %v3740 = vld [vmem:[#allocation2 + $0x18] sm:$0xff]
        %v3741 = vld [vmem:[#allocation2 + $0x20] sm:$0xff]
        %v3742 = vld [vmem:[#allocation2 + $0x28] sm:$0xff]
        %v3743 = vld [vmem:[#allocation2 + $0x48] sm:$0xff]
        %v3744 = vld [vmem:[#allocation2 + $0x50] sm:$0xff]
        %v3745 = vld [vmem:[#allocation2 + $0x58] sm:$0xff]
        %v3746 = vld [vmem:[#allocation2 + $0x60] sm:$0xff]
        %v3747 = vld [vmem:[#allocation2 + $0x68] sm:$0xff]
        %v3748 = vsel %vm3151, 1, 0
        %v3749 = vlaneseq
        %v3750 = vshrl.u32 %v3749, 7
        %v3751 = vsub.s32 0, %v3750
        %v3752 = vrot.slane %v3748, %v3751
        %v3753 = vlaneseq
        %v3754 = vshrl.u32 %v3753, 7
        %v3755 = vsub.s32 1, %v3754
        %v3756 = vrot.slane %v3748, %v3755
        %v3757 = vlaneseq
        %v3758 = vshrl.u32 %v3757, 7
        %v3759 = vsub.s32 2, %v3758
        %v3760 = vrot.slane %v3748, %v3759
        %v3761 = vlaneseq
        %v3762 = vshrl.u32 %v3761, 7
        %v3763 = vsub.s32 3, %v3762
        %v3764 = vrot.slane %v3748, %v3763
        %vm3765 = vcmp.eq.s32.totalorder %v3752, 1
        %vm3766 = vcmp.eq.s32.totalorder %v3756, 1
        %vm3767 = vcmp.eq.s32.totalorder %v3760, 1
        %vm3768 = vcmp.eq.s32.totalorder %v3764, 1
        %3779 = vrot.lane.b32.xlu0 %v3738, 112
        %v3780 = vpop.permute.xlu0 %3779
        %3781 = vrot.lane.b32.xlu0 %v3739, 112
        %v3782 = vpop.permute.xlu0 %3781
        %3783 = vrot.lane.b32.xlu0 %v3740, 112
        %v3784 = vpop.permute.xlu0 %3783
        %3785 = vrot.lane.b32.xlu0 %v3741, 112
        %v3786 = vpop.permute.xlu0 %3785
        %3787 = vrot.lane.b32.xlu0 %v3742, 112
        %v3788 = vpop.permute.xlu0 %3787
        %3789 = vrot.lane.b32.xlu0 %v3743, 112
        %v3790 = vpop.permute.xlu0 %3789
        %3791 = vrot.lane.b32.xlu0 %v3744, 112
        %v3792 = vpop.permute.xlu0 %3791
        %3793 = vrot.lane.b32.xlu0 %v3745, 112
        %v3794 = vpop.permute.xlu0 %3793
        %3795 = vrot.lane.b32.xlu0 %v3746, 112
        %v3796 = vpop.permute.xlu0 %3795
        %3797 = vrot.lane.b32.xlu0 %v3747, 112
        %v3798 = vpop.permute.xlu0 %3797
        %vm3799 = vcmask 916480
        %v3800 = vsel %vm3799, %v3780, %v3782
        %v3801 = vsel %vm3799, %v3782, %v3784
        %v3802 = vsel %vm3799, %v3784, %v3786
        %v3803 = vsel %vm3799, %v3786, %v3788
        %v3804 = vsel %vm3799, %v3790, %v3792
        %v3805 = vsel %vm3799, %v3792, %v3794
        %v3806 = vsel %vm3799, %v3794, %v3796
        %v3807 = vsel %vm3799, %v3796, %v3798
        %v3816 = vsel %vm3765, %v3800, 0.0
        %v3817 = vsel %vm3766, %v3801, 0.0
        %v3818 = vsel %vm3767, %v3802, 0.0
        %v3819 = vsel %vm3768, %v3803, 0.0
        %v3820 = vsel %vm3765, %v3804, 0.0
        %v3821 = vsel %vm3766, %v3805, 0.0
        %v3822 = vsel %vm3767, %v3806, 0.0
        %v3823 = vsel %vm3768, %v3807, 0.0
        %v3824 = vpack.c.bf16 %v3820, %v3816
        %v3825 = vpack.c.bf16 %v3821, %v3817
        %v3826 = vpack.c.bf16 %v3822, %v3818
        %v3827 = vpack.c.bf16 %v3823, %v3819
        %3828 = vst [vmem:[#allocation3 + $0xe0] sm:$0xff] %v3824
        %3829 = vst [vmem:[#allocation3 + $0xe8] sm:$0xff] %v3825
        %3830 = vst [vmem:[#allocation3 + $0xf0] sm:$0xff] %v3826
        %3831 = vst [vmem:[#allocation3 + $0xf8] sm:$0xff] %v3827
        %v3832 = vld [vmem:[#allocation2 + $0x8] sm:$0xff]
        %v3833 = vld [vmem:[#allocation2 + $0x10] sm:$0xff]
        %v3834 = vld [vmem:[#allocation2 + $0x18] sm:$0xff]
        %v3835 = vld [vmem:[#allocation2 + $0x20] sm:$0xff]
        %v3836 = vld [vmem:[#allocation2 + $0x28] sm:$0xff]
        %v3837 = vld [vmem:[#allocation2 + $0x48] sm:$0xff]
        %v3838 = vld [vmem:[#allocation2 + $0x50] sm:$0xff]
        %v3839 = vld [vmem:[#allocation2 + $0x58] sm:$0xff]
        %v3840 = vld [vmem:[#allocation2 + $0x60] sm:$0xff]
        %v3841 = vld [vmem:[#allocation2 + $0x68] sm:$0xff]
        %v3842 = vsel %vm3157, 1, 0
        %v3843 = vlaneseq
        %v3844 = vshrl.u32 %v3843, 7
        %v3845 = vsub.s32 0, %v3844
        %v3846 = vrot.slane %v3842, %v3845
        %v3847 = vlaneseq
        %v3848 = vshrl.u32 %v3847, 7
        %v3849 = vsub.s32 1, %v3848
        %v3850 = vrot.slane %v3842, %v3849
        %v3851 = vlaneseq
        %v3852 = vshrl.u32 %v3851, 7
        %v3853 = vsub.s32 2, %v3852
        %v3854 = vrot.slane %v3842, %v3853
        %v3855 = vlaneseq
        %v3856 = vshrl.u32 %v3855, 7
        %v3857 = vsub.s32 3, %v3856
        %v3858 = vrot.slane %v3842, %v3857
        %vm3859 = vcmp.eq.s32.totalorder %v3846, 1
        %vm3860 = vcmp.eq.s32.totalorder %v3850, 1
        %vm3861 = vcmp.eq.s32.totalorder %v3854, 1
        %vm3862 = vcmp.eq.s32.totalorder %v3858, 1
        %3873 = vrot.lane.b32.xlu0 %v3832, 110
        %v3874 = vpop.permute.xlu0 %3873
        %3875 = vrot.lane.b32.xlu0 %v3833, 110
        %v3876 = vpop.permute.xlu0 %3875
        %3877 = vrot.lane.b32.xlu0 %v3834, 110
        %v3878 = vpop.permute.xlu0 %3877
        %3879 = vrot.lane.b32.xlu0 %v3835, 110
        %v3880 = vpop.permute.xlu0 %3879
        %3881 = vrot.lane.b32.xlu0 %v3836, 110
        %v3882 = vpop.permute.xlu0 %3881
        %3883 = vrot.lane.b32.xlu0 %v3837, 110
        %v3884 = vpop.permute.xlu0 %3883
        %3885 = vrot.lane.b32.xlu0 %v3838, 110
        %v3886 = vpop.permute.xlu0 %3885
        %3887 = vrot.lane.b32.xlu0 %v3839, 110
        %v3888 = vpop.permute.xlu0 %3887
        %3889 = vrot.lane.b32.xlu0 %v3840, 110
        %v3890 = vpop.permute.xlu0 %3889
        %3891 = vrot.lane.b32.xlu0 %v3841, 110
        %v3892 = vpop.permute.xlu0 %3891
        %vm3893 = vcmask 900096
        %v3894 = vsel %vm3893, %v3874, %v3876
        %v3895 = vsel %vm3893, %v3876, %v3878
        %v3896 = vsel %vm3893, %v3878, %v3880
        %v3897 = vsel %vm3893, %v3880, %v3882
        %v3898 = vsel %vm3893, %v3884, %v3886
        %v3899 = vsel %vm3893, %v3886, %v3888
        %v3900 = vsel %vm3893, %v3888, %v3890
        %v3901 = vsel %vm3893, %v3890, %v3892
        %v3910 = vsel %vm3859, %v3894, 0.0
        %v3911 = vsel %vm3860, %v3895, 0.0
        %v3912 = vsel %vm3861, %v3896, 0.0
        %v3913 = vsel %vm3862, %v3897, 0.0
        %v3914 = vsel %vm3859, %v3898, 0.0
        %v3915 = vsel %vm3860, %v3899, 0.0
        %v3916 = vsel %vm3861, %v3900, 0.0
        %v3917 = vsel %vm3862, %v3901, 0.0
        %v3918 = vpack.c.bf16 %v3914, %v3910
        %v3919 = vpack.c.bf16 %v3915, %v3911
        %v3920 = vpack.c.bf16 %v3916, %v3912
        %v3921 = vpack.c.bf16 %v3917, %v3913
        %3922 = vst [vmem:[#allocation3 + $0x100] sm:$0xff] %v3918
        %3923 = vst [vmem:[#allocation3 + $0x108] sm:$0xff] %v3919
        %3924 = vst [vmem:[#allocation3 + $0x110] sm:$0xff] %v3920
        %3925 = vst [vmem:[#allocation3 + $0x118] sm:$0xff] %v3921
        %v3926 = vld [vmem:[#allocation2 + $0x8] sm:$0xff]
        %v3927 = vld [vmem:[#allocation2 + $0x10] sm:$0xff]
        %v3928 = vld [vmem:[#allocation2 + $0x18] sm:$0xff]
        %v3929 = vld [vmem:[#allocation2 + $0x20] sm:$0xff]
        %v3930 = vld [vmem:[#allocation2 + $0x28] sm:$0xff]
        %v3931 = vld [vmem:[#allocation2 + $0x48] sm:$0xff]
        %v3932 = vld [vmem:[#allocation2 + $0x50] sm:$0xff]
        %v3933 = vld [vmem:[#allocation2 + $0x58] sm:$0xff]
        %v3934 = vld [vmem:[#allocation2 + $0x60] sm:$0xff]
        %v3935 = vld [vmem:[#allocation2 + $0x68] sm:$0xff]
        %3946 = vrot.lane.b32.xlu0 %v3926, 18
        %v3947 = vpop.permute.xlu0 %3946
        %3948 = vrot.lane.b32.xlu0 %v3927, 18
        %v3949 = vpop.permute.xlu0 %3948
        %3950 = vrot.lane.b32.xlu0 %v3928, 18
        %v3951 = vpop.permute.xlu0 %3950
        %3952 = vrot.lane.b32.xlu0 %v3929, 18
        %v3953 = vpop.permute.xlu0 %3952
        %3954 = vrot.lane.b32.xlu0 %v3930, 18
        %v3955 = vpop.permute.xlu0 %3954
        %3956 = vrot.lane.b32.xlu0 %v3931, 18
        %v3957 = vpop.permute.xlu0 %3956
        %3958 = vrot.lane.b32.xlu0 %v3932, 18
        %v3959 = vpop.permute.xlu0 %3958
        %3960 = vrot.lane.b32.xlu0 %v3933, 18
        %v3961 = vpop.permute.xlu0 %3960
        %3962 = vrot.lane.b32.xlu0 %v3934, 18
        %v3963 = vpop.permute.xlu0 %3962
        %3964 = vrot.lane.b32.xlu0 %v3935, 18
        %v3965 = vpop.permute.xlu0 %3964
        %v3966 = vsel %vm3219, %v3947, %v3949
        %v3967 = vsel %vm3219, %v3949, %v3951
        %v3968 = vsel %vm3219, %v3951, %v3953
        %v3969 = vsel %vm3219, %v3953, %v3955
        %v3970 = vsel %vm3219, %v3957, %v3959
        %v3971 = vsel %vm3219, %v3959, %v3961
        %v3972 = vsel %vm3219, %v3961, %v3963
        %v3973 = vsel %vm3219, %v3963, %v3965
        %v3982 = vsel %vm3185, %v3966, 0.0
        %v3983 = vsel %vm3186, %v3967, 0.0
        %v3984 = vsel %vm3187, %v3968, 0.0
        %v3985 = vsel %vm3188, %v3969, 0.0
        %v3986 = vsel %vm3185, %v3970, 0.0
        %v3987 = vsel %vm3186, %v3971, 0.0
        %v3988 = vsel %vm3187, %v3972, 0.0
        %v3989 = vsel %vm3188, %v3973, 0.0
        %v3990 = vpack.c.bf16 %v3986, %v3982
        %v3991 = vpack.c.bf16 %v3987, %v3983
        %v3992 = vpack.c.bf16 %v3988, %v3984
        %v3993 = vpack.c.bf16 %v3989, %v3985
        %3994 = vst [vmem:[#allocation3 + $0x120] sm:$0xff] %v3990
        %3995 = vst [vmem:[#allocation3 + $0x128] sm:$0xff] %v3991
        %3996 = vst [vmem:[#allocation3 + $0x130] sm:$0xff] %v3992
        %3997 = vst [vmem:[#allocation3 + $0x138] sm:$0xff] %v3993
        %v3998 = vld [vmem:[#allocation2 + $0x8] sm:$0xff]
        %v3999 = vld [vmem:[#allocation2 + $0x10] sm:$0xff]
        %v4000 = vld [vmem:[#allocation2 + $0x18] sm:$0xff]
        %v4001 = vld [vmem:[#allocation2 + $0x20] sm:$0xff]
        %v4002 = vld [vmem:[#allocation2 + $0x28] sm:$0xff]
        %v4003 = vld [vmem:[#allocation2 + $0x48] sm:$0xff]
        %v4004 = vld [vmem:[#allocation2 + $0x50] sm:$0xff]
        %v4005 = vld [vmem:[#allocation2 + $0x58] sm:$0xff]
        %v4006 = vld [vmem:[#allocation2 + $0x60] sm:$0xff]
        %v4007 = vld [vmem:[#allocation2 + $0x68] sm:$0xff]
        %4018 = vrot.lane.b32.xlu0 %v3998, 16
        %v4019 = vpop.permute.xlu0 %4018
        %4020 = vrot.lane.b32.xlu0 %v3999, 16
        %v4021 = vpop.permute.xlu0 %4020
        %4022 = vrot.lane.b32.xlu0 %v4000, 16
        %v4023 = vpop.permute.xlu0 %4022
        %4024 = vrot.lane.b32.xlu0 %v4001, 16
        %v4025 = vpop.permute.xlu0 %4024
        %4026 = vrot.lane.b32.xlu0 %v4002, 16
        %v4027 = vpop.permute.xlu0 %4026
        %4028 = vrot.lane.b32.xlu0 %v4003, 16
        %v4029 = vpop.permute.xlu0 %4028
        %4030 = vrot.lane.b32.xlu0 %v4004, 16
        %v4031 = vpop.permute.xlu0 %4030
        %4032 = vrot.lane.b32.xlu0 %v4005, 16
        %v4033 = vpop.permute.xlu0 %4032
        %4034 = vrot.lane.b32.xlu0 %v4006, 16
        %v4035 = vpop.permute.xlu0 %4034
        %4036 = vrot.lane.b32.xlu0 %v4007, 16
        %v4037 = vpop.permute.xlu0 %4036
        %v4038 = vsel %vm3313, %v4019, %v4021
        %v4039 = vsel %vm3313, %v4021, %v4023
        %v4040 = vsel %vm3313, %v4023, %v4025
        %v4041 = vsel %vm3313, %v4025, %v4027
        %v4042 = vsel %vm3313, %v4029, %v4031
        %v4043 = vsel %vm3313, %v4031, %v4033
        %v4044 = vsel %vm3313, %v4033, %v4035
        %v4045 = vsel %vm3313, %v4035, %v4037
        %v4054 = vsel %vm3279, %v4038, 0.0
        %v4055 = vsel %vm3280, %v4039, 0.0
        %v4056 = vsel %vm3281, %v4040, 0.0
        %v4057 = vsel %vm3282, %v4041, 0.0
        %v4058 = vsel %vm3279, %v4042, 0.0
        %v4059 = vsel %vm3280, %v4043, 0.0
        %v4060 = vsel %vm3281, %v4044, 0.0
        %v4061 = vsel %vm3282, %v4045, 0.0
        %v4062 = vpack.c.bf16 %v4058, %v4054
        %v4063 = vpack.c.bf16 %v4059, %v4055
        %v4064 = vpack.c.bf16 %v4060, %v4056
        %v4065 = vpack.c.bf16 %v4061, %v4057
        %4066 = vst [vmem:[#allocation3 + $0x140] sm:$0xff] %v4062
        %4067 = vst [vmem:[#allocation3 + $0x148] sm:$0xff] %v4063
        %4068 = vst [vmem:[#allocation3 + $0x150] sm:$0xff] %v4064
        %4069 = vst [vmem:[#allocation3 + $0x158] sm:$0xff] %v4065
        %v4070 = vld [vmem:[#allocation2 + $0x8] sm:$0xff]
        %v4071 = vld [vmem:[#allocation2 + $0x10] sm:$0xff]
        %v4072 = vld [vmem:[#allocation2 + $0x18] sm:$0xff]
        %v4073 = vld [vmem:[#allocation2 + $0x20] sm:$0xff]
        %v4074 = vld [vmem:[#allocation2 + $0x28] sm:$0xff]
        %v4075 = vld [vmem:[#allocation2 + $0x48] sm:$0xff]
        %v4076 = vld [vmem:[#allocation2 + $0x50] sm:$0xff]
        %v4077 = vld [vmem:[#allocation2 + $0x58] sm:$0xff]
        %v4078 = vld [vmem:[#allocation2 + $0x60] sm:$0xff]
        %v4079 = vld [vmem:[#allocation2 + $0x68] sm:$0xff]
        %4090 = vrot.lane.b32.xlu0 %v4070, 14
        %v4091 = vpop.permute.xlu0 %4090
        %4092 = vrot.lane.b32.xlu0 %v4071, 14
        %v4093 = vpop.permute.xlu0 %4092
        %4094 = vrot.lane.b32.xlu0 %v4072, 14
        %v4095 = vpop.permute.xlu0 %4094
        %4096 = vrot.lane.b32.xlu0 %v4073, 14
        %v4097 = vpop.permute.xlu0 %4096
        %4098 = vrot.lane.b32.xlu0 %v4074, 14
        %v4099 = vpop.permute.xlu0 %4098
        %4100 = vrot.lane.b32.xlu0 %v4075, 14
        %v4101 = vpop.permute.xlu0 %4100
        %4102 = vrot.lane.b32.xlu0 %v4076, 14
        %v4103 = vpop.permute.xlu0 %4102
        %4104 = vrot.lane.b32.xlu0 %v4077, 14
        %v4105 = vpop.permute.xlu0 %4104
        %4106 = vrot.lane.b32.xlu0 %v4078, 14
        %v4107 = vpop.permute.xlu0 %4106
        %4108 = vrot.lane.b32.xlu0 %v4079, 14
        %v4109 = vpop.permute.xlu0 %4108
        %v4110 = vsel %vm3407, %v4091, %v4093
        %v4111 = vsel %vm3407, %v4093, %v4095
        %v4112 = vsel %vm3407, %v4095, %v4097
        %v4113 = vsel %vm3407, %v4097, %v4099
        %v4114 = vsel %vm3407, %v4101, %v4103
        %v4115 = vsel %vm3407, %v4103, %v4105
        %v4116 = vsel %vm3407, %v4105, %v4107
        %v4117 = vsel %vm3407, %v4107, %v4109
        %v4126 = vsel %vm3373, %v4110, 0.0
        %v4127 = vsel %vm3374, %v4111, 0.0
        %v4128 = vsel %vm3375, %v4112, 0.0
        %v4129 = vsel %vm3376, %v4113, 0.0
        %v4130 = vsel %vm3373, %v4114, 0.0
        %v4131 = vsel %vm3374, %v4115, 0.0
        %v4132 = vsel %vm3375, %v4116, 0.0
        %v4133 = vsel %vm3376, %v4117, 0.0
        %v4134 = vpack.c.bf16 %v4130, %v4126
        %v4135 = vpack.c.bf16 %v4131, %v4127
        %v4136 = vpack.c.bf16 %v4132, %v4128
        %v4137 = vpack.c.bf16 %v4133, %v4129
        %4138 = vst [vmem:[#allocation3 + $0x160] sm:$0xff] %v4134
        %4139 = vst [vmem:[#allocation3 + $0x168] sm:$0xff] %v4135
        %4140 = vst [vmem:[#allocation3 + $0x170] sm:$0xff] %v4136
        %4141 = vst [vmem:[#allocation3 + $0x178] sm:$0xff] %v4137
        %v4142 = vld [vmem:[#allocation2 + $0x8] sm:$0xff]
        %v4143 = vld [vmem:[#allocation2 + $0x10] sm:$0xff]
        %v4144 = vld [vmem:[#allocation2 + $0x18] sm:$0xff]
        %v4145 = vld [vmem:[#allocation2 + $0x20] sm:$0xff]
        %v4146 = vld [vmem:[#allocation2 + $0x28] sm:$0xff]
        %v4147 = vld [vmem:[#allocation2 + $0x48] sm:$0xff]
        %v4148 = vld [vmem:[#allocation2 + $0x50] sm:$0xff]
        %v4149 = vld [vmem:[#allocation2 + $0x58] sm:$0xff]
        %v4150 = vld [vmem:[#allocation2 + $0x60] sm:$0xff]
        %v4151 = vld [vmem:[#allocation2 + $0x68] sm:$0xff]
        %4162 = vrot.lane.b32.xlu0 %v4142, 2
        %v4163 = vpop.permute.xlu0 %4162
        %4164 = vrot.lane.b32.xlu0 %v4143, 2
        %v4165 = vpop.permute.xlu0 %4164
        %4166 = vrot.lane.b32.xlu0 %v4144, 2
        %v4167 = vpop.permute.xlu0 %4166
        %4168 = vrot.lane.b32.xlu0 %v4145, 2
        %v4169 = vpop.permute.xlu0 %4168
        %4170 = vrot.lane.b32.xlu0 %v4146, 2
        %v4171 = vpop.permute.xlu0 %4170
        %4172 = vrot.lane.b32.xlu0 %v4147, 2
        %v4173 = vpop.permute.xlu0 %4172
        %4174 = vrot.lane.b32.xlu0 %v4148, 2
        %v4175 = vpop.permute.xlu0 %4174
        %4176 = vrot.lane.b32.xlu0 %v4149, 2
        %v4177 = vpop.permute.xlu0 %4176
        %4178 = vrot.lane.b32.xlu0 %v4150, 2
        %v4179 = vpop.permute.xlu0 %4178
        %4180 = vrot.lane.b32.xlu0 %v4151, 2
        %v4181 = vpop.permute.xlu0 %4180
        %v4182 = vsel %vm3501, %v4163, %v4165
        %v4183 = vsel %vm3501, %v4165, %v4167
        %v4184 = vsel %vm3501, %v4167, %v4169
        %v4185 = vsel %vm3501, %v4169, %v4171
        %v4186 = vsel %vm3501, %v4173, %v4175
        %v4187 = vsel %vm3501, %v4175, %v4177
        %v4188 = vsel %vm3501, %v4177, %v4179
        %v4189 = vsel %vm3501, %v4179, %v4181
        %v4198 = vsel %vm3467, %v4182, 0.0
        %v4199 = vsel %vm3468, %v4183, 0.0
        %v4200 = vsel %vm3469, %v4184, 0.0
        %v4201 = vsel %vm3470, %v4185, 0.0
        %v4202 = vsel %vm3467, %v4186, 0.0
        %v4203 = vsel %vm3468, %v4187, 0.0
        %v4204 = vsel %vm3469, %v4188, 0.0
        %v4205 = vsel %vm3470, %v4189, 0.0
        %v4206 = vpack.c.bf16 %v4202, %v4198
        %v4207 = vpack.c.bf16 %v4203, %v4199
        %v4208 = vpack.c.bf16 %v4204, %v4200
        %v4209 = vpack.c.bf16 %v4205, %v4201
        %4210 = vst [vmem:[#allocation3 + $0x180] sm:$0xff] %v4206
        %4211 = vst [vmem:[#allocation3 + $0x188] sm:$0xff] %v4207
        %4212 = vst [vmem:[#allocation3 + $0x190] sm:$0xff] %v4208
        %4213 = vst [vmem:[#allocation3 + $0x198] sm:$0xff] %v4209
        %v4214 = vld [vmem:[#allocation2 + $0x10] sm:$0xff]
        %v4215 = vld [vmem:[#allocation2 + $0x18] sm:$0xff]
        %v4216 = vld [vmem:[#allocation2 + $0x20] sm:$0xff]
        %v4217 = vld [vmem:[#allocation2 + $0x28] sm:$0xff]
        %v4218 = vld [vmem:[#allocation2 + $0x50] sm:$0xff]
        %v4219 = vld [vmem:[#allocation2 + $0x58] sm:$0xff]
        %v4220 = vld [vmem:[#allocation2 + $0x60] sm:$0xff]
        %v4221 = vld [vmem:[#allocation2 + $0x68] sm:$0xff]
        %v4222 = vpack.c.bf16 %v4218, %v4214
        %v4223 = vpack.c.bf16 %v4219, %v4215
        %v4224 = vpack.c.bf16 %v4220, %v4216
        %v4225 = vpack.c.bf16 %v4221, %v4217
        %4226 = vst [vmem:[#allocation3 + $0x1a0] sm:$0xff] %v4222
        %4227 = vst [vmem:[#allocation3 + $0x1a8] sm:$0xff] %v4223
        %4228 = vst [vmem:[#allocation3 + $0x1b0] sm:$0xff] %v4224
        %4229 = vst [vmem:[#allocation3 + $0x1b8] sm:$0xff] %v4225
        %v4230 = vld [vmem:[#allocation2 + $0x10] sm:$0xff]
        %v4231 = vld [vmem:[#allocation2 + $0x18] sm:$0xff]
        %v4232 = vld [vmem:[#allocation2 + $0x20] sm:$0xff]
        %v4233 = vld [vmem:[#allocation2 + $0x28] sm:$0xff]
        %v4234 = vld [vmem:[#allocation2 + $0x30] sm:$0xff]
        %v4235 = vld [vmem:[#allocation2 + $0x50] sm:$0xff]
        %v4236 = vld [vmem:[#allocation2 + $0x58] sm:$0xff]
        %v4237 = vld [vmem:[#allocation2 + $0x60] sm:$0xff]
        %v4238 = vld [vmem:[#allocation2 + $0x68] sm:$0xff]
        %v4239 = vld [vmem:[#allocation2 + $0x70] sm:$0xff]
        %4250 = vrot.lane.b32.xlu0 %v4230, 126
        %v4251 = vpop.permute.xlu0 %4250
        %4252 = vrot.lane.b32.xlu0 %v4231, 126
        %v4253 = vpop.permute.xlu0 %4252
        %4254 = vrot.lane.b32.xlu0 %v4232, 126
        %v4255 = vpop.permute.xlu0 %4254
        %4256 = vrot.lane.b32.xlu0 %v4233, 126
        %v4257 = vpop.permute.xlu0 %4256
        %4258 = vrot.lane.b32.xlu0 %v4234, 126
        %v4259 = vpop.permute.xlu0 %4258
        %4260 = vrot.lane.b32.xlu0 %v4235, 126
        %v4261 = vpop.permute.xlu0 %4260
        %4262 = vrot.lane.b32.xlu0 %v4236, 126
        %v4263 = vpop.permute.xlu0 %4262
        %4264 = vrot.lane.b32.xlu0 %v4237, 126
        %v4265 = vpop.permute.xlu0 %4264
        %4266 = vrot.lane.b32.xlu0 %v4238, 126
        %v4267 = vpop.permute.xlu0 %4266
        %4268 = vrot.lane.b32.xlu0 %v4239, 126
        %v4269 = vpop.permute.xlu0 %4268
        %v4270 = vsel %vm3611, %v4251, %v4253
        %v4271 = vsel %vm3611, %v4253, %v4255
        %v4272 = vsel %vm3611, %v4255, %v4257
        %v4273 = vsel %vm3611, %v4257, %v4259
        %v4274 = vsel %vm3611, %v4261, %v4263
        %v4275 = vsel %vm3611, %v4263, %v4265
        %v4276 = vsel %vm3611, %v4265, %v4267
        %v4277 = vsel %vm3611, %v4267, %v4269
        %v4286 = vsel %vm3577, %v4270, 0.0
        %v4287 = vsel %vm3578, %v4271, 0.0
        %v4288 = vsel %vm3579, %v4272, 0.0
        %v4289 = vsel %vm3580, %v4273, 0.0
        %v4290 = vsel %vm3577, %v4274, 0.0
        %v4291 = vsel %vm3578, %v4275, 0.0
        %v4292 = vsel %vm3579, %v4276, 0.0
        %v4293 = vsel %vm3580, %v4277, 0.0
        %v4294 = vpack.c.bf16 %v4290, %v4286
        %v4295 = vpack.c.bf16 %v4291, %v4287
        %v4296 = vpack.c.bf16 %v4292, %v4288
        %v4297 = vpack.c.bf16 %v4293, %v4289
        %4298 = vst [vmem:[#allocation3 + $0x1c0] sm:$0xff] %v4294
        %4299 = vst [vmem:[#allocation3 + $0x1c8] sm:$0xff] %v4295
        %4300 = vst [vmem:[#allocation3 + $0x1d0] sm:$0xff] %v4296
        %4301 = vst [vmem:[#allocation3 + $0x1d8] sm:$0xff] %v4297
        %v4302 = vld [vmem:[#allocation2 + $0x10] sm:$0xff]
        %v4303 = vld [vmem:[#allocation2 + $0x18] sm:$0xff]
        %v4304 = vld [vmem:[#allocation2 + $0x20] sm:$0xff]
        %v4305 = vld [vmem:[#allocation2 + $0x28] sm:$0xff]
        %v4306 = vld [vmem:[#allocation2 + $0x30] sm:$0xff]
        %v4307 = vld [vmem:[#allocation2 + $0x50] sm:$0xff]
        %v4308 = vld [vmem:[#allocation2 + $0x58] sm:$0xff]
        %v4309 = vld [vmem:[#allocation2 + $0x60] sm:$0xff]
        %v4310 = vld [vmem:[#allocation2 + $0x68] sm:$0xff]
        %v4311 = vld [vmem:[#allocation2 + $0x70] sm:$0xff]
        %4322 = vrot.lane.b32.xlu0 %v4302, 114
        %v4323 = vpop.permute.xlu0 %4322
        %4324 = vrot.lane.b32.xlu0 %v4303, 114
        %v4325 = vpop.permute.xlu0 %4324
        %4326 = vrot.lane.b32.xlu0 %v4304, 114
        %v4327 = vpop.permute.xlu0 %4326
        %4328 = vrot.lane.b32.xlu0 %v4305, 114
        %v4329 = vpop.permute.xlu0 %4328
        %4330 = vrot.lane.b32.xlu0 %v4306, 114
        %v4331 = vpop.permute.xlu0 %4330
        %4332 = vrot.lane.b32.xlu0 %v4307, 114
        %v4333 = vpop.permute.xlu0 %4332
        %4334 = vrot.lane.b32.xlu0 %v4308, 114
        %v4335 = vpop.permute.xlu0 %4334
        %4336 = vrot.lane.b32.xlu0 %v4309, 114
        %v4337 = vpop.permute.xlu0 %4336
        %4338 = vrot.lane.b32.xlu0 %v4310, 114
        %v4339 = vpop.permute.xlu0 %4338
        %4340 = vrot.lane.b32.xlu0 %v4311, 114
        %v4341 = vpop.permute.xlu0 %4340
        %v4342 = vsel %vm3705, %v4323, %v4325
        %v4343 = vsel %vm3705, %v4325, %v4327
        %v4344 = vsel %vm3705, %v4327, %v4329
        %v4345 = vsel %vm3705, %v4329, %v4331
        %v4346 = vsel %vm3705, %v4333, %v4335
        %v4347 = vsel %vm3705, %v4335, %v4337
        %v4348 = vsel %vm3705, %v4337, %v4339
        %v4349 = vsel %vm3705, %v4339, %v4341
        %v4358 = vsel %vm3671, %v4342, 0.0
        %v4359 = vsel %vm3672, %v4343, 0.0
        %v4360 = vsel %vm3673, %v4344, 0.0
        %v4361 = vsel %vm3674, %v4345, 0.0
        %v4362 = vsel %vm3671, %v4346, 0.0
        %v4363 = vsel %vm3672, %v4347, 0.0
        %v4364 = vsel %vm3673, %v4348, 0.0
        %v4365 = vsel %vm3674, %v4349, 0.0
        %v4366 = vpack.c.bf16 %v4362, %v4358
        %v4367 = vpack.c.bf16 %v4363, %v4359
        %v4368 = vpack.c.bf16 %v4364, %v4360
        %v4369 = vpack.c.bf16 %v4365, %v4361
        %4370 = vst [vmem:[#allocation3 + $0x1e0] sm:$0xff] %v4366
        %4371 = vst [vmem:[#allocation3 + $0x1e8] sm:$0xff] %v4367
        %4372 = vst [vmem:[#allocation3 + $0x1f0] sm:$0xff] %v4368
        %4373 = vst [vmem:[#allocation3 + $0x1f8] sm:$0xff] %v4369
        %v4374 = vld [vmem:[#allocation2 + $0x10] sm:$0xff]
        %v4375 = vld [vmem:[#allocation2 + $0x18] sm:$0xff]
        %v4376 = vld [vmem:[#allocation2 + $0x20] sm:$0xff]
        %v4377 = vld [vmem:[#allocation2 + $0x28] sm:$0xff]
        %v4378 = vld [vmem:[#allocation2 + $0x30] sm:$0xff]
        %v4379 = vld [vmem:[#allocation2 + $0x50] sm:$0xff]
        %v4380 = vld [vmem:[#allocation2 + $0x58] sm:$0xff]
        %v4381 = vld [vmem:[#allocation2 + $0x60] sm:$0xff]
        %v4382 = vld [vmem:[#allocation2 + $0x68] sm:$0xff]
        %v4383 = vld [vmem:[#allocation2 + $0x70] sm:$0xff]
        %4394 = vrot.lane.b32.xlu0 %v4374, 112
        %v4395 = vpop.permute.xlu0 %4394
        %4396 = vrot.lane.b32.xlu0 %v4375, 112
        %v4397 = vpop.permute.xlu0 %4396
        %4398 = vrot.lane.b32.xlu0 %v4376, 112
        %v4399 = vpop.permute.xlu0 %4398
        %4400 = vrot.lane.b32.xlu0 %v4377, 112
        %v4401 = vpop.permute.xlu0 %4400
        %4402 = vrot.lane.b32.xlu0 %v4378, 112
        %v4403 = vpop.permute.xlu0 %4402
        %4404 = vrot.lane.b32.xlu0 %v4379, 112
        %v4405 = vpop.permute.xlu0 %4404
        %4406 = vrot.lane.b32.xlu0 %v4380, 112
        %v4407 = vpop.permute.xlu0 %4406
        %4408 = vrot.lane.b32.xlu0 %v4381, 112
        %v4409 = vpop.permute.xlu0 %4408
        %4410 = vrot.lane.b32.xlu0 %v4382, 112
        %v4411 = vpop.permute.xlu0 %4410
        %4412 = vrot.lane.b32.xlu0 %v4383, 112
        %v4413 = vpop.permute.xlu0 %4412
        %v4414 = vsel %vm3799, %v4395, %v4397
        %v4415 = vsel %vm3799, %v4397, %v4399
        %v4416 = vsel %vm3799, %v4399, %v4401
        %v4417 = vsel %vm3799, %v4401, %v4403
        %v4418 = vsel %vm3799, %v4405, %v4407
        %v4419 = vsel %vm3799, %v4407, %v4409
        %v4420 = vsel %vm3799, %v4409, %v4411
        %v4421 = vsel %vm3799, %v4411, %v4413
        %v4430 = vsel %vm3765, %v4414, 0.0
        %v4431 = vsel %vm3766, %v4415, 0.0
        %v4432 = vsel %vm3767, %v4416, 0.0
        %v4433 = vsel %vm3768, %v4417, 0.0
        %v4434 = vsel %vm3765, %v4418, 0.0
        %v4435 = vsel %vm3766, %v4419, 0.0
        %v4436 = vsel %vm3767, %v4420, 0.0
        %v4437 = vsel %vm3768, %v4421, 0.0
        %v4438 = vpack.c.bf16 %v4434, %v4430
        %v4439 = vpack.c.bf16 %v4435, %v4431
        %v4440 = vpack.c.bf16 %v4436, %v4432
        %v4441 = vpack.c.bf16 %v4437, %v4433
        %4442 = vst [vmem:[#allocation3 + $0x200] sm:$0xff] %v4438
        %4443 = vst [vmem:[#allocation3 + $0x208] sm:$0xff] %v4439
        %4444 = vst [vmem:[#allocation3 + $0x210] sm:$0xff] %v4440
        %4445 = vst [vmem:[#allocation3 + $0x218] sm:$0xff] %v4441
        %v4446 = vld [vmem:[#allocation2 + $0x10] sm:$0xff]
        %v4447 = vld [vmem:[#allocation2 + $0x18] sm:$0xff]
        %v4448 = vld [vmem:[#allocation2 + $0x20] sm:$0xff]
        %v4449 = vld [vmem:[#allocation2 + $0x28] sm:$0xff]
        %v4450 = vld [vmem:[#allocation2 + $0x30] sm:$0xff]
        %v4451 = vld [vmem:[#allocation2 + $0x50] sm:$0xff]
        %v4452 = vld [vmem:[#allocation2 + $0x58] sm:$0xff]
        %v4453 = vld [vmem:[#allocation2 + $0x60] sm:$0xff]
        %v4454 = vld [vmem:[#allocation2 + $0x68] sm:$0xff]
        %v4455 = vld [vmem:[#allocation2 + $0x70] sm:$0xff]
        %4466 = vrot.lane.b32.xlu0 %v4446, 110
        %v4467 = vpop.permute.xlu0 %4466
        %4468 = vrot.lane.b32.xlu0 %v4447, 110
        %v4469 = vpop.permute.xlu0 %4468
        %4470 = vrot.lane.b32.xlu0 %v4448, 110
        %v4471 = vpop.permute.xlu0 %4470
        %4472 = vrot.lane.b32.xlu0 %v4449, 110
        %v4473 = vpop.permute.xlu0 %4472
        %4474 = vrot.lane.b32.xlu0 %v4450, 110
        %v4475 = vpop.permute.xlu0 %4474
        %4476 = vrot.lane.b32.xlu0 %v4451, 110
        %v4477 = vpop.permute.xlu0 %4476
        %4478 = vrot.lane.b32.xlu0 %v4452, 110
        %v4479 = vpop.permute.xlu0 %4478
        %4480 = vrot.lane.b32.xlu0 %v4453, 110
        %v4481 = vpop.permute.xlu0 %4480
        %4482 = vrot.lane.b32.xlu0 %v4454, 110
        %v4483 = vpop.permute.xlu0 %4482
        %4484 = vrot.lane.b32.xlu0 %v4455, 110
        %v4485 = vpop.permute.xlu0 %4484
        %v4486 = vsel %vm3893, %v4467, %v4469
        %v4487 = vsel %vm3893, %v4469, %v4471
        %v4488 = vsel %vm3893, %v4471, %v4473
        %v4489 = vsel %vm3893, %v4473, %v4475
        %v4490 = vsel %vm3893, %v4477, %v4479
        %v4491 = vsel %vm3893, %v4479, %v4481
        %v4492 = vsel %vm3893, %v4481, %v4483
        %v4493 = vsel %vm3893, %v4483, %v4485
        %v4502 = vsel %vm3859, %v4486, 0.0
        %v4503 = vsel %vm3860, %v4487, 0.0
        %v4504 = vsel %vm3861, %v4488, 0.0
        %v4505 = vsel %vm3862, %v4489, 0.0
        %v4506 = vsel %vm3859, %v4490, 0.0
        %v4507 = vsel %vm3860, %v4491, 0.0
        %v4508 = vsel %vm3861, %v4492, 0.0
        %v4509 = vsel %vm3862, %v4493, 0.0
        %v4510 = vpack.c.bf16 %v4506, %v4502
        %v4511 = vpack.c.bf16 %v4507, %v4503
        %v4512 = vpack.c.bf16 %v4508, %v4504
        %v4513 = vpack.c.bf16 %v4509, %v4505
        %4514 = vst [vmem:[#allocation3 + $0x220] sm:$0xff] %v4510
        %4515 = vst [vmem:[#allocation3 + $0x228] sm:$0xff] %v4511
        %4516 = vst [vmem:[#allocation3 + $0x230] sm:$0xff] %v4512
        %4517 = vst [vmem:[#allocation3 + $0x238] sm:$0xff] %v4513
        %v4518 = vld [vmem:[#allocation2 + $0x10] sm:$0xff]
        %v4519 = vld [vmem:[#allocation2 + $0x18] sm:$0xff]
        %v4520 = vld [vmem:[#allocation2 + $0x20] sm:$0xff]
        %v4521 = vld [vmem:[#allocation2 + $0x28] sm:$0xff]
        %v4522 = vld [vmem:[#allocation2 + $0x30] sm:$0xff]
        %v4523 = vld [vmem:[#allocation2 + $0x50] sm:$0xff]
        %v4524 = vld [vmem:[#allocation2 + $0x58] sm:$0xff]
        %v4525 = vld [vmem:[#allocation2 + $0x60] sm:$0xff]
        %v4526 = vld [vmem:[#allocation2 + $0x68] sm:$0xff]
        %v4527 = vld [vmem:[#allocation2 + $0x70] sm:$0xff]
        %4538 = vrot.lane.b32.xlu0 %v4518, 18
        %v4539 = vpop.permute.xlu0 %4538
        %4540 = vrot.lane.b32.xlu0 %v4519, 18
        %v4541 = vpop.permute.xlu0 %4540
        %4542 = vrot.lane.b32.xlu0 %v4520, 18
        %v4543 = vpop.permute.xlu0 %4542
        %4544 = vrot.lane.b32.xlu0 %v4521, 18
        %v4545 = vpop.permute.xlu0 %4544
        %4546 = vrot.lane.b32.xlu0 %v4522, 18
        %v4547 = vpop.permute.xlu0 %4546
        %4548 = vrot.lane.b32.xlu0 %v4523, 18
        %v4549 = vpop.permute.xlu0 %4548
        %4550 = vrot.lane.b32.xlu0 %v4524, 18
        %v4551 = vpop.permute.xlu0 %4550
        %4552 = vrot.lane.b32.xlu0 %v4525, 18
        %v4553 = vpop.permute.xlu0 %4552
        %4554 = vrot.lane.b32.xlu0 %v4526, 18
        %v4555 = vpop.permute.xlu0 %4554
        %4556 = vrot.lane.b32.xlu0 %v4527, 18
        %v4557 = vpop.permute.xlu0 %4556
        %v4558 = vsel %vm3219, %v4539, %v4541
        %v4559 = vsel %vm3219, %v4541, %v4543
        %v4560 = vsel %vm3219, %v4543, %v4545
        %v4561 = vsel %vm3219, %v4545, %v4547
        %v4562 = vsel %vm3219, %v4549, %v4551
        %v4563 = vsel %vm3219, %v4551, %v4553
        %v4564 = vsel %vm3219, %v4553, %v4555
        %v4565 = vsel %vm3219, %v4555, %v4557
        %v4574 = vsel %vm3185, %v4558, 0.0
        %v4575 = vsel %vm3186, %v4559, 0.0
        %v4576 = vsel %vm3187, %v4560, 0.0
        %v4577 = vsel %vm3188, %v4561, 0.0
        %v4578 = vsel %vm3185, %v4562, 0.0
        %v4579 = vsel %vm3186, %v4563, 0.0
        %v4580 = vsel %vm3187, %v4564, 0.0
        %v4581 = vsel %vm3188, %v4565, 0.0
        %v4582 = vpack.c.bf16 %v4578, %v4574
        %v4583 = vpack.c.bf16 %v4579, %v4575
        %v4584 = vpack.c.bf16 %v4580, %v4576
        %v4585 = vpack.c.bf16 %v4581, %v4577
        %4586 = vst [vmem:[#allocation3 + $0x240] sm:$0xff] %v4582
        %4587 = vst [vmem:[#allocation3 + $0x248] sm:$0xff] %v4583
        %4588 = vst [vmem:[#allocation3 + $0x250] sm:$0xff] %v4584
        %4589 = vst [vmem:[#allocation3 + $0x258] sm:$0xff] %v4585
        %v4590 = vld [vmem:[#allocation2 + $0x10] sm:$0xff]
        %v4591 = vld [vmem:[#allocation2 + $0x18] sm:$0xff]
        %v4592 = vld [vmem:[#allocation2 + $0x20] sm:$0xff]
        %v4593 = vld [vmem:[#allocation2 + $0x28] sm:$0xff]
        %v4594 = vld [vmem:[#allocation2 + $0x30] sm:$0xff]
        %v4595 = vld [vmem:[#allocation2 + $0x50] sm:$0xff]
        %v4596 = vld [vmem:[#allocation2 + $0x58] sm:$0xff]
        %v4597 = vld [vmem:[#allocation2 + $0x60] sm:$0xff]
        %v4598 = vld [vmem:[#allocation2 + $0x68] sm:$0xff]
        %v4599 = vld [vmem:[#allocation2 + $0x70] sm:$0xff]
        %4610 = vrot.lane.b32.xlu0 %v4590, 16
        %v4611 = vpop.permute.xlu0 %4610
        %4612 = vrot.lane.b32.xlu0 %v4591, 16
        %v4613 = vpop.permute.xlu0 %4612
        %4614 = vrot.lane.b32.xlu0 %v4592, 16
        %v4615 = vpop.permute.xlu0 %4614
        %4616 = vrot.lane.b32.xlu0 %v4593, 16
        %v4617 = vpop.permute.xlu0 %4616
        %4618 = vrot.lane.b32.xlu0 %v4594, 16
        %v4619 = vpop.permute.xlu0 %4618
        %4620 = vrot.lane.b32.xlu0 %v4595, 16
        %v4621 = vpop.permute.xlu0 %4620
        %4622 = vrot.lane.b32.xlu0 %v4596, 16
        %v4623 = vpop.permute.xlu0 %4622
        %4624 = vrot.lane.b32.xlu0 %v4597, 16
        %v4625 = vpop.permute.xlu0 %4624
        %4626 = vrot.lane.b32.xlu0 %v4598, 16
        %v4627 = vpop.permute.xlu0 %4626
        %4628 = vrot.lane.b32.xlu0 %v4599, 16
        %v4629 = vpop.permute.xlu0 %4628
        %v4630 = vsel %vm3313, %v4611, %v4613
        %v4631 = vsel %vm3313, %v4613, %v4615
        %v4632 = vsel %vm3313, %v4615, %v4617
        %v4633 = vsel %vm3313, %v4617, %v4619
        %v4634 = vsel %vm3313, %v4621, %v4623
        %v4635 = vsel %vm3313, %v4623, %v4625
        %v4636 = vsel %vm3313, %v4625, %v4627
        %v4637 = vsel %vm3313, %v4627, %v4629
        %v4646 = vsel %vm3279, %v4630, 0.0
        %v4647 = vsel %vm3280, %v4631, 0.0
        %v4648 = vsel %vm3281, %v4632, 0.0
        %v4649 = vsel %vm3282, %v4633, 0.0
        %v4650 = vsel %vm3279, %v4634, 0.0
        %v4651 = vsel %vm3280, %v4635, 0.0
        %v4652 = vsel %vm3281, %v4636, 0.0
        %v4653 = vsel %vm3282, %v4637, 0.0
        %v4654 = vpack.c.bf16 %v4650, %v4646
        %v4655 = vpack.c.bf16 %v4651, %v4647
        %v4656 = vpack.c.bf16 %v4652, %v4648
        %v4657 = vpack.c.bf16 %v4653, %v4649
        %4658 = vst [vmem:[#allocation3 + $0x260] sm:$0xff] %v4654
        %4659 = vst [vmem:[#allocation3 + $0x268] sm:$0xff] %v4655
        %4660 = vst [vmem:[#allocation3 + $0x270] sm:$0xff] %v4656
        %4661 = vst [vmem:[#allocation3 + $0x278] sm:$0xff] %v4657
        %v4662 = vld [vmem:[#allocation2 + $0x10] sm:$0xff]
        %v4663 = vld [vmem:[#allocation2 + $0x18] sm:$0xff]
        %v4664 = vld [vmem:[#allocation2 + $0x20] sm:$0xff]
        %v4665 = vld [vmem:[#allocation2 + $0x28] sm:$0xff]
        %v4666 = vld [vmem:[#allocation2 + $0x30] sm:$0xff]
        %v4667 = vld [vmem:[#allocation2 + $0x50] sm:$0xff]
        %v4668 = vld [vmem:[#allocation2 + $0x58] sm:$0xff]
        %v4669 = vld [vmem:[#allocation2 + $0x60] sm:$0xff]
        %v4670 = vld [vmem:[#allocation2 + $0x68] sm:$0xff]
        %v4671 = vld [vmem:[#allocation2 + $0x70] sm:$0xff]
        %4682 = vrot.lane.b32.xlu0 %v4662, 14
        %v4683 = vpop.permute.xlu0 %4682
        %4684 = vrot.lane.b32.xlu0 %v4663, 14
        %v4685 = vpop.permute.xlu0 %4684
        %4686 = vrot.lane.b32.xlu0 %v4664, 14
        %v4687 = vpop.permute.xlu0 %4686
        %4688 = vrot.lane.b32.xlu0 %v4665, 14
        %v4689 = vpop.permute.xlu0 %4688
        %4690 = vrot.lane.b32.xlu0 %v4666, 14
        %v4691 = vpop.permute.xlu0 %4690
        %4692 = vrot.lane.b32.xlu0 %v4667, 14
        %v4693 = vpop.permute.xlu0 %4692
        %4694 = vrot.lane.b32.xlu0 %v4668, 14
        %v4695 = vpop.permute.xlu0 %4694
        %4696 = vrot.lane.b32.xlu0 %v4669, 14
        %v4697 = vpop.permute.xlu0 %4696
        %4698 = vrot.lane.b32.xlu0 %v4670, 14
        %v4699 = vpop.permute.xlu0 %4698
        %4700 = vrot.lane.b32.xlu0 %v4671, 14
        %v4701 = vpop.permute.xlu0 %4700
        %v4702 = vsel %vm3407, %v4683, %v4685
        %v4703 = vsel %vm3407, %v4685, %v4687
        %v4704 = vsel %vm3407, %v4687, %v4689
        %v4705 = vsel %vm3407, %v4689, %v4691
        %v4706 = vsel %vm3407, %v4693, %v4695
        %v4707 = vsel %vm3407, %v4695, %v4697
        %v4708 = vsel %vm3407, %v4697, %v4699
        %v4709 = vsel %vm3407, %v4699, %v4701
        %v4718 = vsel %vm3373, %v4702, 0.0
        %v4719 = vsel %vm3374, %v4703, 0.0
        %v4720 = vsel %vm3375, %v4704, 0.0
        %v4721 = vsel %vm3376, %v4705, 0.0
        %v4722 = vsel %vm3373, %v4706, 0.0
        %v4723 = vsel %vm3374, %v4707, 0.0
        %v4724 = vsel %vm3375, %v4708, 0.0
        %v4725 = vsel %vm3376, %v4709, 0.0
        %v4726 = vpack.c.bf16 %v4722, %v4718
        %v4727 = vpack.c.bf16 %v4723, %v4719
        %v4728 = vpack.c.bf16 %v4724, %v4720
        %v4729 = vpack.c.bf16 %v4725, %v4721
        %4730 = vst [vmem:[#allocation3 + $0x280] sm:$0xff] %v4726
        %4731 = vst [vmem:[#allocation3 + $0x288] sm:$0xff] %v4727
        %4732 = vst [vmem:[#allocation3 + $0x290] sm:$0xff] %v4728
        %4733 = vst [vmem:[#allocation3 + $0x298] sm:$0xff] %v4729
        %v4734 = vld [vmem:[#allocation2 + $0x10] sm:$0xff]
        %v4735 = vld [vmem:[#allocation2 + $0x18] sm:$0xff]
        %v4736 = vld [vmem:[#allocation2 + $0x20] sm:$0xff]
        %v4737 = vld [vmem:[#allocation2 + $0x28] sm:$0xff]
        %v4738 = vld [vmem:[#allocation2 + $0x30] sm:$0xff]
        %v4739 = vld [vmem:[#allocation2 + $0x50] sm:$0xff]
        %v4740 = vld [vmem:[#allocation2 + $0x58] sm:$0xff]
        %v4741 = vld [vmem:[#allocation2 + $0x60] sm:$0xff]
        %v4742 = vld [vmem:[#allocation2 + $0x68] sm:$0xff]
        %v4743 = vld [vmem:[#allocation2 + $0x70] sm:$0xff]
        %4754 = vrot.lane.b32.xlu0 %v4734, 2
        %v4755 = vpop.permute.xlu0 %4754
        %4756 = vrot.lane.b32.xlu0 %v4735, 2
        %v4757 = vpop.permute.xlu0 %4756
        %4758 = vrot.lane.b32.xlu0 %v4736, 2
        %v4759 = vpop.permute.xlu0 %4758
        %4760 = vrot.lane.b32.xlu0 %v4737, 2
        %v4761 = vpop.permute.xlu0 %4760
        %4762 = vrot.lane.b32.xlu0 %v4738, 2
        %v4763 = vpop.permute.xlu0 %4762
        %4764 = vrot.lane.b32.xlu0 %v4739, 2
        %v4765 = vpop.permute.xlu0 %4764
        %4766 = vrot.lane.b32.xlu0 %v4740, 2
        %v4767 = vpop.permute.xlu0 %4766
        %4768 = vrot.lane.b32.xlu0 %v4741, 2
        %v4769 = vpop.permute.xlu0 %4768
        %4770 = vrot.lane.b32.xlu0 %v4742, 2
        %v4771 = vpop.permute.xlu0 %4770
        %4772 = vrot.lane.b32.xlu0 %v4743, 2
        %v4773 = vpop.permute.xlu0 %4772
        %v4774 = vsel %vm3501, %v4755, %v4757
        %v4775 = vsel %vm3501, %v4757, %v4759
        %v4776 = vsel %vm3501, %v4759, %v4761
        %v4777 = vsel %vm3501, %v4761, %v4763
        %v4778 = vsel %vm3501, %v4765, %v4767
        %v4779 = vsel %vm3501, %v4767, %v4769
        %v4780 = vsel %vm3501, %v4769, %v4771
        %v4781 = vsel %vm3501, %v4771, %v4773
        %v4790 = vsel %vm3467, %v4774, 0.0
        %v4791 = vsel %vm3468, %v4775, 0.0
        %v4792 = vsel %vm3469, %v4776, 0.0
        %v4793 = vsel %vm3470, %v4777, 0.0
        %v4794 = vsel %vm3467, %v4778, 0.0
        %v4795 = vsel %vm3468, %v4779, 0.0
        %v4796 = vsel %vm3469, %v4780, 0.0
        %v4797 = vsel %vm3470, %v4781, 0.0
        %v4798 = vpack.c.bf16 %v4794, %v4790
        %v4799 = vpack.c.bf16 %v4795, %v4791
        %v4800 = vpack.c.bf16 %v4796, %v4792
        %v4801 = vpack.c.bf16 %v4797, %v4793
        %4802 = vst [vmem:[#allocation3 + $0x2a0] sm:$0xff] %v4798
        %4803 = vst [vmem:[#allocation3 + $0x2a8] sm:$0xff] %v4799
        %4804 = vst [vmem:[#allocation3 + $0x2b0] sm:$0xff] %v4800
        %4805 = vst [vmem:[#allocation3 + $0x2b8] sm:$0xff] %v4801
        %v4806 = vld [vmem:[#allocation2 + $0x18] sm:$0xff]
        %v4807 = vld [vmem:[#allocation2 + $0x20] sm:$0xff]
        %v4808 = vld [vmem:[#allocation2 + $0x28] sm:$0xff]
        %v4809 = vld [vmem:[#allocation2 + $0x30] sm:$0xff]
        %v4810 = vld [vmem:[#allocation2 + $0x58] sm:$0xff]
        %v4811 = vld [vmem:[#allocation2 + $0x60] sm:$0xff]
        %v4812 = vld [vmem:[#allocation2 + $0x68] sm:$0xff]
        %v4813 = vld [vmem:[#allocation2 + $0x70] sm:$0xff]
        %v4814 = vpack.c.bf16 %v4810, %v4806
        %v4815 = vpack.c.bf16 %v4811, %v4807
        %v4816 = vpack.c.bf16 %v4812, %v4808
        %v4817 = vpack.c.bf16 %v4813, %v4809
        %4818 = vst [vmem:[#allocation3 + $0x2c0] sm:$0xff] %v4814
        %4819 = vst [vmem:[#allocation3 + $0x2c8] sm:$0xff] %v4815
        %4820 = vst [vmem:[#allocation3 + $0x2d0] sm:$0xff] %v4816
        %4821 = vst [vmem:[#allocation3 + $0x2d8] sm:$0xff] %v4817
        %v4822 = vld [vmem:[#allocation2 + $0x18] sm:$0xff]
        %v4823 = vld [vmem:[#allocation2 + $0x20] sm:$0xff]
        %v4824 = vld [vmem:[#allocation2 + $0x28] sm:$0xff]
        %v4825 = vld [vmem:[#allocation2 + $0x30] sm:$0xff]
        %v4826 = vld [vmem:[#allocation2 + $0x38] sm:$0xff]
        %v4827 = vld [vmem:[#allocation2 + $0x58] sm:$0xff]
        %v4828 = vld [vmem:[#allocation2 + $0x60] sm:$0xff]
        %v4829 = vld [vmem:[#allocation2 + $0x68] sm:$0xff]
        %v4830 = vld [vmem:[#allocation2 + $0x70] sm:$0xff]
        %v4831 = vld [vmem:[#allocation2 + $0x78] sm:$0xff]
        %4842 = vrot.lane.b32.xlu0 %v4822, 126
        %v4843 = vpop.permute.xlu0 %4842
        %4844 = vrot.lane.b32.xlu0 %v4823, 126
        %v4845 = vpop.permute.xlu0 %4844
        %4846 = vrot.lane.b32.xlu0 %v4824, 126
        %v4847 = vpop.permute.xlu0 %4846
        %4848 = vrot.lane.b32.xlu0 %v4825, 126
        %v4849 = vpop.permute.xlu0 %4848
        %4850 = vrot.lane.b32.xlu0 %v4826, 126
        %v4851 = vpop.permute.xlu0 %4850
        %4852 = vrot.lane.b32.xlu0 %v4827, 126
        %v4853 = vpop.permute.xlu0 %4852
        %4854 = vrot.lane.b32.xlu0 %v4828, 126
        %v4855 = vpop.permute.xlu0 %4854
        %4856 = vrot.lane.b32.xlu0 %v4829, 126
        %v4857 = vpop.permute.xlu0 %4856
        %4858 = vrot.lane.b32.xlu0 %v4830, 126
        %v4859 = vpop.permute.xlu0 %4858
        %4860 = vrot.lane.b32.xlu0 %v4831, 126
        %v4861 = vpop.permute.xlu0 %4860
        %v4862 = vsel %vm3611, %v4843, %v4845
        %v4863 = vsel %vm3611, %v4845, %v4847
        %v4864 = vsel %vm3611, %v4847, %v4849
        %v4865 = vsel %vm3611, %v4849, %v4851
        %v4866 = vsel %vm3611, %v4853, %v4855
        %v4867 = vsel %vm3611, %v4855, %v4857
        %v4868 = vsel %vm3611, %v4857, %v4859
        %v4869 = vsel %vm3611, %v4859, %v4861
        %v4878 = vsel %vm3577, %v4862, 0.0
        %v4879 = vsel %vm3578, %v4863, 0.0
        %v4880 = vsel %vm3579, %v4864, 0.0
        %v4881 = vsel %vm3580, %v4865, 0.0
        %v4882 = vsel %vm3577, %v4866, 0.0
        %v4883 = vsel %vm3578, %v4867, 0.0
        %v4884 = vsel %vm3579, %v4868, 0.0
        %v4885 = vsel %vm3580, %v4869, 0.0
        %v4886 = vpack.c.bf16 %v4882, %v4878
        %v4887 = vpack.c.bf16 %v4883, %v4879
        %v4888 = vpack.c.bf16 %v4884, %v4880
        %v4889 = vpack.c.bf16 %v4885, %v4881
        %4890 = vst [vmem:[#allocation3 + $0x2e0] sm:$0xff] %v4886
        %4891 = vst [vmem:[#allocation3 + $0x2e8] sm:$0xff] %v4887
        %4892 = vst [vmem:[#allocation3 + $0x2f0] sm:$0xff] %v4888
        %4893 = vst [vmem:[#allocation3 + $0x2f8] sm:$0xff] %v4889
        %v4894 = vld [vmem:[#allocation2 + $0x18] sm:$0xff]
        %v4895 = vld [vmem:[#allocation2 + $0x20] sm:$0xff]
        %v4896 = vld [vmem:[#allocation2 + $0x28] sm:$0xff]
        %v4897 = vld [vmem:[#allocation2 + $0x30] sm:$0xff]
        %v4898 = vld [vmem:[#allocation2 + $0x38] sm:$0xff]
        %v4899 = vld [vmem:[#allocation2 + $0x58] sm:$0xff]
        %v4900 = vld [vmem:[#allocation2 + $0x60] sm:$0xff]
        %v4901 = vld [vmem:[#allocation2 + $0x68] sm:$0xff]
        %v4902 = vld [vmem:[#allocation2 + $0x70] sm:$0xff]
        %v4903 = vld [vmem:[#allocation2 + $0x78] sm:$0xff]
        %4914 = vrot.lane.b32.xlu0 %v4894, 114
        %v4915 = vpop.permute.xlu0 %4914
        %4916 = vrot.lane.b32.xlu0 %v4895, 114
        %v4917 = vpop.permute.xlu0 %4916
        %4918 = vrot.lane.b32.xlu0 %v4896, 114
        %v4919 = vpop.permute.xlu0 %4918
        %4920 = vrot.lane.b32.xlu0 %v4897, 114
        %v4921 = vpop.permute.xlu0 %4920
        %4922 = vrot.lane.b32.xlu0 %v4898, 114
        %v4923 = vpop.permute.xlu0 %4922
        %4924 = vrot.lane.b32.xlu0 %v4899, 114
        %v4925 = vpop.permute.xlu0 %4924
        %4926 = vrot.lane.b32.xlu0 %v4900, 114
        %v4927 = vpop.permute.xlu0 %4926
        %4928 = vrot.lane.b32.xlu0 %v4901, 114
        %v4929 = vpop.permute.xlu0 %4928
        %4930 = vrot.lane.b32.xlu0 %v4902, 114
        %v4931 = vpop.permute.xlu0 %4930
        %4932 = vrot.lane.b32.xlu0 %v4903, 114
        %v4933 = vpop.permute.xlu0 %4932
        %v4934 = vsel %vm3705, %v4915, %v4917
        %v4935 = vsel %vm3705, %v4917, %v4919
        %v4936 = vsel %vm3705, %v4919, %v4921
        %v4937 = vsel %vm3705, %v4921, %v4923
        %v4938 = vsel %vm3705, %v4925, %v4927
        %v4939 = vsel %vm3705, %v4927, %v4929
        %v4940 = vsel %vm3705, %v4929, %v4931
        %v4941 = vsel %vm3705, %v4931, %v4933
        %v4950 = vsel %vm3671, %v4934, 0.0
        %v4951 = vsel %vm3672, %v4935, 0.0
        %v4952 = vsel %vm3673, %v4936, 0.0
        %v4953 = vsel %vm3674, %v4937, 0.0
        %v4954 = vsel %vm3671, %v4938, 0.0
        %v4955 = vsel %vm3672, %v4939, 0.0
        %v4956 = vsel %vm3673, %v4940, 0.0
        %v4957 = vsel %vm3674, %v4941, 0.0
        %v4958 = vpack.c.bf16 %v4954, %v4950
        %v4959 = vpack.c.bf16 %v4955, %v4951
        %v4960 = vpack.c.bf16 %v4956, %v4952
        %v4961 = vpack.c.bf16 %v4957, %v4953
        %4962 = vst [vmem:[#allocation3 + $0x300] sm:$0xff] %v4958
        %4963 = vst [vmem:[#allocation3 + $0x308] sm:$0xff] %v4959
        %4964 = vst [vmem:[#allocation3 + $0x310] sm:$0xff] %v4960
        %4965 = vst [vmem:[#allocation3 + $0x318] sm:$0xff] %v4961
        %v4966 = vld [vmem:[#allocation2 + $0x18] sm:$0xff]
        %v4967 = vld [vmem:[#allocation2 + $0x20] sm:$0xff]
        %v4968 = vld [vmem:[#allocation2 + $0x28] sm:$0xff]
        %v4969 = vld [vmem:[#allocation2 + $0x30] sm:$0xff]
        %v4970 = vld [vmem:[#allocation2 + $0x38] sm:$0xff]
        %v4971 = vld [vmem:[#allocation2 + $0x58] sm:$0xff]
        %v4972 = vld [vmem:[#allocation2 + $0x60] sm:$0xff]
        %v4973 = vld [vmem:[#allocation2 + $0x68] sm:$0xff]
        %v4974 = vld [vmem:[#allocation2 + $0x70] sm:$0xff]
        %v4975 = vld [vmem:[#allocation2 + $0x78] sm:$0xff]
        %4986 = vrot.lane.b32.xlu0 %v4966, 112
        %v4987 = vpop.permute.xlu0 %4986
        %4988 = vrot.lane.b32.xlu0 %v4967, 112
        %v4989 = vpop.permute.xlu0 %4988
        %4990 = vrot.lane.b32.xlu0 %v4968, 112
        %v4991 = vpop.permute.xlu0 %4990
        %4992 = vrot.lane.b32.xlu0 %v4969, 112
        %v4993 = vpop.permute.xlu0 %4992
        %4994 = vrot.lane.b32.xlu0 %v4970, 112
        %v4995 = vpop.permute.xlu0 %4994
        %4996 = vrot.lane.b32.xlu0 %v4971, 112
        %v4997 = vpop.permute.xlu0 %4996
        %4998 = vrot.lane.b32.xlu0 %v4972, 112
        %v4999 = vpop.permute.xlu0 %4998
        %5000 = vrot.lane.b32.xlu0 %v4973, 112
        %v5001 = vpop.permute.xlu0 %5000
        %5002 = vrot.lane.b32.xlu0 %v4974, 112
        %v5003 = vpop.permute.xlu0 %5002
        %5004 = vrot.lane.b32.xlu0 %v4975, 112
        %v5005 = vpop.permute.xlu0 %5004
        %v5006 = vsel %vm3799, %v4987, %v4989
        %v5007 = vsel %vm3799, %v4989, %v4991
        %v5008 = vsel %vm3799, %v4991, %v4993
        %v5009 = vsel %vm3799, %v4993, %v4995
        %v5010 = vsel %vm3799, %v4997, %v4999
        %v5011 = vsel %vm3799, %v4999, %v5001
        %v5012 = vsel %vm3799, %v5001, %v5003
        %v5013 = vsel %vm3799, %v5003, %v5005
        %v5022 = vsel %vm3765, %v5006, 0.0
        %v5023 = vsel %vm3766, %v5007, 0.0
        %v5024 = vsel %vm3767, %v5008, 0.0
        %v5025 = vsel %vm3768, %v5009, 0.0
        %v5026 = vsel %vm3765, %v5010, 0.0
        %v5027 = vsel %vm3766, %v5011, 0.0
        %v5028 = vsel %vm3767, %v5012, 0.0
        %v5029 = vsel %vm3768, %v5013, 0.0
        %v5030 = vpack.c.bf16 %v5026, %v5022
        %v5031 = vpack.c.bf16 %v5027, %v5023
        %v5032 = vpack.c.bf16 %v5028, %v5024
        %v5033 = vpack.c.bf16 %v5029, %v5025
        %5034 = vst [vmem:[#allocation3 + $0x320] sm:$0xff] %v5030
        %5035 = vst [vmem:[#allocation3 + $0x328] sm:$0xff] %v5031
        %5036 = vst [vmem:[#allocation3 + $0x330] sm:$0xff] %v5032
        %5037 = vst [vmem:[#allocation3 + $0x338] sm:$0xff] %v5033
        %v5038 = vld [vmem:[#allocation2 + $0x18] sm:$0xff]
        %v5039 = vld [vmem:[#allocation2 + $0x20] sm:$0xff]
        %v5040 = vld [vmem:[#allocation2 + $0x28] sm:$0xff]
        %v5041 = vld [vmem:[#allocation2 + $0x30] sm:$0xff]
        %v5042 = vld [vmem:[#allocation2 + $0x38] sm:$0xff]
        %v5043 = vld [vmem:[#allocation2 + $0x58] sm:$0xff]
        %v5044 = vld [vmem:[#allocation2 + $0x60] sm:$0xff]
        %v5045 = vld [vmem:[#allocation2 + $0x68] sm:$0xff]
        %v5046 = vld [vmem:[#allocation2 + $0x70] sm:$0xff]
        %v5047 = vld [vmem:[#allocation2 + $0x78] sm:$0xff]
        %5058 = vrot.lane.b32.xlu0 %v5038, 110
        %v5059 = vpop.permute.xlu0 %5058
        %5060 = vrot.lane.b32.xlu0 %v5039, 110
        %v5061 = vpop.permute.xlu0 %5060
        %5062 = vrot.lane.b32.xlu0 %v5040, 110
        %v5063 = vpop.permute.xlu0 %5062
        %5064 = vrot.lane.b32.xlu0 %v5041, 110
        %v5065 = vpop.permute.xlu0 %5064
        %5066 = vrot.lane.b32.xlu0 %v5042, 110
        %v5067 = vpop.permute.xlu0 %5066
        %5068 = vrot.lane.b32.xlu0 %v5043, 110
        %v5069 = vpop.permute.xlu0 %5068
        %5070 = vrot.lane.b32.xlu0 %v5044, 110
        %v5071 = vpop.permute.xlu0 %5070
        %5072 = vrot.lane.b32.xlu0 %v5045, 110
        %v5073 = vpop.permute.xlu0 %5072
        %5074 = vrot.lane.b32.xlu0 %v5046, 110
        %v5075 = vpop.permute.xlu0 %5074
        %5076 = vrot.lane.b32.xlu0 %v5047, 110
        %v5077 = vpop.permute.xlu0 %5076
        %v5078 = vsel %vm3893, %v5059, %v5061
        %v5079 = vsel %vm3893, %v5061, %v5063
        %v5080 = vsel %vm3893, %v5063, %v5065
        %v5081 = vsel %vm3893, %v5065, %v5067
        %v5082 = vsel %vm3893, %v5069, %v5071
        %v5083 = vsel %vm3893, %v5071, %v5073
        %v5084 = vsel %vm3893, %v5073, %v5075
        %v5085 = vsel %vm3893, %v5075, %v5077
        %v5094 = vsel %vm3859, %v5078, 0.0
        %v5095 = vsel %vm3860, %v5079, 0.0
        %v5096 = vsel %vm3861, %v5080, 0.0
        %v5097 = vsel %vm3862, %v5081, 0.0
        %v5098 = vsel %vm3859, %v5082, 0.0
        %v5099 = vsel %vm3860, %v5083, 0.0
        %v5100 = vsel %vm3861, %v5084, 0.0
        %v5101 = vsel %vm3862, %v5085, 0.0
        %v5102 = vpack.c.bf16 %v5098, %v5094
        %v5103 = vpack.c.bf16 %v5099, %v5095
        %v5104 = vpack.c.bf16 %v5100, %v5096
        %v5105 = vpack.c.bf16 %v5101, %v5097
        %5106 = vst [vmem:[#allocation3 + $0x340] sm:$0xff] %v5102
        %5107 = vst [vmem:[#allocation3 + $0x348] sm:$0xff] %v5103
        %5108 = vst [vmem:[#allocation3 + $0x350] sm:$0xff] %v5104
        %5109 = vst [vmem:[#allocation3 + $0x358] sm:$0xff] %v5105
        %v5110 = vld [vmem:[%s4] sm:$0xff]
        %v5111 = vld [vmem:[%s4 + $0x8] sm:$0xff]
        %v5112 = vld [vmem:[#allocation3] sm:$0xff]
        %v5113 = vld [vmem:[#allocation3 + $0x8] sm:$0xff]
        %v5114 = vld [vmem:[#allocation3 + $0x10] sm:$0xff]
        %v5115 = vld [vmem:[#allocation3 + $0x18] sm:$0xff]
        %v5116 = vld [vmem:[#allocation3 + $0x20] sm:$0xff]
        %v5117 = vld [vmem:[#allocation3 + $0x28] sm:$0xff]
        %v5118 = vld [vmem:[#allocation3 + $0x30] sm:$0xff]
        %v5119 = vld [vmem:[#allocation3 + $0x38] sm:$0xff]
        %v5120 = vld [vmem:[#allocation3 + $0x40] sm:$0xff]
        %v5121 = vld [vmem:[#allocation3 + $0x48] sm:$0xff]
        %v5122 = vld [vmem:[#allocation3 + $0x50] sm:$0xff]
        %v5123 = vld [vmem:[#allocation3 + $0x58] sm:$0xff]
        %v5124 = vld [vmem:[#allocation3 + $0x60] sm:$0xff]
        %v5125 = vld [vmem:[#allocation3 + $0x68] sm:$0xff]
        %v5126 = vld [vmem:[#allocation3 + $0x70] sm:$0xff]
        %v5127 = vld [vmem:[#allocation3 + $0x78] sm:$0xff]
        %v5128 = vld [vmem:[#allocation3 + $0x80] sm:$0xff]
        %v5129 = vld [vmem:[#allocation3 + $0x88] sm:$0xff]
        %v5130 = vld [vmem:[#allocation3 + $0x90] sm:$0xff]
        %v5131 = vld [vmem:[#allocation3 + $0x98] sm:$0xff]
        %v5132 = vld [vmem:[#allocation3 + $0xa0] sm:$0xff]
        %v5133 = vld [vmem:[#allocation3 + $0xa8] sm:$0xff]
        %v5134 = vld [vmem:[#allocation3 + $0xb0] sm:$0xff]
        %v5135 = vld [vmem:[#allocation3 + $0xb8] sm:$0xff]
        %v5136 = vld [vmem:[#allocation3 + $0xc0] sm:$0xff]
        %v5137 = vld [vmem:[#allocation3 + $0xc8] sm:$0xff]
        %v5138 = vld [vmem:[#allocation3 + $0xd0] sm:$0xff]
        %v5139 = vld [vmem:[#allocation3 + $0xd8] sm:$0xff]
        %v5140 = vld [vmem:[#allocation3 + $0xe0] sm:$0xff]
        %v5141 = vld [vmem:[#allocation3 + $0xe8] sm:$0xff]
        %v5142 = vld [vmem:[#allocation3 + $0xf0] sm:$0xff]
        %v5143 = vld [vmem:[#allocation3 + $0xf8] sm:$0xff]
        %v5144 = vld [vmem:[#allocation3 + $0x100] sm:$0xff]
        %v5145 = vld [vmem:[#allocation3 + $0x108] sm:$0xff]
        %v5146 = vld [vmem:[#allocation3 + $0x110] sm:$0xff]
        %v5147 = vld [vmem:[#allocation3 + $0x118] sm:$0xff]
        %v5148 = vld [vmem:[#allocation3 + $0x120] sm:$0xff]
        %v5149 = vld [vmem:[#allocation3 + $0x128] sm:$0xff]
        %v5150 = vld [vmem:[#allocation3 + $0x130] sm:$0xff]
        %v5151 = vld [vmem:[#allocation3 + $0x138] sm:$0xff]
        %v5152 = vld [vmem:[#allocation3 + $0x140] sm:$0xff]
        %v5153 = vld [vmem:[#allocation3 + $0x148] sm:$0xff]
        %v5154 = vld [vmem:[#allocation3 + $0x150] sm:$0xff]
        %v5155 = vld [vmem:[#allocation3 + $0x158] sm:$0xff]
        %v5156 = vld [vmem:[#allocation3 + $0x160] sm:$0xff]
        %v5157 = vld [vmem:[#allocation3 + $0x168] sm:$0xff]
        %v5158 = vld [vmem:[#allocation3 + $0x170] sm:$0xff]
        %v5159 = vld [vmem:[#allocation3 + $0x178] sm:$0xff]
        %v5160 = vld [vmem:[#allocation3 + $0x180] sm:$0xff]
        %v5161 = vld [vmem:[#allocation3 + $0x188] sm:$0xff]
        %v5162 = vld [vmem:[#allocation3 + $0x190] sm:$0xff]
        %v5163 = vld [vmem:[#allocation3 + $0x198] sm:$0xff]
        %v5164 = vld [vmem:[#allocation3 + $0x1a0] sm:$0xff]
        %v5165 = vld [vmem:[#allocation3 + $0x1a8] sm:$0xff]
        %v5166 = vld [vmem:[#allocation3 + $0x1b0] sm:$0xff]
        %v5167 = vld [vmem:[#allocation3 + $0x1b8] sm:$0xff]
        %v5168 = vld [vmem:[#allocation3 + $0x1c0] sm:$0xff]
        %v5169 = vld [vmem:[#allocation3 + $0x1c8] sm:$0xff]
        %v5170 = vld [vmem:[#allocation3 + $0x1d0] sm:$0xff]
        %v5171 = vld [vmem:[#allocation3 + $0x1d8] sm:$0xff]
        %v5172 = vld [vmem:[#allocation3 + $0x1e0] sm:$0xff]
        %v5173 = vld [vmem:[#allocation3 + $0x1e8] sm:$0xff]
        %v5174 = vld [vmem:[#allocation3 + $0x1f0] sm:$0xff]
        %v5175 = vld [vmem:[#allocation3 + $0x1f8] sm:$0xff]
        %v5176 = vld [vmem:[#allocation3 + $0x200] sm:$0xff]
        %v5177 = vld [vmem:[#allocation3 + $0x208] sm:$0xff]
        %v5178 = vld [vmem:[#allocation3 + $0x210] sm:$0xff]
        %v5179 = vld [vmem:[#allocation3 + $0x218] sm:$0xff]
        %v5180 = vld [vmem:[#allocation3 + $0x220] sm:$0xff]
        %v5181 = vld [vmem:[#allocation3 + $0x228] sm:$0xff]
        %v5182 = vld [vmem:[#allocation3 + $0x230] sm:$0xff]
        %v5183 = vld [vmem:[#allocation3 + $0x238] sm:$0xff]
        %v5184 = vld [vmem:[#allocation3 + $0x240] sm:$0xff]
        %v5185 = vld [vmem:[#allocation3 + $0x248] sm:$0xff]
        %v5186 = vld [vmem:[#allocation3 + $0x250] sm:$0xff]
        %v5187 = vld [vmem:[#allocation3 + $0x258] sm:$0xff]
        %v5188 = vld [vmem:[#allocation3 + $0x260] sm:$0xff]
        %v5189 = vld [vmem:[#allocation3 + $0x268] sm:$0xff]
        %v5190 = vld [vmem:[#allocation3 + $0x270] sm:$0xff]
        %v5191 = vld [vmem:[#allocation3 + $0x278] sm:$0xff]
        %v5192 = vld [vmem:[#allocation3 + $0x280] sm:$0xff]
        %v5193 = vld [vmem:[#allocation3 + $0x288] sm:$0xff]
        %v5194 = vld [vmem:[#allocation3 + $0x290] sm:$0xff]
        %v5195 = vld [vmem:[#allocation3 + $0x298] sm:$0xff]
        %v5196 = vld [vmem:[#allocation3 + $0x2a0] sm:$0xff]
        %v5197 = vld [vmem:[#allocation3 + $0x2a8] sm:$0xff]
        %v5198 = vld [vmem:[#allocation3 + $0x2b0] sm:$0xff]
        %v5199 = vld [vmem:[#allocation3 + $0x2b8] sm:$0xff]
        %v5200 = vld [vmem:[#allocation3 + $0x2c0] sm:$0xff]
        %v5201 = vld [vmem:[#allocation3 + $0x2c8] sm:$0xff]
        %v5202 = vld [vmem:[#allocation3 + $0x2d0] sm:$0xff]
        %v5203 = vld [vmem:[#allocation3 + $0x2d8] sm:$0xff]
        %v5204 = vld [vmem:[#allocation3 + $0x2e0] sm:$0xff]
        %v5205 = vld [vmem:[#allocation3 + $0x2e8] sm:$0xff]
        %v5206 = vld [vmem:[#allocation3 + $0x2f0] sm:$0xff]
        %v5207 = vld [vmem:[#allocation3 + $0x2f8] sm:$0xff]
        %v5208 = vld [vmem:[#allocation3 + $0x300] sm:$0xff]
        %v5209 = vld [vmem:[#allocation3 + $0x308] sm:$0xff]
        %v5210 = vld [vmem:[#allocation3 + $0x310] sm:$0xff]
        %v5211 = vld [vmem:[#allocation3 + $0x318] sm:$0xff]
        %v5212 = vld [vmem:[#allocation3 + $0x320] sm:$0xff]
        %v5213 = vld [vmem:[#allocation3 + $0x328] sm:$0xff]
        %v5214 = vld [vmem:[#allocation3 + $0x330] sm:$0xff]
        %v5215 = vld [vmem:[#allocation3 + $0x338] sm:$0xff]
        %v5216 = vld [vmem:[#allocation3 + $0x340] sm:$0xff]
        %v5217 = vld [vmem:[#allocation3 + $0x348] sm:$0xff]
        %v5218 = vld [vmem:[#allocation3 + $0x350] sm:$0xff]
        %v5219 = vld [vmem:[#allocation3 + $0x358] sm:$0xff]
        %v5220 = vld [vmem:[%s5] sm:$0xff]
        %5222 = vset.pattern.permute.xlu0 0
        %5223 = vperm.xlu0 %5222, %v5220
        %v5224 = vpop.permute.xlu0 %5223
        %v5228 = vunpack.c.l.b16 %v5110
        %v5229 = vunpack.c.h.b16 %v5110
        %v5230 = vunpack.c.l.b16 %v5111
        %v5231 = vunpack.c.h.b16 %v5111
        %v5232 = vpack.c.b16 %v5228, %v5228
        %v5233 = vpack.c.b16 %v5229, %v5229
        %v5234 = vpack.c.b16 %v5230, %v5230
        %v5235 = vpack.c.b16 %v5231, %v5231
        %v5240 = vsel %vm2704, %v5235, 0
        %5242 = vmatprep.subr.bf16.mxu0 %v5113
        %5243 = vmatpush1.bf16.msra.mxu0 %v5112
        %5244 = vmatprep.subr.bf16.mxu0 %v5117
        %5245 = vmatpush1.bf16.msra.mxu0 %v5116
        %5246 = vmatprep.subr.bf16.mxu0 %v5121
        %5247 = vmatpush1.bf16.msra.mxu0 %v5120
        %5248 = vmatprep.subr.bf16.mxu0 %v5125
        %5249 = vmatpush1.bf16.msra.mxu0 %v5124
        %5250 = vmatprep.subr.bf16.mxu0 %v5129
        %5251 = vmatpush1.bf16.msra.mxu0 %v5128
        %5252 = vmatprep.subr.bf16.mxu0 %v5133
        %5253 = vmatpush1.bf16.msra.mxu0 %v5132
        %5254 = vmatprep.subr.bf16.mxu0 %v5137
        %5255 = vmatpush1.bf16.msra.mxu0 %v5136
        %5256 = vmatprep.subr.bf16.mxu0 %v5141
        %5257 = vmatpush1.bf16.msra.mxu0 %v5140
        %5258 = vmatprep.subr.bf16.mxu0 %v5145
        %5259 = vmatpush1.bf16.msra.mxu0 %v5144
        %5260 = vmatprep.subr.bf16.mxu0 %v5149
        %5261 = vmatpush1.bf16.msra.mxu0 %v5148
        %5262 = vmatprep.subr.bf16.mxu0 %v5153
        %5263 = vmatpush1.bf16.msra.mxu0 %v5152
        %5264 = vmatprep.subr.bf16.mxu0 %v5157
        %5265 = vmatpush1.bf16.msra.mxu0 %v5156
        %5266 = vmatprep.subr.bf16.mxu0 %v5161
        %5267 = vmatpush1.bf16.msra.mxu0 %v5160
        %5268 = vmatprep.subr.bf16.mxu0 %v5165
        %5269 = vmatpush1.bf16.msra.mxu0 %v5164
        %5270 = vmatprep.subr.bf16.mxu0 %v5169
        %5271 = vmatpush1.bf16.msra.mxu0 %v5168
        %5272 = vmatprep.subr.bf16.mxu0 %v5173
        %5273 = vmatpush1.bf16.msra.mxu0 %v5172
        %5274 = vmatprep.mubr.bf16.mxu0 %v5233
        %5275 = vmatmul.mubr.bf16.gmra.mrb[0].mxu0 %v5232
        %v5276 = vpop.f32.mrb[0].mxu0
        %v5277 = vadd.f32 %v5224, %v5276
        %v5278 = vpop.f32.mrb[0].mxu0
        %v5279 = vadd.f32 %v5224, %v5278
        %v5280 = vpop.f32.mrb[0].mxu0
        %v5281 = vpop.f32.mrb[0].mxu0
        %5282 = vdwg.mxu0
        %5283 = vmatprep.subr.bf16.mxu0 %v5177
        %5284 = vmatpush1.bf16.msra.mxu0 %v5176
        %5285 = vmatprep.subr.bf16.mxu0 %v5181
        %5286 = vmatpush1.bf16.msra.mxu0 %v5180
        %5287 = vmatprep.subr.bf16.mxu0 %v5185
        %5288 = vmatpush1.bf16.msra.mxu0 %v5184
        %5289 = vmatprep.subr.bf16.mxu0 %v5189
        %5290 = vmatpush1.bf16.msra.mxu0 %v5188
        %5291 = vmatprep.subr.bf16.mxu0 %v5193
        %5292 = vmatpush1.bf16.msra.mxu0 %v5192
        %5293 = vmatprep.subr.bf16.mxu0 %v5197
        %5294 = vmatpush1.bf16.msra.mxu0 %v5196
        %5295 = vmatprep.subr.bf16.mxu0 %v5201
        %5296 = vmatpush1.bf16.msra.mxu0 %v5200
        %5297 = vmatprep.subr.bf16.mxu0 %v5205
        %5298 = vmatpush1.bf16.msra.mxu0 %v5204
        %5299 = vmatprep.subr.bf16.mxu0 %v5209
        %5300 = vmatpush1.bf16.msra.mxu0 %v5208
        %5301 = vmatprep.subr.bf16.mxu0 %v5213
        %5302 = vmatpush1.bf16.msra.mxu0 %v5212
        %5303 = vmatprep.subr.bf16.mxu0 %v5217
        %5304 = vmatpush1.bf16.msra.mxu0 %v5216
        %5305 = vmatprep.subr.bf16.mxu0 0
        %5306 = vmatpush1.bf16.msra.mxu0 0
        %5307 = vmatprep.subr.bf16.mxu0 0
        %5308 = vmatpush1.bf16.msra.mxu0 0
        %5309 = vmatprep.subr.bf16.mxu0 0
        %5310 = vmatpush1.bf16.msra.mxu0 0
        %5311 = vmatprep.subr.bf16.mxu0 0
        %5312 = vmatpush1.bf16.msra.mxu0 0
        %5313 = vmatprep.subr.bf16.mxu0 0
        %5314 = vmatpush1.bf16.msra.mxu0 0
        %5315 = vmatprep.mubr.bf16.mxu0 %v5240
        %5316 = vmatmul.mubr.bf16.gmra.mrb[0].mxu0 %v5234
        %v5317 = vpop.f32.mrb[0].mxu0
        %v5318 = vadd.f32 %v5277, %v5317
        %v5319 = vpop.f32.mrb[0].mxu0
        %v5320 = vadd.f32 %v5279, %v5319
        %v5321 = vpop.f32.mrb[0].mxu0
        %v5322 = vpop.f32.mrb[0].mxu0
        %5323 = vdwg.mxu0
        %5324 = vmatprep.subr.bf16.mxu0 %v5115
        %5325 = vmatpush1.bf16.msra.mxu0 %v5114
        %5326 = vmatprep.subr.bf16.mxu0 %v5119
        %5327 = vmatpush1.bf16.msra.mxu0 %v5118
        %5328 = vmatprep.subr.bf16.mxu0 %v5123
        %5329 = vmatpush1.bf16.msra.mxu0 %v5122
        %5330 = vmatprep.subr.bf16.mxu0 %v5127
        %5331 = vmatpush1.bf16.msra.mxu0 %v5126
        %5332 = vmatprep.subr.bf16.mxu0 %v5131
        %5333 = vmatpush1.bf16.msra.mxu0 %v5130
        %5334 = vmatprep.subr.bf16.mxu0 %v5135
        %5335 = vmatpush1.bf16.msra.mxu0 %v5134
        %5336 = vmatprep.subr.bf16.mxu0 %v5139
        %5337 = vmatpush1.bf16.msra.mxu0 %v5138
        %5338 = vmatprep.subr.bf16.mxu0 %v5143
        %5339 = vmatpush1.bf16.msra.mxu0 %v5142
        %5340 = vmatprep.subr.bf16.mxu0 %v5147
        %5341 = vmatpush1.bf16.msra.mxu0 %v5146
        %5342 = vmatprep.subr.bf16.mxu0 %v5151
        %5343 = vmatpush1.bf16.msra.mxu0 %v5150
        %5344 = vmatprep.subr.bf16.mxu0 %v5155
        %5345 = vmatpush1.bf16.msra.mxu0 %v5154
        %5346 = vmatprep.subr.bf16.mxu0 %v5159
        %5347 = vmatpush1.bf16.msra.mxu0 %v5158
        %5348 = vmatprep.subr.bf16.mxu0 %v5163
        %5349 = vmatpush1.bf16.msra.mxu0 %v5162
        %5350 = vmatprep.subr.bf16.mxu0 %v5167
        %5351 = vmatpush1.bf16.msra.mxu0 %v5166
        %5352 = vmatprep.subr.bf16.mxu0 %v5171
        %5353 = vmatpush1.bf16.msra.mxu0 %v5170
        %5354 = vmatprep.subr.bf16.mxu0 %v5175
        %5355 = vmatpush1.bf16.msra.mxu0 %v5174
        %5356 = vmatprep.mubr.bf16.mxu0 %v5233
        %5357 = vmatmul.mubr.bf16.gmra.mrb[0].mxu0 %v5232
        %v5358 = vpop.f32.mrb[0].mxu0
        %v5359 = vadd.f32 %v5224, %v5358
        %v5360 = vpop.f32.mrb[0].mxu0
        %v5361 = vadd.f32 %v5224, %v5360
        %v5362 = vpop.f32.mrb[0].mxu0
        %v5363 = vpop.f32.mrb[0].mxu0
        %5364 = vdwg.mxu0
        %5365 = vmatprep.subr.bf16.mxu0 %v5179
        %5366 = vmatpush1.bf16.msra.mxu0 %v5178
        %5367 = vmatprep.subr.bf16.mxu0 %v5183
        %5368 = vmatpush1.bf16.msra.mxu0 %v5182
        %5369 = vmatprep.subr.bf16.mxu0 %v5187
        %5370 = vmatpush1.bf16.msra.mxu0 %v5186
        %5371 = vmatprep.subr.bf16.mxu0 %v5191
        %5372 = vmatpush1.bf16.msra.mxu0 %v5190
        %5373 = vmatprep.subr.bf16.mxu0 %v5195
        %5374 = vmatpush1.bf16.msra.mxu0 %v5194
        %5375 = vmatprep.subr.bf16.mxu0 %v5199
        %5376 = vmatpush1.bf16.msra.mxu0 %v5198
        %5377 = vmatprep.subr.bf16.mxu0 %v5203
        %5378 = vmatpush1.bf16.msra.mxu0 %v5202
        %5379 = vmatprep.subr.bf16.mxu0 %v5207
        %5380 = vmatpush1.bf16.msra.mxu0 %v5206
        %5381 = vmatprep.subr.bf16.mxu0 %v5211
        %5382 = vmatpush1.bf16.msra.mxu0 %v5210
        %5383 = vmatprep.subr.bf16.mxu0 %v5215
        %5384 = vmatpush1.bf16.msra.mxu0 %v5214
        %5385 = vmatprep.subr.bf16.mxu0 %v5219
        %5386 = vmatpush1.bf16.msra.mxu0 %v5218
        %5387 = vmatprep.subr.bf16.mxu0 0
        %5388 = vmatpush1.bf16.msra.mxu0 0
        %5389 = vmatprep.subr.bf16.mxu0 0
        %5390 = vmatpush1.bf16.msra.mxu0 0
        %5391 = vmatprep.subr.bf16.mxu0 0
        %5392 = vmatpush1.bf16.msra.mxu0 0
        %5393 = vmatprep.subr.bf16.mxu0 0
        %5394 = vmatpush1.bf16.msra.mxu0 0
        %5395 = vmatprep.subr.bf16.mxu0 0
        %5396 = vmatpush1.bf16.msra.mxu0 0
        %5397 = vmatprep.mubr.bf16.mxu0 %v5240
        %5398 = vmatmul.mubr.bf16.gmra.mrb[0].mxu0 %v5234
        %v5399 = vpop.f32.mrb[0].mxu0
        %v5400 = vadd.f32 %v5359, %v5399
        %v5401 = vpop.f32.mrb[0].mxu0
        %v5402 = vadd.f32 %v5361, %v5401
        %v5403 = vpop.f32.mrb[0].mxu0
        %v5404 = vpop.f32.mrb[0].mxu0
        %5405 = vdwg.mxu0
        %v5406 = vld [vmem:[%s10] sm:$0xf]
        %v5407 = vld [vmem:[%s410] sm:$0xff]
        %v5408 = vld [vmem:[%s410 + $0x8] sm:$0xff]
        %v5411 = vcombine.high %v5407, %v5407
        %v5412 = vcombine.high %v5408, %v5408
        %v5415 = vpack.c.bf16 %v5407, %v5407
        %v5416 = vpack.c.bf16 %v5411, %v5411
        %v5417 = vpack.c.bf16 %v5408, %v5408
        %v5418 = vpack.c.bf16 %v5412, %v5412
        %vm5419 = vcmask 31744
        %v5421 = vsel %vm5419, %v5406, 0
        %vm5423 = vcmask 1041408
        %v5425 = vsel %vm5423, %v5415, 0
        %v5428 = vsel %vm5423, %v5416, 0
        %v5431 = vsel %vm5423, %v5417, 0
        %v5434 = vsel %vm5423, %v5418, 0
        %5436 = vmatprep.subr.bf16.mxu0 %v5428
        %5437 = vmatpush1.bf16.msra.mxu0 %v5425
        %5438 = vmatprep.subr.bf16.mxu0 0
        %5439 = vmatpush1.bf16.msra.mxu0 0
        %5440 = vmatprep.subr.bf16.mxu0 0
        %5441 = vmatpush1.bf16.msra.mxu0 0
        %5442 = vmatprep.subr.bf16.mxu0 0
        %5443 = vmatpush1.bf16.msra.mxu0 0
        %5444 = vmatprep.subr.bf16.mxu0 0
        %5445 = vmatpush1.bf16.msra.mxu0 0
        %5446 = vmatprep.subr.bf16.mxu0 0
        %5447 = vmatpush1.bf16.msra.mxu0 0
        %5448 = vmatprep.subr.bf16.mxu0 0
        %5449 = vmatpush1.bf16.msra.mxu0 0
        %5450 = vmatprep.subr.bf16.mxu0 0
        %5451 = vmatpush1.bf16.msra.mxu0 0
        %5452 = vmatprep.subr.bf16.mxu0 0
        %5453 = vmatpush1.bf16.msra.mxu0 0
        %5454 = vmatprep.subr.bf16.mxu0 0
        %5455 = vmatpush1.bf16.msra.mxu0 0
        %5456 = vmatprep.subr.bf16.mxu0 0
        %5457 = vmatpush1.bf16.msra.mxu0 0
        %5458 = vmatprep.subr.bf16.mxu0 0
        %5459 = vmatpush1.bf16.msra.mxu0 0
        %5460 = vmatprep.subr.bf16.mxu0 0
        %5461 = vmatpush1.bf16.msra.mxu0 0
        %5462 = vmatprep.subr.bf16.mxu0 0
        %5463 = vmatpush1.bf16.msra.mxu0 0
        %5464 = vmatprep.subr.bf16.mxu0 0
        %5465 = vmatpush1.bf16.msra.mxu0 0
        %5466 = vmatprep.subr.bf16.mxu0 0
        %5467 = vmatpush1.bf16.msra.mxu0 0
        %5468 = vmatprep.mubr.bf16.mxu0 0
        %5469 = vmatmul.mubr.bf16.gmra.mrb[0].mxu0 %v5421
        %v5470 = vpop.f32.mrb[0].mxu0
        %v5471 = vadd.f32 0.0, %v5470
        %v5472 = vpop.f32.mrb[0].mxu0
        %v5473 = vadd.f32 0.0, %v5472
        %v5474 = vpop.f32.mrb[0].mxu0
        %v5475 = vpop.f32.mrb[0].mxu0
        %5476 = vdwg.mxu0
        %5477 = vmatprep.subr.bf16.mxu0 %v5434
        %5478 = vmatpush1.bf16.msra.mxu0 %v5431
        %5479 = vmatprep.subr.bf16.mxu0 0
        %5480 = vmatpush1.bf16.msra.mxu0 0
        %5481 = vmatprep.subr.bf16.mxu0 0
        %5482 = vmatpush1.bf16.msra.mxu0 0
        %5483 = vmatprep.subr.bf16.mxu0 0
        %5484 = vmatpush1.bf16.msra.mxu0 0
        %5485 = vmatprep.subr.bf16.mxu0 0
        %5486 = vmatpush1.bf16.msra.mxu0 0
        %5487 = vmatprep.subr.bf16.mxu0 0
        %5488 = vmatpush1.bf16.msra.mxu0 0
        %5489 = vmatprep.subr.bf16.mxu0 0
        %5490 = vmatpush1.bf16.msra.mxu0 0
        %5491 = vmatprep.subr.bf16.mxu0 0
        %5492 = vmatpush1.bf16.msra.mxu0 0
        %5493 = vmatprep.subr.bf16.mxu0 0
        %5494 = vmatpush1.bf16.msra.mxu0 0
        %5495 = vmatprep.subr.bf16.mxu0 0
        %5496 = vmatpush1.bf16.msra.mxu0 0
        %5497 = vmatprep.subr.bf16.mxu0 0
        %5498 = vmatpush1.bf16.msra.mxu0 0
        %5499 = vmatprep.subr.bf16.mxu0 0
        %5500 = vmatpush1.bf16.msra.mxu0 0
        %5501 = vmatprep.subr.bf16.mxu0 0
        %5502 = vmatpush1.bf16.msra.mxu0 0
        %5503 = vmatprep.subr.bf16.mxu0 0
        %5504 = vmatpush1.bf16.msra.mxu0 0
        %5505 = vmatprep.subr.bf16.mxu0 0
        %5506 = vmatpush1.bf16.msra.mxu0 0
        %5507 = vmatprep.subr.bf16.mxu0 0
        %5508 = vmatpush1.bf16.msra.mxu0 0
        %5509 = vmatprep.mubr.bf16.mxu0 0
        %5510 = vmatmul.mubr.bf16.gmra.mrb[0].mxu0 %v5421
        %v5511 = vpop.f32.mrb[0].mxu0
        %v5512 = vadd.f32 0.0, %v5511
        %v5513 = vpop.f32.mrb[0].mxu0
        %v5514 = vadd.f32 0.0, %v5513
        %v5515 = vpop.f32.mrb[0].mxu0
        %v5516 = vpop.f32.mrb[0].mxu0
        %5517 = vdwg.mxu0
        %5518 = vst [vmem:[#allocation2 + $0x10] sm:$0xff] %v5471
        %5519 = vst [vmem:[#allocation2 + $0x18] sm:$0xff] %v5473
        %5520 = vst [vmem:[#allocation2 + $0x20] sm:$0xff] %v5512
        %5521 = vst [vmem:[#allocation2 + $0x28] sm:$0xff] %v5514
        %v5522 = vld [vmem:[#allocation2 + $0x10] sm:$0xff]
        %v5523 = vld [vmem:[#allocation2 + $0x18] sm:$0xff]
        %v5524 = vld [vmem:[#allocation2 + $0x20] sm:$0xff]
        %v5525 = vld [vmem:[#allocation2 + $0x28] sm:$0xff]
        %v5526 = vld [vmem:[#allocation2 + $0x30] sm:$0xff]
        %5532 = vrot.lane.b32.xlu0 %v5522, 127
        %v5533 = vpop.permute.xlu0 %5532
        %5534 = vrot.lane.b32.xlu0 %v5523, 127
        %v5535 = vpop.permute.xlu0 %5534
        %5536 = vrot.lane.b32.xlu0 %v5524, 127
        %v5537 = vpop.permute.xlu0 %5536
        %5538 = vrot.lane.b32.xlu0 %v5525, 127
        %v5539 = vpop.permute.xlu0 %5538
        %5540 = vrot.lane.b32.xlu0 %v5526, 127
        %v5541 = vpop.permute.xlu0 %5540
        %v5542 = vsel %vm1698, %v5533, %v5535
        %v5543 = vsel %vm1698, %v5535, %v5537
        %v5544 = vsel %vm1698, %v5537, %v5539
        %v5545 = vsel %vm1698, %v5539, %v5541
        %v5550 = vadd.f32 %v5471, %v5542
        %v5551 = vadd.f32 %v5473, %v5543
        %v5552 = vadd.f32 %v5512, %v5544
        %v5553 = vadd.f32 %v5514, %v5545
        %5554 = vrot.lane.b32.xlu0 %v5522, 120
        %v5555 = vpop.permute.xlu0 %5554
        %5556 = vrot.lane.b32.xlu0 %v5523, 120
        %v5557 = vpop.permute.xlu0 %5556
        %5558 = vrot.lane.b32.xlu0 %v5524, 120
        %v5559 = vpop.permute.xlu0 %5558
        %5560 = vrot.lane.b32.xlu0 %v5525, 120
        %v5561 = vpop.permute.xlu0 %5560
        %5562 = vrot.lane.b32.xlu0 %v5526, 120
        %v5563 = vpop.permute.xlu0 %5562
        %v5564 = vsel %vm1844, %v5555, %v5557
        %v5565 = vsel %vm1844, %v5557, %v5559
        %v5566 = vsel %vm1844, %v5559, %v5561
        %v5567 = vsel %vm1844, %v5561, %v5563
        %v5572 = vadd.f32 %v5550, %v5564
        %v5573 = vadd.f32 %v5551, %v5565
        %v5574 = vadd.f32 %v5552, %v5566
        %v5575 = vadd.f32 %v5553, %v5567
        %5576 = vrot.lane.b32.xlu0 %v5522, 119
        %v5577 = vpop.permute.xlu0 %5576
        %5578 = vrot.lane.b32.xlu0 %v5523, 119
        %v5579 = vpop.permute.xlu0 %5578
        %5580 = vrot.lane.b32.xlu0 %v5524, 119
        %v5581 = vpop.permute.xlu0 %5580
        %5582 = vrot.lane.b32.xlu0 %v5525, 119
        %v5583 = vpop.permute.xlu0 %5582
        %5584 = vrot.lane.b32.xlu0 %v5526, 119
        %v5585 = vpop.permute.xlu0 %5584
        %v5586 = vsel %vm1917, %v5577, %v5579
        %v5587 = vsel %vm1917, %v5579, %v5581
        %v5588 = vsel %vm1917, %v5581, %v5583
        %v5589 = vsel %vm1917, %v5583, %v5585
        %v5594 = vadd.f32 %v5572, %v5586
        %v5595 = vadd.f32 %v5573, %v5587
        %v5596 = vadd.f32 %v5574, %v5588
        %v5597 = vadd.f32 %v5575, %v5589
        %5598 = vrot.lane.b32.xlu0 %v5522, 64
        %v5599 = vpop.permute.xlu0 %5598
        %5600 = vrot.lane.b32.xlu0 %v5523, 64
        %v5601 = vpop.permute.xlu0 %5600
        %5602 = vrot.lane.b32.xlu0 %v5524, 64
        %v5603 = vpop.permute.xlu0 %5602
        %5604 = vrot.lane.b32.xlu0 %v5525, 64
        %v5605 = vpop.permute.xlu0 %5604
        %5606 = vrot.lane.b32.xlu0 %v5526, 64
        %v5607 = vpop.permute.xlu0 %5606
        %v5608 = vsel %vm2962, %v5599, %v5601
        %v5609 = vsel %vm2962, %v5601, %v5603
        %v5610 = vsel %vm2962, %v5603, %v5605
        %v5611 = vsel %vm2962, %v5605, %v5607
        %v5616 = vadd.f32 %v5594, %v5608
        %v5617 = vadd.f32 %v5595, %v5609
        %v5618 = vadd.f32 %v5596, %v5610
        %v5619 = vadd.f32 %v5597, %v5611
        %5620 = vrot.lane.b32.xlu0 %v5522, 63
        %v5621 = vpop.permute.xlu0 %5620
        %5622 = vrot.lane.b32.xlu0 %v5523, 63
        %v5623 = vpop.permute.xlu0 %5622
        %5624 = vrot.lane.b32.xlu0 %v5524, 63
        %v5625 = vpop.permute.xlu0 %5624
        %5626 = vrot.lane.b32.xlu0 %v5525, 63
        %v5627 = vpop.permute.xlu0 %5626
        %5628 = vrot.lane.b32.xlu0 %v5526, 63
        %v5629 = vpop.permute.xlu0 %5628
        %v5630 = vsel %vm1035, %v5621, %v5623
        %v5631 = vsel %vm1035, %v5623, %v5625
        %v5632 = vsel %vm1035, %v5625, %v5627
        %v5633 = vsel %vm1035, %v5627, %v5629
        %v5638 = vadd.f32 %v5616, %v5630
        %v5639 = vadd.f32 %v5617, %v5631
        %v5640 = vadd.f32 %v5618, %v5632
        %v5641 = vadd.f32 %v5619, %v5633
        %5642 = vrot.lane.b32.xlu0 %v5522, 56
        %v5643 = vpop.permute.xlu0 %5642
        %5644 = vrot.lane.b32.xlu0 %v5523, 56
        %v5645 = vpop.permute.xlu0 %5644
        %5646 = vrot.lane.b32.xlu0 %v5524, 56
        %v5647 = vpop.permute.xlu0 %5646
        %5648 = vrot.lane.b32.xlu0 %v5525, 56
        %v5649 = vpop.permute.xlu0 %5648
        %5650 = vrot.lane.b32.xlu0 %v5526, 56
        %v5651 = vpop.permute.xlu0 %5650
        %v5652 = vsel %vm1223, %v5643, %v5645
        %v5653 = vsel %vm1223, %v5645, %v5647
        %v5654 = vsel %vm1223, %v5647, %v5649
        %v5655 = vsel %vm1223, %v5649, %v5651
        %v5660 = vadd.f32 %v5638, %v5652
        %v5661 = vadd.f32 %v5639, %v5653
        %v5662 = vadd.f32 %v5640, %v5654
        %v5663 = vadd.f32 %v5641, %v5655
        %5664 = vrot.lane.b32.xlu0 %v5522, 55
        %v5665 = vpop.permute.xlu0 %5664
        %5666 = vrot.lane.b32.xlu0 %v5523, 55
        %v5667 = vpop.permute.xlu0 %5666
        %5668 = vrot.lane.b32.xlu0 %v5524, 55
        %v5669 = vpop.permute.xlu0 %5668
        %5670 = vrot.lane.b32.xlu0 %v5525, 55
        %v5671 = vpop.permute.xlu0 %5670
        %5672 = vrot.lane.b32.xlu0 %v5526, 55
        %v5673 = vpop.permute.xlu0 %5672
        %v5674 = vsel %vm1317, %v5665, %v5667
        %v5675 = vsel %vm1317, %v5667, %v5669
        %v5676 = vsel %vm1317, %v5669, %v5671
        %v5677 = vsel %vm1317, %v5671, %v5673
        %v5682 = vadd.f32 %v5660, %v5674
        %v5683 = vadd.f32 %v5661, %v5675
        %v5684 = vadd.f32 %v5662, %v5676
        %v5685 = vadd.f32 %v5663, %v5677
        %v5686 = vmul.f32 %v5682, 0.125
        %v5687 = vmul.f32 %v5683, 0.125
        %v5688 = vmul.f32 %v5684, 0.125
        %v5689 = vmul.f32 %v5685, 0.125
        %v5690 = vadd.f32 %v5686, %v5318
        %v5691 = vadd.f32 %v5687, %v5320
        %v5692 = vadd.f32 %v5688, %v5400
        %v5693 = vadd.f32 %v5689, %v5402
        %v5694 = vmul.f32 %v5690, 0.70710677
        %v5695 = vmul.f32 %v5691, 0.70710677
        %v5696 = vmul.f32 %v5692, 0.70710677
        %v5697 = vmul.f32 %v5693, 0.70710677
        %5698 = vst [vmem:[%s405] sm:$0xff] %v5694
        %5699 = vst [vmem:[%s405 + $0x8] sm:$0xff] %v5695
        %5700 = vst [vmem:[%s405 + $0x10] sm:$0xff] %v5696
        %5701 = vst [vmem:[%s405 + $0x18] sm:$0xff] %v5697
        %s5702 = sand.u32 %s271, 1
        %s5703 = scalar_lea.sflag [#allocation6], %s5702
        %s5704 = sand.u32 %s271, 1
        %s5705 = smul.addr %s5704, 32
        %s5706 = scalar_lea.vmem [#allocation9], %s5705
        // Predicated region
        $region73: #{tpu_custom_call.1} parent=63 // pred_check
          %p5707 = pneg %p281
        $region74: #{tpu_custom_call.1} parent=63 // pred_check_branch
          %5709 = sbr.rel (%p5707) target = $region76
        $region75: #{tpu_custom_call.1} parent=63 // pred_region
          %s5711 = ssub.s32 512, 512
          %5712 = vsyncadd %s5703, %s5711
          %s5713 = smul.addr %s27, 4
          %s5714 = smul.addr %s5713, 128
          %s5715 = scalar_lea.hbm %s11, %s5714
          %s5717 = sshll.u32 %s5706, 4
          %s5718 = int_to_ptr.vmem [resolvable:$true] %s5717
          %5720 = dma.vmem_to_hbm [thread:$0]  %s5718, 512, %s5715, %s5703
        $region76: #{tpu_custom_call.1} parent=63 // pred_fallthru
          _
      $region64: #{tpu_custom_call.1} parent=5 // pred_fallthru
        _
      %p5721 = scmp.le.s32.totalorder 2, %s22
      // Predicated region
      $region77: #{tpu_custom_call.1} parent=5 // pred_check
        %p5722 = pneg %p5721
      $region78: #{tpu_custom_call.1} parent=5 // pred_check_branch
        %5724 = sbr.rel (%p5722) target = $region80
      $region79: #{tpu_custom_call.1} parent=5 // pred_region
        %s5725 = ssub.s32 %s22, 2
        // Predicated region
        $region81: #{tpu_custom_call.1} parent=79 // pred_check
          %p5726 = pneg %p287
        $region82: #{tpu_custom_call.1} parent=79 // pred_check_branch
          %5728 = sbr.rel (%p5726) target = $region84
        $region83: #{tpu_custom_call.1} parent=79 // pred_region
          %s5729 = sand.u32 %s272, 1
          %s5730 = scalar_lea.sflag [#allocation6], %s5729
          %s5731 = sand.u32 %s272, 1
          %s5732 = smul.addr %s5731, 32
          %s5733 = scalar_lea.vmem [#allocation9], %s5732
          %5734 = dma.done %s5730, 512
        $region84: #{tpu_custom_call.1} parent=79 // pred_fallthru
          _
      $region80: #{tpu_custom_call.1} parent=5 // pred_fallthru
        _
    $region6: #{tpu_custom_call.1} parent=1 // loop_footer
      %s26 = sadd.s32 1, %s22
    $region7: #{tpu_custom_call.1} parent=1 // loop_footer_branch
      %21 = sbr.rel target = $region3
    $region8: #{tpu_custom_call.1} parent=1 // loop_exit
      _
    %5735 = vsyncpa [#allocation5], 1
    %s5736 = scalar_lea.sflag [#allocation5], 1
    %5737 = vsyncpa %s5736, 1
    %5738 = vsyncpa [#allocation8], 1
    %5739 = vsyncpa [#allocation6], 1
    %s5740 = scalar_lea.sflag [#allocation6], 1
    %5741 = vsyncpa %s5740, 1

</llo_original>
